<compile_context>
chip_gen: v7x
topology: tpu7x:2x2x1
jax: 0.10.0
libtpu: 0.0.40
codegen_flags: <defaults>
</compile_context>

<pallas_src>
import math
from functools import partial

import jax
import jax.numpy as jnp
from jax import lax
from jax.experimental import pallas as pl
from jax.experimental.pallas import tpu as pltpu

K = 7          # depthwise kernel size
PAD = 3        # depthwise padding
LN_EPS = 1e-6
GRN_EPS = 1e-6
INV_SQRT2 = 1.0 / math.sqrt(2.0)


def convnext_block_kernel(x_ref, dw_ref, dwb_ref, w1_ref, b1_ref,
                          gg_ref, gb_ref, w2_ref, b2_ref,
                          out_ref, xw_ref, h_ref, *, band_rows, approx_gelu):
    _, H, W, C = x_ref.shape
    C4 = w1_ref.shape[1]
    dt = xw_ref.dtype

    # ---- stage x once into an (H+6, W+6, C) zero-halo buffer (input dtype) ---
    # Only the four halo strips are zeroed; the interior is overwritten.
    xw_ref[:PAD, :, :] = jnp.zeros((PAD, W + 2 * PAD, C), dt)
    xw_ref[PAD + H:, :, :] = jnp.zeros((PAD, W + 2 * PAD, C), dt)
    xw_ref[PAD:PAD + H, :PAD, :] = jnp.zeros((H, PAD, C), dt)
    xw_ref[PAD:PAD + H, PAD + W:, :] = jnp.zeros((H, PAD, C), dt)
    xw_ref[PAD:PAD + H, PAD:PAD + W, :] = x_ref[0]

    dw = dw_ref[...].astype(jnp.float32)          # (7, 7, C)
    dwb = dwb_ref[...].astype(jnp.float32)        # (1, C)
    b1 = b1_ref[...]                              # (1, 4C) f32 (LN bias folded in)
    inv_c = 1.0 / C

    # Static band decomposition of the H axis (Python-unrolled, static slices).
    bands = []
    r0 = 0
    while r0 < H:
        bh = min(band_rows, H - r0)
        bands.append((r0, bh))
        r0 += bh

    ss = jnp.zeros((1, C4), jnp.float32)          # GRN sum(h^2) per channel

    # ---- pass 1 per band: dwconv -> LayerNorm -> Linear1 -> GELU -------------
    for (r0, bh) in bands:
        # One band load; 7 band-sized W shifts as value slices; register acc.
        xband = xw_ref[r0:r0 + bh + 2 * PAD, :, :].astype(jnp.float32)
        acc = jnp.zeros((bh, W, C), jnp.float32)
        for j in range(K):
            xs = xband[:, j:j + W, :]             # W shift, band-sized
            for i in range(K):
                acc = acc + xs[i:i + bh] * dw[i, j]
        y = acc + dwb

        # LayerNorm over channels (two-pass variance; affine folded into w1/b1).
        mean = jnp.sum(y, axis=-1, keepdims=True) * inv_c
        yc = y - mean
        var = jnp.sum(yc * yc, axis=-1, keepdims=True) * inv_c
        y = yc * lax.rsqrt(var + LN_EPS)

        # Linear1 on the MXU (bf16 operands, f32 accumulation).
        h = jnp.dot(y.reshape(bh * W, C).astype(jnp.bfloat16), w1_ref[...],
                    preferred_element_type=jnp.float32) + b1

        if approx_gelu:
            # tanh-approx GELU runs on the EUP (separate VLIW slot); small
            # numerics delta vs. torch.nn.GELU()'s exact erf form.
            h = jax.nn.gelu(h, approximate=True)
        else:
            h = 0.5 * h * (1.0 + lax.erf(h * INV_SQRT2))

        ss = ss + jnp.sum(h * h, axis=0, keepdims=True)
        h_ref[r0 * W:(r0 + bh) * W, :] = h.astype(h_ref.dtype)

    # ---- GRN global per-channel scale (this grid step owns a full (H, W)) ----
    gx = jnp.sqrt(ss)                                        # (1, 4C)
    nx = gx / (jnp.mean(gx) + GRN_EPS)
    scale = gg_ref[...].astype(jnp.float32) * nx + 1.0       # gg*nx + 1
    shift = gb_ref[...].astype(jnp.float32)
    b2 = b2_ref[...].astype(jnp.float32)

    # ---- pass 2 per band: GRN apply -> Linear2 -> residual -------------------
    for (r0, bh) in bands:
        h = h_ref[r0 * W:(r0 + bh) * W, :].astype(jnp.float32)
        h = h * scale + shift                                # single mul+add
        o = jnp.dot(h.astype(jnp.bfloat16), w2_ref[...],
                    preferred_element_type=jnp.float32) + b2
        res = o.reshape(bh, W, C) + x_ref[0, r0:r0 + bh, :, :].astype(jnp.float32)
        out_ref[0, r0:r0 + bh, :, :] = res.astype(out_ref.dtype)

    # TODO(synk): StochasticDepth(mode='row') is identity at inference / p=0;
    # the training-time random row drop is not modeled here.


def _pick_band_rows(H, W, C):
    # Keep the per-band f32 accumulator around <= 96 KiB so the band math stays
    # mostly in vregs (64 x 4 KiB register file); cap at 8 rows.
    bh = max(1, (96 * 1024) // max(1, W * C * 4))
    return int(min(bh, H, 8))


def _physical_vmem_bytes():
    get_info = getattr(pltpu, "get_tpu_info", None)
    if get_info is None:
        return 64 << 20
    try:
        cap = getattr(get_info(), "vmem_capacity_bytes", None)
    except (AttributeError, NotImplementedError, RuntimeError, ValueError):
        cap = None
    return int(cap) if cap else 64 << 20


def _vmem_limit_bytes(x, C, band_rows):
    _, H, W, _ = x.shape
    c4 = 4 * C
    it = jnp.dtype(x.dtype).itemsize
    img = H * W * C * it
    xw_scratch = (H + 2 * PAD) * (W + 2 * PAD) * C * it      # staging (input dtype)
    h_scratch = H * W * c4 * 2                               # bf16 post-GELU h
    weights = 2 * C * c4 * 2 + (K * K * C + 3 * c4 + 2 * C) * 4
    band_tmp = band_rows * ((W + 2 * PAD) * C * 14 + W * c4 * 6) * 4
    est = 2 * 2 * img + xw_scratch + h_scratch + 2 * weights + band_tmp + (4 << 20)
    phys = _physical_vmem_bytes()
    cap = phys - max(8 << 20, phys // 8)    # headroom for compiler internal scratch
    return int(min(max(32 << 20, est), max(32 << 20, cap)))


def prepare_params(params):
    """Fold the LayerNorm affine into Linear1 and pre-cast the matmul weights to
    bf16.  In a real network call this ONCE at parameter-creation time (not per
    forward call)."""
    dw, dwb, lng, lnb, w1, b1, gg, gb, w2, b2 = params
    C = dw.shape[-1]
    w1f = lng.reshape(C, 1).astype(jnp.float32) * w1.astype(jnp.float32)
    b1f = b1.astype(jnp.float32) + lnb.astype(jnp.float32) @ w1.astype(jnp.float32)
    return (dw, dwb,
            w1f.astype(jnp.bfloat16), b1f.astype(jnp.float32),
            gg, gb,
            w2.astype(jnp.bfloat16), b2)


def convnext_block_nhwc(x, kparams, *, approx_gelu=False):
    """x: (B, H, W, C) channels-last; kparams from prepare_params."""
    B, H, W, C = x.shape
    band_rows = _pick_band_rows(H, W, C)

    def _param_spec(p):
        nd = p.ndim
        return pl.BlockSpec(p.shape, lambda b, _n=nd: (0,) * _n)

    in_specs = [pl.BlockSpec((1, H, W, C), lambda b: (b, 0, 0, 0))]
    in_specs += [_param_spec(p) for p in kparams]

    kernel = partial(convnext_block_kernel, band_rows=band_rows,
                     approx_gelu=approx_gelu)

    return pl.pallas_call(
        kernel,
        out_shape=jax.ShapeDtypeStruct((B, H, W, C), x.dtype),
        grid=(B,),
        in_specs=in_specs,
        out_specs=pl.BlockSpec((1, H, W, C), lambda b: (b, 0, 0, 0)),
        scratch_shapes=[
            pltpu.VMEM((H + 2 * PAD, W + 2 * PAD, C), x.dtype),  # zero-halo staging
            pltpu.VMEM((H * W, 4 * C), jnp.bfloat16),            # post-GELU h
        ],
        compiler_params=pltpu.CompilerParams(
            # NOTE: with grid=(B,) both TensorCores (v7x) are busy only for
            # B >= 2.  TODO(synk): for B == 1 on v7x, add an H-band grid axis
            # with a two-pass GRN reduction to use both cores.
            dimension_semantics=("parallel",),
            vmem_limit_bytes=_vmem_limit_bytes(x, C, band_rows),
        ),
    )(x, *kparams)


def convnext_block(x_nchw, params, *, approx_gelu=False):
    """NCHW wrapper matching the PyTorch module interface.

    In a full NHWC network call convnext_block_nhwc directly (each transpose
    below is a full HBM pass) and call prepare_params once at init time."""
    kparams = prepare_params(params)
    out_nhwc = convnext_block_nhwc(jnp.transpose(x_nchw, (0, 2, 3, 1)), kparams,
                                   approx_gelu=approx_gelu)
    return jnp.transpose(out_nhwc, (0, 3, 1, 2))


def ref_forward(x_nchw, params):
    """Pure-JAX f32 reference of the PyTorch ConvNeXtBlock forward (eval mode)."""
    dw, dwb, lng, lnb, w1, b1, gg, gb, w2, b2 = params
    B, C, H, W = x_nchw.shape
    dw_oihw = jnp.transpose(dw, (2, 0, 1))[:, None, :, :]                 # (C,1,7,7)
    y = lax.conv_general_dilated(x_nchw, dw_oihw, (1, 1),
                                 ((PAD, PAD), (PAD, PAD)),
                                 feature_group_count=C,
                                 dimension_numbers=("NCHW", "OIHW", "NCHW"))
    y = y + dwb.reshape(1, C, 1, 1)
    y = jnp.transpose(y, (0, 2, 3, 1))                                    # NHWC
    mean = jnp.mean(y, axis=-1, keepdims=True)
    var = jnp.mean((y - mean) ** 2, axis=-1, keepdims=True)
    y = (y - mean) / jnp.sqrt(var + LN_EPS) * lng[0] + lnb[0]
    h = y @ w1 + b1[0]
    h = 0.5 * h * (1.0 + lax.erf(h / jnp.sqrt(2.0)))
    gx = jnp.sqrt(jnp.sum(h * h, axis=(1, 2), keepdims=True))
    nx = gx / (jnp.mean(gx, axis=-1, keepdims=True) + GRN_EPS)
    h = gg[0] * (h * nx) + gb[0] + h
    o = h @ w2 + b2[0]
    o = jnp.transpose(o, (0, 3, 1, 2))
    return o + x_nchw


if __name__ == "__main__":
    key = jax.random.PRNGKey(0)
    B, C, H, W = 2, 4, 16, 16
    ks = jax.random.split(key, 12)

    x = jax.random.normal(ks[0], (B, C, H, W), jnp.float32)

    # Parameters (deterministic, shapes from the module __init__).  LayerNorm /
    # GRN affines are randomized (instead of their init values) so the folded
    # LN-affine and GRN math paths are actually exercised by the check.
    dw = jax.random.normal(ks[1], (K, K, C), jnp.float32) * 0.1    # Conv2d weight (C,1,7,7) stored as (7,7,C)
    dwb = jax.random.normal(ks[2], (1, C), jnp.float32) * 0.1      # Conv2d bias
    lng = 1.0 + jax.random.normal(ks[9], (1, C), jnp.float32) * 0.1   # LayerNorm weight
    lnb = jax.random.normal(ks[10], (1, C), jnp.float32) * 0.1        # LayerNorm bias
    w1 = jax.random.normal(ks[3], (C, 4 * C), jnp.float32) * 0.1   # Linear1 (C -> 4C)
    b1 = jax.random.normal(ks[4], (1, 4 * C), jnp.float32) * 0.1
    gg = jax.random.normal(ks[5], (1, 4 * C), jnp.float32) * 0.1   # GRN gamma (zero-init in module)
    gb = jax.random.normal(ks[6], (1, 4 * C), jnp.float32) * 0.1   # GRN beta
    w2 = jax.random.normal(ks[7], (4 * C, C), jnp.float32) * 0.1   # Linear2 (4C -> C)
    b2 = jax.random.normal(ks[8], (1, C), jnp.float32) * 0.1

    params = (dw, dwb, lng, lnb, w1, b1, gg, gb, w2, b2)

    out = jax.block_until_ready(convnext_block(x, params))
    ref = ref_forward(x, params)

    assert out.shape == x.shape
    # Tolerance accounts for bf16 MXU operands / bf16 h scratch vs. the all-f32 reference.
    assert jnp.allclose(out, ref, atol=3e-2, rtol=3e-2), "kernel/reference mismatch"
    print("KERNEL_OK")
</pallas_src>

<mosaic_0001>
module attributes {stable_mosaic.version = 11 : i64} {
  func.func @convnext_block_kernel(%arg0: i32, %arg1: memref<1x16x16x4xf32, #tpu.memory_space<vmem>>, %arg2: memref<7x7x4xf32, #tpu.memory_space<vmem>>, %arg3: memref<1x4xf32, #tpu.memory_space<vmem>>, %arg4: memref<4x16xbf16, #tpu.memory_space<vmem>>, %arg5: memref<1x16xf32, #tpu.memory_space<vmem>>, %arg6: memref<1x16xf32, #tpu.memory_space<vmem>>, %arg7: memref<1x16xf32, #tpu.memory_space<vmem>>, %arg8: memref<16x4xbf16, #tpu.memory_space<vmem>>, %arg9: memref<1x4xf32, #tpu.memory_space<vmem>>, %arg10: memref<1x16x16x4xf32, #tpu.memory_space<vmem>>, %arg11: memref<22x22x4xf32, #tpu.memory_space<vmem>>, %arg12: memref<256x16xbf16, #tpu.memory_space<vmem>>) attributes {dimension_semantics = [#tpu.dimension_semantics<parallel>], iteration_bounds = array<i64: 2>, scalar_prefetch = 0 : i64, scratch_operands = 2 : i64, tpu.core_type = #tpu.core_type<tc>, window_params = [{transform_indices = @transform_0, window_bounds = array<i64: 1, 16, 16, 4>}, {pipeline_mode = #tpu.pipeline_mode<synchronous>, transform_indices = @transform_1, window_bounds = array<i64: 7, 7, 4>}, {pipeline_mode = #tpu.pipeline_mode<synchronous>, transform_indices = @transform_2, window_bounds = array<i64: 1, 4>}, {pipeline_mode = #tpu.pipeline_mode<synchronous>, transform_indices = @transform_3, window_bounds = array<i64: 4, 16>}, {pipeline_mode = #tpu.pipeline_mode<synchronous>, transform_indices = @transform_4, window_bounds = array<i64: 1, 16>}, {pipeline_mode = #tpu.pipeline_mode<synchronous>, transform_indices = @transform_5, window_bounds = array<i64: 1, 16>}, {pipeline_mode = #tpu.pipeline_mode<synchronous>, transform_indices = @transform_6, window_bounds = array<i64: 1, 16>}, {pipeline_mode = #tpu.pipeline_mode<synchronous>, transform_indices = @transform_7, window_bounds = array<i64: 16, 4>}, {pipeline_mode = #tpu.pipeline_mode<synchronous>, transform_indices = @transform_8, window_bounds = array<i64: 1, 4>}, {transform_indices = @transform_9, window_bounds = array<i64: 1, 16, 16, 4>}]} {
    %cst = arith.constant 0.000000e+00 : f32
    %0 = vector.broadcast %cst : f32 to vector<3x22x4xf32>
    %c0 = arith.constant 0 : index
    %c0_0 = arith.constant 0 : index
    %c0_1 = arith.constant 0 : index
    %1 = vector.load %arg11[%c0, %c0_0, %c0_1] : memref<22x22x4xf32, #tpu.memory_space<vmem>>, vector<3x22x4xf32>
    tpu.vector_store %arg11[%c0, %c0_0, %c0_1], %0 {strides = array<i32>} : memref<22x22x4xf32, #tpu.memory_space<vmem>>, vector<3x22x4xf32>,
    %cst_2 = arith.constant 0.000000e+00 : f32
    %2 = vector.broadcast %cst_2 : f32 to vector<3x22x4xf32>
    %c19 = arith.constant 19 : index
    %c0_3 = arith.constant 0 : index
    %c0_4 = arith.constant 0 : index
    %3 = vector.load %arg11[%c19, %c0_3, %c0_4] : memref<22x22x4xf32, #tpu.memory_space<vmem>>, vector<3x22x4xf32>
    tpu.vector_store %arg11[%c19, %c0_3, %c0_4], %2 {strides = array<i32>} : memref<22x22x4xf32, #tpu.memory_space<vmem>>, vector<3x22x4xf32>,
    %cst_5 = arith.constant 0.000000e+00 : f32
    %4 = vector.broadcast %cst_5 : f32 to vector<16x3x4xf32>
    %c3 = arith.constant 3 : index
    %c0_6 = arith.constant 0 : index
    %c0_7 = arith.constant 0 : index
    %5 = vector.load %arg11[%c3, %c0_6, %c0_7] : memref<22x22x4xf32, #tpu.memory_space<vmem>>, vector<16x3x4xf32>
    tpu.vector_store %arg11[%c3, %c0_6, %c0_7], %4 {strides = array<i32>} : memref<22x22x4xf32, #tpu.memory_space<vmem>>, vector<16x3x4xf32>,
    %cst_8 = arith.constant 0.000000e+00 : f32
    %6 = vector.broadcast %cst_8 : f32 to vector<16x3x4xf32>
    %c3_9 = arith.constant 3 : index
    %c19_10 = arith.constant 19 : index
    %c0_11 = arith.constant 0 : index
    %7 = vector.load %arg11[%c3_9, %c19_10, %c0_11] : memref<22x22x4xf32, #tpu.memory_space<vmem>>, vector<16x3x4xf32>
    tpu.vector_store %arg11[%c3_9, %c19_10, %c0_11], %6 {strides = array<i32>} : memref<22x22x4xf32, #tpu.memory_space<vmem>>, vector<16x3x4xf32>,
    %c0_12 = arith.constant 0 : index
    %c0_13 = arith.constant 0 : index
    %c0_14 = arith.constant 0 : index
    %c0_15 = arith.constant 0 : index
    %8 = vector.load %arg1[%c0_12, %c0_13, %c0_14, %c0_15] : memref<1x16x16x4xf32, #tpu.memory_space<vmem>>, vector<1x16x16x4xf32>
    %9 = vector.shape_cast %8 : vector<1x16x16x4xf32> to vector<16x16x4xf32>
    %c3_16 = arith.constant 3 : index
    %c3_17 = arith.constant 3 : index
    %c0_18 = arith.constant 0 : index
    %10 = vector.load %arg11[%c3_16, %c3_17, %c0_18] : memref<22x22x4xf32, #tpu.memory_space<vmem>>, vector<16x16x4xf32>
    tpu.vector_store %arg11[%c3_16, %c3_17, %c0_18], %9 {strides = array<i32>} : memref<22x22x4xf32, #tpu.memory_space<vmem>>, vector<16x16x4xf32>,
    %c0_19 = arith.constant 0 : index
    %c0_20 = arith.constant 0 : index
    %c0_21 = arith.constant 0 : index
    %11 = vector.load %arg2[%c0_19, %c0_20, %c0_21] : memref<7x7x4xf32, #tpu.memory_space<vmem>>, vector<7x7x4xf32>
    %c0_22 = arith.constant 0 : index
    %c0_23 = arith.constant 0 : index
    %12 = vector.load %arg3[%c0_22, %c0_23] : memref<1x4xf32, #tpu.memory_space<vmem>>, vector<1x4xf32>
    %c0_24 = arith.constant 0 : index
    %c0_25 = arith.constant 0 : index
    %13 = vector.load %arg5[%c0_24, %c0_25] : memref<1x16xf32, #tpu.memory_space<vmem>>, vector<1x16xf32>
    %cst_26 = arith.constant 0.000000e+00 : f32
    %14 = vector.broadcast %cst_26 : f32 to vector<1x16xf32>
    %c0_27 = arith.constant 0 : index
    %c0_28 = arith.constant 0 : index
    %c0_29 = arith.constant 0 : index
    %15 = vector.load %arg11[%c0_27, %c0_28, %c0_29] : memref<22x22x4xf32, #tpu.memory_space<vmem>>, vector<14x22x4xf32>
    %cst_30 = arith.constant 0.000000e+00 : f32
    %16 = vector.broadcast %cst_30 : f32 to vector<8x16x4xf32>
    %17 = vector.extract_strided_slice %15 {offsets = [0, 0, 0], sizes = [14, 16, 4], strides = [1, 1, 1]} : vector<14x22x4xf32> to vector<14x16x4xf32>
    %18 = vector.extract_strided_slice %17 {offsets = [0, 0, 0], sizes = [8, 16, 4], strides = [1, 1, 1]} : vector<14x16x4xf32> to vector<8x16x4xf32>
    %19 = vector.extract_strided_slice %11 {offsets = [0, 0, 0], sizes = [1, 1, 4], strides = [1, 1, 1]} : vector<7x7x4xf32> to vector<1x1x4xf32>
    %20 = vector.shape_cast %19 : vector<1x1x4xf32> to vector<4xf32>
    %21 = vector.shape_cast %20 : vector<4xf32> to vector<1x1x4xf32>
    %22 = vector.broadcast %21 : vector<1x1x4xf32> to vector<8x16x4xf32>
    %23 = arith.mulf %18, %22 : vector<8x16x4xf32>
    %24 = arith.addf %16, %23 : vector<8x16x4xf32>
    %25 = vector.extract_strided_slice %17 {offsets = [1, 0, 0], sizes = [8, 16, 4], strides = [1, 1, 1]} : vector<14x16x4xf32> to vector<8x16x4xf32>
    %26 = vector.extract_strided_slice %11 {offsets = [1, 0, 0], sizes = [1, 1, 4], strides = [1, 1, 1]} : vector<7x7x4xf32> to vector<1x1x4xf32>
    %27 = vector.shape_cast %26 : vector<1x1x4xf32> to vector<4xf32>
    %28 = vector.shape_cast %27 : vector<4xf32> to vector<1x1x4xf32>
    %29 = vector.broadcast %28 : vector<1x1x4xf32> to vector<8x16x4xf32>
    %30 = arith.mulf %25, %29 : vector<8x16x4xf32>
    %31 = arith.addf %24, %30 : vector<8x16x4xf32>
    %32 = vector.extract_strided_slice %17 {offsets = [2, 0, 0], sizes = [8, 16, 4], strides = [1, 1, 1]} : vector<14x16x4xf32> to vector<8x16x4xf32>
    %33 = vector.extract_strided_slice %11 {offsets = [2, 0, 0], sizes = [1, 1, 4], strides = [1, 1, 1]} : vector<7x7x4xf32> to vector<1x1x4xf32>
    %34 = vector.shape_cast %33 : vector<1x1x4xf32> to vector<4xf32>
    %35 = vector.shape_cast %34 : vector<4xf32> to vector<1x1x4xf32>
    %36 = vector.broadcast %35 : vector<1x1x4xf32> to vector<8x16x4xf32>
    %37 = arith.mulf %32, %36 : vector<8x16x4xf32>
    %38 = arith.addf %31, %37 : vector<8x16x4xf32>
    %39 = vector.extract_strided_slice %17 {offsets = [3, 0, 0], sizes = [8, 16, 4], strides = [1, 1, 1]} : vector<14x16x4xf32> to vector<8x16x4xf32>
    %40 = vector.extract_strided_slice %11 {offsets = [3, 0, 0], sizes = [1, 1, 4], strides = [1, 1, 1]} : vector<7x7x4xf32> to vector<1x1x4xf32>
    %41 = vector.shape_cast %40 : vector<1x1x4xf32> to vector<4xf32>
    %42 = vector.shape_cast %41 : vector<4xf32> to vector<1x1x4xf32>
    %43 = vector.broadcast %42 : vector<1x1x4xf32> to vector<8x16x4xf32>
    %44 = arith.mulf %39, %43 : vector<8x16x4xf32>
    %45 = arith.addf %38, %44 : vector<8x16x4xf32>
    %46 = vector.extract_strided_slice %17 {offsets = [4, 0, 0], sizes = [8, 16, 4], strides = [1, 1, 1]} : vector<14x16x4xf32> to vector<8x16x4xf32>
    %47 = vector.extract_strided_slice %11 {offsets = [4, 0, 0], sizes = [1, 1, 4], strides = [1, 1, 1]} : vector<7x7x4xf32> to vector<1x1x4xf32>
    %48 = vector.shape_cast %47 : vector<1x1x4xf32> to vector<4xf32>
    %49 = vector.shape_cast %48 : vector<4xf32> to vector<1x1x4xf32>
    %50 = vector.broadcast %49 : vector<1x1x4xf32> to vector<8x16x4xf32>
    %51 = arith.mulf %46, %50 : vector<8x16x4xf32>
    %52 = arith.addf %45, %51 : vector<8x16x4xf32>
    %53 = vector.extract_strided_slice %17 {offsets = [5, 0, 0], sizes = [8, 16, 4], strides = [1, 1, 1]} : vector<14x16x4xf32> to vector<8x16x4xf32>
    %54 = vector.extract_strided_slice %11 {offsets = [5, 0, 0], sizes = [1, 1, 4], strides = [1, 1, 1]} : vector<7x7x4xf32> to vector<1x1x4xf32>
    %55 = vector.shape_cast %54 : vector<1x1x4xf32> to vector<4xf32>
    %56 = vector.shape_cast %55 : vector<4xf32> to vector<1x1x4xf32>
    %57 = vector.broadcast %56 : vector<1x1x4xf32> to vector<8x16x4xf32>
    %58 = arith.mulf %53, %57 : vector<8x16x4xf32>
    %59 = arith.addf %52, %58 : vector<8x16x4xf32>
    %60 = vector.extract_strided_slice %17 {offsets = [6, 0, 0], sizes = [8, 16, 4], strides = [1, 1, 1]} : vector<14x16x4xf32> to vector<8x16x4xf32>
    %61 = vector.extract_strided_slice %11 {offsets = [6, 0, 0], sizes = [1, 1, 4], strides = [1, 1, 1]} : vector<7x7x4xf32> to vector<1x1x4xf32>
    %62 = vector.shape_cast %61 : vector<1x1x4xf32> to vector<4xf32>
    %63 = vector.shape_cast %62 : vector<4xf32> to vector<1x1x4xf32>
    %64 = vector.broadcast %63 : vector<1x1x4xf32> to vector<8x16x4xf32>
    %65 = arith.mulf %60, %64 : vector<8x16x4xf32>
    %66 = arith.addf %59, %65 : vector<8x16x4xf32>
    %67 = vector.extract_strided_slice %15 {offsets = [0, 1, 0], sizes = [14, 16, 4], strides = [1, 1, 1]} : vector<14x22x4xf32> to vector<14x16x4xf32>
    %68 = vector.extract_strided_slice %67 {offsets = [0, 0, 0], sizes = [8, 16, 4], strides = [1, 1, 1]} : vector<14x16x4xf32> to vector<8x16x4xf32>
    %69 = vector.extract_strided_slice %11 {offsets = [0, 1, 0], sizes = [1, 1, 4], strides = [1, 1, 1]} : vector<7x7x4xf32> to vector<1x1x4xf32>
    %70 = vector.shape_cast %69 : vector<1x1x4xf32> to vector<4xf32>
    %71 = vector.shape_cast %70 : vector<4xf32> to vector<1x1x4xf32>
    %72 = vector.broadcast %71 : vector<1x1x4xf32> to vector<8x16x4xf32>
    %73 = arith.mulf %68, %72 : vector<8x16x4xf32>
    %74 = arith.addf %66, %73 : vector<8x16x4xf32>
    %75 = vector.extract_strided_slice %67 {offsets = [1, 0, 0], sizes = [8, 16, 4], strides = [1, 1, 1]} : vector<14x16x4xf32> to vector<8x16x4xf32>
    %76 = vector.extract_strided_slice %11 {offsets = [1, 1, 0], sizes = [1, 1, 4], strides = [1, 1, 1]} : vector<7x7x4xf32> to vector<1x1x4xf32>
    %77 = vector.shape_cast %76 : vector<1x1x4xf32> to vector<4xf32>
    %78 = vector.shape_cast %77 : vector<4xf32> to vector<1x1x4xf32>
    %79 = vector.broadcast %78 : vector<1x1x4xf32> to vector<8x16x4xf32>
    %80 = arith.mulf %75, %79 : vector<8x16x4xf32>
    %81 = arith.addf %74, %80 : vector<8x16x4xf32>
    %82 = vector.extract_strided_slice %67 {offsets = [2, 0, 0], sizes = [8, 16, 4], strides = [1, 1, 1]} : vector<14x16x4xf32> to vector<8x16x4xf32>
    %83 = vector.extract_strided_slice %11 {offsets = [2, 1, 0], sizes = [1, 1, 4], strides = [1, 1, 1]} : vector<7x7x4xf32> to vector<1x1x4xf32>
    %84 = vector.shape_cast %83 : vector<1x1x4xf32> to vector<4xf32>
    %85 = vector.shape_cast %84 : vector<4xf32> to vector<1x1x4xf32>
    %86 = vector.broadcast %85 : vector<1x1x4xf32> to vector<8x16x4xf32>
    %87 = arith.mulf %82, %86 : vector<8x16x4xf32>
    %88 = arith.addf %81, %87 : vector<8x16x4xf32>
    %89 = vector.extract_strided_slice %67 {offsets = [3, 0, 0], sizes = [8, 16, 4], strides = [1, 1, 1]} : vector<14x16x4xf32> to vector<8x16x4xf32>
    %90 = vector.extract_strided_slice %11 {offsets = [3, 1, 0], sizes = [1, 1, 4], strides = [1, 1, 1]} : vector<7x7x4xf32> to vector<1x1x4xf32>
    %91 = vector.shape_cast %90 : vector<1x1x4xf32> to vector<4xf32>
    %92 = vector.shape_cast %91 : vector<4xf32> to vector<1x1x4xf32>
    %93 = vector.broadcast %92 : vector<1x1x4xf32> to vector<8x16x4xf32>
    %94 = arith.mulf %89, %93 : vector<8x16x4xf32>
    %95 = arith.addf %88, %94 : vector<8x16x4xf32>
    %96 = vector.extract_strided_slice %67 {offsets = [4, 0, 0], sizes = [8, 16, 4], strides = [1, 1, 1]} : vector<14x16x4xf32> to vector<8x16x4xf32>
    %97 = vector.extract_strided_slice %11 {offsets = [4, 1, 0], sizes = [1, 1, 4], strides = [1, 1, 1]} : vector<7x7x4xf32> to vector<1x1x4xf32>
    %98 = vector.shape_cast %97 : vector<1x1x4xf32> to vector<4xf32>
    %99 = vector.shape_cast %98 : vector<4xf32> to vector<1x1x4xf32>
    %100 = vector.broadcast %99 : vector<1x1x4xf32> to vector<8x16x4xf32>
    %101 = arith.mulf %96, %100 : vector<8x16x4xf32>
    %102 = arith.addf %95, %101 : vector<8x16x4xf32>
    %103 = vector.extract_strided_slice %67 {offsets = [5, 0, 0], sizes = [8, 16, 4], strides = [1, 1, 1]} : vector<14x16x4xf32> to vector<8x16x4xf32>
    %104 = vector.extract_strided_slice %11 {offsets = [5, 1, 0], sizes = [1, 1, 4], strides = [1, 1, 1]} : vector<7x7x4xf32> to vector<1x1x4xf32>
    %105 = vector.shape_cast %104 : vector<1x1x4xf32> to vector<4xf32>
    %106 = vector.shape_cast %105 : vector<4xf32> to vector<1x1x4xf32>
    %107 = vector.broadcast %106 : vector<1x1x4xf32> to vector<8x16x4xf32>
    %108 = arith.mulf %103, %107 : vector<8x16x4xf32>
    %109 = arith.addf %102, %108 : vector<8x16x4xf32>
    %110 = vector.extract_strided_slice %67 {offsets = [6, 0, 0], sizes = [8, 16, 4], strides = [1, 1, 1]} : vector<14x16x4xf32> to vector<8x16x4xf32>
    %111 = vector.extract_strided_slice %11 {offsets = [6, 1, 0], sizes = [1, 1, 4], strides = [1, 1, 1]} : vector<7x7x4xf32> to vector<1x1x4xf32>
    %112 = vector.shape_cast %111 : vector<1x1x4xf32> to vector<4xf32>
    %113 = vector.shape_cast %112 : vector<4xf32> to vector<1x1x4xf32>
    %114 = vector.broadcast %113 : vector<1x1x4xf32> to vector<8x16x4xf32>
    %115 = arith.mulf %110, %114 : vector<8x16x4xf32>
    %116 = arith.addf %109, %115 : vector<8x16x4xf32>
    %117 = vector.extract_strided_slice %15 {offsets = [0, 2, 0], sizes = [14, 16, 4], strides = [1, 1, 1]} : vector<14x22x4xf32> to vector<14x16x4xf32>
    %118 = vector.extract_strided_slice %117 {offsets = [0, 0, 0], sizes = [8, 16, 4], strides = [1, 1, 1]} : vector<14x16x4xf32> to vector<8x16x4xf32>
    %119 = vector.extract_strided_slice %11 {offsets = [0, 2, 0], sizes = [1, 1, 4], strides = [1, 1, 1]} : vector<7x7x4xf32> to vector<1x1x4xf32>
    %120 = vector.shape_cast %119 : vector<1x1x4xf32> to vector<4xf32>
    %121 = vector.shape_cast %120 : vector<4xf32> to vector<1x1x4xf32>
    %122 = vector.broadcast %121 : vector<1x1x4xf32> to vector<8x16x4xf32>
    %123 = arith.mulf %118, %122 : vector<8x16x4xf32>
    %124 = arith.addf %116, %123 : vector<8x16x4xf32>
    %125 = vector.extract_strided_slice %117 {offsets = [1, 0, 0], sizes = [8, 16, 4], strides = [1, 1, 1]} : vector<14x16x4xf32> to vector<8x16x4xf32>
    %126 = vector.extract_strided_slice %11 {offsets = [1, 2, 0], sizes = [1, 1, 4], strides = [1, 1, 1]} : vector<7x7x4xf32> to vector<1x1x4xf32>
    %127 = vector.shape_cast %126 : vector<1x1x4xf32> to vector<4xf32>
    %128 = vector.shape_cast %127 : vector<4xf32> to vector<1x1x4xf32>
    %129 = vector.broadcast %128 : vector<1x1x4xf32> to vector<8x16x4xf32>
    %130 = arith.mulf %125, %129 : vector<8x16x4xf32>
    %131 = arith.addf %124, %130 : vector<8x16x4xf32>
    %132 = vector.extract_strided_slice %117 {offsets = [2, 0, 0], sizes = [8, 16, 4], strides = [1, 1, 1]} : vector<14x16x4xf32> to vector<8x16x4xf32>
    %133 = vector.extract_strided_slice %11 {offsets = [2, 2, 0], sizes = [1, 1, 4], strides = [1, 1, 1]} : vector<7x7x4xf32> to vector<1x1x4xf32>
    %134 = vector.shape_cast %133 : vector<1x1x4xf32> to vector<4xf32>
    %135 = vector.shape_cast %134 : vector<4xf32> to vector<1x1x4xf32>
    %136 = vector.broadcast %135 : vector<1x1x4xf32> to vector<8x16x4xf32>
    %137 = arith.mulf %132, %136 : vector<8x16x4xf32>
    %138 = arith.addf %131, %137 : vector<8x16x4xf32>
    %139 = vector.extract_strided_slice %117 {offsets = [3, 0, 0], sizes = [8, 16, 4], strides = [1, 1, 1]} : vector<14x16x4xf32> to vector<8x16x4xf32>
    %140 = vector.extract_strided_slice %11 {offsets = [3, 2, 0], sizes = [1, 1, 4], strides = [1, 1, 1]} : vector<7x7x4xf32> to vector<1x1x4xf32>
    %141 = vector.shape_cast %140 : vector<1x1x4xf32> to vector<4xf32>
    %142 = vector.shape_cast %141 : vector<4xf32> to vector<1x1x4xf32>
    %143 = vector.broadcast %142 : vector<1x1x4xf32> to vector<8x16x4xf32>
    %144 = arith.mulf %139, %143 : vector<8x16x4xf32>
    %145 = arith.addf %138, %144 : vector<8x16x4xf32>
    %146 = vector.extract_strided_slice %117 {offsets = [4, 0, 0], sizes = [8, 16, 4], strides = [1, 1, 1]} : vector<14x16x4xf32> to vector<8x16x4xf32>
    %147 = vector.extract_strided_slice %11 {offsets = [4, 2, 0], sizes = [1, 1, 4], strides = [1, 1, 1]} : vector<7x7x4xf32> to vector<1x1x4xf32>
    %148 = vector.shape_cast %147 : vector<1x1x4xf32> to vector<4xf32>
    %149 = vector.shape_cast %148 : vector<4xf32> to vector<1x1x4xf32>
    %150 = vector.broadcast %149 : vector<1x1x4xf32> to vector<8x16x4xf32>
    %151 = arith.mulf %146, %150 : vector<8x16x4xf32>
    %152 = arith.addf %145, %151 : vector<8x16x4xf32>
    %153 = vector.extract_strided_slice %117 {offsets = [5, 0, 0], sizes = [8, 16, 4], strides = [1, 1, 1]} : vector<14x16x4xf32> to vector<8x16x4xf32>
    %154 = vector.extract_strided_slice %11 {offsets = [5, 2, 0], sizes = [1, 1, 4], strides = [1, 1, 1]} : vector<7x7x4xf32> to vector<1x1x4xf32>
    %155 = vector.shape_cast %154 : vector<1x1x4xf32> to vector<4xf32>
    %156 = vector.shape_cast %155 : vector<4xf32> to vector<1x1x4xf32>
    %157 = vector.broadcast %156 : vector<1x1x4xf32> to vector<8x16x4xf32>
    %158 = arith.mulf %153, %157 : vector<8x16x4xf32>
    %159 = arith.addf %152, %158 : vector<8x16x4xf32>
    %160 = vector.extract_strided_slice %117 {offsets = [6, 0, 0], sizes = [8, 16, 4], strides = [1, 1, 1]} : vector<14x16x4xf32> to vector<8x16x4xf32>
    %161 = vector.extract_strided_slice %11 {offsets = [6, 2, 0], sizes = [1, 1, 4], strides = [1, 1, 1]} : vector<7x7x4xf32> to vector<1x1x4xf32>
    %162 = vector.shape_cast %161 : vector<1x1x4xf32> to vector<4xf32>
    %163 = vector.shape_cast %162 : vector<4xf32> to vector<1x1x4xf32>
    %164 = vector.broadcast %163 : vector<1x1x4xf32> to vector<8x16x4xf32>
    %165 = arith.mulf %160, %164 : vector<8x16x4xf32>
    %166 = arith.addf %159, %165 : vector<8x16x4xf32>
    %167 = vector.extract_strided_slice %15 {offsets = [0, 3, 0], sizes = [14, 16, 4], strides = [1, 1, 1]} : vector<14x22x4xf32> to vector<14x16x4xf32>
    %168 = vector.extract_strided_slice %167 {offsets = [0, 0, 0], sizes = [8, 16, 4], strides = [1, 1, 1]} : vector<14x16x4xf32> to vector<8x16x4xf32>
    %169 = vector.extract_strided_slice %11 {offsets = [0, 3, 0], sizes = [1, 1, 4], strides = [1, 1, 1]} : vector<7x7x4xf32> to vector<1x1x4xf32>
    %170 = vector.shape_cast %169 : vector<1x1x4xf32> to vector<4xf32>
    %171 = vector.shape_cast %170 : vector<4xf32> to vector<1x1x4xf32>
    %172 = vector.broadcast %171 : vector<1x1x4xf32> to vector<8x16x4xf32>
    %173 = arith.mulf %168, %172 : vector<8x16x4xf32>
    %174 = arith.addf %166, %173 : vector<8x16x4xf32>
    %175 = vector.extract_strided_slice %167 {offsets = [1, 0, 0], sizes = [8, 16, 4], strides = [1, 1, 1]} : vector<14x16x4xf32> to vector<8x16x4xf32>
    %176 = vector.extract_strided_slice %11 {offsets = [1, 3, 0], sizes = [1, 1, 4], strides = [1, 1, 1]} : vector<7x7x4xf32> to vector<1x1x4xf32>
    %177 = vector.shape_cast %176 : vector<1x1x4xf32> to vector<4xf32>
    %178 = vector.shape_cast %177 : vector<4xf32> to vector<1x1x4xf32>
    %179 = vector.broadcast %178 : vector<1x1x4xf32> to vector<8x16x4xf32>
    %180 = arith.mulf %175, %179 : vector<8x16x4xf32>
    %181 = arith.addf %174, %180 : vector<8x16x4xf32>
    %182 = vector.extract_strided_slice %167 {offsets = [2, 0, 0], sizes = [8, 16, 4], strides = [1, 1, 1]} : vector<14x16x4xf32> to vector<8x16x4xf32>
    %183 = vector.extract_strided_slice %11 {offsets = [2, 3, 0], sizes = [1, 1, 4], strides = [1, 1, 1]} : vector<7x7x4xf32> to vector<1x1x4xf32>
    %184 = vector.shape_cast %183 : vector<1x1x4xf32> to vector<4xf32>
    %185 = vector.shape_cast %184 : vector<4xf32> to vector<1x1x4xf32>
    %186 = vector.broadcast %185 : vector<1x1x4xf32> to vector<8x16x4xf32>
    %187 = arith.mulf %182, %186 : vector<8x16x4xf32>
    %188 = arith.addf %181, %187 : vector<8x16x4xf32>
    %189 = vector.extract_strided_slice %167 {offsets = [3, 0, 0], sizes = [8, 16, 4], strides = [1, 1, 1]} : vector<14x16x4xf32> to vector<8x16x4xf32>
    %190 = vector.extract_strided_slice %11 {offsets = [3, 3, 0], sizes = [1, 1, 4], strides = [1, 1, 1]} : vector<7x7x4xf32> to vector<1x1x4xf32>
    %191 = vector.shape_cast %190 : vector<1x1x4xf32> to vector<4xf32>
    %192 = vector.shape_cast %191 : vector<4xf32> to vector<1x1x4xf32>
    %193 = vector.broadcast %192 : vector<1x1x4xf32> to vector<8x16x4xf32>
    %194 = arith.mulf %189, %193 : vector<8x16x4xf32>
    %195 = arith.addf %188, %194 : vector<8x16x4xf32>
    %196 = vector.extract_strided_slice %167 {offsets = [4, 0, 0], sizes = [8, 16, 4], strides = [1, 1, 1]} : vector<14x16x4xf32> to vector<8x16x4xf32>
    %197 = vector.extract_strided_slice %11 {offsets = [4, 3, 0], sizes = [1, 1, 4], strides = [1, 1, 1]} : vector<7x7x4xf32> to vector<1x1x4xf32>
    %198 = vector.shape_cast %197 : vector<1x1x4xf32> to vector<4xf32>
    %199 = vector.shape_cast %198 : vector<4xf32> to vector<1x1x4xf32>
    %200 = vector.broadcast %199 : vector<1x1x4xf32> to vector<8x16x4xf32>
    %201 = arith.mulf %196, %200 : vector<8x16x4xf32>
    %202 = arith.addf %195, %201 : vector<8x16x4xf32>
    %203 = vector.extract_strided_slice %167 {offsets = [5, 0, 0], sizes = [8, 16, 4], strides = [1, 1, 1]} : vector<14x16x4xf32> to vector<8x16x4xf32>
    %204 = vector.extract_strided_slice %11 {offsets = [5, 3, 0], sizes = [1, 1, 4], strides = [1, 1, 1]} : vector<7x7x4xf32> to vector<1x1x4xf32>
    %205 = vector.shape_cast %204 : vector<1x1x4xf32> to vector<4xf32>
    %206 = vector.shape_cast %205 : vector<4xf32> to vector<1x1x4xf32>
    %207 = vector.broadcast %206 : vector<1x1x4xf32> to vector<8x16x4xf32>
    %208 = arith.mulf %203, %207 : vector<8x16x4xf32>
    %209 = arith.addf %202, %208 : vector<8x16x4xf32>
    %210 = vector.extract_strided_slice %167 {offsets = [6, 0, 0], sizes = [8, 16, 4], strides = [1, 1, 1]} : vector<14x16x4xf32> to vector<8x16x4xf32>
    %211 = vector.extract_strided_slice %11 {offsets = [6, 3, 0], sizes = [1, 1, 4], strides = [1, 1, 1]} : vector<7x7x4xf32> to vector<1x1x4xf32>
    %212 = vector.shape_cast %211 : vector<1x1x4xf32> to vector<4xf32>
    %213 = vector.shape_cast %212 : vector<4xf32> to vector<1x1x4xf32>
    %214 = vector.broadcast %213 : vector<1x1x4xf32> to vector<8x16x4xf32>
    %215 = arith.mulf %210, %214 : vector<8x16x4xf32>
    %216 = arith.addf %209, %215 : vector<8x16x4xf32>
    %217 = vector.extract_strided_slice %15 {offsets = [0, 4, 0], sizes = [14, 16, 4], strides = [1, 1, 1]} : vector<14x22x4xf32> to vector<14x16x4xf32>
    %218 = vector.extract_strided_slice %217 {offsets = [0, 0, 0], sizes = [8, 16, 4], strides = [1, 1, 1]} : vector<14x16x4xf32> to vector<8x16x4xf32>
    %219 = vector.extract_strided_slice %11 {offsets = [0, 4, 0], sizes = [1, 1, 4], strides = [1, 1, 1]} : vector<7x7x4xf32> to vector<1x1x4xf32>
    %220 = vector.shape_cast %219 : vector<1x1x4xf32> to vector<4xf32>
    %221 = vector.shape_cast %220 : vector<4xf32> to vector<1x1x4xf32>
    %222 = vector.broadcast %221 : vector<1x1x4xf32> to vector<8x16x4xf32>
    %223 = arith.mulf %218, %222 : vector<8x16x4xf32>
    %224 = arith.addf %216, %223 : vector<8x16x4xf32>
    %225 = vector.extract_strided_slice %217 {offsets = [1, 0, 0], sizes = [8, 16, 4], strides = [1, 1, 1]} : vector<14x16x4xf32> to vector<8x16x4xf32>
    %226 = vector.extract_strided_slice %11 {offsets = [1, 4, 0], sizes = [1, 1, 4], strides = [1, 1, 1]} : vector<7x7x4xf32> to vector<1x1x4xf32>
    %227 = vector.shape_cast %226 : vector<1x1x4xf32> to vector<4xf32>
    %228 = vector.shape_cast %227 : vector<4xf32> to vector<1x1x4xf32>
    %229 = vector.broadcast %228 : vector<1x1x4xf32> to vector<8x16x4xf32>
    %230 = arith.mulf %225, %229 : vector<8x16x4xf32>
    %231 = arith.addf %224, %230 : vector<8x16x4xf32>
    %232 = vector.extract_strided_slice %217 {offsets = [2, 0, 0], sizes = [8, 16, 4], strides = [1, 1, 1]} : vector<14x16x4xf32> to vector<8x16x4xf32>
    %233 = vector.extract_strided_slice %11 {offsets = [2, 4, 0], sizes = [1, 1, 4], strides = [1, 1, 1]} : vector<7x7x4xf32> to vector<1x1x4xf32>
    %234 = vector.shape_cast %233 : vector<1x1x4xf32> to vector<4xf32>
    %235 = vector.shape_cast %234 : vector<4xf32> to vector<1x1x4xf32>
    %236 = vector.broadcast %235 : vector<1x1x4xf32> to vector<8x16x4xf32>
    %237 = arith.mulf %232, %236 : vector<8x16x4xf32>
    %238 = arith.addf %231, %237 : vector<8x16x4xf32>
    %239 = vector.extract_strided_slice %217 {offsets = [3, 0, 0], sizes = [8, 16, 4], strides = [1, 1, 1]} : vector<14x16x4xf32> to vector<8x16x4xf32>
    %240 = vector.extract_strided_slice %11 {offsets = [3, 4, 0], sizes = [1, 1, 4], strides = [1, 1, 1]} : vector<7x7x4xf32> to vector<1x1x4xf32>
    %241 = vector.shape_cast %240 : vector<1x1x4xf32> to vector<4xf32>
    %242 = vector.shape_cast %241 : vector<4xf32> to vector<1x1x4xf32>
    %243 = vector.broadcast %242 : vector<1x1x4xf32> to vector<8x16x4xf32>
    %244 = arith.mulf %239, %243 : vector<8x16x4xf32>
    %245 = arith.addf %238, %244 : vector<8x16x4xf32>
    %246 = vector.extract_strided_slice %217 {offsets = [4, 0, 0], sizes = [8, 16, 4], strides = [1, 1, 1]} : vector<14x16x4xf32> to vector<8x16x4xf32>
    %247 = vector.extract_strided_slice %11 {offsets = [4, 4, 0], sizes = [1, 1, 4], strides = [1, 1, 1]} : vector<7x7x4xf32> to vector<1x1x4xf32>
    %248 = vector.shape_cast %247 : vector<1x1x4xf32> to vector<4xf32>
    %249 = vector.shape_cast %248 : vector<4xf32> to vector<1x1x4xf32>
    %250 = vector.broadcast %249 : vector<1x1x4xf32> to vector<8x16x4xf32>
    %251 = arith.mulf %246, %250 : vector<8x16x4xf32>
    %252 = arith.addf %245, %251 : vector<8x16x4xf32>
    %253 = vector.extract_strided_slice %217 {offsets = [5, 0, 0], sizes = [8, 16, 4], strides = [1, 1, 1]} : vector<14x16x4xf32> to vector<8x16x4xf32>
    %254 = vector.extract_strided_slice %11 {offsets = [5, 4, 0], sizes = [1, 1, 4], strides = [1, 1, 1]} : vector<7x7x4xf32> to vector<1x1x4xf32>
    %255 = vector.shape_cast %254 : vector<1x1x4xf32> to vector<4xf32>
    %256 = vector.shape_cast %255 : vector<4xf32> to vector<1x1x4xf32>
    %257 = vector.broadcast %256 : vector<1x1x4xf32> to vector<8x16x4xf32>
    %258 = arith.mulf %253, %257 : vector<8x16x4xf32>
    %259 = arith.addf %252, %258 : vector<8x16x4xf32>
    %260 = vector.extract_strided_slice %217 {offsets = [6, 0, 0], sizes = [8, 16, 4], strides = [1, 1, 1]} : vector<14x16x4xf32> to vector<8x16x4xf32>
    %261 = vector.extract_strided_slice %11 {offsets = [6, 4, 0], sizes = [1, 1, 4], strides = [1, 1, 1]} : vector<7x7x4xf32> to vector<1x1x4xf32>
    %262 = vector.shape_cast %261 : vector<1x1x4xf32> to vector<4xf32>
    %263 = vector.shape_cast %262 : vector<4xf32> to vector<1x1x4xf32>
    %264 = vector.broadcast %263 : vector<1x1x4xf32> to vector<8x16x4xf32>
    %265 = arith.mulf %260, %264 : vector<8x16x4xf32>
    %266 = arith.addf %259, %265 : vector<8x16x4xf32>
    %267 = vector.extract_strided_slice %15 {offsets = [0, 5, 0], sizes = [14, 16, 4], strides = [1, 1, 1]} : vector<14x22x4xf32> to vector<14x16x4xf32>
    %268 = vector.extract_strided_slice %267 {offsets = [0, 0, 0], sizes = [8, 16, 4], strides = [1, 1, 1]} : vector<14x16x4xf32> to vector<8x16x4xf32>
    %269 = vector.extract_strided_slice %11 {offsets = [0, 5, 0], sizes = [1, 1, 4], strides = [1, 1, 1]} : vector<7x7x4xf32> to vector<1x1x4xf32>
    %270 = vector.shape_cast %269 : vector<1x1x4xf32> to vector<4xf32>
    %271 = vector.shape_cast %270 : vector<4xf32> to vector<1x1x4xf32>
    %272 = vector.broadcast %271 : vector<1x1x4xf32> to vector<8x16x4xf32>
    %273 = arith.mulf %268, %272 : vector<8x16x4xf32>
    %274 = arith.addf %266, %273 : vector<8x16x4xf32>
    %275 = vector.extract_strided_slice %267 {offsets = [1, 0, 0], sizes = [8, 16, 4], strides = [1, 1, 1]} : vector<14x16x4xf32> to vector<8x16x4xf32>
    %276 = vector.extract_strided_slice %11 {offsets = [1, 5, 0], sizes = [1, 1, 4], strides = [1, 1, 1]} : vector<7x7x4xf32> to vector<1x1x4xf32>
    %277 = vector.shape_cast %276 : vector<1x1x4xf32> to vector<4xf32>
    %278 = vector.shape_cast %277 : vector<4xf32> to vector<1x1x4xf32>
    %279 = vector.broadcast %278 : vector<1x1x4xf32> to vector<8x16x4xf32>
    %280 = arith.mulf %275, %279 : vector<8x16x4xf32>
    %281 = arith.addf %274, %280 : vector<8x16x4xf32>
    %282 = vector.extract_strided_slice %267 {offsets = [2, 0, 0], sizes = [8, 16, 4], strides = [1, 1, 1]} : vector<14x16x4xf32> to vector<8x16x4xf32>
    %283 = vector.extract_strided_slice %11 {offsets = [2, 5, 0], sizes = [1, 1, 4], strides = [1, 1, 1]} : vector<7x7x4xf32> to vector<1x1x4xf32>
    %284 = vector.shape_cast %283 : vector<1x1x4xf32> to vector<4xf32>
    %285 = vector.shape_cast %284 : vector<4xf32> to vector<1x1x4xf32>
    %286 = vector.broadcast %285 : vector<1x1x4xf32> to vector<8x16x4xf32>
    %287 = arith.mulf %282, %286 : vector<8x16x4xf32>
    %288 = arith.addf %281, %287 : vector<8x16x4xf32>
    %289 = vector.extract_strided_slice %267 {offsets = [3, 0, 0], sizes = [8, 16, 4], strides = [1, 1, 1]} : vector<14x16x4xf32> to vector<8x16x4xf32>
    %290 = vector.extract_strided_slice %11 {offsets = [3, 5, 0], sizes = [1, 1, 4], strides = [1, 1, 1]} : vector<7x7x4xf32> to vector<1x1x4xf32>
    %291 = vector.shape_cast %290 : vector<1x1x4xf32> to vector<4xf32>
    %292 = vector.shape_cast %291 : vector<4xf32> to vector<1x1x4xf32>
    %293 = vector.broadcast %292 : vector<1x1x4xf32> to vector<8x16x4xf32>
    %294 = arith.mulf %289, %293 : vector<8x16x4xf32>
    %295 = arith.addf %288, %294 : vector<8x16x4xf32>
    %296 = vector.extract_strided_slice %267 {offsets = [4, 0, 0], sizes = [8, 16, 4], strides = [1, 1, 1]} : vector<14x16x4xf32> to vector<8x16x4xf32>
    %297 = vector.extract_strided_slice %11 {offsets = [4, 5, 0], sizes = [1, 1, 4], strides = [1, 1, 1]} : vector<7x7x4xf32> to vector<1x1x4xf32>
    %298 = vector.shape_cast %297 : vector<1x1x4xf32> to vector<4xf32>
    %299 = vector.shape_cast %298 : vector<4xf32> to vector<1x1x4xf32>
    %300 = vector.broadcast %299 : vector<1x1x4xf32> to vector<8x16x4xf32>
    %301 = arith.mulf %296, %300 : vector<8x16x4xf32>
    %302 = arith.addf %295, %301 : vector<8x16x4xf32>
    %303 = vector.extract_strided_slice %267 {offsets = [5, 0, 0], sizes = [8, 16, 4], strides = [1, 1, 1]} : vector<14x16x4xf32> to vector<8x16x4xf32>
    %304 = vector.extract_strided_slice %11 {offsets = [5, 5, 0], sizes = [1, 1, 4], strides = [1, 1, 1]} : vector<7x7x4xf32> to vector<1x1x4xf32>
    %305 = vector.shape_cast %304 : vector<1x1x4xf32> to vector<4xf32>
    %306 = vector.shape_cast %305 : vector<4xf32> to vector<1x1x4xf32>
    %307 = vector.broadcast %306 : vector<1x1x4xf32> to vector<8x16x4xf32>
    %308 = arith.mulf %303, %307 : vector<8x16x4xf32>
    %309 = arith.addf %302, %308 : vector<8x16x4xf32>
    %310 = vector.extract_strided_slice %267 {offsets = [6, 0, 0], sizes = [8, 16, 4], strides = [1, 1, 1]} : vector<14x16x4xf32> to vector<8x16x4xf32>
    %311 = vector.extract_strided_slice %11 {offsets = [6, 5, 0], sizes = [1, 1, 4], strides = [1, 1, 1]} : vector<7x7x4xf32> to vector<1x1x4xf32>
    %312 = vector.shape_cast %311 : vector<1x1x4xf32> to vector<4xf32>
    %313 = vector.shape_cast %312 : vector<4xf32> to vector<1x1x4xf32>
    %314 = vector.broadcast %313 : vector<1x1x4xf32> to vector<8x16x4xf32>
    %315 = arith.mulf %310, %314 : vector<8x16x4xf32>
    %316 = arith.addf %309, %315 : vector<8x16x4xf32>
    %317 = vector.extract_strided_slice %15 {offsets = [0, 6, 0], sizes = [14, 16, 4], strides = [1, 1, 1]} : vector<14x22x4xf32> to vector<14x16x4xf32>
    %318 = vector.extract_strided_slice %317 {offsets = [0, 0, 0], sizes = [8, 16, 4], strides = [1, 1, 1]} : vector<14x16x4xf32> to vector<8x16x4xf32>
    %319 = vector.extract_strided_slice %11 {offsets = [0, 6, 0], sizes = [1, 1, 4], strides = [1, 1, 1]} : vector<7x7x4xf32> to vector<1x1x4xf32>
    %320 = vector.shape_cast %319 : vector<1x1x4xf32> to vector<4xf32>
    %321 = vector.shape_cast %320 : vector<4xf32> to vector<1x1x4xf32>
    %322 = vector.broadcast %321 : vector<1x1x4xf32> to vector<8x16x4xf32>
    %323 = arith.mulf %318, %322 : vector<8x16x4xf32>
    %324 = arith.addf %316, %323 : vector<8x16x4xf32>
    %325 = vector.extract_strided_slice %317 {offsets = [1, 0, 0], sizes = [8, 16, 4], strides = [1, 1, 1]} : vector<14x16x4xf32> to vector<8x16x4xf32>
    %326 = vector.extract_strided_slice %11 {offsets = [1, 6, 0], sizes = [1, 1, 4], strides = [1, 1, 1]} : vector<7x7x4xf32> to vector<1x1x4xf32>
    %327 = vector.shape_cast %326 : vector<1x1x4xf32> to vector<4xf32>
    %328 = vector.shape_cast %327 : vector<4xf32> to vector<1x1x4xf32>
    %329 = vector.broadcast %328 : vector<1x1x4xf32> to vector<8x16x4xf32>
    %330 = arith.mulf %325, %329 : vector<8x16x4xf32>
    %331 = arith.addf %324, %330 : vector<8x16x4xf32>
    %332 = vector.extract_strided_slice %317 {offsets = [2, 0, 0], sizes = [8, 16, 4], strides = [1, 1, 1]} : vector<14x16x4xf32> to vector<8x16x4xf32>
    %333 = vector.extract_strided_slice %11 {offsets = [2, 6, 0], sizes = [1, 1, 4], strides = [1, 1, 1]} : vector<7x7x4xf32> to vector<1x1x4xf32>
    %334 = vector.shape_cast %333 : vector<1x1x4xf32> to vector<4xf32>
    %335 = vector.shape_cast %334 : vector<4xf32> to vector<1x1x4xf32>
    %336 = vector.broadcast %335 : vector<1x1x4xf32> to vector<8x16x4xf32>
    %337 = arith.mulf %332, %336 : vector<8x16x4xf32>
    %338 = arith.addf %331, %337 : vector<8x16x4xf32>
    %339 = vector.extract_strided_slice %317 {offsets = [3, 0, 0], sizes = [8, 16, 4], strides = [1, 1, 1]} : vector<14x16x4xf32> to vector<8x16x4xf32>
    %340 = vector.extract_strided_slice %11 {offsets = [3, 6, 0], sizes = [1, 1, 4], strides = [1, 1, 1]} : vector<7x7x4xf32> to vector<1x1x4xf32>
    %341 = vector.shape_cast %340 : vector<1x1x4xf32> to vector<4xf32>
    %342 = vector.shape_cast %341 : vector<4xf32> to vector<1x1x4xf32>
    %343 = vector.broadcast %342 : vector<1x1x4xf32> to vector<8x16x4xf32>
    %344 = arith.mulf %339, %343 : vector<8x16x4xf32>
    %345 = arith.addf %338, %344 : vector<8x16x4xf32>
    %346 = vector.extract_strided_slice %317 {offsets = [4, 0, 0], sizes = [8, 16, 4], strides = [1, 1, 1]} : vector<14x16x4xf32> to vector<8x16x4xf32>
    %347 = vector.extract_strided_slice %11 {offsets = [4, 6, 0], sizes = [1, 1, 4], strides = [1, 1, 1]} : vector<7x7x4xf32> to vector<1x1x4xf32>
    %348 = vector.shape_cast %347 : vector<1x1x4xf32> to vector<4xf32>
    %349 = vector.shape_cast %348 : vector<4xf32> to vector<1x1x4xf32>
    %350 = vector.broadcast %349 : vector<1x1x4xf32> to vector<8x16x4xf32>
    %351 = arith.mulf %346, %350 : vector<8x16x4xf32>
    %352 = arith.addf %345, %351 : vector<8x16x4xf32>
    %353 = vector.extract_strided_slice %317 {offsets = [5, 0, 0], sizes = [8, 16, 4], strides = [1, 1, 1]} : vector<14x16x4xf32> to vector<8x16x4xf32>
    %354 = vector.extract_strided_slice %11 {offsets = [5, 6, 0], sizes = [1, 1, 4], strides = [1, 1, 1]} : vector<7x7x4xf32> to vector<1x1x4xf32>
    %355 = vector.shape_cast %354 : vector<1x1x4xf32> to vector<4xf32>
    %356 = vector.shape_cast %355 : vector<4xf32> to vector<1x1x4xf32>
    %357 = vector.broadcast %356 : vector<1x1x4xf32> to vector<8x16x4xf32>
    %358 = arith.mulf %353, %357 : vector<8x16x4xf32>
    %359 = arith.addf %352, %358 : vector<8x16x4xf32>
    %360 = vector.extract_strided_slice %317 {offsets = [6, 0, 0], sizes = [8, 16, 4], strides = [1, 1, 1]} : vector<14x16x4xf32> to vector<8x16x4xf32>
    %361 = vector.extract_strided_slice %11 {offsets = [6, 6, 0], sizes = [1, 1, 4], strides = [1, 1, 1]} : vector<7x7x4xf32> to vector<1x1x4xf32>
    %362 = vector.shape_cast %361 : vector<1x1x4xf32> to vector<4xf32>
    %363 = vector.shape_cast %362 : vector<4xf32> to vector<1x1x4xf32>
    %364 = vector.broadcast %363 : vector<1x1x4xf32> to vector<8x16x4xf32>
    %365 = arith.mulf %360, %364 : vector<8x16x4xf32>
    %366 = arith.addf %359, %365 : vector<8x16x4xf32>
    %367 = vector.shape_cast %12 : vector<1x4xf32> to vector<1x1x4xf32>
    %368 = vector.broadcast %367 : vector<1x1x4xf32> to vector<8x16x4xf32>
    %369 = arith.addf %366, %368 : vector<8x16x4xf32>
    %cst_31 = arith.constant dense<0.000000e+00> : vector<8x16xf32>
    %370 = vector.multi_reduction <add>, %369, %cst_31 [2] : vector<8x16x4xf32> to vector<8x16xf32>
    %371 = vector.shape_cast %370 : vector<8x16xf32> to vector<8x16x1xf32>
    %cst_32 = arith.constant 2.500000e-01 : f32
    %372 = vector.broadcast %cst_32 : f32 to vector<8x16x1xf32>
    %373 = arith.mulf %371, %372 : vector<8x16x1xf32>
    %374 = vector.broadcast %373 : vector<8x16x1xf32> to vector<8x16x4xf32>
    %375 = arith.subf %369, %374 : vector<8x16x4xf32>
    %376 = arith.mulf %375, %375 : vector<8x16x4xf32>
    %cst_33 = arith.constant dense<0.000000e+00> : vector<8x16xf32>
    %377 = vector.multi_reduction <add>, %376, %cst_33 [2] : vector<8x16x4xf32> to vector<8x16xf32>
    %378 = vector.shape_cast %377 : vector<8x16xf32> to vector<8x16x1xf32>
    %cst_34 = arith.constant 2.500000e-01 : f32
    %379 = vector.broadcast %cst_34 : f32 to vector<8x16x1xf32>
    %380 = arith.mulf %378, %379 : vector<8x16x1xf32>
    %cst_35 = arith.constant 9.99999997E-7 : f32
    %381 = vector.broadcast %cst_35 : f32 to vector<8x16x1xf32>
    %382 = arith.addf %380, %381 : vector<8x16x1xf32>
    %383 = math.rsqrt %382 : vector<8x16x1xf32>
    %384 = vector.broadcast %383 : vector<8x16x1xf32> to vector<8x16x4xf32>
    %385 = arith.mulf %375, %384 : vector<8x16x4xf32>
    %386 = vector.shape_cast %385 : vector<8x16x4xf32> to vector<128x4xf32>
    %387 = arith.truncf %386 : vector<128x4xf32> to vector<128x4xbf16>
    %c0_36 = arith.constant 0 : index
    %c0_37 = arith.constant 0 : index
    %388 = vector.load %arg4[%c0_36, %c0_37] : memref<4x16xbf16, #tpu.memory_space<vmem>>, vector<4x16xbf16>
    %cst_38 = arith.constant dense<0.000000e+00> : vector<128x16xf32>
    %389 = tpu.matmul %387, %388, %cst_38 {dimension_numbers = #tpu.dot_dimension_numbers<[1], [0], [0], [1], [0, 0, 1, 1], [], []>} : vector<128x4xbf16>, vector<4x16xbf16>, vector<128x16xf32> -> vector<128x16xf32>
    %390 = vector.broadcast %13 : vector<1x16xf32> to vector<128x16xf32>
    %391 = arith.addf %389, %390 : vector<128x16xf32>
    %cst_39 = arith.constant 5.000000e-01 : f32
    %392 = vector.broadcast %cst_39 : f32 to vector<128x16xf32>
    %393 = arith.mulf %392, %391 : vector<128x16xf32>
    %cst_40 = arith.constant 0.707106769 : f32
    %394 = vector.broadcast %cst_40 : f32 to vector<128x16xf32>
    %395 = arith.mulf %391, %394 : vector<128x16xf32>
    %396 = math.erf %395 : vector<128x16xf32>
    %cst_41 = arith.constant 1.000000e+00 : f32
    %397 = vector.broadcast %cst_41 : f32 to vector<128x16xf32>
    %398 = arith.addf %397, %396 : vector<128x16xf32>
    %399 = arith.mulf %393, %398 : vector<128x16xf32>
    %400 = arith.mulf %399, %399 : vector<128x16xf32>
    %cst_42 = arith.constant dense<0.000000e+00> : vector<16xf32>
    %401 = vector.multi_reduction <add>, %400, %cst_42 [0] : vector<128x16xf32> to vector<16xf32>
    %402 = vector.shape_cast %401 : vector<16xf32> to vector<1x16xf32>
    %403 = arith.addf %14, %402 : vector<1x16xf32>
    %404 = arith.truncf %399 : vector<128x16xf32> to vector<128x16xbf16>
    %c0_43 = arith.constant 0 : index
    %c0_44 = arith.constant 0 : index
    %405 = vector.load %arg12[%c0_43, %c0_44] : memref<256x16xbf16, #tpu.memory_space<vmem>>, vector<128x16xbf16>
    tpu.vector_store %arg12[%c0_43, %c0_44], %404 {strides = array<i32>} : memref<256x16xbf16, #tpu.memory_space<vmem>>, vector<128x16xbf16>,
    %c8 = arith.constant 8 : index
    %c0_45 = arith.constant 0 : index
    %c0_46 = arith.constant 0 : index
    %406 = vector.load %arg11[%c8, %c0_45, %c0_46] : memref<22x22x4xf32, #tpu.memory_space<vmem>>, vector<14x22x4xf32>
    %cst_47 = arith.constant 0.000000e+00 : f32
    %407 = vector.broadcast %cst_47 : f32 to vector<8x16x4xf32>
    %408 = vector.extract_strided_slice %406 {offsets = [0, 0, 0], sizes = [14, 16, 4], strides = [1, 1, 1]} : vector<14x22x4xf32> to vector<14x16x4xf32>
    %409 = vector.extract_strided_slice %408 {offsets = [0, 0, 0], sizes = [8, 16, 4], strides = [1, 1, 1]} : vector<14x16x4xf32> to vector<8x16x4xf32>
    %410 = vector.extract_strided_slice %11 {offsets = [0, 0, 0], sizes = [1, 1, 4], strides = [1, 1, 1]} : vector<7x7x4xf32> to vector<1x1x4xf32>
    %411 = vector.shape_cast %410 : vector<1x1x4xf32> to vector<4xf32>
    %412 = vector.shape_cast %411 : vector<4xf32> to vector<1x1x4xf32>
    %413 = vector.broadcast %412 : vector<1x1x4xf32> to vector<8x16x4xf32>
    %414 = arith.mulf %409, %413 : vector<8x16x4xf32>
    %415 = arith.addf %407, %414 : vector<8x16x4xf32>
    %416 = vector.extract_strided_slice %408 {offsets = [1, 0, 0], sizes = [8, 16, 4], strides = [1, 1, 1]} : vector<14x16x4xf32> to vector<8x16x4xf32>
    %417 = vector.extract_strided_slice %11 {offsets = [1, 0, 0], sizes = [1, 1, 4], strides = [1, 1, 1]} : vector<7x7x4xf32> to vector<1x1x4xf32>
    %418 = vector.shape_cast %417 : vector<1x1x4xf32> to vector<4xf32>
    %419 = vector.shape_cast %418 : vector<4xf32> to vector<1x1x4xf32>
    %420 = vector.broadcast %419 : vector<1x1x4xf32> to vector<8x16x4xf32>
    %421 = arith.mulf %416, %420 : vector<8x16x4xf32>
    %422 = arith.addf %415, %421 : vector<8x16x4xf32>
    %423 = vector.extract_strided_slice %408 {offsets = [2, 0, 0], sizes = [8, 16, 4], strides = [1, 1, 1]} : vector<14x16x4xf32> to vector<8x16x4xf32>
    %424 = vector.extract_strided_slice %11 {offsets = [2, 0, 0], sizes = [1, 1, 4], strides = [1, 1, 1]} : vector<7x7x4xf32> to vector<1x1x4xf32>
    %425 = vector.shape_cast %424 : vector<1x1x4xf32> to vector<4xf32>
    %426 = vector.shape_cast %425 : vector<4xf32> to vector<1x1x4xf32>
    %427 = vector.broadcast %426 : vector<1x1x4xf32> to vector<8x16x4xf32>
    %428 = arith.mulf %423, %427 : vector<8x16x4xf32>
    %429 = arith.addf %422, %428 : vector<8x16x4xf32>
    %430 = vector.extract_strided_slice %408 {offsets = [3, 0, 0], sizes = [8, 16, 4], strides = [1, 1, 1]} : vector<14x16x4xf32> to vector<8x16x4xf32>
    %431 = vector.extract_strided_slice %11 {offsets = [3, 0, 0], sizes = [1, 1, 4], strides = [1, 1, 1]} : vector<7x7x4xf32> to vector<1x1x4xf32>
    %432 = vector.shape_cast %431 : vector<1x1x4xf32> to vector<4xf32>
    %433 = vector.shape_cast %432 : vector<4xf32> to vector<1x1x4xf32>
    %434 = vector.broadcast %433 : vector<1x1x4xf32> to vector<8x16x4xf32>
    %435 = arith.mulf %430, %434 : vector<8x16x4xf32>
    %436 = arith.addf %429, %435 : vector<8x16x4xf32>
    %437 = vector.extract_strided_slice %408 {offsets = [4, 0, 0], sizes = [8, 16, 4], strides = [1, 1, 1]} : vector<14x16x4xf32> to vector<8x16x4xf32>
    %438 = vector.extract_strided_slice %11 {offsets = [4, 0, 0], sizes = [1, 1, 4], strides = [1, 1, 1]} : vector<7x7x4xf32> to vector<1x1x4xf32>
    %439 = vector.shape_cast %438 : vector<1x1x4xf32> to vector<4xf32>
    %440 = vector.shape_cast %439 : vector<4xf32> to vector<1x1x4xf32>
    %441 = vector.broadcast %440 : vector<1x1x4xf32> to vector<8x16x4xf32>
    %442 = arith.mulf %437, %441 : vector<8x16x4xf32>
    %443 = arith.addf %436, %442 : vector<8x16x4xf32>
    %444 = vector.extract_strided_slice %408 {offsets = [5, 0, 0], sizes = [8, 16, 4], strides = [1, 1, 1]} : vector<14x16x4xf32> to vector<8x16x4xf32>
    %445 = vector.extract_strided_slice %11 {offsets = [5, 0, 0], sizes = [1, 1, 4], strides = [1, 1, 1]} : vector<7x7x4xf32> to vector<1x1x4xf32>
    %446 = vector.shape_cast %445 : vector<1x1x4xf32> to vector<4xf32>
    %447 = vector.shape_cast %446 : vector<4xf32> to vector<1x1x4xf32>
    %448 = vector.broadcast %447 : vector<1x1x4xf32> to vector<8x16x4xf32>
    %449 = arith.mulf %444, %448 : vector<8x16x4xf32>
    %450 = arith.addf %443, %449 : vector<8x16x4xf32>
    %451 = vector.extract_strided_slice %408 {offsets = [6, 0, 0], sizes = [8, 16, 4], strides = [1, 1, 1]} : vector<14x16x4xf32> to vector<8x16x4xf32>
    %452 = vector.extract_strided_slice %11 {offsets = [6, 0, 0], sizes = [1, 1, 4], strides = [1, 1, 1]} : vector<7x7x4xf32> to vector<1x1x4xf32>
    %453 = vector.shape_cast %452 : vector<1x1x4xf32> to vector<4xf32>
    %454 = vector.shape_cast %453 : vector<4xf32> to vector<1x1x4xf32>
    %455 = vector.broadcast %454 : vector<1x1x4xf32> to vector<8x16x4xf32>
    %456 = arith.mulf %451, %455 : vector<8x16x4xf32>
    %457 = arith.addf %450, %456 : vector<8x16x4xf32>
    %458 = vector.extract_strided_slice %406 {offsets = [0, 1, 0], sizes = [14, 16, 4], strides = [1, 1, 1]} : vector<14x22x4xf32> to vector<14x16x4xf32>
    %459 = vector.extract_strided_slice %458 {offsets = [0, 0, 0], sizes = [8, 16, 4], strides = [1, 1, 1]} : vector<14x16x4xf32> to vector<8x16x4xf32>
    %460 = vector.extract_strided_slice %11 {offsets = [0, 1, 0], sizes = [1, 1, 4], strides = [1, 1, 1]} : vector<7x7x4xf32> to vector<1x1x4xf32>
    %461 = vector.shape_cast %460 : vector<1x1x4xf32> to vector<4xf32>
    %462 = vector.shape_cast %461 : vector<4xf32> to vector<1x1x4xf32>
    %463 = vector.broadcast %462 : vector<1x1x4xf32> to vector<8x16x4xf32>
    %464 = arith.mulf %459, %463 : vector<8x16x4xf32>
    %465 = arith.addf %457, %464 : vector<8x16x4xf32>
    %466 = vector.extract_strided_slice %458 {offsets = [1, 0, 0], sizes = [8, 16, 4], strides = [1, 1, 1]} : vector<14x16x4xf32> to vector<8x16x4xf32>
    %467 = vector.extract_strided_slice %11 {offsets = [1, 1, 0], sizes = [1, 1, 4], strides = [1, 1, 1]} : vector<7x7x4xf32> to vector<1x1x4xf32>
    %468 = vector.shape_cast %467 : vector<1x1x4xf32> to vector<4xf32>
    %469 = vector.shape_cast %468 : vector<4xf32> to vector<1x1x4xf32>
    %470 = vector.broadcast %469 : vector<1x1x4xf32> to vector<8x16x4xf32>
    %471 = arith.mulf %466, %470 : vector<8x16x4xf32>
    %472 = arith.addf %465, %471 : vector<8x16x4xf32>
    %473 = vector.extract_strided_slice %458 {offsets = [2, 0, 0], sizes = [8, 16, 4], strides = [1, 1, 1]} : vector<14x16x4xf32> to vector<8x16x4xf32>
    %474 = vector.extract_strided_slice %11 {offsets = [2, 1, 0], sizes = [1, 1, 4], strides = [1, 1, 1]} : vector<7x7x4xf32> to vector<1x1x4xf32>
    %475 = vector.shape_cast %474 : vector<1x1x4xf32> to vector<4xf32>
    %476 = vector.shape_cast %475 : vector<4xf32> to vector<1x1x4xf32>
    %477 = vector.broadcast %476 : vector<1x1x4xf32> to vector<8x16x4xf32>
    %478 = arith.mulf %473, %477 : vector<8x16x4xf32>
    %479 = arith.addf %472, %478 : vector<8x16x4xf32>
    %480 = vector.extract_strided_slice %458 {offsets = [3, 0, 0], sizes = [8, 16, 4], strides = [1, 1, 1]} : vector<14x16x4xf32> to vector<8x16x4xf32>
    %481 = vector.extract_strided_slice %11 {offsets = [3, 1, 0], sizes = [1, 1, 4], strides = [1, 1, 1]} : vector<7x7x4xf32> to vector<1x1x4xf32>
    %482 = vector.shape_cast %481 : vector<1x1x4xf32> to vector<4xf32>
    %483 = vector.shape_cast %482 : vector<4xf32> to vector<1x1x4xf32>
    %484 = vector.broadcast %483 : vector<1x1x4xf32> to vector<8x16x4xf32>
    %485 = arith.mulf %480, %484 : vector<8x16x4xf32>
    %486 = arith.addf %479, %485 : vector<8x16x4xf32>
    %487 = vector.extract_strided_slice %458 {offsets = [4, 0, 0], sizes = [8, 16, 4], strides = [1, 1, 1]} : vector<14x16x4xf32> to vector<8x16x4xf32>
    %488 = vector.extract_strided_slice %11 {offsets = [4, 1, 0], sizes = [1, 1, 4], strides = [1, 1, 1]} : vector<7x7x4xf32> to vector<1x1x4xf32>
    %489 = vector.shape_cast %488 : vector<1x1x4xf32> to vector<4xf32>
    %490 = vector.shape_cast %489 : vector<4xf32> to vector<1x1x4xf32>
    %491 = vector.broadcast %490 : vector<1x1x4xf32> to vector<8x16x4xf32>
    %492 = arith.mulf %487, %491 : vector<8x16x4xf32>
    %493 = arith.addf %486, %492 : vector<8x16x4xf32>
    %494 = vector.extract_strided_slice %458 {offsets = [5, 0, 0], sizes = [8, 16, 4], strides = [1, 1, 1]} : vector<14x16x4xf32> to vector<8x16x4xf32>
    %495 = vector.extract_strided_slice %11 {offsets = [5, 1, 0], sizes = [1, 1, 4], strides = [1, 1, 1]} : vector<7x7x4xf32> to vector<1x1x4xf32>
    %496 = vector.shape_cast %495 : vector<1x1x4xf32> to vector<4xf32>
    %497 = vector.shape_cast %496 : vector<4xf32> to vector<1x1x4xf32>
    %498 = vector.broadcast %497 : vector<1x1x4xf32> to vector<8x16x4xf32>
    %499 = arith.mulf %494, %498 : vector<8x16x4xf32>
    %500 = arith.addf %493, %499 : vector<8x16x4xf32>
    %501 = vector.extract_strided_slice %458 {offsets = [6, 0, 0], sizes = [8, 16, 4], strides = [1, 1, 1]} : vector<14x16x4xf32> to vector<8x16x4xf32>
    %502 = vector.extract_strided_slice %11 {offsets = [6, 1, 0], sizes = [1, 1, 4], strides = [1, 1, 1]} : vector<7x7x4xf32> to vector<1x1x4xf32>
    %503 = vector.shape_cast %502 : vector<1x1x4xf32> to vector<4xf32>
    %504 = vector.shape_cast %503 : vector<4xf32> to vector<1x1x4xf32>
    %505 = vector.broadcast %504 : vector<1x1x4xf32> to vector<8x16x4xf32>
    %506 = arith.mulf %501, %505 : vector<8x16x4xf32>
    %507 = arith.addf %500, %506 : vector<8x16x4xf32>
    %508 = vector.extract_strided_slice %406 {offsets = [0, 2, 0], sizes = [14, 16, 4], strides = [1, 1, 1]} : vector<14x22x4xf32> to vector<14x16x4xf32>
    %509 = vector.extract_strided_slice %508 {offsets = [0, 0, 0], sizes = [8, 16, 4], strides = [1, 1, 1]} : vector<14x16x4xf32> to vector<8x16x4xf32>
    %510 = vector.extract_strided_slice %11 {offsets = [0, 2, 0], sizes = [1, 1, 4], strides = [1, 1, 1]} : vector<7x7x4xf32> to vector<1x1x4xf32>
    %511 = vector.shape_cast %510 : vector<1x1x4xf32> to vector<4xf32>
    %512 = vector.shape_cast %511 : vector<4xf32> to vector<1x1x4xf32>
    %513 = vector.broadcast %512 : vector<1x1x4xf32> to vector<8x16x4xf32>
    %514 = arith.mulf %509, %513 : vector<8x16x4xf32>
    %515 = arith.addf %507, %514 : vector<8x16x4xf32>
    %516 = vector.extract_strided_slice %508 {offsets = [1, 0, 0], sizes = [8, 16, 4], strides = [1, 1, 1]} : vector<14x16x4xf32> to vector<8x16x4xf32>
    %517 = vector.extract_strided_slice %11 {offsets = [1, 2, 0], sizes = [1, 1, 4], strides = [1, 1, 1]} : vector<7x7x4xf32> to vector<1x1x4xf32>
    %518 = vector.shape_cast %517 : vector<1x1x4xf32> to vector<4xf32>
    %519 = vector.shape_cast %518 : vector<4xf32> to vector<1x1x4xf32>
    %520 = vector.broadcast %519 : vector<1x1x4xf32> to vector<8x16x4xf32>
    %521 = arith.mulf %516, %520 : vector<8x16x4xf32>
    %522 = arith.addf %515, %521 : vector<8x16x4xf32>
    %523 = vector.extract_strided_slice %508 {offsets = [2, 0, 0], sizes = [8, 16, 4], strides = [1, 1, 1]} : vector<14x16x4xf32> to vector<8x16x4xf32>
    %524 = vector.extract_strided_slice %11 {offsets = [2, 2, 0], sizes = [1, 1, 4], strides = [1, 1, 1]} : vector<7x7x4xf32> to vector<1x1x4xf32>
    %525 = vector.shape_cast %524 : vector<1x1x4xf32> to vector<4xf32>
    %526 = vector.shape_cast %525 : vector<4xf32> to vector<1x1x4xf32>
    %527 = vector.broadcast %526 : vector<1x1x4xf32> to vector<8x16x4xf32>
    %528 = arith.mulf %523, %527 : vector<8x16x4xf32>
    %529 = arith.addf %522, %528 : vector<8x16x4xf32>
    %530 = vector.extract_strided_slice %508 {offsets = [3, 0, 0], sizes = [8, 16, 4], strides = [1, 1, 1]} : vector<14x16x4xf32> to vector<8x16x4xf32>
    %531 = vector.extract_strided_slice %11 {offsets = [3, 2, 0], sizes = [1, 1, 4], strides = [1, 1, 1]} : vector<7x7x4xf32> to vector<1x1x4xf32>
    %532 = vector.shape_cast %531 : vector<1x1x4xf32> to vector<4xf32>
    %533 = vector.shape_cast %532 : vector<4xf32> to vector<1x1x4xf32>
    %534 = vector.broadcast %533 : vector<1x1x4xf32> to vector<8x16x4xf32>
    %535 = arith.mulf %530, %534 : vector<8x16x4xf32>
    %536 = arith.addf %529, %535 : vector<8x16x4xf32>
    %537 = vector.extract_strided_slice %508 {offsets = [4, 0, 0], sizes = [8, 16, 4], strides = [1, 1, 1]} : vector<14x16x4xf32> to vector<8x16x4xf32>
    %538 = vector.extract_strided_slice %11 {offsets = [4, 2, 0], sizes = [1, 1, 4], strides = [1, 1, 1]} : vector<7x7x4xf32> to vector<1x1x4xf32>
    %539 = vector.shape_cast %538 : vector<1x1x4xf32> to vector<4xf32>
    %540 = vector.shape_cast %539 : vector<4xf32> to vector<1x1x4xf32>
    %541 = vector.broadcast %540 : vector<1x1x4xf32> to vector<8x16x4xf32>
    %542 = arith.mulf %537, %541 : vector<8x16x4xf32>
    %543 = arith.addf %536, %542 : vector<8x16x4xf32>
    %544 = vector.extract_strided_slice %508 {offsets = [5, 0, 0], sizes = [8, 16, 4], strides = [1, 1, 1]} : vector<14x16x4xf32> to vector<8x16x4xf32>
    %545 = vector.extract_strided_slice %11 {offsets = [5, 2, 0], sizes = [1, 1, 4], strides = [1, 1, 1]} : vector<7x7x4xf32> to vector<1x1x4xf32>
    %546 = vector.shape_cast %545 : vector<1x1x4xf32> to vector<4xf32>
    %547 = vector.shape_cast %546 : vector<4xf32> to vector<1x1x4xf32>
    %548 = vector.broadcast %547 : vector<1x1x4xf32> to vector<8x16x4xf32>
    %549 = arith.mulf %544, %548 : vector<8x16x4xf32>
    %550 = arith.addf %543, %549 : vector<8x16x4xf32>
    %551 = vector.extract_strided_slice %508 {offsets = [6, 0, 0], sizes = [8, 16, 4], strides = [1, 1, 1]} : vector<14x16x4xf32> to vector<8x16x4xf32>
    %552 = vector.extract_strided_slice %11 {offsets = [6, 2, 0], sizes = [1, 1, 4], strides = [1, 1, 1]} : vector<7x7x4xf32> to vector<1x1x4xf32>
    %553 = vector.shape_cast %552 : vector<1x1x4xf32> to vector<4xf32>
    %554 = vector.shape_cast %553 : vector<4xf32> to vector<1x1x4xf32>
    %555 = vector.broadcast %554 : vector<1x1x4xf32> to vector<8x16x4xf32>
    %556 = arith.mulf %551, %555 : vector<8x16x4xf32>
    %557 = arith.addf %550, %556 : vector<8x16x4xf32>
    %558 = vector.extract_strided_slice %406 {offsets = [0, 3, 0], sizes = [14, 16, 4], strides = [1, 1, 1]} : vector<14x22x4xf32> to vector<14x16x4xf32>
    %559 = vector.extract_strided_slice %558 {offsets = [0, 0, 0], sizes = [8, 16, 4], strides = [1, 1, 1]} : vector<14x16x4xf32> to vector<8x16x4xf32>
    %560 = vector.extract_strided_slice %11 {offsets = [0, 3, 0], sizes = [1, 1, 4], strides = [1, 1, 1]} : vector<7x7x4xf32> to vector<1x1x4xf32>
    %561 = vector.shape_cast %560 : vector<1x1x4xf32> to vector<4xf32>
    %562 = vector.shape_cast %561 : vector<4xf32> to vector<1x1x4xf32>
    %563 = vector.broadcast %562 : vector<1x1x4xf32> to vector<8x16x4xf32>
    %564 = arith.mulf %559, %563 : vector<8x16x4xf32>
    %565 = arith.addf %557, %564 : vector<8x16x4xf32>
    %566 = vector.extract_strided_slice %558 {offsets = [1, 0, 0], sizes = [8, 16, 4], strides = [1, 1, 1]} : vector<14x16x4xf32> to vector<8x16x4xf32>
    %567 = vector.extract_strided_slice %11 {offsets = [1, 3, 0], sizes = [1, 1, 4], strides = [1, 1, 1]} : vector<7x7x4xf32> to vector<1x1x4xf32>
    %568 = vector.shape_cast %567 : vector<1x1x4xf32> to vector<4xf32>
    %569 = vector.shape_cast %568 : vector<4xf32> to vector<1x1x4xf32>
    %570 = vector.broadcast %569 : vector<1x1x4xf32> to vector<8x16x4xf32>
    %571 = arith.mulf %566, %570 : vector<8x16x4xf32>
    %572 = arith.addf %565, %571 : vector<8x16x4xf32>
    %573 = vector.extract_strided_slice %558 {offsets = [2, 0, 0], sizes = [8, 16, 4], strides = [1, 1, 1]} : vector<14x16x4xf32> to vector<8x16x4xf32>
    %574 = vector.extract_strided_slice %11 {offsets = [2, 3, 0], sizes = [1, 1, 4], strides = [1, 1, 1]} : vector<7x7x4xf32> to vector<1x1x4xf32>
    %575 = vector.shape_cast %574 : vector<1x1x4xf32> to vector<4xf32>
    %576 = vector.shape_cast %575 : vector<4xf32> to vector<1x1x4xf32>
    %577 = vector.broadcast %576 : vector<1x1x4xf32> to vector<8x16x4xf32>
    %578 = arith.mulf %573, %577 : vector<8x16x4xf32>
    %579 = arith.addf %572, %578 : vector<8x16x4xf32>
    %580 = vector.extract_strided_slice %558 {offsets = [3, 0, 0], sizes = [8, 16, 4], strides = [1, 1, 1]} : vector<14x16x4xf32> to vector<8x16x4xf32>
    %581 = vector.extract_strided_slice %11 {offsets = [3, 3, 0], sizes = [1, 1, 4], strides = [1, 1, 1]} : vector<7x7x4xf32> to vector<1x1x4xf32>
    %582 = vector.shape_cast %581 : vector<1x1x4xf32> to vector<4xf32>
    %583 = vector.shape_cast %582 : vector<4xf32> to vector<1x1x4xf32>
    %584 = vector.broadcast %583 : vector<1x1x4xf32> to vector<8x16x4xf32>
    %585 = arith.mulf %580, %584 : vector<8x16x4xf32>
    %586 = arith.addf %579, %585 : vector<8x16x4xf32>
    %587 = vector.extract_strided_slice %558 {offsets = [4, 0, 0], sizes = [8, 16, 4], strides = [1, 1, 1]} : vector<14x16x4xf32> to vector<8x16x4xf32>
    %588 = vector.extract_strided_slice %11 {offsets = [4, 3, 0], sizes = [1, 1, 4], strides = [1, 1, 1]} : vector<7x7x4xf32> to vector<1x1x4xf32>
    %589 = vector.shape_cast %588 : vector<1x1x4xf32> to vector<4xf32>
    %590 = vector.shape_cast %589 : vector<4xf32> to vector<1x1x4xf32>
    %591 = vector.broadcast %590 : vector<1x1x4xf32> to vector<8x16x4xf32>
    %592 = arith.mulf %587, %591 : vector<8x16x4xf32>
    %593 = arith.addf %586, %592 : vector<8x16x4xf32>
    %594 = vector.extract_strided_slice %558 {offsets = [5, 0, 0], sizes = [8, 16, 4], strides = [1, 1, 1]} : vector<14x16x4xf32> to vector<8x16x4xf32>
    %595 = vector.extract_strided_slice %11 {offsets = [5, 3, 0], sizes = [1, 1, 4], strides = [1, 1, 1]} : vector<7x7x4xf32> to vector<1x1x4xf32>
    %596 = vector.shape_cast %595 : vector<1x1x4xf32> to vector<4xf32>
    %597 = vector.shape_cast %596 : vector<4xf32> to vector<1x1x4xf32>
    %598 = vector.broadcast %597 : vector<1x1x4xf32> to vector<8x16x4xf32>
    %599 = arith.mulf %594, %598 : vector<8x16x4xf32>
    %600 = arith.addf %593, %599 : vector<8x16x4xf32>
    %601 = vector.extract_strided_slice %558 {offsets = [6, 0, 0], sizes = [8, 16, 4], strides = [1, 1, 1]} : vector<14x16x4xf32> to vector<8x16x4xf32>
    %602 = vector.extract_strided_slice %11 {offsets = [6, 3, 0], sizes = [1, 1, 4], strides = [1, 1, 1]} : vector<7x7x4xf32> to vector<1x1x4xf32>
    %603 = vector.shape_cast %602 : vector<1x1x4xf32> to vector<4xf32>
    %604 = vector.shape_cast %603 : vector<4xf32> to vector<1x1x4xf32>
    %605 = vector.broadcast %604 : vector<1x1x4xf32> to vector<8x16x4xf32>
    %606 = arith.mulf %601, %605 : vector<8x16x4xf32>
    %607 = arith.addf %600, %606 : vector<8x16x4xf32>
    %608 = vector.extract_strided_slice %406 {offsets = [0, 4, 0], sizes = [14, 16, 4], strides = [1, 1, 1]} : vector<14x22x4xf32> to vector<14x16x4xf32>
    %609 = vector.extract_strided_slice %608 {offsets = [0, 0, 0], sizes = [8, 16, 4], strides = [1, 1, 1]} : vector<14x16x4xf32> to vector<8x16x4xf32>
    %610 = vector.extract_strided_slice %11 {offsets = [0, 4, 0], sizes = [1, 1, 4], strides = [1, 1, 1]} : vector<7x7x4xf32> to vector<1x1x4xf32>
    %611 = vector.shape_cast %610 : vector<1x1x4xf32> to vector<4xf32>
    %612 = vector.shape_cast %611 : vector<4xf32> to vector<1x1x4xf32>
    %613 = vector.broadcast %612 : vector<1x1x4xf32> to vector<8x16x4xf32>
    %614 = arith.mulf %609, %613 : vector<8x16x4xf32>
    %615 = arith.addf %607, %614 : vector<8x16x4xf32>
    %616 = vector.extract_strided_slice %608 {offsets = [1, 0, 0], sizes = [8, 16, 4], strides = [1, 1, 1]} : vector<14x16x4xf32> to vector<8x16x4xf32>
    %617 = vector.extract_strided_slice %11 {offsets = [1, 4, 0], sizes = [1, 1, 4], strides = [1, 1, 1]} : vector<7x7x4xf32> to vector<1x1x4xf32>
    %618 = vector.shape_cast %617 : vector<1x1x4xf32> to vector<4xf32>
    %619 = vector.shape_cast %618 : vector<4xf32> to vector<1x1x4xf32>
    %620 = vector.broadcast %619 : vector<1x1x4xf32> to vector<8x16x4xf32>
    %621 = arith.mulf %616, %620 : vector<8x16x4xf32>
    %622 = arith.addf %615, %621 : vector<8x16x4xf32>
    %623 = vector.extract_strided_slice %608 {offsets = [2, 0, 0], sizes = [8, 16, 4], strides = [1, 1, 1]} : vector<14x16x4xf32> to vector<8x16x4xf32>
    %624 = vector.extract_strided_slice %11 {offsets = [2, 4, 0], sizes = [1, 1, 4], strides = [1, 1, 1]} : vector<7x7x4xf32> to vector<1x1x4xf32>
    %625 = vector.shape_cast %624 : vector<1x1x4xf32> to vector<4xf32>
    %626 = vector.shape_cast %625 : vector<4xf32> to vector<1x1x4xf32>
    %627 = vector.broadcast %626 : vector<1x1x4xf32> to vector<8x16x4xf32>
    %628 = arith.mulf %623, %627 : vector<8x16x4xf32>
    %629 = arith.addf %622, %628 : vector<8x16x4xf32>
    %630 = vector.extract_strided_slice %608 {offsets = [3, 0, 0], sizes = [8, 16, 4], strides = [1, 1, 1]} : vector<14x16x4xf32> to vector<8x16x4xf32>
    %631 = vector.extract_strided_slice %11 {offsets = [3, 4, 0], sizes = [1, 1, 4], strides = [1, 1, 1]} : vector<7x7x4xf32> to vector<1x1x4xf32>
    %632 = vector.shape_cast %631 : vector<1x1x4xf32> to vector<4xf32>
    %633 = vector.shape_cast %632 : vector<4xf32> to vector<1x1x4xf32>
    %634 = vector.broadcast %633 : vector<1x1x4xf32> to vector<8x16x4xf32>
    %635 = arith.mulf %630, %634 : vector<8x16x4xf32>
    %636 = arith.addf %629, %635 : vector<8x16x4xf32>
    %637 = vector.extract_strided_slice %608 {offsets = [4, 0, 0], sizes = [8, 16, 4], strides = [1, 1, 1]} : vector<14x16x4xf32> to vector<8x16x4xf32>
    %638 = vector.extract_strided_slice %11 {offsets = [4, 4, 0], sizes = [1, 1, 4], strides = [1, 1, 1]} : vector<7x7x4xf32> to vector<1x1x4xf32>
    %639 = vector.shape_cast %638 : vector<1x1x4xf32> to vector<4xf32>
    %640 = vector.shape_cast %639 : vector<4xf32> to vector<1x1x4xf32>
    %641 = vector.broadcast %640 : vector<1x1x4xf32> to vector<8x16x4xf32>
    %642 = arith.mulf %637, %641 : vector<8x16x4xf32>
    %643 = arith.addf %636, %642 : vector<8x16x4xf32>
    %644 = vector.extract_strided_slice %608 {offsets = [5, 0, 0], sizes = [8, 16, 4], strides = [1, 1, 1]} : vector<14x16x4xf32> to vector<8x16x4xf32>
    %645 = vector.extract_strided_slice %11 {offsets = [5, 4, 0], sizes = [1, 1, 4], strides = [1, 1, 1]} : vector<7x7x4xf32> to vector<1x1x4xf32>
    %646 = vector.shape_cast %645 : vector<1x1x4xf32> to vector<4xf32>
    %647 = vector.shape_cast %646 : vector<4xf32> to vector<1x1x4xf32>
    %648 = vector.broadcast %647 : vector<1x1x4xf32> to vector<8x16x4xf32>
    %649 = arith.mulf %644, %648 : vector<8x16x4xf32>
    %650 = arith.addf %643, %649 : vector<8x16x4xf32>
    %651 = vector.extract_strided_slice %608 {offsets = [6, 0, 0], sizes = [8, 16, 4], strides = [1, 1, 1]} : vector<14x16x4xf32> to vector<8x16x4xf32>
    %652 = vector.extract_strided_slice %11 {offsets = [6, 4, 0], sizes = [1, 1, 4], strides = [1, 1, 1]} : vector<7x7x4xf32> to vector<1x1x4xf32>
    %653 = vector.shape_cast %652 : vector<1x1x4xf32> to vector<4xf32>
    %654 = vector.shape_cast %653 : vector<4xf32> to vector<1x1x4xf32>
    %655 = vector.broadcast %654 : vector<1x1x4xf32> to vector<8x16x4xf32>
    %656 = arith.mulf %651, %655 : vector<8x16x4xf32>
    %657 = arith.addf %650, %656 : vector<8x16x4xf32>
    %658 = vector.extract_strided_slice %406 {offsets = [0, 5, 0], sizes = [14, 16, 4], strides = [1, 1, 1]} : vector<14x22x4xf32> to vector<14x16x4xf32>
    %659 = vector.extract_strided_slice %658 {offsets = [0, 0, 0], sizes = [8, 16, 4], strides = [1, 1, 1]} : vector<14x16x4xf32> to vector<8x16x4xf32>
    %660 = vector.extract_strided_slice %11 {offsets = [0, 5, 0], sizes = [1, 1, 4], strides = [1, 1, 1]} : vector<7x7x4xf32> to vector<1x1x4xf32>
    %661 = vector.shape_cast %660 : vector<1x1x4xf32> to vector<4xf32>
    %662 = vector.shape_cast %661 : vector<4xf32> to vector<1x1x4xf32>
    %663 = vector.broadcast %662 : vector<1x1x4xf32> to vector<8x16x4xf32>
    %664 = arith.mulf %659, %663 : vector<8x16x4xf32>
    %665 = arith.addf %657, %664 : vector<8x16x4xf32>
    %666 = vector.extract_strided_slice %658 {offsets = [1, 0, 0], sizes = [8, 16, 4], strides = [1, 1, 1]} : vector<14x16x4xf32> to vector<8x16x4xf32>
    %667 = vector.extract_strided_slice %11 {offsets = [1, 5, 0], sizes = [1, 1, 4], strides = [1, 1, 1]} : vector<7x7x4xf32> to vector<1x1x4xf32>
    %668 = vector.shape_cast %667 : vector<1x1x4xf32> to vector<4xf32>
    %669 = vector.shape_cast %668 : vector<4xf32> to vector<1x1x4xf32>
    %670 = vector.broadcast %669 : vector<1x1x4xf32> to vector<8x16x4xf32>
    %671 = arith.mulf %666, %670 : vector<8x16x4xf32>
    %672 = arith.addf %665, %671 : vector<8x16x4xf32>
    %673 = vector.extract_strided_slice %658 {offsets = [2, 0, 0], sizes = [8, 16, 4], strides = [1, 1, 1]} : vector<14x16x4xf32> to vector<8x16x4xf32>
    %674 = vector.extract_strided_slice %11 {offsets = [2, 5, 0], sizes = [1, 1, 4], strides = [1, 1, 1]} : vector<7x7x4xf32> to vector<1x1x4xf32>
    %675 = vector.shape_cast %674 : vector<1x1x4xf32> to vector<4xf32>
    %676 = vector.shape_cast %675 : vector<4xf32> to vector<1x1x4xf32>
    %677 = vector.broadcast %676 : vector<1x1x4xf32> to vector<8x16x4xf32>
    %678 = arith.mulf %673, %677 : vector<8x16x4xf32>
    %679 = arith.addf %672, %678 : vector<8x16x4xf32>
    %680 = vector.extract_strided_slice %658 {offsets = [3, 0, 0], sizes = [8, 16, 4], strides = [1, 1, 1]} : vector<14x16x4xf32> to vector<8x16x4xf32>
    %681 = vector.extract_strided_slice %11 {offsets = [3, 5, 0], sizes = [1, 1, 4], strides = [1, 1, 1]} : vector<7x7x4xf32> to vector<1x1x4xf32>
    %682 = vector.shape_cast %681 : vector<1x1x4xf32> to vector<4xf32>
    %683 = vector.shape_cast %682 : vector<4xf32> to vector<1x1x4xf32>
    %684 = vector.broadcast %683 : vector<1x1x4xf32> to vector<8x16x4xf32>
    %685 = arith.mulf %680, %684 : vector<8x16x4xf32>
    %686 = arith.addf %679, %685 : vector<8x16x4xf32>
    %687 = vector.extract_strided_slice %658 {offsets = [4, 0, 0], sizes = [8, 16, 4], strides = [1, 1, 1]} : vector<14x16x4xf32> to vector<8x16x4xf32>
    %688 = vector.extract_strided_slice %11 {offsets = [4, 5, 0], sizes = [1, 1, 4], strides = [1, 1, 1]} : vector<7x7x4xf32> to vector<1x1x4xf32>
    %689 = vector.shape_cast %688 : vector<1x1x4xf32> to vector<4xf32>
    %690 = vector.shape_cast %689 : vector<4xf32> to vector<1x1x4xf32>
    %691 = vector.broadcast %690 : vector<1x1x4xf32> to vector<8x16x4xf32>
    %692 = arith.mulf %687, %691 : vector<8x16x4xf32>
    %693 = arith.addf %686, %692 : vector<8x16x4xf32>
    %694 = vector.extract_strided_slice %658 {offsets = [5, 0, 0], sizes = [8, 16, 4], strides = [1, 1, 1]} : vector<14x16x4xf32> to vector<8x16x4xf32>
    %695 = vector.extract_strided_slice %11 {offsets = [5, 5, 0], sizes = [1, 1, 4], strides = [1, 1, 1]} : vector<7x7x4xf32> to vector<1x1x4xf32>
    %696 = vector.shape_cast %695 : vector<1x1x4xf32> to vector<4xf32>
    %697 = vector.shape_cast %696 : vector<4xf32> to vector<1x1x4xf32>
    %698 = vector.broadcast %697 : vector<1x1x4xf32> to vector<8x16x4xf32>
    %699 = arith.mulf %694, %698 : vector<8x16x4xf32>
    %700 = arith.addf %693, %699 : vector<8x16x4xf32>
    %701 = vector.extract_strided_slice %658 {offsets = [6, 0, 0], sizes = [8, 16, 4], strides = [1, 1, 1]} : vector<14x16x4xf32> to vector<8x16x4xf32>
    %702 = vector.extract_strided_slice %11 {offsets = [6, 5, 0], sizes = [1, 1, 4], strides = [1, 1, 1]} : vector<7x7x4xf32> to vector<1x1x4xf32>
    %703 = vector.shape_cast %702 : vector<1x1x4xf32> to vector<4xf32>
    %704 = vector.shape_cast %703 : vector<4xf32> to vector<1x1x4xf32>
    %705 = vector.broadcast %704 : vector<1x1x4xf32> to vector<8x16x4xf32>
    %706 = arith.mulf %701, %705 : vector<8x16x4xf32>
    %707 = arith.addf %700, %706 : vector<8x16x4xf32>
    %708 = vector.extract_strided_slice %406 {offsets = [0, 6, 0], sizes = [14, 16, 4], strides = [1, 1, 1]} : vector<14x22x4xf32> to vector<14x16x4xf32>
    %709 = vector.extract_strided_slice %708 {offsets = [0, 0, 0], sizes = [8, 16, 4], strides = [1, 1, 1]} : vector<14x16x4xf32> to vector<8x16x4xf32>
    %710 = vector.extract_strided_slice %11 {offsets = [0, 6, 0], sizes = [1, 1, 4], strides = [1, 1, 1]} : vector<7x7x4xf32> to vector<1x1x4xf32>
    %711 = vector.shape_cast %710 : vector<1x1x4xf32> to vector<4xf32>
    %712 = vector.shape_cast %711 : vector<4xf32> to vector<1x1x4xf32>
    %713 = vector.broadcast %712 : vector<1x1x4xf32> to vector<8x16x4xf32>
    %714 = arith.mulf %709, %713 : vector<8x16x4xf32>
    %715 = arith.addf %707, %714 : vector<8x16x4xf32>
    %716 = vector.extract_strided_slice %708 {offsets = [1, 0, 0], sizes = [8, 16, 4], strides = [1, 1, 1]} : vector<14x16x4xf32> to vector<8x16x4xf32>
    %717 = vector.extract_strided_slice %11 {offsets = [1, 6, 0], sizes = [1, 1, 4], strides = [1, 1, 1]} : vector<7x7x4xf32> to vector<1x1x4xf32>
    %718 = vector.shape_cast %717 : vector<1x1x4xf32> to vector<4xf32>
    %719 = vector.shape_cast %718 : vector<4xf32> to vector<1x1x4xf32>
    %720 = vector.broadcast %719 : vector<1x1x4xf32> to vector<8x16x4xf32>
    %721 = arith.mulf %716, %720 : vector<8x16x4xf32>
    %722 = arith.addf %715, %721 : vector<8x16x4xf32>
    %723 = vector.extract_strided_slice %708 {offsets = [2, 0, 0], sizes = [8, 16, 4], strides = [1, 1, 1]} : vector<14x16x4xf32> to vector<8x16x4xf32>
    %724 = vector.extract_strided_slice %11 {offsets = [2, 6, 0], sizes = [1, 1, 4], strides = [1, 1, 1]} : vector<7x7x4xf32> to vector<1x1x4xf32>
    %725 = vector.shape_cast %724 : vector<1x1x4xf32> to vector<4xf32>
    %726 = vector.shape_cast %725 : vector<4xf32> to vector<1x1x4xf32>
    %727 = vector.broadcast %726 : vector<1x1x4xf32> to vector<8x16x4xf32>
    %728 = arith.mulf %723, %727 : vector<8x16x4xf32>
    %729 = arith.addf %722, %728 : vector<8x16x4xf32>
    %730 = vector.extract_strided_slice %708 {offsets = [3, 0, 0], sizes = [8, 16, 4], strides = [1, 1, 1]} : vector<14x16x4xf32> to vector<8x16x4xf32>
    %731 = vector.extract_strided_slice %11 {offsets = [3, 6, 0], sizes = [1, 1, 4], strides = [1, 1, 1]} : vector<7x7x4xf32> to vector<1x1x4xf32>
    %732 = vector.shape_cast %731 : vector<1x1x4xf32> to vector<4xf32>
    %733 = vector.shape_cast %732 : vector<4xf32> to vector<1x1x4xf32>
    %734 = vector.broadcast %733 : vector<1x1x4xf32> to vector<8x16x4xf32>
    %735 = arith.mulf %730, %734 : vector<8x16x4xf32>
    %736 = arith.addf %729, %735 : vector<8x16x4xf32>
    %737 = vector.extract_strided_slice %708 {offsets = [4, 0, 0], sizes = [8, 16, 4], strides = [1, 1, 1]} : vector<14x16x4xf32> to vector<8x16x4xf32>
    %738 = vector.extract_strided_slice %11 {offsets = [4, 6, 0], sizes = [1, 1, 4], strides = [1, 1, 1]} : vector<7x7x4xf32> to vector<1x1x4xf32>
    %739 = vector.shape_cast %738 : vector<1x1x4xf32> to vector<4xf32>
    %740 = vector.shape_cast %739 : vector<4xf32> to vector<1x1x4xf32>
    %741 = vector.broadcast %740 : vector<1x1x4xf32> to vector<8x16x4xf32>
    %742 = arith.mulf %737, %741 : vector<8x16x4xf32>
    %743 = arith.addf %736, %742 : vector<8x16x4xf32>
    %744 = vector.extract_strided_slice %708 {offsets = [5, 0, 0], sizes = [8, 16, 4], strides = [1, 1, 1]} : vector<14x16x4xf32> to vector<8x16x4xf32>
    %745 = vector.extract_strided_slice %11 {offsets = [5, 6, 0], sizes = [1, 1, 4], strides = [1, 1, 1]} : vector<7x7x4xf32> to vector<1x1x4xf32>
    %746 = vector.shape_cast %745 : vector<1x1x4xf32> to vector<4xf32>
    %747 = vector.shape_cast %746 : vector<4xf32> to vector<1x1x4xf32>
    %748 = vector.broadcast %747 : vector<1x1x4xf32> to vector<8x16x4xf32>
    %749 = arith.mulf %744, %748 : vector<8x16x4xf32>
    %750 = arith.addf %743, %749 : vector<8x16x4xf32>
    %751 = vector.extract_strided_slice %708 {offsets = [6, 0, 0], sizes = [8, 16, 4], strides = [1, 1, 1]} : vector<14x16x4xf32> to vector<8x16x4xf32>
    %752 = vector.extract_strided_slice %11 {offsets = [6, 6, 0], sizes = [1, 1, 4], strides = [1, 1, 1]} : vector<7x7x4xf32> to vector<1x1x4xf32>
    %753 = vector.shape_cast %752 : vector<1x1x4xf32> to vector<4xf32>
    %754 = vector.shape_cast %753 : vector<4xf32> to vector<1x1x4xf32>
    %755 = vector.broadcast %754 : vector<1x1x4xf32> to vector<8x16x4xf32>
    %756 = arith.mulf %751, %755 : vector<8x16x4xf32>
    %757 = arith.addf %750, %756 : vector<8x16x4xf32>
    %758 = vector.shape_cast %12 : vector<1x4xf32> to vector<1x1x4xf32>
    %759 = vector.broadcast %758 : vector<1x1x4xf32> to vector<8x16x4xf32>
    %760 = arith.addf %757, %759 : vector<8x16x4xf32>
    %cst_48 = arith.constant dense<0.000000e+00> : vector<8x16xf32>
    %761 = vector.multi_reduction <add>, %760, %cst_48 [2] : vector<8x16x4xf32> to vector<8x16xf32>
    %762 = vector.shape_cast %761 : vector<8x16xf32> to vector<8x16x1xf32>
    %cst_49 = arith.constant 2.500000e-01 : f32
    %763 = vector.broadcast %cst_49 : f32 to vector<8x16x1xf32>
    %764 = arith.mulf %762, %763 : vector<8x16x1xf32>
    %765 = vector.broadcast %764 : vector<8x16x1xf32> to vector<8x16x4xf32>
    %766 = arith.subf %760, %765 : vector<8x16x4xf32>
    %767 = arith.mulf %766, %766 : vector<8x16x4xf32>
    %cst_50 = arith.constant dense<0.000000e+00> : vector<8x16xf32>
    %768 = vector.multi_reduction <add>, %767, %cst_50 [2] : vector<8x16x4xf32> to vector<8x16xf32>
    %769 = vector.shape_cast %768 : vector<8x16xf32> to vector<8x16x1xf32>
    %cst_51 = arith.constant 2.500000e-01 : f32
    %770 = vector.broadcast %cst_51 : f32 to vector<8x16x1xf32>
    %771 = arith.mulf %769, %770 : vector<8x16x1xf32>
    %cst_52 = arith.constant 9.99999997E-7 : f32
    %772 = vector.broadcast %cst_52 : f32 to vector<8x16x1xf32>
    %773 = arith.addf %771, %772 : vector<8x16x1xf32>
    %774 = math.rsqrt %773 : vector<8x16x1xf32>
    %775 = vector.broadcast %774 : vector<8x16x1xf32> to vector<8x16x4xf32>
    %776 = arith.mulf %766, %775 : vector<8x16x4xf32>
    %777 = vector.shape_cast %776 : vector<8x16x4xf32> to vector<128x4xf32>
    %778 = arith.truncf %777 : vector<128x4xf32> to vector<128x4xbf16>
    %c0_53 = arith.constant 0 : index
    %c0_54 = arith.constant 0 : index
    %779 = vector.load %arg4[%c0_53, %c0_54] : memref<4x16xbf16, #tpu.memory_space<vmem>>, vector<4x16xbf16>
    %cst_55 = arith.constant dense<0.000000e+00> : vector<128x16xf32>
    %780 = tpu.matmul %778, %779, %cst_55 {dimension_numbers = #tpu.dot_dimension_numbers<[1], [0], [0], [1], [0, 0, 1, 1], [], []>} : vector<128x4xbf16>, vector<4x16xbf16>, vector<128x16xf32> -> vector<128x16xf32>
    %781 = vector.broadcast %13 : vector<1x16xf32> to vector<128x16xf32>
    %782 = arith.addf %780, %781 : vector<128x16xf32>
    %cst_56 = arith.constant 5.000000e-01 : f32
    %783 = vector.broadcast %cst_56 : f32 to vector<128x16xf32>
    %784 = arith.mulf %783, %782 : vector<128x16xf32>
    %cst_57 = arith.constant 0.707106769 : f32
    %785 = vector.broadcast %cst_57 : f32 to vector<128x16xf32>
    %786 = arith.mulf %782, %785 : vector<128x16xf32>
    %787 = math.erf %786 : vector<128x16xf32>
    %cst_58 = arith.constant 1.000000e+00 : f32
    %788 = vector.broadcast %cst_58 : f32 to vector<128x16xf32>
    %789 = arith.addf %788, %787 : vector<128x16xf32>
    %790 = arith.mulf %784, %789 : vector<128x16xf32>
    %791 = arith.mulf %790, %790 : vector<128x16xf32>
    %cst_59 = arith.constant dense<0.000000e+00> : vector<16xf32>
    %792 = vector.multi_reduction <add>, %791, %cst_59 [0] : vector<128x16xf32> to vector<16xf32>
    %793 = vector.shape_cast %792 : vector<16xf32> to vector<1x16xf32>
    %794 = arith.addf %403, %793 : vector<1x16xf32>
    %795 = arith.truncf %790 : vector<128x16xf32> to vector<128x16xbf16>
    %c128 = arith.constant 128 : index
    %c0_60 = arith.constant 0 : index
    %796 = vector.load %arg12[%c128, %c0_60] : memref<256x16xbf16, #tpu.memory_space<vmem>>, vector<128x16xbf16>
    tpu.vector_store %arg12[%c128, %c0_60], %795 {strides = array<i32>} : memref<256x16xbf16, #tpu.memory_space<vmem>>, vector<128x16xbf16>,
    %797 = math.sqrt %794 : vector<1x16xf32>
    %798 = vector.shape_cast %797 : vector<1x16xf32> to vector<1x1x16xf32>
    %cst_61 = arith.constant dense<0.000000e+00> : vector<1xf32>
    %799 = vector.multi_reduction <add>, %798, %cst_61 [1, 2] : vector<1x1x16xf32> to vector<1xf32>
    %800 = vector.shape_cast %799 : vector<1xf32> to vector<1x1x1xf32>
    %801 = vector.extract %800[0, 0, 0] : f32 from vector<1x1x1xf32>
    %cst_62 = arith.constant 1.600000e+01 : f32
    %802 = arith.divf %801, %cst_62 : f32
    %cst_63 = arith.constant 9.99999997E-7 : f32
    %803 = arith.addf %802, %cst_63 : f32
    %804 = vector.broadcast %803 : f32 to vector<1x16xf32>
    %805 = arith.divf %797, %804 : vector<1x16xf32>
    %c0_64 = arith.constant 0 : index
    %c0_65 = arith.constant 0 : index
    %806 = vector.load %arg6[%c0_64, %c0_65] : memref<1x16xf32, #tpu.memory_space<vmem>>, vector<1x16xf32>
    %807 = arith.mulf %806, %805 : vector<1x16xf32>
    %cst_66 = arith.constant 1.000000e+00 : f32
    %808 = vector.broadcast %cst_66 : f32 to vector<1x16xf32>
    %809 = arith.addf %807, %808 : vector<1x16xf32>
    %c0_67 = arith.constant 0 : index
    %c0_68 = arith.constant 0 : index
    %810 = vector.load %arg7[%c0_67, %c0_68] : memref<1x16xf32, #tpu.memory_space<vmem>>, vector<1x16xf32>
    %c0_69 = arith.constant 0 : index
    %c0_70 = arith.constant 0 : index
    %811 = vector.load %arg9[%c0_69, %c0_70] : memref<1x4xf32, #tpu.memory_space<vmem>>, vector<1x4xf32>
    %c0_71 = arith.constant 0 : index
    %c0_72 = arith.constant 0 : index
    %812 = vector.load %arg12[%c0_71, %c0_72] : memref<256x16xbf16, #tpu.memory_space<vmem>>, vector<128x16xbf16>
    %813 = arith.extf %812 : vector<128x16xbf16> to vector<128x16xf32>
    %814 = vector.broadcast %809 : vector<1x16xf32> to vector<128x16xf32>
    %815 = arith.mulf %813, %814 : vector<128x16xf32>
    %816 = vector.broadcast %810 : vector<1x16xf32> to vector<128x16xf32>
    %817 = arith.addf %815, %816 : vector<128x16xf32>
    %818 = arith.truncf %817 : vector<128x16xf32> to vector<128x16xbf16>
    %c0_73 = arith.constant 0 : index
    %c0_74 = arith.constant 0 : index
    %819 = vector.load %arg8[%c0_73, %c0_74] : memref<16x4xbf16, #tpu.memory_space<vmem>>, vector<16x4xbf16>
    %cst_75 = arith.constant dense<0.000000e+00> : vector<128x4xf32>
    %820 = tpu.matmul %818, %819, %cst_75 {dimension_numbers = #tpu.dot_dimension_numbers<[1], [0], [0], [1], [0, 0, 1, 1], [], []>} : vector<128x16xbf16>, vector<16x4xbf16>, vector<128x4xf32> -> vector<128x4xf32>
    %821 = vector.broadcast %811 : vector<1x4xf32> to vector<128x4xf32>
    %822 = arith.addf %820, %821 : vector<128x4xf32>
    %823 = vector.shape_cast %822 : vector<128x4xf32> to vector<8x16x4xf32>
    %c0_76 = arith.constant 0 : index
    %c0_77 = arith.constant 0 : index
    %c0_78 = arith.constant 0 : index
    %c0_79 = arith.constant 0 : index
    %824 = vector.load %arg1[%c0_76, %c0_77, %c0_78, %c0_79] : memref<1x16x16x4xf32, #tpu.memory_space<vmem>>, vector<1x8x16x4xf32>
    %825 = vector.shape_cast %824 : vector<1x8x16x4xf32> to vector<8x16x4xf32>
    %826 = arith.addf %823, %825 : vector<8x16x4xf32>
    %c0_80 = arith.constant 0 : index
    %c0_81 = arith.constant 0 : index
    %c0_82 = arith.constant 0 : index
    %c0_83 = arith.constant 0 : index
    %827 = vector.load %arg10[%c0_80, %c0_81, %c0_82, %c0_83] : memref<1x16x16x4xf32, #tpu.memory_space<vmem>>, vector<1x8x16x4xf32>
    %828 = vector.shape_cast %827 : vector<1x8x16x4xf32> to vector<8x16x4xf32>
    %829 = vector.shape_cast %826 : vector<8x16x4xf32> to vector<1x8x16x4xf32>
    tpu.vector_store %arg10[%c0_80, %c0_81, %c0_82, %c0_83], %829 {strides = array<i32>} : memref<1x16x16x4xf32, #tpu.memory_space<vmem>>, vector<1x8x16x4xf32>,
    %c128_84 = arith.constant 128 : index
    %c0_85 = arith.constant 0 : index
    %830 = vector.load %arg12[%c128_84, %c0_85] : memref<256x16xbf16, #tpu.memory_space<vmem>>, vector<128x16xbf16>
    %831 = arith.extf %830 : vector<128x16xbf16> to vector<128x16xf32>
    %832 = vector.broadcast %809 : vector<1x16xf32> to vector<128x16xf32>
    %833 = arith.mulf %831, %832 : vector<128x16xf32>
    %834 = vector.broadcast %810 : vector<1x16xf32> to vector<128x16xf32>
    %835 = arith.addf %833, %834 : vector<128x16xf32>
    %836 = arith.truncf %835 : vector<128x16xf32> to vector<128x16xbf16>
    %c0_86 = arith.constant 0 : index
    %c0_87 = arith.constant 0 : index
    %837 = vector.load %arg8[%c0_86, %c0_87] : memref<16x4xbf16, #tpu.memory_space<vmem>>, vector<16x4xbf16>
    %cst_88 = arith.constant dense<0.000000e+00> : vector<128x4xf32>
    %838 = tpu.matmul %836, %837, %cst_88 {dimension_numbers = #tpu.dot_dimension_numbers<[1], [0], [0], [1], [0, 0, 1, 1], [], []>} : vector<128x16xbf16>, vector<16x4xbf16>, vector<128x4xf32> -> vector<128x4xf32>
    %839 = vector.broadcast %811 : vector<1x4xf32> to vector<128x4xf32>
    %840 = arith.addf %838, %839 : vector<128x4xf32>
    %841 = vector.shape_cast %840 : vector<128x4xf32> to vector<8x16x4xf32>
    %c0_89 = arith.constant 0 : index
    %c8_90 = arith.constant 8 : index
    %c0_91 = arith.constant 0 : index
    %c0_92 = arith.constant 0 : index
    %842 = vector.load %arg1[%c0_89, %c8_90, %c0_91, %c0_92] : memref<1x16x16x4xf32, #tpu.memory_space<vmem>>, vector<1x8x16x4xf32>
    %843 = vector.shape_cast %842 : vector<1x8x16x4xf32> to vector<8x16x4xf32>
    %844 = arith.addf %841, %843 : vector<8x16x4xf32>
    %c0_93 = arith.constant 0 : index
    %c8_94 = arith.constant 8 : index
    %c0_95 = arith.constant 0 : index
    %c0_96 = arith.constant 0 : index
    %845 = vector.load %arg10[%c0_93, %c8_94, %c0_95, %c0_96] : memref<1x16x16x4xf32, #tpu.memory_space<vmem>>, vector<1x8x16x4xf32>
    %846 = vector.shape_cast %845 : vector<1x8x16x4xf32> to vector<8x16x4xf32>
    %847 = vector.shape_cast %844 : vector<8x16x4xf32> to vector<1x8x16x4xf32>
    tpu.vector_store %arg10[%c0_93, %c8_94, %c0_95, %c0_96], %847 {strides = array<i32>} : memref<1x16x16x4xf32, #tpu.memory_space<vmem>>, vector<1x8x16x4xf32>,
    return
  }
  func.func @transform_0(%arg0: i32) -> (i32, i32, i32, i32) {
    %c0_i32 = arith.constant 0 : i32
    %c0_i32_0 = arith.constant 0 : i32
    %c0_i32_1 = arith.constant 0 : i32
    %c0_i32_2 = arith.constant 0 : i32
    return %arg0, %c0_i32, %c0_i32_0, %c0_i32_1 : i32, i32, i32, i32
  }
  func.func @transform_1(%arg0: i32) -> (i32, i32, i32) {
    %c0_i32 = arith.constant 0 : i32
    %c0_i32_0 = arith.constant 0 : i32
    %c0_i32_1 = arith.constant 0 : i32
    %c0_i32_2 = arith.constant 0 : i32
    return %c0_i32, %c0_i32_0, %c0_i32_1 : i32, i32, i32
  }
  func.func @transform_2(%arg0: i32) -> (i32, i32) {
    %c0_i32 = arith.constant 0 : i32
    %c0_i32_0 = arith.constant 0 : i32
    %c0_i32_1 = arith.constant 0 : i32
    return %c0_i32, %c0_i32_0 : i32, i32
  }
  func.func @transform_3(%arg0: i32) -> (i32, i32) {
    %c0_i32 = arith.constant 0 : i32
    %c0_i32_0 = arith.constant 0 : i32
    %c0_i32_1 = arith.constant 0 : i32
    return %c0_i32, %c0_i32_0 : i32, i32
  }
  func.func @transform_4(%arg0: i32) -> (i32, i32) {
    %c0_i32 = arith.constant 0 : i32
    %c0_i32_0 = arith.constant 0 : i32
    %c0_i32_1 = arith.constant 0 : i32
    return %c0_i32, %c0_i32_0 : i32, i32
  }
  func.func @transform_5(%arg0: i32) -> (i32, i32) {
    %c0_i32 = arith.constant 0 : i32
    %c0_i32_0 = arith.constant 0 : i32
    %c0_i32_1 = arith.constant 0 : i32
    return %c0_i32, %c0_i32_0 : i32, i32
  }
  func.func @transform_6(%arg0: i32) -> (i32, i32) {
    %c0_i32 = arith.constant 0 : i32
    %c0_i32_0 = arith.constant 0 : i32
    %c0_i32_1 = arith.constant 0 : i32
    return %c0_i32, %c0_i32_0 : i32, i32
  }
  func.func @transform_7(%arg0: i32) -> (i32, i32) {
    %c0_i32 = arith.constant 0 : i32
    %c0_i32_0 = arith.constant 0 : i32
    %c0_i32_1 = arith.constant 0 : i32
    return %c0_i32, %c0_i32_0 : i32, i32
  }
  func.func @transform_8(%arg0: i32) -> (i32, i32) {
    %c0_i32 = arith.constant 0 : i32
    %c0_i32_0 = arith.constant 0 : i32
    %c0_i32_1 = arith.constant 0 : i32
    return %c0_i32, %c0_i32_0 : i32, i32
  }
  func.func @transform_9(%arg0: i32) -> (i32, i32, i32, i32) {
    %c0_i32 = arith.constant 0 : i32
    %c0_i32_0 = arith.constant 0 : i32
    %c0_i32_1 = arith.constant 0 : i32
    %c0_i32_2 = arith.constant 0 : i32
    return %arg0, %c0_i32, %c0_i32_0, %c0_i32_1 : i32, i32, i32, i32
  }
}

</mosaic_0001>

<llo_original>
// kernel: tpu_custom_call.1
$region0: #{tpu_custom_call.1}
  #allocation0 [shape = 'u32[]', space=smem, size = 0x4, offset = 0x4, fixed_abs, tag = 'smem constant byte address 0x4 - core index']
  #allocation1 [shape = 'u32[144,128]{1,0:T(1,128)}', space=vmem, size = 0x12000, scoped, tag = 'internal scratch']
  #allocation2 [shape = 'f32[22,22,4]{2,1,0:T(8,128)}', space=vmem, size = 0x42000, scoped, tag = 'scratch operand']
  #allocation3 [shape = 'bf16[256,16]{1,0:T(16,128)(2,1)}', space=vmem, size = 0x10000, scoped, tag = 'scratch operand']
  %s0 = inlined_call_operand.vmem [shape: f32[2,16,16,4], index: 0, kind: input, shape index: {}]
  %s1 = inlined_call_operand.vmem [shape: f32[7,7,4], index: 1, kind: input, shape index: {}]
  %s2 = inlined_call_operand.vmem [shape: f32[1,4], index: 2, kind: input, shape index: {}]
  %s3 = inlined_call_operand.vmem [shape: bf16[4,16], index: 3, kind: input, shape index: {}]
  %s4 = inlined_call_operand.vmem [shape: f32[1,16], index: 4, kind: input, shape index: {}]
  %s5 = inlined_call_operand.vmem [shape: f32[1,16], index: 5, kind: input, shape index: {}]
  %s6 = inlined_call_operand.vmem [shape: f32[1,16], index: 6, kind: input, shape index: {}]
  %s7 = inlined_call_operand.vmem [shape: bf16[16,4], index: 7, kind: input, shape index: {}]
  %s8 = inlined_call_operand.vmem [shape: f32[1,4], index: 8, kind: input, shape index: {}]
  %s9 = inlined_call_operand.vmem [shape: f32[2,16,16,4], index: 9, kind: output, shape index: {}]
  %s10 = sld [smem:[#allocation0]]
  $region69: #{tpu_custom_call.1} parent=0
    _
  %s12 = ssub.s32 1, %s10
  %s13 = scalar_select 0, %s12, %s10
  loop: start=0, step=1, limit=4
  $region2: #{tpu_custom_call.1} parent=0 // loop_pre_header
    _
  $region3: #{tpu_custom_call.1} parent=0 // loop_header
    %s15 = sphi 0, %s19
    %p16 = scmp.ge.s32.totalorder %s15, 4
    %s25 = sphi 0, %s27
    %s28 = sphi 0, %s25
    %s29 = sphi 0, %s28
    %s45 = sphi 0, %s29
    %s49 = sphi 0, %s49
    %s51 = sphi 0, %s49
    %s52 = sphi 0, %s51
    %s66 = sphi 0, %s52
    %s70 = sphi 0, %s70
    %s72 = sphi 0, %s70
    %s73 = sphi 0, %s72
    %s87 = sphi 0, %s73
    %s91 = sphi 0, %s91
    %s93 = sphi 0, %s91
    %s94 = sphi 0, %s93
    %s108 = sphi 0, %s94
    %s112 = sphi 0, %s112
    %s114 = sphi 0, %s112
    %s115 = sphi 0, %s114
    %s129 = sphi 0, %s115
    %s133 = sphi 0, %s133
    %s135 = sphi 0, %s133
    %s136 = sphi 0, %s135
    %s150 = sphi 0, %s136
    %s154 = sphi 0, %s154
    %s156 = sphi 0, %s154
    %s157 = sphi 0, %s156
    %s171 = sphi 0, %s157
    %s175 = sphi 0, %s175
    %s177 = sphi 0, %s175
    %s178 = sphi 0, %s177
    %s192 = sphi 0, %s178
    %s196 = sphi 0, %s196
    %s198 = sphi 0, %s196
    %s199 = sphi 0, %s198
    %s213 = sphi 0, %s199
    %s219 = sphi 0, %s221
    %s222 = sphi 0, %s219
    %s223 = sphi 0, %s222
    %s239 = sphi 0, %s223
  $region4: #{tpu_custom_call.1} parent=0 // loop_header_branch
    %18 = sbr.rel (%p16) target = $region8
  $region5: #{tpu_custom_call.1} parent=0 // loop_body
    %s20 = ssub.s32 %s15, 1
    %s21 = ssub.s32 %s15, 2
    %s22 = sadd.s32 %s15, 1
    %s23 = ssub.s32 %s15, %s22
    %p24 = scmp.eq.s32.totalorder %s23, 0
    %s26 = sadd.s32 %s25, 1
    %s27 = scalar_select %p24, %s25, %s26
    %p30 = pneg %p24
    %p31 = scmp.eq.s32.totalorder %s15, 1
    %p32 = por %p30, %p31
    %p33 = scmp.ne.s32.totalorder %s25, %s28
    %p34 = scmp.eq.s32.totalorder %s15, 0
    %p35 = por %p33, %p34
    %p36 = scmp.ne.s32.totalorder %s25, %s28
    %p37 = scmp.eq.s32.totalorder %s20, 1
    %p38 = por %p36, %p37
    %p39 = scmp.ne.s32.totalorder %s28, %s29
    %p40 = scmp.eq.s32.totalorder %s20, 0
    %p41 = por %p39, %p40
    %p42 = scmp.ne.s32.totalorder %s28, %s29
    %p43 = scmp.eq.s32.totalorder %s21, 1
    %p44 = por %p42, %p43
    %p46 = scmp.ne.s32.totalorder %s29, %s45
    %p47 = scmp.eq.s32.totalorder %s21, 0
    %p48 = por %p46, %p47
    %s50 = sadd.s32 %s49, 1
    %p53 = scmp.eq.s32.totalorder %s15, 1
    %p54 = scmp.ne.s32.totalorder %s49, %s51
    %p55 = scmp.eq.s32.totalorder %s15, 0
    %p56 = por %p54, %p55
    %p57 = scmp.ne.s32.totalorder %s49, %s51
    %p58 = scmp.eq.s32.totalorder %s20, 1
    %p59 = por %p57, %p58
    %p60 = scmp.ne.s32.totalorder %s51, %s52
    %p61 = scmp.eq.s32.totalorder %s20, 0
    %p62 = por %p60, %p61
    %p63 = scmp.ne.s32.totalorder %s51, %s52
    %p64 = scmp.eq.s32.totalorder %s21, 1
    %p65 = por %p63, %p64
    %p67 = scmp.ne.s32.totalorder %s52, %s66
    %p68 = scmp.eq.s32.totalorder %s21, 0
    %p69 = por %p67, %p68
    %s71 = sadd.s32 %s70, 1
    %p74 = scmp.eq.s32.totalorder %s15, 1
    %p75 = scmp.ne.s32.totalorder %s70, %s72
    %p76 = scmp.eq.s32.totalorder %s15, 0
    %p77 = por %p75, %p76
    %p78 = scmp.ne.s32.totalorder %s70, %s72
    %p79 = scmp.eq.s32.totalorder %s20, 1
    %p80 = por %p78, %p79
    %p81 = scmp.ne.s32.totalorder %s72, %s73
    %p82 = scmp.eq.s32.totalorder %s20, 0
    %p83 = por %p81, %p82
    %p84 = scmp.ne.s32.totalorder %s72, %s73
    %p85 = scmp.eq.s32.totalorder %s21, 1
    %p86 = por %p84, %p85
    %p88 = scmp.ne.s32.totalorder %s73, %s87
    %p89 = scmp.eq.s32.totalorder %s21, 0
    %p90 = por %p88, %p89
    %s92 = sadd.s32 %s91, 1
    %p95 = scmp.eq.s32.totalorder %s15, 1
    %p96 = scmp.ne.s32.totalorder %s91, %s93
    %p97 = scmp.eq.s32.totalorder %s15, 0
    %p98 = por %p96, %p97
    %p99 = scmp.ne.s32.totalorder %s91, %s93
    %p100 = scmp.eq.s32.totalorder %s20, 1
    %p101 = por %p99, %p100
    %p102 = scmp.ne.s32.totalorder %s93, %s94
    %p103 = scmp.eq.s32.totalorder %s20, 0
    %p104 = por %p102, %p103
    %p105 = scmp.ne.s32.totalorder %s93, %s94
    %p106 = scmp.eq.s32.totalorder %s21, 1
    %p107 = por %p105, %p106
    %p109 = scmp.ne.s32.totalorder %s94, %s108
    %p110 = scmp.eq.s32.totalorder %s21, 0
    %p111 = por %p109, %p110
    %s113 = sadd.s32 %s112, 1
    %p116 = scmp.eq.s32.totalorder %s15, 1
    %p117 = scmp.ne.s32.totalorder %s112, %s114
    %p118 = scmp.eq.s32.totalorder %s15, 0
    %p119 = por %p117, %p118
    %p120 = scmp.ne.s32.totalorder %s112, %s114
    %p121 = scmp.eq.s32.totalorder %s20, 1
    %p122 = por %p120, %p121
    %p123 = scmp.ne.s32.totalorder %s114, %s115
    %p124 = scmp.eq.s32.totalorder %s20, 0
    %p125 = por %p123, %p124
    %p126 = scmp.ne.s32.totalorder %s114, %s115
    %p127 = scmp.eq.s32.totalorder %s21, 1
    %p128 = por %p126, %p127
    %p130 = scmp.ne.s32.totalorder %s115, %s129
    %p131 = scmp.eq.s32.totalorder %s21, 0
    %p132 = por %p130, %p131
    %s134 = sadd.s32 %s133, 1
    %p137 = scmp.eq.s32.totalorder %s15, 1
    %p138 = scmp.ne.s32.totalorder %s133, %s135
    %p139 = scmp.eq.s32.totalorder %s15, 0
    %p140 = por %p138, %p139
    %p141 = scmp.ne.s32.totalorder %s133, %s135
    %p142 = scmp.eq.s32.totalorder %s20, 1
    %p143 = por %p141, %p142
    %p144 = scmp.ne.s32.totalorder %s135, %s136
    %p145 = scmp.eq.s32.totalorder %s20, 0
    %p146 = por %p144, %p145
    %p147 = scmp.ne.s32.totalorder %s135, %s136
    %p148 = scmp.eq.s32.totalorder %s21, 1
    %p149 = por %p147, %p148
    %p151 = scmp.ne.s32.totalorder %s136, %s150
    %p152 = scmp.eq.s32.totalorder %s21, 0
    %p153 = por %p151, %p152
    %s155 = sadd.s32 %s154, 1
    %p158 = scmp.eq.s32.totalorder %s15, 1
    %p159 = scmp.ne.s32.totalorder %s154, %s156
    %p160 = scmp.eq.s32.totalorder %s15, 0
    %p161 = por %p159, %p160
    %p162 = scmp.ne.s32.totalorder %s154, %s156
    %p163 = scmp.eq.s32.totalorder %s20, 1
    %p164 = por %p162, %p163
    %p165 = scmp.ne.s32.totalorder %s156, %s157
    %p166 = scmp.eq.s32.totalorder %s20, 0
    %p167 = por %p165, %p166
    %p168 = scmp.ne.s32.totalorder %s156, %s157
    %p169 = scmp.eq.s32.totalorder %s21, 1
    %p170 = por %p168, %p169
    %p172 = scmp.ne.s32.totalorder %s157, %s171
    %p173 = scmp.eq.s32.totalorder %s21, 0
    %p174 = por %p172, %p173
    %s176 = sadd.s32 %s175, 1
    %p179 = scmp.eq.s32.totalorder %s15, 1
    %p180 = scmp.ne.s32.totalorder %s175, %s177
    %p181 = scmp.eq.s32.totalorder %s15, 0
    %p182 = por %p180, %p181
    %p183 = scmp.ne.s32.totalorder %s175, %s177
    %p184 = scmp.eq.s32.totalorder %s20, 1
    %p185 = por %p183, %p184
    %p186 = scmp.ne.s32.totalorder %s177, %s178
    %p187 = scmp.eq.s32.totalorder %s20, 0
    %p188 = por %p186, %p187
    %p189 = scmp.ne.s32.totalorder %s177, %s178
    %p190 = scmp.eq.s32.totalorder %s21, 1
    %p191 = por %p189, %p190
    %p193 = scmp.ne.s32.totalorder %s178, %s192
    %p194 = scmp.eq.s32.totalorder %s21, 0
    %p195 = por %p193, %p194
    %s197 = sadd.s32 %s196, 1
    %p200 = scmp.eq.s32.totalorder %s15, 1
    %p201 = scmp.ne.s32.totalorder %s196, %s198
    %p202 = scmp.eq.s32.totalorder %s15, 0
    %p203 = por %p201, %p202
    %p204 = scmp.ne.s32.totalorder %s196, %s198
    %p205 = scmp.eq.s32.totalorder %s20, 1
    %p206 = por %p204, %p205
    %p207 = scmp.ne.s32.totalorder %s198, %s199
    %p208 = scmp.eq.s32.totalorder %s20, 0
    %p209 = por %p207, %p208
    %p210 = scmp.ne.s32.totalorder %s198, %s199
    %p211 = scmp.eq.s32.totalorder %s21, 1
    %p212 = por %p210, %p211
    %p214 = scmp.ne.s32.totalorder %s199, %s213
    %p215 = scmp.eq.s32.totalorder %s21, 0
    %p216 = por %p214, %p215
    %s217 = ssub.s32 %s15, %s22
    %p218 = scmp.eq.s32.totalorder %s217, 0
    %s220 = sadd.s32 %s219, 1
    %s221 = scalar_select %p218, %s219, %s220
    %p224 = pneg %p218
    %p225 = scmp.eq.s32.totalorder %s15, 1
    %p226 = por %p224, %p225
    %p227 = scmp.ne.s32.totalorder %s219, %s222
    %p228 = scmp.eq.s32.totalorder %s15, 0
    %p229 = por %p227, %p228
    %p230 = scmp.ne.s32.totalorder %s219, %s222
    %p231 = scmp.eq.s32.totalorder %s20, 1
    %p232 = por %p230, %p231
    %p233 = scmp.ne.s32.totalorder %s222, %s223
    %p234 = scmp.eq.s32.totalorder %s20, 0
    %p235 = por %p233, %p234
    %p236 = scmp.ne.s32.totalorder %s222, %s223
    %p237 = scmp.eq.s32.totalorder %s21, 1
    %p238 = por %p236, %p237
    %p240 = scmp.ne.s32.totalorder %s223, %s239
    %p241 = scmp.eq.s32.totalorder %s21, 0
    %p242 = por %p240, %p241
    %p243 = scmp.le.s32.totalorder 1, %s15
    %p244 = scmp.lt.s32.totalorder %s15, 3
    %p245 = pnand %p243, %p244
    %p246 = pneg %p245
    // Predicated region
    $region9: #{tpu_custom_call.1} parent=5 // pred_check
      _
    $region10: #{tpu_custom_call.1} parent=5 // pred_check_branch
      %248 = sbr.rel (%p245) target = $region12
    $region11: #{tpu_custom_call.1} parent=5 // pred_region
      %s249 = ssub.s32 %s15, 1
      // Predicated region
      $region13: #{tpu_custom_call.1} parent=11 // pred_check
        %p250 = pneg %p62
      $region14: #{tpu_custom_call.1} parent=11 // pred_check_branch
        %252 = sbr.rel (%p250) target = $region16
      $region15: #{tpu_custom_call.1} parent=11 // pred_region
        _
      $region16: #{tpu_custom_call.1} parent=11 // pred_fallthru
        _
      // Predicated region
      $region17: #{tpu_custom_call.1} parent=11 // pred_check
        %p253 = pneg %p83
      $region18: #{tpu_custom_call.1} parent=11 // pred_check_branch
        %255 = sbr.rel (%p253) target = $region20
      $region19: #{tpu_custom_call.1} parent=11 // pred_region
        _
      $region20: #{tpu_custom_call.1} parent=11 // pred_fallthru
        _
      // Predicated region
      $region21: #{tpu_custom_call.1} parent=11 // pred_check
        %p256 = pneg %p104
      $region22: #{tpu_custom_call.1} parent=11 // pred_check_branch
        %258 = sbr.rel (%p256) target = $region24
      $region23: #{tpu_custom_call.1} parent=11 // pred_region
        _
      $region24: #{tpu_custom_call.1} parent=11 // pred_fallthru
        _
      // Predicated region
      $region25: #{tpu_custom_call.1} parent=11 // pred_check
        %p259 = pneg %p125
      $region26: #{tpu_custom_call.1} parent=11 // pred_check_branch
        %261 = sbr.rel (%p259) target = $region28
      $region27: #{tpu_custom_call.1} parent=11 // pred_region
        _
      $region28: #{tpu_custom_call.1} parent=11 // pred_fallthru
        _
      // Predicated region
      $region29: #{tpu_custom_call.1} parent=11 // pred_check
        %p262 = pneg %p146
      $region30: #{tpu_custom_call.1} parent=11 // pred_check_branch
        %264 = sbr.rel (%p262) target = $region32
      $region31: #{tpu_custom_call.1} parent=11 // pred_region
        _
      $region32: #{tpu_custom_call.1} parent=11 // pred_fallthru
        _
      // Predicated region
      $region33: #{tpu_custom_call.1} parent=11 // pred_check
        %p265 = pneg %p167
      $region34: #{tpu_custom_call.1} parent=11 // pred_check_branch
        %267 = sbr.rel (%p265) target = $region36
      $region35: #{tpu_custom_call.1} parent=11 // pred_region
        _
      $region36: #{tpu_custom_call.1} parent=11 // pred_fallthru
        _
      // Predicated region
      $region37: #{tpu_custom_call.1} parent=11 // pred_check
        %p268 = pneg %p188
      $region38: #{tpu_custom_call.1} parent=11 // pred_check_branch
        %270 = sbr.rel (%p268) target = $region40
      $region39: #{tpu_custom_call.1} parent=11 // pred_region
        _
      $region40: #{tpu_custom_call.1} parent=11 // pred_fallthru
        _
      // Predicated region
      $region41: #{tpu_custom_call.1} parent=11 // pred_check
        %p271 = pneg %p209
      $region42: #{tpu_custom_call.1} parent=11 // pred_check_branch
        %273 = sbr.rel (%p271) target = $region44
      $region43: #{tpu_custom_call.1} parent=11 // pred_region
        _
      $region44: #{tpu_custom_call.1} parent=11 // pred_fallthru
        _
    $region12: #{tpu_custom_call.1} parent=5 // pred_fallthru
      _
    %p274 = scmp.lt.s32.totalorder %s15, 2
    // Predicated region
    $region45: #{tpu_custom_call.1} parent=5 // pred_check
      %p275 = pneg %p274
    $region46: #{tpu_custom_call.1} parent=5 // pred_check_branch
      %277 = sbr.rel (%p275) target = $region48
    $region47: #{tpu_custom_call.1} parent=5 // pred_region
      // Predicated region
      $region49: #{tpu_custom_call.1} parent=47 // pred_check
        %p278 = pneg %p35
      $region50: #{tpu_custom_call.1} parent=47 // pred_check_branch
        %280 = sbr.rel (%p278) target = $region52
      $region51: #{tpu_custom_call.1} parent=47 // pred_region
        %p281 = scmp.lt.s32.totalorder %s15, 1
        %s282 = scalar_select %p281, %s15, 1
        %s283 = smul.addr %s282, 32
        %s284 = smul.addr %s283, 8
        %s285 = scalar_lea.vmem %s0, %s284
      $region52: #{tpu_custom_call.1} parent=47 // pred_fallthru
        _
    $region48: #{tpu_custom_call.1} parent=5 // pred_fallthru
      _
    %p286 = scmp.le.s32.totalorder 1, %s15
    %p287 = scmp.lt.s32.totalorder %s15, 3
    %p288 = pnand %p286, %p287
    %p289 = pneg %p288
    // Predicated region
    $region53: #{tpu_custom_call.1} parent=5 // pred_check
      _
    $region54: #{tpu_custom_call.1} parent=5 // pred_check_branch
      %291 = sbr.rel (%p288) target = $region56
    $region55: #{tpu_custom_call.1} parent=5 // pred_region
      %s292 = ssub.s32 %s15, 1
      %p293 = scmp.lt.s32.totalorder %s20, 1
      %s294 = scalar_select %p293, %s20, 1
      %s295 = smul.addr %s294, 32
      %s296 = smul.addr %s295, 8
      %s297 = scalar_lea.vmem %s0, %s296
      %p298 = pneg %p41
      %p299 = pneg %p38
      %p300 = pneg %p62
      %p301 = pneg %p59
      %p302 = pneg %p83
      %p303 = pneg %p80
      %p304 = pneg %p104
      %p305 = pneg %p101
      %p306 = pneg %p125
      %p307 = pneg %p122
      %p308 = pneg %p146
      %p309 = pneg %p143
      %p310 = pneg %p167
      %p311 = pneg %p164
      %p312 = pneg %p188
      %p313 = pneg %p185
      %p314 = pneg %p209
      %p315 = pneg %p206
      %p316 = pneg %p235
      %p317 = pneg %p232
      %p318 = scmp.lt.s32.totalorder %s20, 1
      %s319 = scalar_select %p318, %s20, 1
      %s320 = smul.addr %s319, 32
      %s321 = smul.addr %s320, 8
      %s322 = scalar_lea.vmem %s9, %s321
      %p323 = scmp.lt.s32.totalorder %s20, 1
      %s324 = scalar_select %p323, %s20, 1
      %s325 = smul.addr %s324, 32
      %s326 = smul.addr %s325, 8
      %s327 = scalar_lea.vmem %s0, %s326
      %p328 = scmp.lt.s32.totalorder %s20, 1
      %s329 = scalar_select %p328, %s20, 1
      %s330 = smul.addr %s329, 32
      %s331 = smul.addr %s330, 8
      %s332 = scalar_lea.vmem %s9, %s331
      %vm334 = vcmask 31744
      %335 = vst.msk [vmem:[#allocation2] sm:$0xff] %vm334, 0.0
      %336 = vst.msk [vmem:[#allocation2 + $0x8] sm:$0xff] %vm334, 0.0
      %vm337 = vcmask 29696
      %338 = vst.msk [vmem:[#allocation2 + $0x10] sm:$0x3f] %vm337, 0.0
      %339 = vst.msk [vmem:[#allocation2 + $0x18] sm:$0xff] %vm334, 0.0
      %340 = vst.msk [vmem:[#allocation2 + $0x20] sm:$0xff] %vm334, 0.0
      %341 = vst.msk [vmem:[#allocation2 + $0x28] sm:$0x3f] %vm337, 0.0
      %342 = vst.msk [vmem:[#allocation2 + $0x30] sm:$0xff] %vm334, 0.0
      %343 = vst.msk [vmem:[#allocation2 + $0x38] sm:$0xff] %vm334, 0.0
      %344 = vst.msk [vmem:[#allocation2 + $0x40] sm:$0x3f] %vm337, 0.0
      %s345 = scalar_lea.vmem [#allocation2], 456
      %346 = vst.msk [vmem:[%s345] sm:$0xff] %vm334, 0.0
      %347 = vst.msk [vmem:[%s345 + $0x8] sm:$0xff] %vm334, 0.0
      %348 = vst.msk [vmem:[%s345 + $0x10] sm:$0x3f] %vm337, 0.0
      %349 = vst.msk [vmem:[%s345 + $0x18] sm:$0xff] %vm334, 0.0
      %350 = vst.msk [vmem:[%s345 + $0x20] sm:$0xff] %vm334, 0.0
      %351 = vst.msk [vmem:[%s345 + $0x28] sm:$0x3f] %vm337, 0.0
      %352 = vst.msk [vmem:[%s345 + $0x30] sm:$0xff] %vm334, 0.0
      %353 = vst.msk [vmem:[%s345 + $0x38] sm:$0xff] %vm334, 0.0
      %354 = vst.msk [vmem:[%s345 + $0x40] sm:$0x3f] %vm337, 0.0
      %s355 = scalar_lea.vmem [#allocation2], 72
      %vm356 = vcmask 26624
      %357 = vst.msk [vmem:[%s355] sm:$0x7] %vm356, 0.0
      %358 = vst.msk [vmem:[%s355 + $0x18] sm:$0x7] %vm356, 0.0
      %359 = vst.msk [vmem:[%s355 + $0x30] sm:$0x7] %vm356, 0.0
      %360 = vst.msk [vmem:[%s355 + $0x48] sm:$0x7] %vm356, 0.0
      %361 = vst.msk [vmem:[%s355 + $0x60] sm:$0x7] %vm356, 0.0
      %362 = vst.msk [vmem:[%s355 + $0x78] sm:$0x7] %vm356, 0.0
      %363 = vst.msk [vmem:[%s355 + $0x90] sm:$0x7] %vm356, 0.0
      %364 = vst.msk [vmem:[%s355 + $0xa8] sm:$0x7] %vm356, 0.0
      %365 = vst.msk [vmem:[%s355 + $0xc0] sm:$0x7] %vm356, 0.0
      %366 = vst.msk [vmem:[%s355 + $0xd8] sm:$0x7] %vm356, 0.0
      %367 = vst.msk [vmem:[%s355 + $0xf0] sm:$0x7] %vm356, 0.0
      %368 = vst.msk [vmem:[%s355 + $0x108] sm:$0x7] %vm356, 0.0
      %369 = vst.msk [vmem:[%s355 + $0x120] sm:$0x7] %vm356, 0.0
      %370 = vst.msk [vmem:[%s355 + $0x138] sm:$0x7] %vm356, 0.0
      %371 = vst.msk [vmem:[%s355 + $0x150] sm:$0x7] %vm356, 0.0
      %372 = vst.msk [vmem:[%s355 + $0x168] sm:$0x7] %vm356, 0.0
      %373 = vst.msk [vmem:[%s355 + $0x13] sm:$0x7] %vm356, 0.0
      %374 = vst.msk [vmem:[%s355 + $0x2b] sm:$0x7] %vm356, 0.0
      %375 = vst.msk [vmem:[%s355 + $0x43] sm:$0x7] %vm356, 0.0
      %376 = vst.msk [vmem:[%s355 + $0x5b] sm:$0x7] %vm356, 0.0
      %377 = vst.msk [vmem:[%s355 + $0x73] sm:$0x7] %vm356, 0.0
      %378 = vst.msk [vmem:[%s355 + $0x8b] sm:$0x7] %vm356, 0.0
      %379 = vst.msk [vmem:[%s355 + $0xa3] sm:$0x7] %vm356, 0.0
      %380 = vst.msk [vmem:[%s355 + $0xbb] sm:$0x7] %vm356, 0.0
      %381 = vst.msk [vmem:[%s355 + $0xd3] sm:$0x7] %vm356, 0.0
      %382 = vst.msk [vmem:[%s355 + $0xeb] sm:$0x7] %vm356, 0.0
      %383 = vst.msk [vmem:[%s355 + $0x103] sm:$0x7] %vm356, 0.0
      %384 = vst.msk [vmem:[%s355 + $0x11b] sm:$0x7] %vm356, 0.0
      %385 = vst.msk [vmem:[%s355 + $0x133] sm:$0x7] %vm356, 0.0
      %386 = vst.msk [vmem:[%s355 + $0x14b] sm:$0x7] %vm356, 0.0
      %387 = vst.msk [vmem:[%s355 + $0x163] sm:$0x7] %vm356, 0.0
      %388 = vst.msk [vmem:[%s355 + $0x17b] sm:$0x7] %vm356, 0.0
      %v389 = vld [vmem:[%s327] sm:$0xff]
      %v390 = vld [vmem:[%s327 + $0x8] sm:$0xff]
      %v391 = vld [vmem:[%s327 + $0x10] sm:$0xff]
      %v392 = vld [vmem:[%s327 + $0x18] sm:$0xff]
      %v393 = vld [vmem:[%s327 + $0x20] sm:$0xff]
      %v394 = vld [vmem:[%s327 + $0x28] sm:$0xff]
      %v395 = vld [vmem:[%s327 + $0x30] sm:$0xff]
      %v396 = vld [vmem:[%s327 + $0x38] sm:$0xff]
      %v397 = vld [vmem:[%s327 + $0x40] sm:$0xff]
      %v398 = vld [vmem:[%s327 + $0x48] sm:$0xff]
      %v399 = vld [vmem:[%s327 + $0x50] sm:$0xff]
      %v400 = vld [vmem:[%s327 + $0x58] sm:$0xff]
      %v401 = vld [vmem:[%s327 + $0x60] sm:$0xff]
      %v402 = vld [vmem:[%s327 + $0x68] sm:$0xff]
      %v403 = vld [vmem:[%s327 + $0x70] sm:$0xff]
      %v404 = vld [vmem:[%s327 + $0x78] sm:$0xff]
      %v405 = vld [vmem:[%s327 + $0x80] sm:$0xff]
      %v406 = vld [vmem:[%s327 + $0x88] sm:$0xff]
      %v407 = vld [vmem:[%s327 + $0x90] sm:$0xff]
      %v408 = vld [vmem:[%s327 + $0x98] sm:$0xff]
      %v409 = vld [vmem:[%s327 + $0xa0] sm:$0xff]
      %v410 = vld [vmem:[%s327 + $0xa8] sm:$0xff]
      %v411 = vld [vmem:[%s327 + $0xb0] sm:$0xff]
      %v412 = vld [vmem:[%s327 + $0xb8] sm:$0xff]
      %v413 = vld [vmem:[%s327 + $0xc0] sm:$0xff]
      %v414 = vld [vmem:[%s327 + $0xc8] sm:$0xff]
      %v415 = vld [vmem:[%s327 + $0xd0] sm:$0xff]
      %v416 = vld [vmem:[%s327 + $0xd8] sm:$0xff]
      %v417 = vld [vmem:[%s327 + $0xe0] sm:$0xff]
      %v418 = vld [vmem:[%s327 + $0xe8] sm:$0xff]
      %v419 = vld [vmem:[%s327 + $0xf0] sm:$0xff]
      %v420 = vld [vmem:[%s327 + $0xf8] sm:$0xff]
      %421 = vst.msk [vmem:[%s355 + $0x3] sm:$0xff] %vm334, %v389
      %422 = vst.msk [vmem:[%s355 + $0xb] sm:$0xff] %vm334, %v390
      %423 = vst.msk [vmem:[%s355 + $0x1b] sm:$0xff] %vm334, %v391
      %424 = vst.msk [vmem:[%s355 + $0x23] sm:$0xff] %vm334, %v392
      %425 = vst.msk [vmem:[%s355 + $0x33] sm:$0xff] %vm334, %v393
      %426 = vst.msk [vmem:[%s355 + $0x3b] sm:$0xff] %vm334, %v394
      %427 = vst.msk [vmem:[%s355 + $0x4b] sm:$0xff] %vm334, %v395
      %428 = vst.msk [vmem:[%s355 + $0x53] sm:$0xff] %vm334, %v396
      %429 = vst.msk [vmem:[%s355 + $0x63] sm:$0xff] %vm334, %v397
      %430 = vst.msk [vmem:[%s355 + $0x6b] sm:$0xff] %vm334, %v398
      %431 = vst.msk [vmem:[%s355 + $0x7b] sm:$0xff] %vm334, %v399
      %432 = vst.msk [vmem:[%s355 + $0x83] sm:$0xff] %vm334, %v400
      %433 = vst.msk [vmem:[%s355 + $0x93] sm:$0xff] %vm334, %v401
      %434 = vst.msk [vmem:[%s355 + $0x9b] sm:$0xff] %vm334, %v402
      %435 = vst.msk [vmem:[%s355 + $0xab] sm:$0xff] %vm334, %v403
      %436 = vst.msk [vmem:[%s355 + $0xb3] sm:$0xff] %vm334, %v404
      %437 = vst.msk [vmem:[%s355 + $0xc3] sm:$0xff] %vm334, %v405
      %438 = vst.msk [vmem:[%s355 + $0xcb] sm:$0xff] %vm334, %v406
      %439 = vst.msk [vmem:[%s355 + $0xdb] sm:$0xff] %vm334, %v407
      %440 = vst.msk [vmem:[%s355 + $0xe3] sm:$0xff] %vm334, %v408
      %441 = vst.msk [vmem:[%s355 + $0xf3] sm:$0xff] %vm334, %v409
      %442 = vst.msk [vmem:[%s355 + $0xfb] sm:$0xff] %vm334, %v410
      %443 = vst.msk [vmem:[%s355 + $0x10b] sm:$0xff] %vm334, %v411
      %444 = vst.msk [vmem:[%s355 + $0x113] sm:$0xff] %vm334, %v412
      %445 = vst.msk [vmem:[%s355 + $0x123] sm:$0xff] %vm334, %v413
      %446 = vst.msk [vmem:[%s355 + $0x12b] sm:$0xff] %vm334, %v414
      %447 = vst.msk [vmem:[%s355 + $0x13b] sm:$0xff] %vm334, %v415
      %448 = vst.msk [vmem:[%s355 + $0x143] sm:$0xff] %vm334, %v416
      %449 = vst.msk [vmem:[%s355 + $0x153] sm:$0xff] %vm334, %v417
      %450 = vst.msk [vmem:[%s355 + $0x15b] sm:$0xff] %vm334, %v418
      %451 = vst.msk [vmem:[%s355 + $0x16b] sm:$0xff] %vm334, %v419
      %452 = vst.msk [vmem:[%s355 + $0x173] sm:$0xff] %vm334, %v420
      %v453 = vld [vmem:[%s1] sm:$0x7f]
      %v454 = vld [vmem:[%s1 + $0x8] sm:$0x7f]
      %v455 = vld [vmem:[%s1 + $0x10] sm:$0x7f]
      %v456 = vld [vmem:[%s1 + $0x18] sm:$0x7f]
      %v457 = vld [vmem:[%s1 + $0x20] sm:$0x7f]
      %v458 = vld [vmem:[%s1 + $0x28] sm:$0x7f]
      %v459 = vld [vmem:[%s1 + $0x30] sm:$0x7f]
      %v460 = vld [vmem:[%s2] sm:$0x1]
      %v461 = vld [vmem:[%s4] sm:$0x1]
      %v462 = vld [vmem:[#allocation2] sm:$0xff]
      %v463 = vld [vmem:[#allocation2 + $0x8] sm:$0xff]
      %v464 = vld [vmem:[#allocation2 + $0x10] sm:$0x3f]
      %v465 = vld [vmem:[#allocation2 + $0x18] sm:$0xff]
      %v466 = vld [vmem:[#allocation2 + $0x20] sm:$0xff]
      %v467 = vld [vmem:[#allocation2 + $0x28] sm:$0x3f]
      %v468 = vld [vmem:[#allocation2 + $0x30] sm:$0xff]
      %v469 = vld [vmem:[#allocation2 + $0x38] sm:$0xff]
      %v470 = vld [vmem:[#allocation2 + $0x40] sm:$0x3f]
      %v471 = vld [vmem:[#allocation2 + $0x48] sm:$0xff]
      %v472 = vld [vmem:[#allocation2 + $0x50] sm:$0xff]
      %v473 = vld [vmem:[#allocation2 + $0x58] sm:$0x3f]
      %v474 = vld [vmem:[#allocation2 + $0x60] sm:$0xff]
      %v475 = vld [vmem:[#allocation2 + $0x68] sm:$0xff]
      %v476 = vld [vmem:[#allocation2 + $0x70] sm:$0x3f]
      %v477 = vld [vmem:[#allocation2 + $0x78] sm:$0xff]
      %v478 = vld [vmem:[#allocation2 + $0x80] sm:$0xff]
      %v479 = vld [vmem:[#allocation2 + $0x88] sm:$0x3f]
      %v480 = vld [vmem:[#allocation2 + $0x90] sm:$0xff]
      %v481 = vld [vmem:[#allocation2 + $0x98] sm:$0xff]
      %v482 = vld [vmem:[#allocation2 + $0xa0] sm:$0x3f]
      %v483 = vld [vmem:[#allocation2 + $0xa8] sm:$0xff]
      %v484 = vld [vmem:[#allocation2 + $0xb0] sm:$0xff]
      %v485 = vld [vmem:[#allocation2 + $0xb8] sm:$0x3f]
      %v486 = vld [vmem:[#allocation2 + $0xc0] sm:$0xff]
      %v487 = vld [vmem:[#allocation2 + $0xc8] sm:$0xff]
      %v488 = vld [vmem:[#allocation2 + $0xd0] sm:$0x3f]
      %v489 = vld [vmem:[#allocation2 + $0xd8] sm:$0xff]
      %v490 = vld [vmem:[#allocation2 + $0xe0] sm:$0xff]
      %v491 = vld [vmem:[#allocation2 + $0xe8] sm:$0x3f]
      %v492 = vld [vmem:[#allocation2 + $0xf0] sm:$0xff]
      %v493 = vld [vmem:[#allocation2 + $0xf8] sm:$0xff]
      %v494 = vld [vmem:[#allocation2 + $0x100] sm:$0x3f]
      %v495 = vld [vmem:[#allocation2 + $0x108] sm:$0xff]
      %v496 = vld [vmem:[#allocation2 + $0x110] sm:$0xff]
      %v497 = vld [vmem:[#allocation2 + $0x118] sm:$0x3f]
      %v498 = vld [vmem:[#allocation2 + $0x120] sm:$0xff]
      %v499 = vld [vmem:[#allocation2 + $0x128] sm:$0xff]
      %v500 = vld [vmem:[#allocation2 + $0x130] sm:$0x3f]
      %v501 = vld [vmem:[#allocation2 + $0x138] sm:$0xff]
      %v502 = vld [vmem:[#allocation2 + $0x140] sm:$0xff]
      %v503 = vld [vmem:[#allocation2 + $0x148] sm:$0x3f]
      %v504 = vlaneseq
      %v505 = vshrl.u32 %v504, 7
      %v506 = vsub.s32 0, %v505
      %v507 = vrot.slane %v453, %v506
      %v508 = vmul.f32 %v462, %v507
      %v509 = vmul.f32 %v463, %v507
      %v510 = vmul.f32 %v465, %v507
      %v511 = vmul.f32 %v466, %v507
      %v512 = vmul.f32 %v468, %v507
      %v513 = vmul.f32 %v469, %v507
      %v514 = vmul.f32 %v471, %v507
      %v515 = vmul.f32 %v472, %v507
      %v516 = vmul.f32 %v474, %v507
      %v517 = vmul.f32 %v475, %v507
      %v518 = vmul.f32 %v477, %v507
      %v519 = vmul.f32 %v478, %v507
      %v520 = vmul.f32 %v480, %v507
      %v521 = vmul.f32 %v481, %v507
      %v522 = vmul.f32 %v483, %v507
      %v523 = vmul.f32 %v484, %v507
      %v524 = vadd.f32 %v508, 0.0
      %v525 = vadd.f32 %v509, 0.0
      %v526 = vadd.f32 %v510, 0.0
      %v527 = vadd.f32 %v511, 0.0
      %v528 = vadd.f32 %v512, 0.0
      %v529 = vadd.f32 %v513, 0.0
      %v530 = vadd.f32 %v514, 0.0
      %v531 = vadd.f32 %v515, 0.0
      %v532 = vadd.f32 %v516, 0.0
      %v533 = vadd.f32 %v517, 0.0
      %v534 = vadd.f32 %v518, 0.0
      %v535 = vadd.f32 %v519, 0.0
      %v536 = vadd.f32 %v520, 0.0
      %v537 = vadd.f32 %v521, 0.0
      %v538 = vadd.f32 %v522, 0.0
      %v539 = vadd.f32 %v523, 0.0
      %v540 = vlaneseq
      %v541 = vshrl.u32 %v540, 7
      %v542 = vsub.s32 0, %v541
      %v543 = vrot.slane %v454, %v542
      %v544 = vmul.f32 %v465, %v543
      %v545 = vmul.f32 %v466, %v543
      %v546 = vmul.f32 %v468, %v543
      %v547 = vmul.f32 %v469, %v543
      %v548 = vmul.f32 %v471, %v543
      %v549 = vmul.f32 %v472, %v543
      %v550 = vmul.f32 %v474, %v543
      %v551 = vmul.f32 %v475, %v543
      %v552 = vmul.f32 %v477, %v543
      %v553 = vmul.f32 %v478, %v543
      %v554 = vmul.f32 %v480, %v543
      %v555 = vmul.f32 %v481, %v543
      %v556 = vmul.f32 %v483, %v543
      %v557 = vmul.f32 %v484, %v543
      %v558 = vmul.f32 %v486, %v543
      %v559 = vmul.f32 %v487, %v543
      %v560 = vadd.f32 %v524, %v544
      %v561 = vadd.f32 %v525, %v545
      %v562 = vadd.f32 %v526, %v546
      %v563 = vadd.f32 %v527, %v547
      %v564 = vadd.f32 %v528, %v548
      %v565 = vadd.f32 %v529, %v549
      %v566 = vadd.f32 %v530, %v550
      %v567 = vadd.f32 %v531, %v551
      %v568 = vadd.f32 %v532, %v552
      %v569 = vadd.f32 %v533, %v553
      %v570 = vadd.f32 %v534, %v554
      %v571 = vadd.f32 %v535, %v555
      %v572 = vadd.f32 %v536, %v556
      %v573 = vadd.f32 %v537, %v557
      %v574 = vadd.f32 %v538, %v558
      %v575 = vadd.f32 %v539, %v559
      %v576 = vlaneseq
      %v577 = vshrl.u32 %v576, 7
      %v578 = vsub.s32 0, %v577
      %v579 = vrot.slane %v455, %v578
      %v580 = vmul.f32 %v468, %v579
      %v581 = vmul.f32 %v469, %v579
      %v582 = vmul.f32 %v471, %v579
      %v583 = vmul.f32 %v472, %v579
      %v584 = vmul.f32 %v474, %v579
      %v585 = vmul.f32 %v475, %v579
      %v586 = vmul.f32 %v477, %v579
      %v587 = vmul.f32 %v478, %v579
      %v588 = vmul.f32 %v480, %v579
      %v589 = vmul.f32 %v481, %v579
      %v590 = vmul.f32 %v483, %v579
      %v591 = vmul.f32 %v484, %v579
      %v592 = vmul.f32 %v486, %v579
      %v593 = vmul.f32 %v487, %v579
      %v594 = vmul.f32 %v489, %v579
      %v595 = vmul.f32 %v490, %v579
      %v596 = vadd.f32 %v560, %v580
      %v597 = vadd.f32 %v561, %v581
      %v598 = vadd.f32 %v562, %v582
      %v599 = vadd.f32 %v563, %v583
      %v600 = vadd.f32 %v564, %v584
      %v601 = vadd.f32 %v565, %v585
      %v602 = vadd.f32 %v566, %v586
      %v603 = vadd.f32 %v567, %v587
      %v604 = vadd.f32 %v568, %v588
      %v605 = vadd.f32 %v569, %v589
      %v606 = vadd.f32 %v570, %v590
      %v607 = vadd.f32 %v571, %v591
      %v608 = vadd.f32 %v572, %v592
      %v609 = vadd.f32 %v573, %v593
      %v610 = vadd.f32 %v574, %v594
      %v611 = vadd.f32 %v575, %v595
      %v612 = vlaneseq
      %v613 = vshrl.u32 %v612, 7
      %v614 = vsub.s32 0, %v613
      %v615 = vrot.slane %v456, %v614
      %v616 = vmul.f32 %v471, %v615
      %v617 = vmul.f32 %v472, %v615
      %v618 = vmul.f32 %v474, %v615
      %v619 = vmul.f32 %v475, %v615
      %v620 = vmul.f32 %v477, %v615
      %v621 = vmul.f32 %v478, %v615
      %v622 = vmul.f32 %v480, %v615
      %v623 = vmul.f32 %v481, %v615
      %v624 = vmul.f32 %v483, %v615
      %v625 = vmul.f32 %v484, %v615
      %v626 = vmul.f32 %v486, %v615
      %v627 = vmul.f32 %v487, %v615
      %v628 = vmul.f32 %v489, %v615
      %v629 = vmul.f32 %v490, %v615
      %v630 = vmul.f32 %v492, %v615
      %v631 = vmul.f32 %v493, %v615
      %v632 = vadd.f32 %v596, %v616
      %v633 = vadd.f32 %v597, %v617
      %v634 = vadd.f32 %v598, %v618
      %v635 = vadd.f32 %v599, %v619
      %v636 = vadd.f32 %v600, %v620
      %v637 = vadd.f32 %v601, %v621
      %v638 = vadd.f32 %v602, %v622
      %v639 = vadd.f32 %v603, %v623
      %v640 = vadd.f32 %v604, %v624
      %v641 = vadd.f32 %v605, %v625
      %v642 = vadd.f32 %v606, %v626
      %v643 = vadd.f32 %v607, %v627
      %v644 = vadd.f32 %v608, %v628
      %v645 = vadd.f32 %v609, %v629
      %v646 = vadd.f32 %v610, %v630
      %v647 = vadd.f32 %v611, %v631
      %v648 = vlaneseq
      %v649 = vshrl.u32 %v648, 7
      %v650 = vsub.s32 0, %v649
      %v651 = vrot.slane %v457, %v650
      %v652 = vmul.f32 %v474, %v651
      %v653 = vmul.f32 %v475, %v651
      %v654 = vmul.f32 %v477, %v651
      %v655 = vmul.f32 %v478, %v651
      %v656 = vmul.f32 %v480, %v651
      %v657 = vmul.f32 %v481, %v651
      %v658 = vmul.f32 %v483, %v651
      %v659 = vmul.f32 %v484, %v651
      %v660 = vmul.f32 %v486, %v651
      %v661 = vmul.f32 %v487, %v651
      %v662 = vmul.f32 %v489, %v651
      %v663 = vmul.f32 %v490, %v651
      %v664 = vmul.f32 %v492, %v651
      %v665 = vmul.f32 %v493, %v651
      %v666 = vmul.f32 %v495, %v651
      %v667 = vmul.f32 %v496, %v651
      %v668 = vadd.f32 %v632, %v652
      %v669 = vadd.f32 %v633, %v653
      %v670 = vadd.f32 %v634, %v654
      %v671 = vadd.f32 %v635, %v655
      %v672 = vadd.f32 %v636, %v656
      %v673 = vadd.f32 %v637, %v657
      %v674 = vadd.f32 %v638, %v658
      %v675 = vadd.f32 %v639, %v659
      %v676 = vadd.f32 %v640, %v660
      %v677 = vadd.f32 %v641, %v661
      %v678 = vadd.f32 %v642, %v662
      %v679 = vadd.f32 %v643, %v663
      %v680 = vadd.f32 %v644, %v664
      %v681 = vadd.f32 %v645, %v665
      %v682 = vadd.f32 %v646, %v666
      %v683 = vadd.f32 %v647, %v667
      %v684 = vlaneseq
      %v685 = vshrl.u32 %v684, 7
      %v686 = vsub.s32 0, %v685
      %v687 = vrot.slane %v458, %v686
      %v688 = vmul.f32 %v477, %v687
      %v689 = vmul.f32 %v478, %v687
      %v690 = vmul.f32 %v480, %v687
      %v691 = vmul.f32 %v481, %v687
      %v692 = vmul.f32 %v483, %v687
      %v693 = vmul.f32 %v484, %v687
      %v694 = vmul.f32 %v486, %v687
      %v695 = vmul.f32 %v487, %v687
      %v696 = vmul.f32 %v489, %v687
      %v697 = vmul.f32 %v490, %v687
      %v698 = vmul.f32 %v492, %v687
      %v699 = vmul.f32 %v493, %v687
      %v700 = vmul.f32 %v495, %v687
      %v701 = vmul.f32 %v496, %v687
      %v702 = vmul.f32 %v498, %v687
      %v703 = vmul.f32 %v499, %v687
      %v704 = vadd.f32 %v668, %v688
      %v705 = vadd.f32 %v669, %v689
      %v706 = vadd.f32 %v670, %v690
      %v707 = vadd.f32 %v671, %v691
      %v708 = vadd.f32 %v672, %v692
      %v709 = vadd.f32 %v673, %v693
      %v710 = vadd.f32 %v674, %v694
      %v711 = vadd.f32 %v675, %v695
      %v712 = vadd.f32 %v676, %v696
      %v713 = vadd.f32 %v677, %v697
      %v714 = vadd.f32 %v678, %v698
      %v715 = vadd.f32 %v679, %v699
      %v716 = vadd.f32 %v680, %v700
      %v717 = vadd.f32 %v681, %v701
      %v718 = vadd.f32 %v682, %v702
      %v719 = vadd.f32 %v683, %v703
      %v720 = vlaneseq
      %v721 = vshrl.u32 %v720, 7
      %v722 = vsub.s32 0, %v721
      %v723 = vrot.slane %v459, %v722
      %v724 = vmul.f32 %v480, %v723
      %v725 = vmul.f32 %v481, %v723
      %v726 = vmul.f32 %v483, %v723
      %v727 = vmul.f32 %v484, %v723
      %v728 = vmul.f32 %v486, %v723
      %v729 = vmul.f32 %v487, %v723
      %v730 = vmul.f32 %v489, %v723
      %v731 = vmul.f32 %v490, %v723
      %v732 = vmul.f32 %v492, %v723
      %v733 = vmul.f32 %v493, %v723
      %v734 = vmul.f32 %v495, %v723
      %v735 = vmul.f32 %v496, %v723
      %v736 = vmul.f32 %v498, %v723
      %v737 = vmul.f32 %v499, %v723
      %v738 = vmul.f32 %v501, %v723
      %v739 = vmul.f32 %v502, %v723
      %v740 = vadd.f32 %v704, %v724
      %v741 = vadd.f32 %v705, %v725
      %v742 = vadd.f32 %v706, %v726
      %v743 = vadd.f32 %v707, %v727
      %v744 = vadd.f32 %v708, %v728
      %v745 = vadd.f32 %v709, %v729
      %v746 = vadd.f32 %v710, %v730
      %v747 = vadd.f32 %v711, %v731
      %v748 = vadd.f32 %v712, %v732
      %v749 = vadd.f32 %v713, %v733
      %v750 = vadd.f32 %v714, %v734
      %v751 = vadd.f32 %v715, %v735
      %v752 = vadd.f32 %v716, %v736
      %v753 = vadd.f32 %v717, %v737
      %v754 = vadd.f32 %v718, %v738
      %v755 = vadd.f32 %v719, %v739
      %v756 = vlaneseq
      %v757 = vshrl.u32 %v756, 7
      %v758 = vsub.s32 1, %v757
      %v759 = vrot.slane %v453, %v758
      %v760 = vmul.f32 %v462, %v759
      %v761 = vmul.f32 %v463, %v759
      %v762 = vmul.f32 %v464, %v759
      %v763 = vmul.f32 %v465, %v759
      %v764 = vmul.f32 %v466, %v759
      %v765 = vmul.f32 %v467, %v759
      %v766 = vmul.f32 %v468, %v759
      %v767 = vmul.f32 %v469, %v759
      %v768 = vmul.f32 %v470, %v759
      %v769 = vmul.f32 %v471, %v759
      %v770 = vmul.f32 %v472, %v759
      %v771 = vmul.f32 %v473, %v759
      %v772 = vmul.f32 %v474, %v759
      %v773 = vmul.f32 %v475, %v759
      %v774 = vmul.f32 %v476, %v759
      %v775 = vmul.f32 %v477, %v759
      %v776 = vmul.f32 %v478, %v759
      %v777 = vmul.f32 %v479, %v759
      %v778 = vmul.f32 %v480, %v759
      %v779 = vmul.f32 %v481, %v759
      %v780 = vmul.f32 %v482, %v759
      %v781 = vmul.f32 %v483, %v759
      %v782 = vmul.f32 %v484, %v759
      %v783 = vmul.f32 %v485, %v759
      %vm808 = vcmask 1046528
      %v809 = vrot.slane %v760, 1
      %v810 = vrot.slane %v761, 1
      %v811 = vsel %vm808, %v809, %v810
      %v812 = vrot.slane %v762, 1
      %v813 = vsel %vm808, %v810, %v812
      %v814 = vrot.slane %v763, 1
      %v815 = vrot.slane %v764, 1
      %v816 = vsel %vm808, %v814, %v815
      %v817 = vrot.slane %v765, 1
      %v818 = vsel %vm808, %v815, %v817
      %v819 = vrot.slane %v766, 1
      %v820 = vrot.slane %v767, 1
      %v821 = vsel %vm808, %v819, %v820
      %v822 = vrot.slane %v768, 1
      %v823 = vsel %vm808, %v820, %v822
      %v824 = vrot.slane %v769, 1
      %v825 = vrot.slane %v770, 1
      %v826 = vsel %vm808, %v824, %v825
      %v827 = vrot.slane %v771, 1
      %v828 = vsel %vm808, %v825, %v827
      %v829 = vrot.slane %v772, 1
      %v830 = vrot.slane %v773, 1
      %v831 = vsel %vm808, %v829, %v830
      %v832 = vrot.slane %v774, 1
      %v833 = vsel %vm808, %v830, %v832
      %v834 = vrot.slane %v775, 1
      %v835 = vrot.slane %v776, 1
      %v836 = vsel %vm808, %v834, %v835
      %v837 = vrot.slane %v777, 1
      %v838 = vsel %vm808, %v835, %v837
      %v839 = vrot.slane %v778, 1
      %v840 = vrot.slane %v779, 1
      %v841 = vsel %vm808, %v839, %v840
      %v842 = vrot.slane %v780, 1
      %v843 = vsel %vm808, %v840, %v842
      %v844 = vrot.slane %v781, 1
      %v845 = vrot.slane %v782, 1
      %v846 = vsel %vm808, %v844, %v845
      %v847 = vrot.slane %v783, 1
      %v848 = vsel %vm808, %v845, %v847
      %v865 = vadd.f32 %v740, %v811
      %v866 = vadd.f32 %v741, %v813
      %v867 = vadd.f32 %v742, %v816
      %v868 = vadd.f32 %v743, %v818
      %v869 = vadd.f32 %v744, %v821
      %v870 = vadd.f32 %v745, %v823
      %v871 = vadd.f32 %v746, %v826
      %v872 = vadd.f32 %v747, %v828
      %v873 = vadd.f32 %v748, %v831
      %v874 = vadd.f32 %v749, %v833
      %v875 = vadd.f32 %v750, %v836
      %v876 = vadd.f32 %v751, %v838
      %v877 = vadd.f32 %v752, %v841
      %v878 = vadd.f32 %v753, %v843
      %v879 = vadd.f32 %v754, %v846
      %v880 = vadd.f32 %v755, %v848
      %v881 = vlaneseq
      %v882 = vshrl.u32 %v881, 7
      %v883 = vsub.s32 1, %v882
      %v884 = vrot.slane %v454, %v883
      %v885 = vmul.f32 %v465, %v884
      %v886 = vmul.f32 %v466, %v884
      %v887 = vmul.f32 %v467, %v884
      %v888 = vmul.f32 %v468, %v884
      %v889 = vmul.f32 %v469, %v884
      %v890 = vmul.f32 %v470, %v884
      %v891 = vmul.f32 %v471, %v884
      %v892 = vmul.f32 %v472, %v884
      %v893 = vmul.f32 %v473, %v884
      %v894 = vmul.f32 %v474, %v884
      %v895 = vmul.f32 %v475, %v884
      %v896 = vmul.f32 %v476, %v884
      %v897 = vmul.f32 %v477, %v884
      %v898 = vmul.f32 %v478, %v884
      %v899 = vmul.f32 %v479, %v884
      %v900 = vmul.f32 %v480, %v884
      %v901 = vmul.f32 %v481, %v884
      %v902 = vmul.f32 %v482, %v884
      %v903 = vmul.f32 %v483, %v884
      %v904 = vmul.f32 %v484, %v884
      %v905 = vmul.f32 %v485, %v884
      %v906 = vmul.f32 %v486, %v884
      %v907 = vmul.f32 %v487, %v884
      %v908 = vmul.f32 %v488, %v884
      %v933 = vrot.slane %v885, 1
      %v934 = vrot.slane %v886, 1
      %v935 = vsel %vm808, %v933, %v934
      %v936 = vrot.slane %v887, 1
      %v937 = vsel %vm808, %v934, %v936
      %v938 = vrot.slane %v888, 1
      %v939 = vrot.slane %v889, 1
      %v940 = vsel %vm808, %v938, %v939
      %v941 = vrot.slane %v890, 1
      %v942 = vsel %vm808, %v939, %v941
      %v943 = vrot.slane %v891, 1
      %v944 = vrot.slane %v892, 1
      %v945 = vsel %vm808, %v943, %v944
      %v946 = vrot.slane %v893, 1
      %v947 = vsel %vm808, %v944, %v946
      %v948 = vrot.slane %v894, 1
      %v949 = vrot.slane %v895, 1
      %v950 = vsel %vm808, %v948, %v949
      %v951 = vrot.slane %v896, 1
      %v952 = vsel %vm808, %v949, %v951
      %v953 = vrot.slane %v897, 1
      %v954 = vrot.slane %v898, 1
      %v955 = vsel %vm808, %v953, %v954
      %v956 = vrot.slane %v899, 1
      %v957 = vsel %vm808, %v954, %v956
      %v958 = vrot.slane %v900, 1
      %v959 = vrot.slane %v901, 1
      %v960 = vsel %vm808, %v958, %v959
      %v961 = vrot.slane %v902, 1
      %v962 = vsel %vm808, %v959, %v961
      %v963 = vrot.slane %v903, 1
      %v964 = vrot.slane %v904, 1
      %v965 = vsel %vm808, %v963, %v964
      %v966 = vrot.slane %v905, 1
      %v967 = vsel %vm808, %v964, %v966
      %v968 = vrot.slane %v906, 1
      %v969 = vrot.slane %v907, 1
      %v970 = vsel %vm808, %v968, %v969
      %v971 = vrot.slane %v908, 1
      %v972 = vsel %vm808, %v969, %v971
      %v989 = vadd.f32 %v865, %v935
      %v990 = vadd.f32 %v866, %v937
      %v991 = vadd.f32 %v867, %v940
      %v992 = vadd.f32 %v868, %v942
      %v993 = vadd.f32 %v869, %v945
      %v994 = vadd.f32 %v870, %v947
      %v995 = vadd.f32 %v871, %v950
      %v996 = vadd.f32 %v872, %v952
      %v997 = vadd.f32 %v873, %v955
      %v998 = vadd.f32 %v874, %v957
      %v999 = vadd.f32 %v875, %v960
      %v1000 = vadd.f32 %v876, %v962
      %v1001 = vadd.f32 %v877, %v965
      %v1002 = vadd.f32 %v878, %v967
      %v1003 = vadd.f32 %v879, %v970
      %v1004 = vadd.f32 %v880, %v972
      %v1005 = vlaneseq
      %v1006 = vshrl.u32 %v1005, 7
      %v1007 = vsub.s32 1, %v1006
      %v1008 = vrot.slane %v455, %v1007
      %v1009 = vmul.f32 %v468, %v1008
      %v1010 = vmul.f32 %v469, %v1008
      %v1011 = vmul.f32 %v470, %v1008
      %v1012 = vmul.f32 %v471, %v1008
      %v1013 = vmul.f32 %v472, %v1008
      %v1014 = vmul.f32 %v473, %v1008
      %v1015 = vmul.f32 %v474, %v1008
      %v1016 = vmul.f32 %v475, %v1008
      %v1017 = vmul.f32 %v476, %v1008
      %v1018 = vmul.f32 %v477, %v1008
      %v1019 = vmul.f32 %v478, %v1008
      %v1020 = vmul.f32 %v479, %v1008
      %v1021 = vmul.f32 %v480, %v1008
      %v1022 = vmul.f32 %v481, %v1008
      %v1023 = vmul.f32 %v482, %v1008
      %v1024 = vmul.f32 %v483, %v1008
      %v1025 = vmul.f32 %v484, %v1008
      %v1026 = vmul.f32 %v485, %v1008
      %v1027 = vmul.f32 %v486, %v1008
      %v1028 = vmul.f32 %v487, %v1008
      %v1029 = vmul.f32 %v488, %v1008
      %v1030 = vmul.f32 %v489, %v1008
      %v1031 = vmul.f32 %v490, %v1008
      %v1032 = vmul.f32 %v491, %v1008
      %v1057 = vrot.slane %v1009, 1
      %v1058 = vrot.slane %v1010, 1
      %v1059 = vsel %vm808, %v1057, %v1058
      %v1060 = vrot.slane %v1011, 1
      %v1061 = vsel %vm808, %v1058, %v1060
      %v1062 = vrot.slane %v1012, 1
      %v1063 = vrot.slane %v1013, 1
      %v1064 = vsel %vm808, %v1062, %v1063
      %v1065 = vrot.slane %v1014, 1
      %v1066 = vsel %vm808, %v1063, %v1065
      %v1067 = vrot.slane %v1015, 1
      %v1068 = vrot.slane %v1016, 1
      %v1069 = vsel %vm808, %v1067, %v1068
      %v1070 = vrot.slane %v1017, 1
      %v1071 = vsel %vm808, %v1068, %v1070
      %v1072 = vrot.slane %v1018, 1
      %v1073 = vrot.slane %v1019, 1
      %v1074 = vsel %vm808, %v1072, %v1073
      %v1075 = vrot.slane %v1020, 1
      %v1076 = vsel %vm808, %v1073, %v1075
      %v1077 = vrot.slane %v1021, 1
      %v1078 = vrot.slane %v1022, 1
      %v1079 = vsel %vm808, %v1077, %v1078
      %v1080 = vrot.slane %v1023, 1
      %v1081 = vsel %vm808, %v1078, %v1080
      %v1082 = vrot.slane %v1024, 1
      %v1083 = vrot.slane %v1025, 1
      %v1084 = vsel %vm808, %v1082, %v1083
      %v1085 = vrot.slane %v1026, 1
      %v1086 = vsel %vm808, %v1083, %v1085
      %v1087 = vrot.slane %v1027, 1
      %v1088 = vrot.slane %v1028, 1
      %v1089 = vsel %vm808, %v1087, %v1088
      %v1090 = vrot.slane %v1029, 1
      %v1091 = vsel %vm808, %v1088, %v1090
      %v1092 = vrot.slane %v1030, 1
      %v1093 = vrot.slane %v1031, 1
      %v1094 = vsel %vm808, %v1092, %v1093
      %v1095 = vrot.slane %v1032, 1
      %v1096 = vsel %vm808, %v1093, %v1095
      %v1113 = vadd.f32 %v989, %v1059
      %v1114 = vadd.f32 %v990, %v1061
      %v1115 = vadd.f32 %v991, %v1064
      %v1116 = vadd.f32 %v992, %v1066
      %v1117 = vadd.f32 %v993, %v1069
      %v1118 = vadd.f32 %v994, %v1071
      %v1119 = vadd.f32 %v995, %v1074
      %v1120 = vadd.f32 %v996, %v1076
      %v1121 = vadd.f32 %v997, %v1079
      %v1122 = vadd.f32 %v998, %v1081
      %v1123 = vadd.f32 %v999, %v1084
      %v1124 = vadd.f32 %v1000, %v1086
      %v1125 = vadd.f32 %v1001, %v1089
      %v1126 = vadd.f32 %v1002, %v1091
      %v1127 = vadd.f32 %v1003, %v1094
      %v1128 = vadd.f32 %v1004, %v1096
      %v1129 = vlaneseq
      %v1130 = vshrl.u32 %v1129, 7
      %v1131 = vsub.s32 1, %v1130
      %v1132 = vrot.slane %v456, %v1131
      %v1133 = vmul.f32 %v471, %v1132
      %v1134 = vmul.f32 %v472, %v1132
      %v1135 = vmul.f32 %v473, %v1132
      %v1136 = vmul.f32 %v474, %v1132
      %v1137 = vmul.f32 %v475, %v1132
      %v1138 = vmul.f32 %v476, %v1132
      %v1139 = vmul.f32 %v477, %v1132
      %v1140 = vmul.f32 %v478, %v1132
      %v1141 = vmul.f32 %v479, %v1132
      %v1142 = vmul.f32 %v480, %v1132
      %v1143 = vmul.f32 %v481, %v1132
      %v1144 = vmul.f32 %v482, %v1132
      %v1145 = vmul.f32 %v483, %v1132
      %v1146 = vmul.f32 %v484, %v1132
      %v1147 = vmul.f32 %v485, %v1132
      %v1148 = vmul.f32 %v486, %v1132
      %v1149 = vmul.f32 %v487, %v1132
      %v1150 = vmul.f32 %v488, %v1132
      %v1151 = vmul.f32 %v489, %v1132
      %v1152 = vmul.f32 %v490, %v1132
      %v1153 = vmul.f32 %v491, %v1132
      %v1154 = vmul.f32 %v492, %v1132
      %v1155 = vmul.f32 %v493, %v1132
      %v1156 = vmul.f32 %v494, %v1132
      %v1181 = vrot.slane %v1133, 1
      %v1182 = vrot.slane %v1134, 1
      %v1183 = vsel %vm808, %v1181, %v1182
      %v1184 = vrot.slane %v1135, 1
      %v1185 = vsel %vm808, %v1182, %v1184
      %v1186 = vrot.slane %v1136, 1
      %v1187 = vrot.slane %v1137, 1
      %v1188 = vsel %vm808, %v1186, %v1187
      %v1189 = vrot.slane %v1138, 1
      %v1190 = vsel %vm808, %v1187, %v1189
      %v1191 = vrot.slane %v1139, 1
      %v1192 = vrot.slane %v1140, 1
      %v1193 = vsel %vm808, %v1191, %v1192
      %v1194 = vrot.slane %v1141, 1
      %v1195 = vsel %vm808, %v1192, %v1194
      %v1196 = vrot.slane %v1142, 1
      %v1197 = vrot.slane %v1143, 1
      %v1198 = vsel %vm808, %v1196, %v1197
      %v1199 = vrot.slane %v1144, 1
      %v1200 = vsel %vm808, %v1197, %v1199
      %v1201 = vrot.slane %v1145, 1
      %v1202 = vrot.slane %v1146, 1
      %v1203 = vsel %vm808, %v1201, %v1202
      %v1204 = vrot.slane %v1147, 1
      %v1205 = vsel %vm808, %v1202, %v1204
      %v1206 = vrot.slane %v1148, 1
      %v1207 = vrot.slane %v1149, 1
      %v1208 = vsel %vm808, %v1206, %v1207
      %v1209 = vrot.slane %v1150, 1
      %v1210 = vsel %vm808, %v1207, %v1209
      %v1211 = vrot.slane %v1151, 1
      %v1212 = vrot.slane %v1152, 1
      %v1213 = vsel %vm808, %v1211, %v1212
      %v1214 = vrot.slane %v1153, 1
      %v1215 = vsel %vm808, %v1212, %v1214
      %v1216 = vrot.slane %v1154, 1
      %v1217 = vrot.slane %v1155, 1
      %v1218 = vsel %vm808, %v1216, %v1217
      %v1219 = vrot.slane %v1156, 1
      %v1220 = vsel %vm808, %v1217, %v1219
      %v1237 = vadd.f32 %v1113, %v1183
      %v1238 = vadd.f32 %v1114, %v1185
      %v1239 = vadd.f32 %v1115, %v1188
      %v1240 = vadd.f32 %v1116, %v1190
      %v1241 = vadd.f32 %v1117, %v1193
      %v1242 = vadd.f32 %v1118, %v1195
      %v1243 = vadd.f32 %v1119, %v1198
      %v1244 = vadd.f32 %v1120, %v1200
      %v1245 = vadd.f32 %v1121, %v1203
      %v1246 = vadd.f32 %v1122, %v1205
      %v1247 = vadd.f32 %v1123, %v1208
      %v1248 = vadd.f32 %v1124, %v1210
      %v1249 = vadd.f32 %v1125, %v1213
      %v1250 = vadd.f32 %v1126, %v1215
      %v1251 = vadd.f32 %v1127, %v1218
      %v1252 = vadd.f32 %v1128, %v1220
      %v1253 = vlaneseq
      %v1254 = vshrl.u32 %v1253, 7
      %v1255 = vsub.s32 1, %v1254
      %v1256 = vrot.slane %v457, %v1255
      %v1257 = vmul.f32 %v474, %v1256
      %v1258 = vmul.f32 %v475, %v1256
      %v1259 = vmul.f32 %v476, %v1256
      %v1260 = vmul.f32 %v477, %v1256
      %v1261 = vmul.f32 %v478, %v1256
      %v1262 = vmul.f32 %v479, %v1256
      %v1263 = vmul.f32 %v480, %v1256
      %v1264 = vmul.f32 %v481, %v1256
      %v1265 = vmul.f32 %v482, %v1256
      %v1266 = vmul.f32 %v483, %v1256
      %v1267 = vmul.f32 %v484, %v1256
      %v1268 = vmul.f32 %v485, %v1256
      %v1269 = vmul.f32 %v486, %v1256
      %v1270 = vmul.f32 %v487, %v1256
      %v1271 = vmul.f32 %v488, %v1256
      %v1272 = vmul.f32 %v489, %v1256
      %v1273 = vmul.f32 %v490, %v1256
      %v1274 = vmul.f32 %v491, %v1256
      %v1275 = vmul.f32 %v492, %v1256
      %v1276 = vmul.f32 %v493, %v1256
      %v1277 = vmul.f32 %v494, %v1256
      %v1278 = vmul.f32 %v495, %v1256
      %v1279 = vmul.f32 %v496, %v1256
      %v1280 = vmul.f32 %v497, %v1256
      %v1305 = vrot.slane %v1257, 1
      %v1306 = vrot.slane %v1258, 1
      %v1307 = vsel %vm808, %v1305, %v1306
      %v1308 = vrot.slane %v1259, 1
      %v1309 = vsel %vm808, %v1306, %v1308
      %v1310 = vrot.slane %v1260, 1
      %v1311 = vrot.slane %v1261, 1
      %v1312 = vsel %vm808, %v1310, %v1311
      %v1313 = vrot.slane %v1262, 1
      %v1314 = vsel %vm808, %v1311, %v1313
      %v1315 = vrot.slane %v1263, 1
      %v1316 = vrot.slane %v1264, 1
      %v1317 = vsel %vm808, %v1315, %v1316
      %v1318 = vrot.slane %v1265, 1
      %v1319 = vsel %vm808, %v1316, %v1318
      %v1320 = vrot.slane %v1266, 1
      %v1321 = vrot.slane %v1267, 1
      %v1322 = vsel %vm808, %v1320, %v1321
      %v1323 = vrot.slane %v1268, 1
      %v1324 = vsel %vm808, %v1321, %v1323
      %v1325 = vrot.slane %v1269, 1
      %v1326 = vrot.slane %v1270, 1
      %v1327 = vsel %vm808, %v1325, %v1326
      %v1328 = vrot.slane %v1271, 1
      %v1329 = vsel %vm808, %v1326, %v1328
      %v1330 = vrot.slane %v1272, 1
      %v1331 = vrot.slane %v1273, 1
      %v1332 = vsel %vm808, %v1330, %v1331
      %v1333 = vrot.slane %v1274, 1
      %v1334 = vsel %vm808, %v1331, %v1333
      %v1335 = vrot.slane %v1275, 1
      %v1336 = vrot.slane %v1276, 1
      %v1337 = vsel %vm808, %v1335, %v1336
      %v1338 = vrot.slane %v1277, 1
      %v1339 = vsel %vm808, %v1336, %v1338
      %v1340 = vrot.slane %v1278, 1
      %v1341 = vrot.slane %v1279, 1
      %v1342 = vsel %vm808, %v1340, %v1341
      %v1343 = vrot.slane %v1280, 1
      %v1344 = vsel %vm808, %v1341, %v1343
      %v1361 = vadd.f32 %v1237, %v1307
      %v1362 = vadd.f32 %v1238, %v1309
      %v1363 = vadd.f32 %v1239, %v1312
      %v1364 = vadd.f32 %v1240, %v1314
      %v1365 = vadd.f32 %v1241, %v1317
      %v1366 = vadd.f32 %v1242, %v1319
      %v1367 = vadd.f32 %v1243, %v1322
      %v1368 = vadd.f32 %v1244, %v1324
      %v1369 = vadd.f32 %v1245, %v1327
      %v1370 = vadd.f32 %v1246, %v1329
      %v1371 = vadd.f32 %v1247, %v1332
      %v1372 = vadd.f32 %v1248, %v1334
      %v1373 = vadd.f32 %v1249, %v1337
      %v1374 = vadd.f32 %v1250, %v1339
      %v1375 = vadd.f32 %v1251, %v1342
      %v1376 = vadd.f32 %v1252, %v1344
      %v1377 = vlaneseq
      %v1378 = vshrl.u32 %v1377, 7
      %v1379 = vsub.s32 1, %v1378
      %v1380 = vrot.slane %v458, %v1379
      %v1381 = vmul.f32 %v477, %v1380
      %v1382 = vmul.f32 %v478, %v1380
      %v1383 = vmul.f32 %v479, %v1380
      %v1384 = vmul.f32 %v480, %v1380
      %v1385 = vmul.f32 %v481, %v1380
      %v1386 = vmul.f32 %v482, %v1380
      %v1387 = vmul.f32 %v483, %v1380
      %v1388 = vmul.f32 %v484, %v1380
      %v1389 = vmul.f32 %v485, %v1380
      %v1390 = vmul.f32 %v486, %v1380
      %v1391 = vmul.f32 %v487, %v1380
      %v1392 = vmul.f32 %v488, %v1380
      %v1393 = vmul.f32 %v489, %v1380
      %v1394 = vmul.f32 %v490, %v1380
      %v1395 = vmul.f32 %v491, %v1380
      %v1396 = vmul.f32 %v492, %v1380
      %v1397 = vmul.f32 %v493, %v1380
      %v1398 = vmul.f32 %v494, %v1380
      %v1399 = vmul.f32 %v495, %v1380
      %v1400 = vmul.f32 %v496, %v1380
      %v1401 = vmul.f32 %v497, %v1380
      %v1402 = vmul.f32 %v498, %v1380
      %v1403 = vmul.f32 %v499, %v1380
      %v1404 = vmul.f32 %v500, %v1380
      %v1429 = vrot.slane %v1381, 1
      %v1430 = vrot.slane %v1382, 1
      %v1431 = vsel %vm808, %v1429, %v1430
      %v1432 = vrot.slane %v1383, 1
      %v1433 = vsel %vm808, %v1430, %v1432
      %v1434 = vrot.slane %v1384, 1
      %v1435 = vrot.slane %v1385, 1
      %v1436 = vsel %vm808, %v1434, %v1435
      %v1437 = vrot.slane %v1386, 1
      %v1438 = vsel %vm808, %v1435, %v1437
      %v1439 = vrot.slane %v1387, 1
      %v1440 = vrot.slane %v1388, 1
      %v1441 = vsel %vm808, %v1439, %v1440
      %v1442 = vrot.slane %v1389, 1
      %v1443 = vsel %vm808, %v1440, %v1442
      %v1444 = vrot.slane %v1390, 1
      %v1445 = vrot.slane %v1391, 1
      %v1446 = vsel %vm808, %v1444, %v1445
      %v1447 = vrot.slane %v1392, 1
      %v1448 = vsel %vm808, %v1445, %v1447
      %v1449 = vrot.slane %v1393, 1
      %v1450 = vrot.slane %v1394, 1
      %v1451 = vsel %vm808, %v1449, %v1450
      %v1452 = vrot.slane %v1395, 1
      %v1453 = vsel %vm808, %v1450, %v1452
      %v1454 = vrot.slane %v1396, 1
      %v1455 = vrot.slane %v1397, 1
      %v1456 = vsel %vm808, %v1454, %v1455
      %v1457 = vrot.slane %v1398, 1
      %v1458 = vsel %vm808, %v1455, %v1457
      %v1459 = vrot.slane %v1399, 1
      %v1460 = vrot.slane %v1400, 1
      %v1461 = vsel %vm808, %v1459, %v1460
      %v1462 = vrot.slane %v1401, 1
      %v1463 = vsel %vm808, %v1460, %v1462
      %v1464 = vrot.slane %v1402, 1
      %v1465 = vrot.slane %v1403, 1
      %v1466 = vsel %vm808, %v1464, %v1465
      %v1467 = vrot.slane %v1404, 1
      %v1468 = vsel %vm808, %v1465, %v1467
      %v1485 = vadd.f32 %v1361, %v1431
      %v1486 = vadd.f32 %v1362, %v1433
      %v1487 = vadd.f32 %v1363, %v1436
      %v1488 = vadd.f32 %v1364, %v1438
      %v1489 = vadd.f32 %v1365, %v1441
      %v1490 = vadd.f32 %v1366, %v1443
      %v1491 = vadd.f32 %v1367, %v1446
      %v1492 = vadd.f32 %v1368, %v1448
      %v1493 = vadd.f32 %v1369, %v1451
      %v1494 = vadd.f32 %v1370, %v1453
      %v1495 = vadd.f32 %v1371, %v1456
      %v1496 = vadd.f32 %v1372, %v1458
      %v1497 = vadd.f32 %v1373, %v1461
      %v1498 = vadd.f32 %v1374, %v1463
      %v1499 = vadd.f32 %v1375, %v1466
      %v1500 = vadd.f32 %v1376, %v1468
      %v1501 = vlaneseq
      %v1502 = vshrl.u32 %v1501, 7
      %v1503 = vsub.s32 1, %v1502
      %v1504 = vrot.slane %v459, %v1503
      %v1505 = vmul.f32 %v480, %v1504
      %v1506 = vmul.f32 %v481, %v1504
      %v1507 = vmul.f32 %v482, %v1504
      %v1508 = vmul.f32 %v483, %v1504
      %v1509 = vmul.f32 %v484, %v1504
      %v1510 = vmul.f32 %v485, %v1504
      %v1511 = vmul.f32 %v486, %v1504
      %v1512 = vmul.f32 %v487, %v1504
      %v1513 = vmul.f32 %v488, %v1504
      %v1514 = vmul.f32 %v489, %v1504
      %v1515 = vmul.f32 %v490, %v1504
      %v1516 = vmul.f32 %v491, %v1504
      %v1517 = vmul.f32 %v492, %v1504
      %v1518 = vmul.f32 %v493, %v1504
      %v1519 = vmul.f32 %v494, %v1504
      %v1520 = vmul.f32 %v495, %v1504
      %v1521 = vmul.f32 %v496, %v1504
      %v1522 = vmul.f32 %v497, %v1504
      %v1523 = vmul.f32 %v498, %v1504
      %v1524 = vmul.f32 %v499, %v1504
      %v1525 = vmul.f32 %v500, %v1504
      %v1526 = vmul.f32 %v501, %v1504
      %v1527 = vmul.f32 %v502, %v1504
      %v1528 = vmul.f32 %v503, %v1504
      %v1553 = vrot.slane %v1505, 1
      %v1554 = vrot.slane %v1506, 1
      %v1555 = vsel %vm808, %v1553, %v1554
      %v1556 = vrot.slane %v1507, 1
      %v1557 = vsel %vm808, %v1554, %v1556
      %v1558 = vrot.slane %v1508, 1
      %v1559 = vrot.slane %v1509, 1
      %v1560 = vsel %vm808, %v1558, %v1559
      %v1561 = vrot.slane %v1510, 1
      %v1562 = vsel %vm808, %v1559, %v1561
      %v1563 = vrot.slane %v1511, 1
      %v1564 = vrot.slane %v1512, 1
      %v1565 = vsel %vm808, %v1563, %v1564
      %v1566 = vrot.slane %v1513, 1
      %v1567 = vsel %vm808, %v1564, %v1566
      %v1568 = vrot.slane %v1514, 1
      %v1569 = vrot.slane %v1515, 1
      %v1570 = vsel %vm808, %v1568, %v1569
      %v1571 = vrot.slane %v1516, 1
      %v1572 = vsel %vm808, %v1569, %v1571
      %v1573 = vrot.slane %v1517, 1
      %v1574 = vrot.slane %v1518, 1
      %v1575 = vsel %vm808, %v1573, %v1574
      %v1576 = vrot.slane %v1519, 1
      %v1577 = vsel %vm808, %v1574, %v1576
      %v1578 = vrot.slane %v1520, 1
      %v1579 = vrot.slane %v1521, 1
      %v1580 = vsel %vm808, %v1578, %v1579
      %v1581 = vrot.slane %v1522, 1
      %v1582 = vsel %vm808, %v1579, %v1581
      %v1583 = vrot.slane %v1523, 1
      %v1584 = vrot.slane %v1524, 1
      %v1585 = vsel %vm808, %v1583, %v1584
      %v1586 = vrot.slane %v1525, 1
      %v1587 = vsel %vm808, %v1584, %v1586
      %v1588 = vrot.slane %v1526, 1
      %v1589 = vrot.slane %v1527, 1
      %v1590 = vsel %vm808, %v1588, %v1589
      %v1591 = vrot.slane %v1528, 1
      %v1592 = vsel %vm808, %v1589, %v1591
      %v1609 = vadd.f32 %v1485, %v1555
      %v1610 = vadd.f32 %v1486, %v1557
      %v1611 = vadd.f32 %v1487, %v1560
      %v1612 = vadd.f32 %v1488, %v1562
      %v1613 = vadd.f32 %v1489, %v1565
      %v1614 = vadd.f32 %v1490, %v1567
      %v1615 = vadd.f32 %v1491, %v1570
      %v1616 = vadd.f32 %v1492, %v1572
      %v1617 = vadd.f32 %v1493, %v1575
      %v1618 = vadd.f32 %v1494, %v1577
      %v1619 = vadd.f32 %v1495, %v1580
      %v1620 = vadd.f32 %v1496, %v1582
      %v1621 = vadd.f32 %v1497, %v1585
      %v1622 = vadd.f32 %v1498, %v1587
      %v1623 = vadd.f32 %v1499, %v1590
      %v1624 = vadd.f32 %v1500, %v1592
      %v1625 = vlaneseq
      %v1626 = vshrl.u32 %v1625, 7
      %v1627 = vsub.s32 2, %v1626
      %v1628 = vrot.slane %v453, %v1627
      %v1629 = vmul.f32 %v462, %v1628
      %v1630 = vmul.f32 %v463, %v1628
      %v1631 = vmul.f32 %v464, %v1628
      %v1632 = vmul.f32 %v465, %v1628
      %v1633 = vmul.f32 %v466, %v1628
      %v1634 = vmul.f32 %v467, %v1628
      %v1635 = vmul.f32 %v468, %v1628
      %v1636 = vmul.f32 %v469, %v1628
      %v1637 = vmul.f32 %v470, %v1628
      %v1638 = vmul.f32 %v471, %v1628
      %v1639 = vmul.f32 %v472, %v1628
      %v1640 = vmul.f32 %v473, %v1628
      %v1641 = vmul.f32 %v474, %v1628
      %v1642 = vmul.f32 %v475, %v1628
      %v1643 = vmul.f32 %v476, %v1628
      %v1644 = vmul.f32 %v477, %v1628
      %v1645 = vmul.f32 %v478, %v1628
      %v1646 = vmul.f32 %v479, %v1628
      %v1647 = vmul.f32 %v480, %v1628
      %v1648 = vmul.f32 %v481, %v1628
      %v1649 = vmul.f32 %v482, %v1628
      %v1650 = vmul.f32 %v483, %v1628
      %v1651 = vmul.f32 %v484, %v1628
      %v1652 = vmul.f32 %v485, %v1628
      %vm1677 = vcmask 1045504
      %v1678 = vrot.slane %v1629, 2
      %v1679 = vrot.slane %v1630, 2
      %v1680 = vsel %vm1677, %v1678, %v1679
      %v1681 = vrot.slane %v1631, 2
      %v1682 = vsel %vm1677, %v1679, %v1681
      %v1683 = vrot.slane %v1632, 2
      %v1684 = vrot.slane %v1633, 2
      %v1685 = vsel %vm1677, %v1683, %v1684
      %v1686 = vrot.slane %v1634, 2
      %v1687 = vsel %vm1677, %v1684, %v1686
      %v1688 = vrot.slane %v1635, 2
      %v1689 = vrot.slane %v1636, 2
      %v1690 = vsel %vm1677, %v1688, %v1689
      %v1691 = vrot.slane %v1637, 2
      %v1692 = vsel %vm1677, %v1689, %v1691
      %v1693 = vrot.slane %v1638, 2
      %v1694 = vrot.slane %v1639, 2
      %v1695 = vsel %vm1677, %v1693, %v1694
      %v1696 = vrot.slane %v1640, 2
      %v1697 = vsel %vm1677, %v1694, %v1696
      %v1698 = vrot.slane %v1641, 2
      %v1699 = vrot.slane %v1642, 2
      %v1700 = vsel %vm1677, %v1698, %v1699
      %v1701 = vrot.slane %v1643, 2
      %v1702 = vsel %vm1677, %v1699, %v1701
      %v1703 = vrot.slane %v1644, 2
      %v1704 = vrot.slane %v1645, 2
      %v1705 = vsel %vm1677, %v1703, %v1704
      %v1706 = vrot.slane %v1646, 2
      %v1707 = vsel %vm1677, %v1704, %v1706
      %v1708 = vrot.slane %v1647, 2
      %v1709 = vrot.slane %v1648, 2
      %v1710 = vsel %vm1677, %v1708, %v1709
      %v1711 = vrot.slane %v1649, 2
      %v1712 = vsel %vm1677, %v1709, %v1711
      %v1713 = vrot.slane %v1650, 2
      %v1714 = vrot.slane %v1651, 2
      %v1715 = vsel %vm1677, %v1713, %v1714
      %v1716 = vrot.slane %v1652, 2
      %v1717 = vsel %vm1677, %v1714, %v1716
      %v1734 = vadd.f32 %v1609, %v1680
      %v1735 = vadd.f32 %v1610, %v1682
      %v1736 = vadd.f32 %v1611, %v1685
      %v1737 = vadd.f32 %v1612, %v1687
      %v1738 = vadd.f32 %v1613, %v1690
      %v1739 = vadd.f32 %v1614, %v1692
      %v1740 = vadd.f32 %v1615, %v1695
      %v1741 = vadd.f32 %v1616, %v1697
      %v1742 = vadd.f32 %v1617, %v1700
      %v1743 = vadd.f32 %v1618, %v1702
      %v1744 = vadd.f32 %v1619, %v1705
      %v1745 = vadd.f32 %v1620, %v1707
      %v1746 = vadd.f32 %v1621, %v1710
      %v1747 = vadd.f32 %v1622, %v1712
      %v1748 = vadd.f32 %v1623, %v1715
      %v1749 = vadd.f32 %v1624, %v1717
      %v1750 = vlaneseq
      %v1751 = vshrl.u32 %v1750, 7
      %v1752 = vsub.s32 2, %v1751
      %v1753 = vrot.slane %v454, %v1752
      %v1754 = vmul.f32 %v465, %v1753
      %v1755 = vmul.f32 %v466, %v1753
      %v1756 = vmul.f32 %v467, %v1753
      %v1757 = vmul.f32 %v468, %v1753
      %v1758 = vmul.f32 %v469, %v1753
      %v1759 = vmul.f32 %v470, %v1753
      %v1760 = vmul.f32 %v471, %v1753
      %v1761 = vmul.f32 %v472, %v1753
      %v1762 = vmul.f32 %v473, %v1753
      %v1763 = vmul.f32 %v474, %v1753
      %v1764 = vmul.f32 %v475, %v1753
      %v1765 = vmul.f32 %v476, %v1753
      %v1766 = vmul.f32 %v477, %v1753
      %v1767 = vmul.f32 %v478, %v1753
      %v1768 = vmul.f32 %v479, %v1753
      %v1769 = vmul.f32 %v480, %v1753
      %v1770 = vmul.f32 %v481, %v1753
      %v1771 = vmul.f32 %v482, %v1753
      %v1772 = vmul.f32 %v483, %v1753
      %v1773 = vmul.f32 %v484, %v1753
      %v1774 = vmul.f32 %v485, %v1753
      %v1775 = vmul.f32 %v486, %v1753
      %v1776 = vmul.f32 %v487, %v1753
      %v1777 = vmul.f32 %v488, %v1753
      %v1802 = vrot.slane %v1754, 2
      %v1803 = vrot.slane %v1755, 2
      %v1804 = vsel %vm1677, %v1802, %v1803
      %v1805 = vrot.slane %v1756, 2
      %v1806 = vsel %vm1677, %v1803, %v1805
      %v1807 = vrot.slane %v1757, 2
      %v1808 = vrot.slane %v1758, 2
      %v1809 = vsel %vm1677, %v1807, %v1808
      %v1810 = vrot.slane %v1759, 2
      %v1811 = vsel %vm1677, %v1808, %v1810
      %v1812 = vrot.slane %v1760, 2
      %v1813 = vrot.slane %v1761, 2
      %v1814 = vsel %vm1677, %v1812, %v1813
      %v1815 = vrot.slane %v1762, 2
      %v1816 = vsel %vm1677, %v1813, %v1815
      %v1817 = vrot.slane %v1763, 2
      %v1818 = vrot.slane %v1764, 2
      %v1819 = vsel %vm1677, %v1817, %v1818
      %v1820 = vrot.slane %v1765, 2
      %v1821 = vsel %vm1677, %v1818, %v1820
      %v1822 = vrot.slane %v1766, 2
      %v1823 = vrot.slane %v1767, 2
      %v1824 = vsel %vm1677, %v1822, %v1823
      %v1825 = vrot.slane %v1768, 2
      %v1826 = vsel %vm1677, %v1823, %v1825
      %v1827 = vrot.slane %v1769, 2
      %v1828 = vrot.slane %v1770, 2
      %v1829 = vsel %vm1677, %v1827, %v1828
      %v1830 = vrot.slane %v1771, 2
      %v1831 = vsel %vm1677, %v1828, %v1830
      %v1832 = vrot.slane %v1772, 2
      %v1833 = vrot.slane %v1773, 2
      %v1834 = vsel %vm1677, %v1832, %v1833
      %v1835 = vrot.slane %v1774, 2
      %v1836 = vsel %vm1677, %v1833, %v1835
      %v1837 = vrot.slane %v1775, 2
      %v1838 = vrot.slane %v1776, 2
      %v1839 = vsel %vm1677, %v1837, %v1838
      %v1840 = vrot.slane %v1777, 2
      %v1841 = vsel %vm1677, %v1838, %v1840
      %v1858 = vadd.f32 %v1734, %v1804
      %v1859 = vadd.f32 %v1735, %v1806
      %v1860 = vadd.f32 %v1736, %v1809
      %v1861 = vadd.f32 %v1737, %v1811
      %v1862 = vadd.f32 %v1738, %v1814
      %v1863 = vadd.f32 %v1739, %v1816
      %v1864 = vadd.f32 %v1740, %v1819
      %v1865 = vadd.f32 %v1741, %v1821
      %v1866 = vadd.f32 %v1742, %v1824
      %v1867 = vadd.f32 %v1743, %v1826
      %v1868 = vadd.f32 %v1744, %v1829
      %v1869 = vadd.f32 %v1745, %v1831
      %v1870 = vadd.f32 %v1746, %v1834
      %v1871 = vadd.f32 %v1747, %v1836
      %v1872 = vadd.f32 %v1748, %v1839
      %v1873 = vadd.f32 %v1749, %v1841
      %v1874 = vlaneseq
      %v1875 = vshrl.u32 %v1874, 7
      %v1876 = vsub.s32 2, %v1875
      %v1877 = vrot.slane %v455, %v1876
      %v1878 = vmul.f32 %v468, %v1877
      %v1879 = vmul.f32 %v469, %v1877
      %v1880 = vmul.f32 %v470, %v1877
      %v1881 = vmul.f32 %v471, %v1877
      %v1882 = vmul.f32 %v472, %v1877
      %v1883 = vmul.f32 %v473, %v1877
      %v1884 = vmul.f32 %v474, %v1877
      %v1885 = vmul.f32 %v475, %v1877
      %v1886 = vmul.f32 %v476, %v1877
      %v1887 = vmul.f32 %v477, %v1877
      %v1888 = vmul.f32 %v478, %v1877
      %v1889 = vmul.f32 %v479, %v1877
      %v1890 = vmul.f32 %v480, %v1877
      %v1891 = vmul.f32 %v481, %v1877
      %v1892 = vmul.f32 %v482, %v1877
      %v1893 = vmul.f32 %v483, %v1877
      %v1894 = vmul.f32 %v484, %v1877
      %v1895 = vmul.f32 %v485, %v1877
      %v1896 = vmul.f32 %v486, %v1877
      %v1897 = vmul.f32 %v487, %v1877
      %v1898 = vmul.f32 %v488, %v1877
      %v1899 = vmul.f32 %v489, %v1877
      %v1900 = vmul.f32 %v490, %v1877
      %v1901 = vmul.f32 %v491, %v1877
      %v1926 = vrot.slane %v1878, 2
      %v1927 = vrot.slane %v1879, 2
      %v1928 = vsel %vm1677, %v1926, %v1927
      %v1929 = vrot.slane %v1880, 2
      %v1930 = vsel %vm1677, %v1927, %v1929
      %v1931 = vrot.slane %v1881, 2
      %v1932 = vrot.slane %v1882, 2
      %v1933 = vsel %vm1677, %v1931, %v1932
      %v1934 = vrot.slane %v1883, 2
      %v1935 = vsel %vm1677, %v1932, %v1934
      %v1936 = vrot.slane %v1884, 2
      %v1937 = vrot.slane %v1885, 2
      %v1938 = vsel %vm1677, %v1936, %v1937
      %v1939 = vrot.slane %v1886, 2
      %v1940 = vsel %vm1677, %v1937, %v1939
      %v1941 = vrot.slane %v1887, 2
      %v1942 = vrot.slane %v1888, 2
      %v1943 = vsel %vm1677, %v1941, %v1942
      %v1944 = vrot.slane %v1889, 2
      %v1945 = vsel %vm1677, %v1942, %v1944
      %v1946 = vrot.slane %v1890, 2
      %v1947 = vrot.slane %v1891, 2
      %v1948 = vsel %vm1677, %v1946, %v1947
      %v1949 = vrot.slane %v1892, 2
      %v1950 = vsel %vm1677, %v1947, %v1949
      %v1951 = vrot.slane %v1893, 2
      %v1952 = vrot.slane %v1894, 2
      %v1953 = vsel %vm1677, %v1951, %v1952
      %v1954 = vrot.slane %v1895, 2
      %v1955 = vsel %vm1677, %v1952, %v1954
      %v1956 = vrot.slane %v1896, 2
      %v1957 = vrot.slane %v1897, 2
      %v1958 = vsel %vm1677, %v1956, %v1957
      %v1959 = vrot.slane %v1898, 2
      %v1960 = vsel %vm1677, %v1957, %v1959
      %v1961 = vrot.slane %v1899, 2
      %v1962 = vrot.slane %v1900, 2
      %v1963 = vsel %vm1677, %v1961, %v1962
      %v1964 = vrot.slane %v1901, 2
      %v1965 = vsel %vm1677, %v1962, %v1964
      %v1982 = vadd.f32 %v1858, %v1928
      %v1983 = vadd.f32 %v1859, %v1930
      %v1984 = vadd.f32 %v1860, %v1933
      %v1985 = vadd.f32 %v1861, %v1935
      %v1986 = vadd.f32 %v1862, %v1938
      %v1987 = vadd.f32 %v1863, %v1940
      %v1988 = vadd.f32 %v1864, %v1943
      %v1989 = vadd.f32 %v1865, %v1945
      %v1990 = vadd.f32 %v1866, %v1948
      %v1991 = vadd.f32 %v1867, %v1950
      %v1992 = vadd.f32 %v1868, %v1953
      %v1993 = vadd.f32 %v1869, %v1955
      %v1994 = vadd.f32 %v1870, %v1958
      %v1995 = vadd.f32 %v1871, %v1960
      %v1996 = vadd.f32 %v1872, %v1963
      %v1997 = vadd.f32 %v1873, %v1965
      %v1998 = vlaneseq
      %v1999 = vshrl.u32 %v1998, 7
      %v2000 = vsub.s32 2, %v1999
      %v2001 = vrot.slane %v456, %v2000
      %v2002 = vmul.f32 %v471, %v2001
      %v2003 = vmul.f32 %v472, %v2001
      %v2004 = vmul.f32 %v473, %v2001
      %v2005 = vmul.f32 %v474, %v2001
      %v2006 = vmul.f32 %v475, %v2001
      %v2007 = vmul.f32 %v476, %v2001
      %v2008 = vmul.f32 %v477, %v2001
      %v2009 = vmul.f32 %v478, %v2001
      %v2010 = vmul.f32 %v479, %v2001
      %v2011 = vmul.f32 %v480, %v2001
      %v2012 = vmul.f32 %v481, %v2001
      %v2013 = vmul.f32 %v482, %v2001
      %v2014 = vmul.f32 %v483, %v2001
      %v2015 = vmul.f32 %v484, %v2001
      %v2016 = vmul.f32 %v485, %v2001
      %v2017 = vmul.f32 %v486, %v2001
      %v2018 = vmul.f32 %v487, %v2001
      %v2019 = vmul.f32 %v488, %v2001
      %v2020 = vmul.f32 %v489, %v2001
      %v2021 = vmul.f32 %v490, %v2001
      %v2022 = vmul.f32 %v491, %v2001
      %v2023 = vmul.f32 %v492, %v2001
      %v2024 = vmul.f32 %v493, %v2001
      %v2025 = vmul.f32 %v494, %v2001
      %v2050 = vrot.slane %v2002, 2
      %v2051 = vrot.slane %v2003, 2
      %v2052 = vsel %vm1677, %v2050, %v2051
      %v2053 = vrot.slane %v2004, 2
      %v2054 = vsel %vm1677, %v2051, %v2053
      %v2055 = vrot.slane %v2005, 2
      %v2056 = vrot.slane %v2006, 2
      %v2057 = vsel %vm1677, %v2055, %v2056
      %v2058 = vrot.slane %v2007, 2
      %v2059 = vsel %vm1677, %v2056, %v2058
      %v2060 = vrot.slane %v2008, 2
      %v2061 = vrot.slane %v2009, 2
      %v2062 = vsel %vm1677, %v2060, %v2061
      %v2063 = vrot.slane %v2010, 2
      %v2064 = vsel %vm1677, %v2061, %v2063
      %v2065 = vrot.slane %v2011, 2
      %v2066 = vrot.slane %v2012, 2
      %v2067 = vsel %vm1677, %v2065, %v2066
      %v2068 = vrot.slane %v2013, 2
      %v2069 = vsel %vm1677, %v2066, %v2068
      %v2070 = vrot.slane %v2014, 2
      %v2071 = vrot.slane %v2015, 2
      %v2072 = vsel %vm1677, %v2070, %v2071
      %v2073 = vrot.slane %v2016, 2
      %v2074 = vsel %vm1677, %v2071, %v2073
      %v2075 = vrot.slane %v2017, 2
      %v2076 = vrot.slane %v2018, 2
      %v2077 = vsel %vm1677, %v2075, %v2076
      %v2078 = vrot.slane %v2019, 2
      %v2079 = vsel %vm1677, %v2076, %v2078
      %v2080 = vrot.slane %v2020, 2
      %v2081 = vrot.slane %v2021, 2
      %v2082 = vsel %vm1677, %v2080, %v2081
      %v2083 = vrot.slane %v2022, 2
      %v2084 = vsel %vm1677, %v2081, %v2083
      %v2085 = vrot.slane %v2023, 2
      %v2086 = vrot.slane %v2024, 2
      %v2087 = vsel %vm1677, %v2085, %v2086
      %v2088 = vrot.slane %v2025, 2
      %v2089 = vsel %vm1677, %v2086, %v2088
      %v2106 = vadd.f32 %v1982, %v2052
      %v2107 = vadd.f32 %v1983, %v2054
      %v2108 = vadd.f32 %v1984, %v2057
      %v2109 = vadd.f32 %v1985, %v2059
      %v2110 = vadd.f32 %v1986, %v2062
      %v2111 = vadd.f32 %v1987, %v2064
      %v2112 = vadd.f32 %v1988, %v2067
      %v2113 = vadd.f32 %v1989, %v2069
      %v2114 = vadd.f32 %v1990, %v2072
      %v2115 = vadd.f32 %v1991, %v2074
      %v2116 = vadd.f32 %v1992, %v2077
      %v2117 = vadd.f32 %v1993, %v2079
      %v2118 = vadd.f32 %v1994, %v2082
      %v2119 = vadd.f32 %v1995, %v2084
      %v2120 = vadd.f32 %v1996, %v2087
      %v2121 = vadd.f32 %v1997, %v2089
      %v2122 = vlaneseq
      %v2123 = vshrl.u32 %v2122, 7
      %v2124 = vsub.s32 2, %v2123
      %v2125 = vrot.slane %v457, %v2124
      %v2126 = vmul.f32 %v474, %v2125
      %v2127 = vmul.f32 %v475, %v2125
      %v2128 = vmul.f32 %v476, %v2125
      %v2129 = vmul.f32 %v477, %v2125
      %v2130 = vmul.f32 %v478, %v2125
      %v2131 = vmul.f32 %v479, %v2125
      %v2132 = vmul.f32 %v480, %v2125
      %v2133 = vmul.f32 %v481, %v2125
      %v2134 = vmul.f32 %v482, %v2125
      %v2135 = vmul.f32 %v483, %v2125
      %v2136 = vmul.f32 %v484, %v2125
      %v2137 = vmul.f32 %v485, %v2125
      %v2138 = vmul.f32 %v486, %v2125
      %v2139 = vmul.f32 %v487, %v2125
      %v2140 = vmul.f32 %v488, %v2125
      %v2141 = vmul.f32 %v489, %v2125
      %v2142 = vmul.f32 %v490, %v2125
      %v2143 = vmul.f32 %v491, %v2125
      %v2144 = vmul.f32 %v492, %v2125
      %v2145 = vmul.f32 %v493, %v2125
      %v2146 = vmul.f32 %v494, %v2125
      %v2147 = vmul.f32 %v495, %v2125
      %v2148 = vmul.f32 %v496, %v2125
      %v2149 = vmul.f32 %v497, %v2125
      %v2174 = vrot.slane %v2126, 2
      %v2175 = vrot.slane %v2127, 2
      %v2176 = vsel %vm1677, %v2174, %v2175
      %v2177 = vrot.slane %v2128, 2
      %v2178 = vsel %vm1677, %v2175, %v2177
      %v2179 = vrot.slane %v2129, 2
      %v2180 = vrot.slane %v2130, 2
      %v2181 = vsel %vm1677, %v2179, %v2180
      %v2182 = vrot.slane %v2131, 2
      %v2183 = vsel %vm1677, %v2180, %v2182
      %v2184 = vrot.slane %v2132, 2
      %v2185 = vrot.slane %v2133, 2
      %v2186 = vsel %vm1677, %v2184, %v2185
      %v2187 = vrot.slane %v2134, 2
      %v2188 = vsel %vm1677, %v2185, %v2187
      %v2189 = vrot.slane %v2135, 2
      %v2190 = vrot.slane %v2136, 2
      %v2191 = vsel %vm1677, %v2189, %v2190
      %v2192 = vrot.slane %v2137, 2
      %v2193 = vsel %vm1677, %v2190, %v2192
      %v2194 = vrot.slane %v2138, 2
      %v2195 = vrot.slane %v2139, 2
      %v2196 = vsel %vm1677, %v2194, %v2195
      %v2197 = vrot.slane %v2140, 2
      %v2198 = vsel %vm1677, %v2195, %v2197
      %v2199 = vrot.slane %v2141, 2
      %v2200 = vrot.slane %v2142, 2
      %v2201 = vsel %vm1677, %v2199, %v2200
      %v2202 = vrot.slane %v2143, 2
      %v2203 = vsel %vm1677, %v2200, %v2202
      %v2204 = vrot.slane %v2144, 2
      %v2205 = vrot.slane %v2145, 2
      %v2206 = vsel %vm1677, %v2204, %v2205
      %v2207 = vrot.slane %v2146, 2
      %v2208 = vsel %vm1677, %v2205, %v2207
      %v2209 = vrot.slane %v2147, 2
      %v2210 = vrot.slane %v2148, 2
      %v2211 = vsel %vm1677, %v2209, %v2210
      %v2212 = vrot.slane %v2149, 2
      %v2213 = vsel %vm1677, %v2210, %v2212
      %v2230 = vadd.f32 %v2106, %v2176
      %v2231 = vadd.f32 %v2107, %v2178
      %v2232 = vadd.f32 %v2108, %v2181
      %v2233 = vadd.f32 %v2109, %v2183
      %v2234 = vadd.f32 %v2110, %v2186
      %v2235 = vadd.f32 %v2111, %v2188
      %v2236 = vadd.f32 %v2112, %v2191
      %v2237 = vadd.f32 %v2113, %v2193
      %v2238 = vadd.f32 %v2114, %v2196
      %v2239 = vadd.f32 %v2115, %v2198
      %v2240 = vadd.f32 %v2116, %v2201
      %v2241 = vadd.f32 %v2117, %v2203
      %v2242 = vadd.f32 %v2118, %v2206
      %v2243 = vadd.f32 %v2119, %v2208
      %v2244 = vadd.f32 %v2120, %v2211
      %v2245 = vadd.f32 %v2121, %v2213
      %v2246 = vlaneseq
      %v2247 = vshrl.u32 %v2246, 7
      %v2248 = vsub.s32 2, %v2247
      %v2249 = vrot.slane %v458, %v2248
      %v2250 = vmul.f32 %v477, %v2249
      %v2251 = vmul.f32 %v478, %v2249
      %v2252 = vmul.f32 %v479, %v2249
      %v2253 = vmul.f32 %v480, %v2249
      %v2254 = vmul.f32 %v481, %v2249
      %v2255 = vmul.f32 %v482, %v2249
      %v2256 = vmul.f32 %v483, %v2249
      %v2257 = vmul.f32 %v484, %v2249
      %v2258 = vmul.f32 %v485, %v2249
      %v2259 = vmul.f32 %v486, %v2249
      %v2260 = vmul.f32 %v487, %v2249
      %v2261 = vmul.f32 %v488, %v2249
      %v2262 = vmul.f32 %v489, %v2249
      %v2263 = vmul.f32 %v490, %v2249
      %v2264 = vmul.f32 %v491, %v2249
      %v2265 = vmul.f32 %v492, %v2249
      %v2266 = vmul.f32 %v493, %v2249
      %v2267 = vmul.f32 %v494, %v2249
      %v2268 = vmul.f32 %v495, %v2249
      %v2269 = vmul.f32 %v496, %v2249
      %v2270 = vmul.f32 %v497, %v2249
      %v2271 = vmul.f32 %v498, %v2249
      %v2272 = vmul.f32 %v499, %v2249
      %v2273 = vmul.f32 %v500, %v2249
      %v2298 = vrot.slane %v2250, 2
      %v2299 = vrot.slane %v2251, 2
      %v2300 = vsel %vm1677, %v2298, %v2299
      %v2301 = vrot.slane %v2252, 2
      %v2302 = vsel %vm1677, %v2299, %v2301
      %v2303 = vrot.slane %v2253, 2
      %v2304 = vrot.slane %v2254, 2
      %v2305 = vsel %vm1677, %v2303, %v2304
      %v2306 = vrot.slane %v2255, 2
      %v2307 = vsel %vm1677, %v2304, %v2306
      %v2308 = vrot.slane %v2256, 2
      %v2309 = vrot.slane %v2257, 2
      %v2310 = vsel %vm1677, %v2308, %v2309
      %v2311 = vrot.slane %v2258, 2
      %v2312 = vsel %vm1677, %v2309, %v2311
      %v2313 = vrot.slane %v2259, 2
      %v2314 = vrot.slane %v2260, 2
      %v2315 = vsel %vm1677, %v2313, %v2314
      %v2316 = vrot.slane %v2261, 2
      %v2317 = vsel %vm1677, %v2314, %v2316
      %v2318 = vrot.slane %v2262, 2
      %v2319 = vrot.slane %v2263, 2
      %v2320 = vsel %vm1677, %v2318, %v2319
      %v2321 = vrot.slane %v2264, 2
      %v2322 = vsel %vm1677, %v2319, %v2321
      %v2323 = vrot.slane %v2265, 2
      %v2324 = vrot.slane %v2266, 2
      %v2325 = vsel %vm1677, %v2323, %v2324
      %v2326 = vrot.slane %v2267, 2
      %v2327 = vsel %vm1677, %v2324, %v2326
      %v2328 = vrot.slane %v2268, 2
      %v2329 = vrot.slane %v2269, 2
      %v2330 = vsel %vm1677, %v2328, %v2329
      %v2331 = vrot.slane %v2270, 2
      %v2332 = vsel %vm1677, %v2329, %v2331
      %v2333 = vrot.slane %v2271, 2
      %v2334 = vrot.slane %v2272, 2
      %v2335 = vsel %vm1677, %v2333, %v2334
      %v2336 = vrot.slane %v2273, 2
      %v2337 = vsel %vm1677, %v2334, %v2336
      %v2354 = vadd.f32 %v2230, %v2300
      %v2355 = vadd.f32 %v2231, %v2302
      %v2356 = vadd.f32 %v2232, %v2305
      %v2357 = vadd.f32 %v2233, %v2307
      %v2358 = vadd.f32 %v2234, %v2310
      %v2359 = vadd.f32 %v2235, %v2312
      %v2360 = vadd.f32 %v2236, %v2315
      %v2361 = vadd.f32 %v2237, %v2317
      %v2362 = vadd.f32 %v2238, %v2320
      %v2363 = vadd.f32 %v2239, %v2322
      %v2364 = vadd.f32 %v2240, %v2325
      %v2365 = vadd.f32 %v2241, %v2327
      %v2366 = vadd.f32 %v2242, %v2330
      %v2367 = vadd.f32 %v2243, %v2332
      %v2368 = vadd.f32 %v2244, %v2335
      %v2369 = vadd.f32 %v2245, %v2337
      %v2370 = vlaneseq
      %v2371 = vshrl.u32 %v2370, 7
      %v2372 = vsub.s32 2, %v2371
      %v2373 = vrot.slane %v459, %v2372
      %v2374 = vmul.f32 %v480, %v2373
      %v2375 = vmul.f32 %v481, %v2373
      %v2376 = vmul.f32 %v482, %v2373
      %v2377 = vmul.f32 %v483, %v2373
      %v2378 = vmul.f32 %v484, %v2373
      %v2379 = vmul.f32 %v485, %v2373
      %v2380 = vmul.f32 %v486, %v2373
      %v2381 = vmul.f32 %v487, %v2373
      %v2382 = vmul.f32 %v488, %v2373
      %v2383 = vmul.f32 %v489, %v2373
      %v2384 = vmul.f32 %v490, %v2373
      %v2385 = vmul.f32 %v491, %v2373
      %v2386 = vmul.f32 %v492, %v2373
      %v2387 = vmul.f32 %v493, %v2373
      %v2388 = vmul.f32 %v494, %v2373
      %v2389 = vmul.f32 %v495, %v2373
      %v2390 = vmul.f32 %v496, %v2373
      %v2391 = vmul.f32 %v497, %v2373
      %v2392 = vmul.f32 %v498, %v2373
      %v2393 = vmul.f32 %v499, %v2373
      %v2394 = vmul.f32 %v500, %v2373
      %v2395 = vmul.f32 %v501, %v2373
      %v2396 = vmul.f32 %v502, %v2373
      %v2397 = vmul.f32 %v503, %v2373
      %v2422 = vrot.slane %v2374, 2
      %v2423 = vrot.slane %v2375, 2
      %v2424 = vsel %vm1677, %v2422, %v2423
      %v2425 = vrot.slane %v2376, 2
      %v2426 = vsel %vm1677, %v2423, %v2425
      %v2427 = vrot.slane %v2377, 2
      %v2428 = vrot.slane %v2378, 2
      %v2429 = vsel %vm1677, %v2427, %v2428
      %v2430 = vrot.slane %v2379, 2
      %v2431 = vsel %vm1677, %v2428, %v2430
      %v2432 = vrot.slane %v2380, 2
      %v2433 = vrot.slane %v2381, 2
      %v2434 = vsel %vm1677, %v2432, %v2433
      %v2435 = vrot.slane %v2382, 2
      %v2436 = vsel %vm1677, %v2433, %v2435
      %v2437 = vrot.slane %v2383, 2
      %v2438 = vrot.slane %v2384, 2
      %v2439 = vsel %vm1677, %v2437, %v2438
      %v2440 = vrot.slane %v2385, 2
      %v2441 = vsel %vm1677, %v2438, %v2440
      %v2442 = vrot.slane %v2386, 2
      %v2443 = vrot.slane %v2387, 2
      %v2444 = vsel %vm1677, %v2442, %v2443
      %v2445 = vrot.slane %v2388, 2
      %v2446 = vsel %vm1677, %v2443, %v2445
      %v2447 = vrot.slane %v2389, 2
      %v2448 = vrot.slane %v2390, 2
      %v2449 = vsel %vm1677, %v2447, %v2448
      %v2450 = vrot.slane %v2391, 2
      %v2451 = vsel %vm1677, %v2448, %v2450
      %v2452 = vrot.slane %v2392, 2
      %v2453 = vrot.slane %v2393, 2
      %v2454 = vsel %vm1677, %v2452, %v2453
      %v2455 = vrot.slane %v2394, 2
      %v2456 = vsel %vm1677, %v2453, %v2455
      %v2457 = vrot.slane %v2395, 2
      %v2458 = vrot.slane %v2396, 2
      %v2459 = vsel %vm1677, %v2457, %v2458
      %v2460 = vrot.slane %v2397, 2
      %v2461 = vsel %vm1677, %v2458, %v2460
      %v2478 = vadd.f32 %v2354, %v2424
      %v2479 = vadd.f32 %v2355, %v2426
      %v2480 = vadd.f32 %v2356, %v2429
      %v2481 = vadd.f32 %v2357, %v2431
      %v2482 = vadd.f32 %v2358, %v2434
      %v2483 = vadd.f32 %v2359, %v2436
      %v2484 = vadd.f32 %v2360, %v2439
      %v2485 = vadd.f32 %v2361, %v2441
      %v2486 = vadd.f32 %v2362, %v2444
      %v2487 = vadd.f32 %v2363, %v2446
      %v2488 = vadd.f32 %v2364, %v2449
      %v2489 = vadd.f32 %v2365, %v2451
      %v2490 = vadd.f32 %v2366, %v2454
      %v2491 = vadd.f32 %v2367, %v2456
      %v2492 = vadd.f32 %v2368, %v2459
      %v2493 = vadd.f32 %v2369, %v2461
      %v2494 = vlaneseq
      %v2495 = vshrl.u32 %v2494, 7
      %v2496 = vsub.s32 3, %v2495
      %v2497 = vrot.slane %v453, %v2496
      %v2498 = vmul.f32 %v462, %v2497
      %v2499 = vmul.f32 %v463, %v2497
      %v2500 = vmul.f32 %v464, %v2497
      %v2501 = vmul.f32 %v465, %v2497
      %v2502 = vmul.f32 %v466, %v2497
      %v2503 = vmul.f32 %v467, %v2497
      %v2504 = vmul.f32 %v468, %v2497
      %v2505 = vmul.f32 %v469, %v2497
      %v2506 = vmul.f32 %v470, %v2497
      %v2507 = vmul.f32 %v471, %v2497
      %v2508 = vmul.f32 %v472, %v2497
      %v2509 = vmul.f32 %v473, %v2497
      %v2510 = vmul.f32 %v474, %v2497
      %v2511 = vmul.f32 %v475, %v2497
      %v2512 = vmul.f32 %v476, %v2497
      %v2513 = vmul.f32 %v477, %v2497
      %v2514 = vmul.f32 %v478, %v2497
      %v2515 = vmul.f32 %v479, %v2497
      %v2516 = vmul.f32 %v480, %v2497
      %v2517 = vmul.f32 %v481, %v2497
      %v2518 = vmul.f32 %v482, %v2497
      %v2519 = vmul.f32 %v483, %v2497
      %v2520 = vmul.f32 %v484, %v2497
      %v2521 = vmul.f32 %v485, %v2497
      %vm2546 = vcmask 1044480
      %v2547 = vrot.slane %v2498, 3
      %v2548 = vrot.slane %v2499, 3
      %v2549 = vsel %vm2546, %v2547, %v2548
      %v2550 = vrot.slane %v2500, 3
      %v2551 = vsel %vm2546, %v2548, %v2550
      %v2552 = vrot.slane %v2501, 3
      %v2553 = vrot.slane %v2502, 3
      %v2554 = vsel %vm2546, %v2552, %v2553
      %v2555 = vrot.slane %v2503, 3
      %v2556 = vsel %vm2546, %v2553, %v2555
      %v2557 = vrot.slane %v2504, 3
      %v2558 = vrot.slane %v2505, 3
      %v2559 = vsel %vm2546, %v2557, %v2558
      %v2560 = vrot.slane %v2506, 3
      %v2561 = vsel %vm2546, %v2558, %v2560
      %v2562 = vrot.slane %v2507, 3
      %v2563 = vrot.slane %v2508, 3
      %v2564 = vsel %vm2546, %v2562, %v2563
      %v2565 = vrot.slane %v2509, 3
      %v2566 = vsel %vm2546, %v2563, %v2565
      %v2567 = vrot.slane %v2510, 3
      %v2568 = vrot.slane %v2511, 3
      %v2569 = vsel %vm2546, %v2567, %v2568
      %v2570 = vrot.slane %v2512, 3
      %v2571 = vsel %vm2546, %v2568, %v2570
      %v2572 = vrot.slane %v2513, 3
      %v2573 = vrot.slane %v2514, 3
      %v2574 = vsel %vm2546, %v2572, %v2573
      %v2575 = vrot.slane %v2515, 3
      %v2576 = vsel %vm2546, %v2573, %v2575
      %v2577 = vrot.slane %v2516, 3
      %v2578 = vrot.slane %v2517, 3
      %v2579 = vsel %vm2546, %v2577, %v2578
      %v2580 = vrot.slane %v2518, 3
      %v2581 = vsel %vm2546, %v2578, %v2580
      %v2582 = vrot.slane %v2519, 3
      %v2583 = vrot.slane %v2520, 3
      %v2584 = vsel %vm2546, %v2582, %v2583
      %v2585 = vrot.slane %v2521, 3
      %v2586 = vsel %vm2546, %v2583, %v2585
      %v2603 = vadd.f32 %v2478, %v2549
      %v2604 = vadd.f32 %v2479, %v2551
      %v2605 = vadd.f32 %v2480, %v2554
      %v2606 = vadd.f32 %v2481, %v2556
      %v2607 = vadd.f32 %v2482, %v2559
      %v2608 = vadd.f32 %v2483, %v2561
      %v2609 = vadd.f32 %v2484, %v2564
      %v2610 = vadd.f32 %v2485, %v2566
      %v2611 = vadd.f32 %v2486, %v2569
      %v2612 = vadd.f32 %v2487, %v2571
      %v2613 = vadd.f32 %v2488, %v2574
      %v2614 = vadd.f32 %v2489, %v2576
      %v2615 = vadd.f32 %v2490, %v2579
      %v2616 = vadd.f32 %v2491, %v2581
      %v2617 = vadd.f32 %v2492, %v2584
      %v2618 = vadd.f32 %v2493, %v2586
      %v2619 = vlaneseq
      %v2620 = vshrl.u32 %v2619, 7
      %v2621 = vsub.s32 3, %v2620
      %v2622 = vrot.slane %v454, %v2621
      %v2623 = vmul.f32 %v465, %v2622
      %v2624 = vmul.f32 %v466, %v2622
      %v2625 = vmul.f32 %v467, %v2622
      %v2626 = vmul.f32 %v468, %v2622
      %v2627 = vmul.f32 %v469, %v2622
      %v2628 = vmul.f32 %v470, %v2622
      %v2629 = vmul.f32 %v471, %v2622
      %v2630 = vmul.f32 %v472, %v2622
      %v2631 = vmul.f32 %v473, %v2622
      %v2632 = vmul.f32 %v474, %v2622
      %v2633 = vmul.f32 %v475, %v2622
      %v2634 = vmul.f32 %v476, %v2622
      %v2635 = vmul.f32 %v477, %v2622
      %v2636 = vmul.f32 %v478, %v2622
      %v2637 = vmul.f32 %v479, %v2622
      %v2638 = vmul.f32 %v480, %v2622
      %v2639 = vmul.f32 %v481, %v2622
      %v2640 = vmul.f32 %v482, %v2622
      %v2641 = vmul.f32 %v483, %v2622
      %v2642 = vmul.f32 %v484, %v2622
      %v2643 = vmul.f32 %v485, %v2622
      %v2644 = vmul.f32 %v486, %v2622
      %v2645 = vmul.f32 %v487, %v2622
      %v2646 = vmul.f32 %v488, %v2622
      %v2671 = vrot.slane %v2623, 3
      %v2672 = vrot.slane %v2624, 3
      %v2673 = vsel %vm2546, %v2671, %v2672
      %v2674 = vrot.slane %v2625, 3
      %v2675 = vsel %vm2546, %v2672, %v2674
      %v2676 = vrot.slane %v2626, 3
      %v2677 = vrot.slane %v2627, 3
      %v2678 = vsel %vm2546, %v2676, %v2677
      %v2679 = vrot.slane %v2628, 3
      %v2680 = vsel %vm2546, %v2677, %v2679
      %v2681 = vrot.slane %v2629, 3
      %v2682 = vrot.slane %v2630, 3
      %v2683 = vsel %vm2546, %v2681, %v2682
      %v2684 = vrot.slane %v2631, 3
      %v2685 = vsel %vm2546, %v2682, %v2684
      %v2686 = vrot.slane %v2632, 3
      %v2687 = vrot.slane %v2633, 3
      %v2688 = vsel %vm2546, %v2686, %v2687
      %v2689 = vrot.slane %v2634, 3
      %v2690 = vsel %vm2546, %v2687, %v2689
      %v2691 = vrot.slane %v2635, 3
      %v2692 = vrot.slane %v2636, 3
      %v2693 = vsel %vm2546, %v2691, %v2692
      %v2694 = vrot.slane %v2637, 3
      %v2695 = vsel %vm2546, %v2692, %v2694
      %v2696 = vrot.slane %v2638, 3
      %v2697 = vrot.slane %v2639, 3
      %v2698 = vsel %vm2546, %v2696, %v2697
      %v2699 = vrot.slane %v2640, 3
      %v2700 = vsel %vm2546, %v2697, %v2699
      %v2701 = vrot.slane %v2641, 3
      %v2702 = vrot.slane %v2642, 3
      %v2703 = vsel %vm2546, %v2701, %v2702
      %v2704 = vrot.slane %v2643, 3
      %v2705 = vsel %vm2546, %v2702, %v2704
      %v2706 = vrot.slane %v2644, 3
      %v2707 = vrot.slane %v2645, 3
      %v2708 = vsel %vm2546, %v2706, %v2707
      %v2709 = vrot.slane %v2646, 3
      %v2710 = vsel %vm2546, %v2707, %v2709
      %v2727 = vadd.f32 %v2603, %v2673
      %v2728 = vadd.f32 %v2604, %v2675
      %v2729 = vadd.f32 %v2605, %v2678
      %v2730 = vadd.f32 %v2606, %v2680
      %v2731 = vadd.f32 %v2607, %v2683
      %v2732 = vadd.f32 %v2608, %v2685
      %v2733 = vadd.f32 %v2609, %v2688
      %v2734 = vadd.f32 %v2610, %v2690
      %v2735 = vadd.f32 %v2611, %v2693
      %v2736 = vadd.f32 %v2612, %v2695
      %v2737 = vadd.f32 %v2613, %v2698
      %v2738 = vadd.f32 %v2614, %v2700
      %v2739 = vadd.f32 %v2615, %v2703
      %v2740 = vadd.f32 %v2616, %v2705
      %v2741 = vadd.f32 %v2617, %v2708
      %v2742 = vadd.f32 %v2618, %v2710
      %v2743 = vlaneseq
      %v2744 = vshrl.u32 %v2743, 7
      %v2745 = vsub.s32 3, %v2744
      %v2746 = vrot.slane %v455, %v2745
      %v2747 = vmul.f32 %v468, %v2746
      %v2748 = vmul.f32 %v469, %v2746
      %v2749 = vmul.f32 %v470, %v2746
      %v2750 = vmul.f32 %v471, %v2746
      %v2751 = vmul.f32 %v472, %v2746
      %v2752 = vmul.f32 %v473, %v2746
      %v2753 = vmul.f32 %v474, %v2746
      %v2754 = vmul.f32 %v475, %v2746
      %v2755 = vmul.f32 %v476, %v2746
      %v2756 = vmul.f32 %v477, %v2746
      %v2757 = vmul.f32 %v478, %v2746
      %v2758 = vmul.f32 %v479, %v2746
      %v2759 = vmul.f32 %v480, %v2746
      %v2760 = vmul.f32 %v481, %v2746
      %v2761 = vmul.f32 %v482, %v2746
      %v2762 = vmul.f32 %v483, %v2746
      %v2763 = vmul.f32 %v484, %v2746
      %v2764 = vmul.f32 %v485, %v2746
      %v2765 = vmul.f32 %v486, %v2746
      %v2766 = vmul.f32 %v487, %v2746
      %v2767 = vmul.f32 %v488, %v2746
      %v2768 = vmul.f32 %v489, %v2746
      %v2769 = vmul.f32 %v490, %v2746
      %v2770 = vmul.f32 %v491, %v2746
      %v2795 = vrot.slane %v2747, 3
      %v2796 = vrot.slane %v2748, 3
      %v2797 = vsel %vm2546, %v2795, %v2796
      %v2798 = vrot.slane %v2749, 3
      %v2799 = vsel %vm2546, %v2796, %v2798
      %v2800 = vrot.slane %v2750, 3
      %v2801 = vrot.slane %v2751, 3
      %v2802 = vsel %vm2546, %v2800, %v2801
      %v2803 = vrot.slane %v2752, 3
      %v2804 = vsel %vm2546, %v2801, %v2803
      %v2805 = vrot.slane %v2753, 3
      %v2806 = vrot.slane %v2754, 3
      %v2807 = vsel %vm2546, %v2805, %v2806
      %v2808 = vrot.slane %v2755, 3
      %v2809 = vsel %vm2546, %v2806, %v2808
      %v2810 = vrot.slane %v2756, 3
      %v2811 = vrot.slane %v2757, 3
      %v2812 = vsel %vm2546, %v2810, %v2811
      %v2813 = vrot.slane %v2758, 3
      %v2814 = vsel %vm2546, %v2811, %v2813
      %v2815 = vrot.slane %v2759, 3
      %v2816 = vrot.slane %v2760, 3
      %v2817 = vsel %vm2546, %v2815, %v2816
      %v2818 = vrot.slane %v2761, 3
      %v2819 = vsel %vm2546, %v2816, %v2818
      %v2820 = vrot.slane %v2762, 3
      %v2821 = vrot.slane %v2763, 3
      %v2822 = vsel %vm2546, %v2820, %v2821
      %v2823 = vrot.slane %v2764, 3
      %v2824 = vsel %vm2546, %v2821, %v2823
      %v2825 = vrot.slane %v2765, 3
      %v2826 = vrot.slane %v2766, 3
      %v2827 = vsel %vm2546, %v2825, %v2826
      %v2828 = vrot.slane %v2767, 3
      %v2829 = vsel %vm2546, %v2826, %v2828
      %v2830 = vrot.slane %v2768, 3
      %v2831 = vrot.slane %v2769, 3
      %v2832 = vsel %vm2546, %v2830, %v2831
      %v2833 = vrot.slane %v2770, 3
      %v2834 = vsel %vm2546, %v2831, %v2833
      %v2851 = vadd.f32 %v2727, %v2797
      %v2852 = vadd.f32 %v2728, %v2799
      %v2853 = vadd.f32 %v2729, %v2802
      %v2854 = vadd.f32 %v2730, %v2804
      %v2855 = vadd.f32 %v2731, %v2807
      %v2856 = vadd.f32 %v2732, %v2809
      %v2857 = vadd.f32 %v2733, %v2812
      %v2858 = vadd.f32 %v2734, %v2814
      %v2859 = vadd.f32 %v2735, %v2817
      %v2860 = vadd.f32 %v2736, %v2819
      %v2861 = vadd.f32 %v2737, %v2822
      %v2862 = vadd.f32 %v2738, %v2824
      %v2863 = vadd.f32 %v2739, %v2827
      %v2864 = vadd.f32 %v2740, %v2829
      %v2865 = vadd.f32 %v2741, %v2832
      %v2866 = vadd.f32 %v2742, %v2834
      %v2867 = vlaneseq
      %v2868 = vshrl.u32 %v2867, 7
      %v2869 = vsub.s32 3, %v2868
      %v2870 = vrot.slane %v456, %v2869
      %v2871 = vmul.f32 %v471, %v2870
      %v2872 = vmul.f32 %v472, %v2870
      %v2873 = vmul.f32 %v473, %v2870
      %v2874 = vmul.f32 %v474, %v2870
      %v2875 = vmul.f32 %v475, %v2870
      %v2876 = vmul.f32 %v476, %v2870
      %v2877 = vmul.f32 %v477, %v2870
      %v2878 = vmul.f32 %v478, %v2870
      %v2879 = vmul.f32 %v479, %v2870
      %v2880 = vmul.f32 %v480, %v2870
      %v2881 = vmul.f32 %v481, %v2870
      %v2882 = vmul.f32 %v482, %v2870
      %v2883 = vmul.f32 %v483, %v2870
      %v2884 = vmul.f32 %v484, %v2870
      %v2885 = vmul.f32 %v485, %v2870
      %v2886 = vmul.f32 %v486, %v2870
      %v2887 = vmul.f32 %v487, %v2870
      %v2888 = vmul.f32 %v488, %v2870
      %v2889 = vmul.f32 %v489, %v2870
      %v2890 = vmul.f32 %v490, %v2870
      %v2891 = vmul.f32 %v491, %v2870
      %v2892 = vmul.f32 %v492, %v2870
      %v2893 = vmul.f32 %v493, %v2870
      %v2894 = vmul.f32 %v494, %v2870
      %v2919 = vrot.slane %v2871, 3
      %v2920 = vrot.slane %v2872, 3
      %v2921 = vsel %vm2546, %v2919, %v2920
      %v2922 = vrot.slane %v2873, 3
      %v2923 = vsel %vm2546, %v2920, %v2922
      %v2924 = vrot.slane %v2874, 3
      %v2925 = vrot.slane %v2875, 3
      %v2926 = vsel %vm2546, %v2924, %v2925
      %v2927 = vrot.slane %v2876, 3
      %v2928 = vsel %vm2546, %v2925, %v2927
      %v2929 = vrot.slane %v2877, 3
      %v2930 = vrot.slane %v2878, 3
      %v2931 = vsel %vm2546, %v2929, %v2930
      %v2932 = vrot.slane %v2879, 3
      %v2933 = vsel %vm2546, %v2930, %v2932
      %v2934 = vrot.slane %v2880, 3
      %v2935 = vrot.slane %v2881, 3
      %v2936 = vsel %vm2546, %v2934, %v2935
      %v2937 = vrot.slane %v2882, 3
      %v2938 = vsel %vm2546, %v2935, %v2937
      %v2939 = vrot.slane %v2883, 3
      %v2940 = vrot.slane %v2884, 3
      %v2941 = vsel %vm2546, %v2939, %v2940
      %v2942 = vrot.slane %v2885, 3
      %v2943 = vsel %vm2546, %v2940, %v2942
      %v2944 = vrot.slane %v2886, 3
      %v2945 = vrot.slane %v2887, 3
      %v2946 = vsel %vm2546, %v2944, %v2945
      %v2947 = vrot.slane %v2888, 3
      %v2948 = vsel %vm2546, %v2945, %v2947
      %v2949 = vrot.slane %v2889, 3
      %v2950 = vrot.slane %v2890, 3
      %v2951 = vsel %vm2546, %v2949, %v2950
      %v2952 = vrot.slane %v2891, 3
      %v2953 = vsel %vm2546, %v2950, %v2952
      %v2954 = vrot.slane %v2892, 3
      %v2955 = vrot.slane %v2893, 3
      %v2956 = vsel %vm2546, %v2954, %v2955
      %v2957 = vrot.slane %v2894, 3
      %v2958 = vsel %vm2546, %v2955, %v2957
      %v2975 = vadd.f32 %v2851, %v2921
      %v2976 = vadd.f32 %v2852, %v2923
      %v2977 = vadd.f32 %v2853, %v2926
      %v2978 = vadd.f32 %v2854, %v2928
      %v2979 = vadd.f32 %v2855, %v2931
      %v2980 = vadd.f32 %v2856, %v2933
      %v2981 = vadd.f32 %v2857, %v2936
      %v2982 = vadd.f32 %v2858, %v2938
      %v2983 = vadd.f32 %v2859, %v2941
      %v2984 = vadd.f32 %v2860, %v2943
      %v2985 = vadd.f32 %v2861, %v2946
      %v2986 = vadd.f32 %v2862, %v2948
      %v2987 = vadd.f32 %v2863, %v2951
      %v2988 = vadd.f32 %v2864, %v2953
      %v2989 = vadd.f32 %v2865, %v2956
      %v2990 = vadd.f32 %v2866, %v2958
      %v2991 = vlaneseq
      %v2992 = vshrl.u32 %v2991, 7
      %v2993 = vsub.s32 3, %v2992
      %v2994 = vrot.slane %v457, %v2993
      %v2995 = vmul.f32 %v474, %v2994
      %v2996 = vmul.f32 %v475, %v2994
      %v2997 = vmul.f32 %v476, %v2994
      %v2998 = vmul.f32 %v477, %v2994
      %v2999 = vmul.f32 %v478, %v2994
      %v3000 = vmul.f32 %v479, %v2994
      %v3001 = vmul.f32 %v480, %v2994
      %v3002 = vmul.f32 %v481, %v2994
      %v3003 = vmul.f32 %v482, %v2994
      %v3004 = vmul.f32 %v483, %v2994
      %v3005 = vmul.f32 %v484, %v2994
      %v3006 = vmul.f32 %v485, %v2994
      %v3007 = vmul.f32 %v486, %v2994
      %v3008 = vmul.f32 %v487, %v2994
      %v3009 = vmul.f32 %v488, %v2994
      %v3010 = vmul.f32 %v489, %v2994
      %v3011 = vmul.f32 %v490, %v2994
      %v3012 = vmul.f32 %v491, %v2994
      %v3013 = vmul.f32 %v492, %v2994
      %v3014 = vmul.f32 %v493, %v2994
      %v3015 = vmul.f32 %v494, %v2994
      %v3016 = vmul.f32 %v495, %v2994
      %v3017 = vmul.f32 %v496, %v2994
      %v3018 = vmul.f32 %v497, %v2994
      %v3043 = vrot.slane %v2995, 3
      %v3044 = vrot.slane %v2996, 3
      %v3045 = vsel %vm2546, %v3043, %v3044
      %v3046 = vrot.slane %v2997, 3
      %v3047 = vsel %vm2546, %v3044, %v3046
      %v3048 = vrot.slane %v2998, 3
      %v3049 = vrot.slane %v2999, 3
      %v3050 = vsel %vm2546, %v3048, %v3049
      %v3051 = vrot.slane %v3000, 3
      %v3052 = vsel %vm2546, %v3049, %v3051
      %v3053 = vrot.slane %v3001, 3
      %v3054 = vrot.slane %v3002, 3
      %v3055 = vsel %vm2546, %v3053, %v3054
      %v3056 = vrot.slane %v3003, 3
      %v3057 = vsel %vm2546, %v3054, %v3056
      %v3058 = vrot.slane %v3004, 3
      %v3059 = vrot.slane %v3005, 3
      %v3060 = vsel %vm2546, %v3058, %v3059
      %v3061 = vrot.slane %v3006, 3
      %v3062 = vsel %vm2546, %v3059, %v3061
      %v3063 = vrot.slane %v3007, 3
      %v3064 = vrot.slane %v3008, 3
      %v3065 = vsel %vm2546, %v3063, %v3064
      %v3066 = vrot.slane %v3009, 3
      %v3067 = vsel %vm2546, %v3064, %v3066
      %v3068 = vrot.slane %v3010, 3
      %v3069 = vrot.slane %v3011, 3
      %v3070 = vsel %vm2546, %v3068, %v3069
      %v3071 = vrot.slane %v3012, 3
      %v3072 = vsel %vm2546, %v3069, %v3071
      %v3073 = vrot.slane %v3013, 3
      %v3074 = vrot.slane %v3014, 3
      %v3075 = vsel %vm2546, %v3073, %v3074
      %v3076 = vrot.slane %v3015, 3
      %v3077 = vsel %vm2546, %v3074, %v3076
      %v3078 = vrot.slane %v3016, 3
      %v3079 = vrot.slane %v3017, 3
      %v3080 = vsel %vm2546, %v3078, %v3079
      %v3081 = vrot.slane %v3018, 3
      %v3082 = vsel %vm2546, %v3079, %v3081
      %v3099 = vadd.f32 %v2975, %v3045
      %v3100 = vadd.f32 %v2976, %v3047
      %v3101 = vadd.f32 %v2977, %v3050
      %v3102 = vadd.f32 %v2978, %v3052
      %v3103 = vadd.f32 %v2979, %v3055
      %v3104 = vadd.f32 %v2980, %v3057
      %v3105 = vadd.f32 %v2981, %v3060
      %v3106 = vadd.f32 %v2982, %v3062
      %v3107 = vadd.f32 %v2983, %v3065
      %v3108 = vadd.f32 %v2984, %v3067
      %v3109 = vadd.f32 %v2985, %v3070
      %v3110 = vadd.f32 %v2986, %v3072
      %v3111 = vadd.f32 %v2987, %v3075
      %v3112 = vadd.f32 %v2988, %v3077
      %v3113 = vadd.f32 %v2989, %v3080
      %v3114 = vadd.f32 %v2990, %v3082
      %v3115 = vlaneseq
      %v3116 = vshrl.u32 %v3115, 7
      %v3117 = vsub.s32 3, %v3116
      %v3118 = vrot.slane %v458, %v3117
      %v3119 = vmul.f32 %v477, %v3118
      %v3120 = vmul.f32 %v478, %v3118
      %v3121 = vmul.f32 %v479, %v3118
      %v3122 = vmul.f32 %v480, %v3118
      %v3123 = vmul.f32 %v481, %v3118
      %v3124 = vmul.f32 %v482, %v3118
      %v3125 = vmul.f32 %v483, %v3118
      %v3126 = vmul.f32 %v484, %v3118
      %v3127 = vmul.f32 %v485, %v3118
      %v3128 = vmul.f32 %v486, %v3118
      %v3129 = vmul.f32 %v487, %v3118
      %v3130 = vmul.f32 %v488, %v3118
      %v3131 = vmul.f32 %v489, %v3118
      %v3132 = vmul.f32 %v490, %v3118
      %v3133 = vmul.f32 %v491, %v3118
      %v3134 = vmul.f32 %v492, %v3118
      %v3135 = vmul.f32 %v493, %v3118
      %v3136 = vmul.f32 %v494, %v3118
      %v3137 = vmul.f32 %v495, %v3118
      %v3138 = vmul.f32 %v496, %v3118
      %v3139 = vmul.f32 %v497, %v3118
      %v3140 = vmul.f32 %v498, %v3118
      %v3141 = vmul.f32 %v499, %v3118
      %v3142 = vmul.f32 %v500, %v3118
      %v3167 = vrot.slane %v3119, 3
      %v3168 = vrot.slane %v3120, 3
      %v3169 = vsel %vm2546, %v3167, %v3168
      %v3170 = vrot.slane %v3121, 3
      %v3171 = vsel %vm2546, %v3168, %v3170
      %v3172 = vrot.slane %v3122, 3
      %v3173 = vrot.slane %v3123, 3
      %v3174 = vsel %vm2546, %v3172, %v3173
      %v3175 = vrot.slane %v3124, 3
      %v3176 = vsel %vm2546, %v3173, %v3175
      %v3177 = vrot.slane %v3125, 3
      %v3178 = vrot.slane %v3126, 3
      %v3179 = vsel %vm2546, %v3177, %v3178
      %v3180 = vrot.slane %v3127, 3
      %v3181 = vsel %vm2546, %v3178, %v3180
      %v3182 = vrot.slane %v3128, 3
      %v3183 = vrot.slane %v3129, 3
      %v3184 = vsel %vm2546, %v3182, %v3183
      %v3185 = vrot.slane %v3130, 3
      %v3186 = vsel %vm2546, %v3183, %v3185
      %v3187 = vrot.slane %v3131, 3
      %v3188 = vrot.slane %v3132, 3
      %v3189 = vsel %vm2546, %v3187, %v3188
      %v3190 = vrot.slane %v3133, 3
      %v3191 = vsel %vm2546, %v3188, %v3190
      %v3192 = vrot.slane %v3134, 3
      %v3193 = vrot.slane %v3135, 3
      %v3194 = vsel %vm2546, %v3192, %v3193
      %v3195 = vrot.slane %v3136, 3
      %v3196 = vsel %vm2546, %v3193, %v3195
      %v3197 = vrot.slane %v3137, 3
      %v3198 = vrot.slane %v3138, 3
      %v3199 = vsel %vm2546, %v3197, %v3198
      %v3200 = vrot.slane %v3139, 3
      %v3201 = vsel %vm2546, %v3198, %v3200
      %v3202 = vrot.slane %v3140, 3
      %v3203 = vrot.slane %v3141, 3
      %v3204 = vsel %vm2546, %v3202, %v3203
      %v3205 = vrot.slane %v3142, 3
      %v3206 = vsel %vm2546, %v3203, %v3205
      %v3223 = vadd.f32 %v3099, %v3169
      %v3224 = vadd.f32 %v3100, %v3171
      %v3225 = vadd.f32 %v3101, %v3174
      %v3226 = vadd.f32 %v3102, %v3176
      %v3227 = vadd.f32 %v3103, %v3179
      %v3228 = vadd.f32 %v3104, %v3181
      %v3229 = vadd.f32 %v3105, %v3184
      %v3230 = vadd.f32 %v3106, %v3186
      %v3231 = vadd.f32 %v3107, %v3189
      %v3232 = vadd.f32 %v3108, %v3191
      %v3233 = vadd.f32 %v3109, %v3194
      %v3234 = vadd.f32 %v3110, %v3196
      %v3235 = vadd.f32 %v3111, %v3199
      %v3236 = vadd.f32 %v3112, %v3201
      %v3237 = vadd.f32 %v3113, %v3204
      %v3238 = vadd.f32 %v3114, %v3206
      %v3239 = vlaneseq
      %v3240 = vshrl.u32 %v3239, 7
      %v3241 = vsub.s32 3, %v3240
      %v3242 = vrot.slane %v459, %v3241
      %v3243 = vmul.f32 %v480, %v3242
      %v3244 = vmul.f32 %v481, %v3242
      %v3245 = vmul.f32 %v482, %v3242
      %v3246 = vmul.f32 %v483, %v3242
      %v3247 = vmul.f32 %v484, %v3242
      %v3248 = vmul.f32 %v485, %v3242
      %v3249 = vmul.f32 %v486, %v3242
      %v3250 = vmul.f32 %v487, %v3242
      %v3251 = vmul.f32 %v488, %v3242
      %v3252 = vmul.f32 %v489, %v3242
      %v3253 = vmul.f32 %v490, %v3242
      %v3254 = vmul.f32 %v491, %v3242
      %v3255 = vmul.f32 %v492, %v3242
      %v3256 = vmul.f32 %v493, %v3242
      %v3257 = vmul.f32 %v494, %v3242
      %v3258 = vmul.f32 %v495, %v3242
      %v3259 = vmul.f32 %v496, %v3242
      %v3260 = vmul.f32 %v497, %v3242
      %v3261 = vmul.f32 %v498, %v3242
      %v3262 = vmul.f32 %v499, %v3242
      %v3263 = vmul.f32 %v500, %v3242
      %v3264 = vmul.f32 %v501, %v3242
      %v3265 = vmul.f32 %v502, %v3242
      %v3266 = vmul.f32 %v503, %v3242
      %v3291 = vrot.slane %v3243, 3
      %v3292 = vrot.slane %v3244, 3
      %v3293 = vsel %vm2546, %v3291, %v3292
      %v3294 = vrot.slane %v3245, 3
      %v3295 = vsel %vm2546, %v3292, %v3294
      %v3296 = vrot.slane %v3246, 3
      %v3297 = vrot.slane %v3247, 3
      %v3298 = vsel %vm2546, %v3296, %v3297
      %v3299 = vrot.slane %v3248, 3
      %v3300 = vsel %vm2546, %v3297, %v3299
      %v3301 = vrot.slane %v3249, 3
      %v3302 = vrot.slane %v3250, 3
      %v3303 = vsel %vm2546, %v3301, %v3302
      %v3304 = vrot.slane %v3251, 3
      %v3305 = vsel %vm2546, %v3302, %v3304
      %v3306 = vrot.slane %v3252, 3
      %v3307 = vrot.slane %v3253, 3
      %v3308 = vsel %vm2546, %v3306, %v3307
      %v3309 = vrot.slane %v3254, 3
      %v3310 = vsel %vm2546, %v3307, %v3309
      %v3311 = vrot.slane %v3255, 3
      %v3312 = vrot.slane %v3256, 3
      %v3313 = vsel %vm2546, %v3311, %v3312
      %v3314 = vrot.slane %v3257, 3
      %v3315 = vsel %vm2546, %v3312, %v3314
      %v3316 = vrot.slane %v3258, 3
      %v3317 = vrot.slane %v3259, 3
      %v3318 = vsel %vm2546, %v3316, %v3317
      %v3319 = vrot.slane %v3260, 3
      %v3320 = vsel %vm2546, %v3317, %v3319
      %v3321 = vrot.slane %v3261, 3
      %v3322 = vrot.slane %v3262, 3
      %v3323 = vsel %vm2546, %v3321, %v3322
      %v3324 = vrot.slane %v3263, 3
      %v3325 = vsel %vm2546, %v3322, %v3324
      %v3326 = vrot.slane %v3264, 3
      %v3327 = vrot.slane %v3265, 3
      %v3328 = vsel %vm2546, %v3326, %v3327
      %v3329 = vrot.slane %v3266, 3
      %v3330 = vsel %vm2546, %v3327, %v3329
      %v3347 = vadd.f32 %v3223, %v3293
      %v3348 = vadd.f32 %v3224, %v3295
      %v3349 = vadd.f32 %v3225, %v3298
      %v3350 = vadd.f32 %v3226, %v3300
      %v3351 = vadd.f32 %v3227, %v3303
      %v3352 = vadd.f32 %v3228, %v3305
      %v3353 = vadd.f32 %v3229, %v3308
      %v3354 = vadd.f32 %v3230, %v3310
      %v3355 = vadd.f32 %v3231, %v3313
      %v3356 = vadd.f32 %v3232, %v3315
      %v3357 = vadd.f32 %v3233, %v3318
      %v3358 = vadd.f32 %v3234, %v3320
      %v3359 = vadd.f32 %v3235, %v3323
      %v3360 = vadd.f32 %v3236, %v3325
      %v3361 = vadd.f32 %v3237, %v3328
      %v3362 = vadd.f32 %v3238, %v3330
      %v3363 = vlaneseq
      %v3364 = vshrl.u32 %v3363, 7
      %v3365 = vsub.s32 4, %v3364
      %v3366 = vrot.slane %v453, %v3365
      %v3367 = vmul.f32 %v462, %v3366
      %v3368 = vmul.f32 %v463, %v3366
      %v3369 = vmul.f32 %v464, %v3366
      %v3370 = vmul.f32 %v465, %v3366
      %v3371 = vmul.f32 %v466, %v3366
      %v3372 = vmul.f32 %v467, %v3366
      %v3373 = vmul.f32 %v468, %v3366
      %v3374 = vmul.f32 %v469, %v3366
      %v3375 = vmul.f32 %v470, %v3366
      %v3376 = vmul.f32 %v471, %v3366
      %v3377 = vmul.f32 %v472, %v3366
      %v3378 = vmul.f32 %v473, %v3366
      %v3379 = vmul.f32 %v474, %v3366
      %v3380 = vmul.f32 %v475, %v3366
      %v3381 = vmul.f32 %v476, %v3366
      %v3382 = vmul.f32 %v477, %v3366
      %v3383 = vmul.f32 %v478, %v3366
      %v3384 = vmul.f32 %v479, %v3366
      %v3385 = vmul.f32 %v480, %v3366
      %v3386 = vmul.f32 %v481, %v3366
      %v3387 = vmul.f32 %v482, %v3366
      %v3388 = vmul.f32 %v483, %v3366
      %v3389 = vmul.f32 %v484, %v3366
      %v3390 = vmul.f32 %v485, %v3366
      %vm3415 = vcmask 1043456
      %v3416 = vrot.slane %v3367, 4
      %v3417 = vrot.slane %v3368, 4
      %v3418 = vsel %vm3415, %v3416, %v3417
      %v3419 = vrot.slane %v3369, 4
      %v3420 = vsel %vm3415, %v3417, %v3419
      %v3421 = vrot.slane %v3370, 4
      %v3422 = vrot.slane %v3371, 4
      %v3423 = vsel %vm3415, %v3421, %v3422
      %v3424 = vrot.slane %v3372, 4
      %v3425 = vsel %vm3415, %v3422, %v3424
      %v3426 = vrot.slane %v3373, 4
      %v3427 = vrot.slane %v3374, 4
      %v3428 = vsel %vm3415, %v3426, %v3427
      %v3429 = vrot.slane %v3375, 4
      %v3430 = vsel %vm3415, %v3427, %v3429
      %v3431 = vrot.slane %v3376, 4
      %v3432 = vrot.slane %v3377, 4
      %v3433 = vsel %vm3415, %v3431, %v3432
      %v3434 = vrot.slane %v3378, 4
      %v3435 = vsel %vm3415, %v3432, %v3434
      %v3436 = vrot.slane %v3379, 4
      %v3437 = vrot.slane %v3380, 4
      %v3438 = vsel %vm3415, %v3436, %v3437
      %v3439 = vrot.slane %v3381, 4
      %v3440 = vsel %vm3415, %v3437, %v3439
      %v3441 = vrot.slane %v3382, 4
      %v3442 = vrot.slane %v3383, 4
      %v3443 = vsel %vm3415, %v3441, %v3442
      %v3444 = vrot.slane %v3384, 4
      %v3445 = vsel %vm3415, %v3442, %v3444
      %v3446 = vrot.slane %v3385, 4
      %v3447 = vrot.slane %v3386, 4
      %v3448 = vsel %vm3415, %v3446, %v3447
      %v3449 = vrot.slane %v3387, 4
      %v3450 = vsel %vm3415, %v3447, %v3449
      %v3451 = vrot.slane %v3388, 4
      %v3452 = vrot.slane %v3389, 4
      %v3453 = vsel %vm3415, %v3451, %v3452
      %v3454 = vrot.slane %v3390, 4
      %v3455 = vsel %vm3415, %v3452, %v3454
      %v3472 = vadd.f32 %v3347, %v3418
      %v3473 = vadd.f32 %v3348, %v3420
      %v3474 = vadd.f32 %v3349, %v3423
      %v3475 = vadd.f32 %v3350, %v3425
      %v3476 = vadd.f32 %v3351, %v3428
      %v3477 = vadd.f32 %v3352, %v3430
      %v3478 = vadd.f32 %v3353, %v3433
      %v3479 = vadd.f32 %v3354, %v3435
      %v3480 = vadd.f32 %v3355, %v3438
      %v3481 = vadd.f32 %v3356, %v3440
      %v3482 = vadd.f32 %v3357, %v3443
      %v3483 = vadd.f32 %v3358, %v3445
      %v3484 = vadd.f32 %v3359, %v3448
      %v3485 = vadd.f32 %v3360, %v3450
      %v3486 = vadd.f32 %v3361, %v3453
      %v3487 = vadd.f32 %v3362, %v3455
      %v3488 = vlaneseq
      %v3489 = vshrl.u32 %v3488, 7
      %v3490 = vsub.s32 4, %v3489
      %v3491 = vrot.slane %v454, %v3490
      %v3492 = vmul.f32 %v465, %v3491
      %v3493 = vmul.f32 %v466, %v3491
      %v3494 = vmul.f32 %v467, %v3491
      %v3495 = vmul.f32 %v468, %v3491
      %v3496 = vmul.f32 %v469, %v3491
      %v3497 = vmul.f32 %v470, %v3491
      %v3498 = vmul.f32 %v471, %v3491
      %v3499 = vmul.f32 %v472, %v3491
      %v3500 = vmul.f32 %v473, %v3491
      %v3501 = vmul.f32 %v474, %v3491
      %v3502 = vmul.f32 %v475, %v3491
      %v3503 = vmul.f32 %v476, %v3491
      %v3504 = vmul.f32 %v477, %v3491
      %v3505 = vmul.f32 %v478, %v3491
      %v3506 = vmul.f32 %v479, %v3491
      %v3507 = vmul.f32 %v480, %v3491
      %v3508 = vmul.f32 %v481, %v3491
      %v3509 = vmul.f32 %v482, %v3491
      %v3510 = vmul.f32 %v483, %v3491
      %v3511 = vmul.f32 %v484, %v3491
      %v3512 = vmul.f32 %v485, %v3491
      %v3513 = vmul.f32 %v486, %v3491
      %v3514 = vmul.f32 %v487, %v3491
      %v3515 = vmul.f32 %v488, %v3491
      %v3540 = vrot.slane %v3492, 4
      %v3541 = vrot.slane %v3493, 4
      %v3542 = vsel %vm3415, %v3540, %v3541
      %v3543 = vrot.slane %v3494, 4
      %v3544 = vsel %vm3415, %v3541, %v3543
      %v3545 = vrot.slane %v3495, 4
      %v3546 = vrot.slane %v3496, 4
      %v3547 = vsel %vm3415, %v3545, %v3546
      %v3548 = vrot.slane %v3497, 4
      %v3549 = vsel %vm3415, %v3546, %v3548
      %v3550 = vrot.slane %v3498, 4
      %v3551 = vrot.slane %v3499, 4
      %v3552 = vsel %vm3415, %v3550, %v3551
      %v3553 = vrot.slane %v3500, 4
      %v3554 = vsel %vm3415, %v3551, %v3553
      %v3555 = vrot.slane %v3501, 4
      %v3556 = vrot.slane %v3502, 4
      %v3557 = vsel %vm3415, %v3555, %v3556
      %v3558 = vrot.slane %v3503, 4
      %v3559 = vsel %vm3415, %v3556, %v3558
      %v3560 = vrot.slane %v3504, 4
      %v3561 = vrot.slane %v3505, 4
      %v3562 = vsel %vm3415, %v3560, %v3561
      %v3563 = vrot.slane %v3506, 4
      %v3564 = vsel %vm3415, %v3561, %v3563
      %v3565 = vrot.slane %v3507, 4
      %v3566 = vrot.slane %v3508, 4
      %v3567 = vsel %vm3415, %v3565, %v3566
      %v3568 = vrot.slane %v3509, 4
      %v3569 = vsel %vm3415, %v3566, %v3568
      %v3570 = vrot.slane %v3510, 4
      %v3571 = vrot.slane %v3511, 4
      %v3572 = vsel %vm3415, %v3570, %v3571
      %v3573 = vrot.slane %v3512, 4
      %v3574 = vsel %vm3415, %v3571, %v3573
      %v3575 = vrot.slane %v3513, 4
      %v3576 = vrot.slane %v3514, 4
      %v3577 = vsel %vm3415, %v3575, %v3576
      %v3578 = vrot.slane %v3515, 4
      %v3579 = vsel %vm3415, %v3576, %v3578
      %v3596 = vadd.f32 %v3472, %v3542
      %v3597 = vadd.f32 %v3473, %v3544
      %v3598 = vadd.f32 %v3474, %v3547
      %v3599 = vadd.f32 %v3475, %v3549
      %v3600 = vadd.f32 %v3476, %v3552
      %v3601 = vadd.f32 %v3477, %v3554
      %v3602 = vadd.f32 %v3478, %v3557
      %v3603 = vadd.f32 %v3479, %v3559
      %v3604 = vadd.f32 %v3480, %v3562
      %v3605 = vadd.f32 %v3481, %v3564
      %v3606 = vadd.f32 %v3482, %v3567
      %v3607 = vadd.f32 %v3483, %v3569
      %v3608 = vadd.f32 %v3484, %v3572
      %v3609 = vadd.f32 %v3485, %v3574
      %v3610 = vadd.f32 %v3486, %v3577
      %v3611 = vadd.f32 %v3487, %v3579
      %v3612 = vlaneseq
      %v3613 = vshrl.u32 %v3612, 7
      %v3614 = vsub.s32 4, %v3613
      %v3615 = vrot.slane %v455, %v3614
      %v3616 = vmul.f32 %v468, %v3615
      %v3617 = vmul.f32 %v469, %v3615
      %v3618 = vmul.f32 %v470, %v3615
      %v3619 = vmul.f32 %v471, %v3615
      %v3620 = vmul.f32 %v472, %v3615
      %v3621 = vmul.f32 %v473, %v3615
      %v3622 = vmul.f32 %v474, %v3615
      %v3623 = vmul.f32 %v475, %v3615
      %v3624 = vmul.f32 %v476, %v3615
      %v3625 = vmul.f32 %v477, %v3615
      %v3626 = vmul.f32 %v478, %v3615
      %v3627 = vmul.f32 %v479, %v3615
      %v3628 = vmul.f32 %v480, %v3615
      %v3629 = vmul.f32 %v481, %v3615
      %v3630 = vmul.f32 %v482, %v3615
      %v3631 = vmul.f32 %v483, %v3615
      %v3632 = vmul.f32 %v484, %v3615
      %v3633 = vmul.f32 %v485, %v3615
      %v3634 = vmul.f32 %v486, %v3615
      %v3635 = vmul.f32 %v487, %v3615
      %v3636 = vmul.f32 %v488, %v3615
      %v3637 = vmul.f32 %v489, %v3615
      %v3638 = vmul.f32 %v490, %v3615
      %v3639 = vmul.f32 %v491, %v3615
      %v3664 = vrot.slane %v3616, 4
      %v3665 = vrot.slane %v3617, 4
      %v3666 = vsel %vm3415, %v3664, %v3665
      %v3667 = vrot.slane %v3618, 4
      %v3668 = vsel %vm3415, %v3665, %v3667
      %v3669 = vrot.slane %v3619, 4
      %v3670 = vrot.slane %v3620, 4
      %v3671 = vsel %vm3415, %v3669, %v3670
      %v3672 = vrot.slane %v3621, 4
      %v3673 = vsel %vm3415, %v3670, %v3672
      %v3674 = vrot.slane %v3622, 4
      %v3675 = vrot.slane %v3623, 4
      %v3676 = vsel %vm3415, %v3674, %v3675
      %v3677 = vrot.slane %v3624, 4
      %v3678 = vsel %vm3415, %v3675, %v3677
      %v3679 = vrot.slane %v3625, 4
      %v3680 = vrot.slane %v3626, 4
      %v3681 = vsel %vm3415, %v3679, %v3680
      %v3682 = vrot.slane %v3627, 4
      %v3683 = vsel %vm3415, %v3680, %v3682
      %v3684 = vrot.slane %v3628, 4
      %v3685 = vrot.slane %v3629, 4
      %v3686 = vsel %vm3415, %v3684, %v3685
      %v3687 = vrot.slane %v3630, 4
      %v3688 = vsel %vm3415, %v3685, %v3687
      %v3689 = vrot.slane %v3631, 4
      %v3690 = vrot.slane %v3632, 4
      %v3691 = vsel %vm3415, %v3689, %v3690
      %v3692 = vrot.slane %v3633, 4
      %v3693 = vsel %vm3415, %v3690, %v3692
      %v3694 = vrot.slane %v3634, 4
      %v3695 = vrot.slane %v3635, 4
      %v3696 = vsel %vm3415, %v3694, %v3695
      %v3697 = vrot.slane %v3636, 4
      %v3698 = vsel %vm3415, %v3695, %v3697
      %v3699 = vrot.slane %v3637, 4
      %v3700 = vrot.slane %v3638, 4
      %v3701 = vsel %vm3415, %v3699, %v3700
      %v3702 = vrot.slane %v3639, 4
      %v3703 = vsel %vm3415, %v3700, %v3702
      %v3720 = vadd.f32 %v3596, %v3666
      %v3721 = vadd.f32 %v3597, %v3668
      %v3722 = vadd.f32 %v3598, %v3671
      %v3723 = vadd.f32 %v3599, %v3673
      %v3724 = vadd.f32 %v3600, %v3676
      %v3725 = vadd.f32 %v3601, %v3678
      %v3726 = vadd.f32 %v3602, %v3681
      %v3727 = vadd.f32 %v3603, %v3683
      %v3728 = vadd.f32 %v3604, %v3686
      %v3729 = vadd.f32 %v3605, %v3688
      %v3730 = vadd.f32 %v3606, %v3691
      %v3731 = vadd.f32 %v3607, %v3693
      %v3732 = vadd.f32 %v3608, %v3696
      %v3733 = vadd.f32 %v3609, %v3698
      %v3734 = vadd.f32 %v3610, %v3701
      %v3735 = vadd.f32 %v3611, %v3703
      %v3736 = vlaneseq
      %v3737 = vshrl.u32 %v3736, 7
      %v3738 = vsub.s32 4, %v3737
      %v3739 = vrot.slane %v456, %v3738
      %v3740 = vmul.f32 %v471, %v3739
      %v3741 = vmul.f32 %v472, %v3739
      %v3742 = vmul.f32 %v473, %v3739
      %v3743 = vmul.f32 %v474, %v3739
      %v3744 = vmul.f32 %v475, %v3739
      %v3745 = vmul.f32 %v476, %v3739
      %v3746 = vmul.f32 %v477, %v3739
      %v3747 = vmul.f32 %v478, %v3739
      %v3748 = vmul.f32 %v479, %v3739
      %v3749 = vmul.f32 %v480, %v3739
      %v3750 = vmul.f32 %v481, %v3739
      %v3751 = vmul.f32 %v482, %v3739
      %v3752 = vmul.f32 %v483, %v3739
      %v3753 = vmul.f32 %v484, %v3739
      %v3754 = vmul.f32 %v485, %v3739
      %v3755 = vmul.f32 %v486, %v3739
      %v3756 = vmul.f32 %v487, %v3739
      %v3757 = vmul.f32 %v488, %v3739
      %v3758 = vmul.f32 %v489, %v3739
      %v3759 = vmul.f32 %v490, %v3739
      %v3760 = vmul.f32 %v491, %v3739
      %v3761 = vmul.f32 %v492, %v3739
      %v3762 = vmul.f32 %v493, %v3739
      %v3763 = vmul.f32 %v494, %v3739
      %v3788 = vrot.slane %v3740, 4
      %v3789 = vrot.slane %v3741, 4
      %v3790 = vsel %vm3415, %v3788, %v3789
      %v3791 = vrot.slane %v3742, 4
      %v3792 = vsel %vm3415, %v3789, %v3791
      %v3793 = vrot.slane %v3743, 4
      %v3794 = vrot.slane %v3744, 4
      %v3795 = vsel %vm3415, %v3793, %v3794
      %v3796 = vrot.slane %v3745, 4
      %v3797 = vsel %vm3415, %v3794, %v3796
      %v3798 = vrot.slane %v3746, 4
      %v3799 = vrot.slane %v3747, 4
      %v3800 = vsel %vm3415, %v3798, %v3799
      %v3801 = vrot.slane %v3748, 4
      %v3802 = vsel %vm3415, %v3799, %v3801
      %v3803 = vrot.slane %v3749, 4
      %v3804 = vrot.slane %v3750, 4
      %v3805 = vsel %vm3415, %v3803, %v3804
      %v3806 = vrot.slane %v3751, 4
      %v3807 = vsel %vm3415, %v3804, %v3806
      %v3808 = vrot.slane %v3752, 4
      %v3809 = vrot.slane %v3753, 4
      %v3810 = vsel %vm3415, %v3808, %v3809
      %v3811 = vrot.slane %v3754, 4
      %v3812 = vsel %vm3415, %v3809, %v3811
      %v3813 = vrot.slane %v3755, 4
      %v3814 = vrot.slane %v3756, 4
      %v3815 = vsel %vm3415, %v3813, %v3814
      %v3816 = vrot.slane %v3757, 4
      %v3817 = vsel %vm3415, %v3814, %v3816
      %v3818 = vrot.slane %v3758, 4
      %v3819 = vrot.slane %v3759, 4
      %v3820 = vsel %vm3415, %v3818, %v3819
      %v3821 = vrot.slane %v3760, 4
      %v3822 = vsel %vm3415, %v3819, %v3821
      %v3823 = vrot.slane %v3761, 4
      %v3824 = vrot.slane %v3762, 4
      %v3825 = vsel %vm3415, %v3823, %v3824
      %v3826 = vrot.slane %v3763, 4
      %v3827 = vsel %vm3415, %v3824, %v3826
      %v3844 = vadd.f32 %v3720, %v3790
      %v3845 = vadd.f32 %v3721, %v3792
      %v3846 = vadd.f32 %v3722, %v3795
      %v3847 = vadd.f32 %v3723, %v3797
      %v3848 = vadd.f32 %v3724, %v3800
      %v3849 = vadd.f32 %v3725, %v3802
      %v3850 = vadd.f32 %v3726, %v3805
      %v3851 = vadd.f32 %v3727, %v3807
      %v3852 = vadd.f32 %v3728, %v3810
      %v3853 = vadd.f32 %v3729, %v3812
      %v3854 = vadd.f32 %v3730, %v3815
      %v3855 = vadd.f32 %v3731, %v3817
      %v3856 = vadd.f32 %v3732, %v3820
      %v3857 = vadd.f32 %v3733, %v3822
      %v3858 = vadd.f32 %v3734, %v3825
      %v3859 = vadd.f32 %v3735, %v3827
      %v3860 = vlaneseq
      %v3861 = vshrl.u32 %v3860, 7
      %v3862 = vsub.s32 4, %v3861
      %v3863 = vrot.slane %v457, %v3862
      %v3864 = vmul.f32 %v474, %v3863
      %v3865 = vmul.f32 %v475, %v3863
      %v3866 = vmul.f32 %v476, %v3863
      %v3867 = vmul.f32 %v477, %v3863
      %v3868 = vmul.f32 %v478, %v3863
      %v3869 = vmul.f32 %v479, %v3863
      %v3870 = vmul.f32 %v480, %v3863
      %v3871 = vmul.f32 %v481, %v3863
      %v3872 = vmul.f32 %v482, %v3863
      %v3873 = vmul.f32 %v483, %v3863
      %v3874 = vmul.f32 %v484, %v3863
      %v3875 = vmul.f32 %v485, %v3863
      %v3876 = vmul.f32 %v486, %v3863
      %v3877 = vmul.f32 %v487, %v3863
      %v3878 = vmul.f32 %v488, %v3863
      %v3879 = vmul.f32 %v489, %v3863
      %v3880 = vmul.f32 %v490, %v3863
      %v3881 = vmul.f32 %v491, %v3863
      %v3882 = vmul.f32 %v492, %v3863
      %v3883 = vmul.f32 %v493, %v3863
      %v3884 = vmul.f32 %v494, %v3863
      %v3885 = vmul.f32 %v495, %v3863
      %v3886 = vmul.f32 %v496, %v3863
      %v3887 = vmul.f32 %v497, %v3863
      %v3912 = vrot.slane %v3864, 4
      %v3913 = vrot.slane %v3865, 4
      %v3914 = vsel %vm3415, %v3912, %v3913
      %v3915 = vrot.slane %v3866, 4
      %v3916 = vsel %vm3415, %v3913, %v3915
      %v3917 = vrot.slane %v3867, 4
      %v3918 = vrot.slane %v3868, 4
      %v3919 = vsel %vm3415, %v3917, %v3918
      %v3920 = vrot.slane %v3869, 4
      %v3921 = vsel %vm3415, %v3918, %v3920
      %v3922 = vrot.slane %v3870, 4
      %v3923 = vrot.slane %v3871, 4
      %v3924 = vsel %vm3415, %v3922, %v3923
      %v3925 = vrot.slane %v3872, 4
      %v3926 = vsel %vm3415, %v3923, %v3925
      %v3927 = vrot.slane %v3873, 4
      %v3928 = vrot.slane %v3874, 4
      %v3929 = vsel %vm3415, %v3927, %v3928
      %v3930 = vrot.slane %v3875, 4
      %v3931 = vsel %vm3415, %v3928, %v3930
      %v3932 = vrot.slane %v3876, 4
      %v3933 = vrot.slane %v3877, 4
      %v3934 = vsel %vm3415, %v3932, %v3933
      %v3935 = vrot.slane %v3878, 4
      %v3936 = vsel %vm3415, %v3933, %v3935
      %v3937 = vrot.slane %v3879, 4
      %v3938 = vrot.slane %v3880, 4
      %v3939 = vsel %vm3415, %v3937, %v3938
      %v3940 = vrot.slane %v3881, 4
      %v3941 = vsel %vm3415, %v3938, %v3940
      %v3942 = vrot.slane %v3882, 4
      %v3943 = vrot.slane %v3883, 4
      %v3944 = vsel %vm3415, %v3942, %v3943
      %v3945 = vrot.slane %v3884, 4
      %v3946 = vsel %vm3415, %v3943, %v3945
      %v3947 = vrot.slane %v3885, 4
      %v3948 = vrot.slane %v3886, 4
      %v3949 = vsel %vm3415, %v3947, %v3948
      %v3950 = vrot.slane %v3887, 4
      %v3951 = vsel %vm3415, %v3948, %v3950
      %v3968 = vadd.f32 %v3844, %v3914
      %v3969 = vadd.f32 %v3845, %v3916
      %v3970 = vadd.f32 %v3846, %v3919
      %v3971 = vadd.f32 %v3847, %v3921
      %v3972 = vadd.f32 %v3848, %v3924
      %v3973 = vadd.f32 %v3849, %v3926
      %v3974 = vadd.f32 %v3850, %v3929
      %v3975 = vadd.f32 %v3851, %v3931
      %v3976 = vadd.f32 %v3852, %v3934
      %v3977 = vadd.f32 %v3853, %v3936
      %v3978 = vadd.f32 %v3854, %v3939
      %v3979 = vadd.f32 %v3855, %v3941
      %v3980 = vadd.f32 %v3856, %v3944
      %v3981 = vadd.f32 %v3857, %v3946
      %v3982 = vadd.f32 %v3858, %v3949
      %v3983 = vadd.f32 %v3859, %v3951
      %v3984 = vlaneseq
      %v3985 = vshrl.u32 %v3984, 7
      %v3986 = vsub.s32 4, %v3985
      %v3987 = vrot.slane %v458, %v3986
      %v3988 = vmul.f32 %v477, %v3987
      %v3989 = vmul.f32 %v478, %v3987
      %v3990 = vmul.f32 %v479, %v3987
      %v3991 = vmul.f32 %v480, %v3987
      %v3992 = vmul.f32 %v481, %v3987
      %v3993 = vmul.f32 %v482, %v3987
      %v3994 = vmul.f32 %v483, %v3987
      %v3995 = vmul.f32 %v484, %v3987
      %v3996 = vmul.f32 %v485, %v3987
      %v3997 = vmul.f32 %v486, %v3987
      %v3998 = vmul.f32 %v487, %v3987
      %v3999 = vmul.f32 %v488, %v3987
      %v4000 = vmul.f32 %v489, %v3987
      %v4001 = vmul.f32 %v490, %v3987
      %v4002 = vmul.f32 %v491, %v3987
      %v4003 = vmul.f32 %v492, %v3987
      %v4004 = vmul.f32 %v493, %v3987
      %v4005 = vmul.f32 %v494, %v3987
      %v4006 = vmul.f32 %v495, %v3987
      %v4007 = vmul.f32 %v496, %v3987
      %v4008 = vmul.f32 %v497, %v3987
      %v4009 = vmul.f32 %v498, %v3987
      %v4010 = vmul.f32 %v499, %v3987
      %v4011 = vmul.f32 %v500, %v3987
      %v4036 = vrot.slane %v3988, 4
      %v4037 = vrot.slane %v3989, 4
      %v4038 = vsel %vm3415, %v4036, %v4037
      %v4039 = vrot.slane %v3990, 4
      %v4040 = vsel %vm3415, %v4037, %v4039
      %v4041 = vrot.slane %v3991, 4
      %v4042 = vrot.slane %v3992, 4
      %v4043 = vsel %vm3415, %v4041, %v4042
      %v4044 = vrot.slane %v3993, 4
      %v4045 = vsel %vm3415, %v4042, %v4044
      %v4046 = vrot.slane %v3994, 4
      %v4047 = vrot.slane %v3995, 4
      %v4048 = vsel %vm3415, %v4046, %v4047
      %v4049 = vrot.slane %v3996, 4
      %v4050 = vsel %vm3415, %v4047, %v4049
      %v4051 = vrot.slane %v3997, 4
      %v4052 = vrot.slane %v3998, 4
      %v4053 = vsel %vm3415, %v4051, %v4052
      %v4054 = vrot.slane %v3999, 4
      %v4055 = vsel %vm3415, %v4052, %v4054
      %v4056 = vrot.slane %v4000, 4
      %v4057 = vrot.slane %v4001, 4
      %v4058 = vsel %vm3415, %v4056, %v4057
      %v4059 = vrot.slane %v4002, 4
      %v4060 = vsel %vm3415, %v4057, %v4059
      %v4061 = vrot.slane %v4003, 4
      %v4062 = vrot.slane %v4004, 4
      %v4063 = vsel %vm3415, %v4061, %v4062
      %v4064 = vrot.slane %v4005, 4
      %v4065 = vsel %vm3415, %v4062, %v4064
      %v4066 = vrot.slane %v4006, 4
      %v4067 = vrot.slane %v4007, 4
      %v4068 = vsel %vm3415, %v4066, %v4067
      %v4069 = vrot.slane %v4008, 4
      %v4070 = vsel %vm3415, %v4067, %v4069
      %v4071 = vrot.slane %v4009, 4
      %v4072 = vrot.slane %v4010, 4
      %v4073 = vsel %vm3415, %v4071, %v4072
      %v4074 = vrot.slane %v4011, 4
      %v4075 = vsel %vm3415, %v4072, %v4074
      %v4092 = vadd.f32 %v3968, %v4038
      %v4093 = vadd.f32 %v3969, %v4040
      %v4094 = vadd.f32 %v3970, %v4043
      %v4095 = vadd.f32 %v3971, %v4045
      %v4096 = vadd.f32 %v3972, %v4048
      %v4097 = vadd.f32 %v3973, %v4050
      %v4098 = vadd.f32 %v3974, %v4053
      %v4099 = vadd.f32 %v3975, %v4055
      %v4100 = vadd.f32 %v3976, %v4058
      %v4101 = vadd.f32 %v3977, %v4060
      %v4102 = vadd.f32 %v3978, %v4063
      %v4103 = vadd.f32 %v3979, %v4065
      %v4104 = vadd.f32 %v3980, %v4068
      %v4105 = vadd.f32 %v3981, %v4070
      %v4106 = vadd.f32 %v3982, %v4073
      %v4107 = vadd.f32 %v3983, %v4075
      %v4108 = vlaneseq
      %v4109 = vshrl.u32 %v4108, 7
      %v4110 = vsub.s32 4, %v4109
      %v4111 = vrot.slane %v459, %v4110
      %v4112 = vmul.f32 %v480, %v4111
      %v4113 = vmul.f32 %v481, %v4111
      %v4114 = vmul.f32 %v482, %v4111
      %v4115 = vmul.f32 %v483, %v4111
      %v4116 = vmul.f32 %v484, %v4111
      %v4117 = vmul.f32 %v485, %v4111
      %v4118 = vmul.f32 %v486, %v4111
      %v4119 = vmul.f32 %v487, %v4111
      %v4120 = vmul.f32 %v488, %v4111
      %v4121 = vmul.f32 %v489, %v4111
      %v4122 = vmul.f32 %v490, %v4111
      %v4123 = vmul.f32 %v491, %v4111
      %v4124 = vmul.f32 %v492, %v4111
      %v4125 = vmul.f32 %v493, %v4111
      %v4126 = vmul.f32 %v494, %v4111
      %v4127 = vmul.f32 %v495, %v4111
      %v4128 = vmul.f32 %v496, %v4111
      %v4129 = vmul.f32 %v497, %v4111
      %v4130 = vmul.f32 %v498, %v4111
      %v4131 = vmul.f32 %v499, %v4111
      %v4132 = vmul.f32 %v500, %v4111
      %v4133 = vmul.f32 %v501, %v4111
      %v4134 = vmul.f32 %v502, %v4111
      %v4135 = vmul.f32 %v503, %v4111
      %v4160 = vrot.slane %v4112, 4
      %v4161 = vrot.slane %v4113, 4
      %v4162 = vsel %vm3415, %v4160, %v4161
      %v4163 = vrot.slane %v4114, 4
      %v4164 = vsel %vm3415, %v4161, %v4163
      %v4165 = vrot.slane %v4115, 4
      %v4166 = vrot.slane %v4116, 4
      %v4167 = vsel %vm3415, %v4165, %v4166
      %v4168 = vrot.slane %v4117, 4
      %v4169 = vsel %vm3415, %v4166, %v4168
      %v4170 = vrot.slane %v4118, 4
      %v4171 = vrot.slane %v4119, 4
      %v4172 = vsel %vm3415, %v4170, %v4171
      %v4173 = vrot.slane %v4120, 4
      %v4174 = vsel %vm3415, %v4171, %v4173
      %v4175 = vrot.slane %v4121, 4
      %v4176 = vrot.slane %v4122, 4
      %v4177 = vsel %vm3415, %v4175, %v4176
      %v4178 = vrot.slane %v4123, 4
      %v4179 = vsel %vm3415, %v4176, %v4178
      %v4180 = vrot.slane %v4124, 4
      %v4181 = vrot.slane %v4125, 4
      %v4182 = vsel %vm3415, %v4180, %v4181
      %v4183 = vrot.slane %v4126, 4
      %v4184 = vsel %vm3415, %v4181, %v4183
      %v4185 = vrot.slane %v4127, 4
      %v4186 = vrot.slane %v4128, 4
      %v4187 = vsel %vm3415, %v4185, %v4186
      %v4188 = vrot.slane %v4129, 4
      %v4189 = vsel %vm3415, %v4186, %v4188
      %v4190 = vrot.slane %v4130, 4
      %v4191 = vrot.slane %v4131, 4
      %v4192 = vsel %vm3415, %v4190, %v4191
      %v4193 = vrot.slane %v4132, 4
      %v4194 = vsel %vm3415, %v4191, %v4193
      %v4195 = vrot.slane %v4133, 4
      %v4196 = vrot.slane %v4134, 4
      %v4197 = vsel %vm3415, %v4195, %v4196
      %v4198 = vrot.slane %v4135, 4
      %v4199 = vsel %vm3415, %v4196, %v4198
      %v4216 = vadd.f32 %v4092, %v4162
      %v4217 = vadd.f32 %v4093, %v4164
      %v4218 = vadd.f32 %v4094, %v4167
      %v4219 = vadd.f32 %v4095, %v4169
      %v4220 = vadd.f32 %v4096, %v4172
      %v4221 = vadd.f32 %v4097, %v4174
      %v4222 = vadd.f32 %v4098, %v4177
      %v4223 = vadd.f32 %v4099, %v4179
      %v4224 = vadd.f32 %v4100, %v4182
      %v4225 = vadd.f32 %v4101, %v4184
      %v4226 = vadd.f32 %v4102, %v4187
      %v4227 = vadd.f32 %v4103, %v4189
      %v4228 = vadd.f32 %v4104, %v4192
      %v4229 = vadd.f32 %v4105, %v4194
      %v4230 = vadd.f32 %v4106, %v4197
      %v4231 = vadd.f32 %v4107, %v4199
      %v4232 = vlaneseq
      %v4233 = vshrl.u32 %v4232, 7
      %v4234 = vsub.s32 5, %v4233
      %v4235 = vrot.slane %v453, %v4234
      %v4236 = vmul.f32 %v462, %v4235
      %v4237 = vmul.f32 %v463, %v4235
      %v4238 = vmul.f32 %v464, %v4235
      %v4239 = vmul.f32 %v465, %v4235
      %v4240 = vmul.f32 %v466, %v4235
      %v4241 = vmul.f32 %v467, %v4235
      %v4242 = vmul.f32 %v468, %v4235
      %v4243 = vmul.f32 %v469, %v4235
      %v4244 = vmul.f32 %v470, %v4235
      %v4245 = vmul.f32 %v471, %v4235
      %v4246 = vmul.f32 %v472, %v4235
      %v4247 = vmul.f32 %v473, %v4235
      %v4248 = vmul.f32 %v474, %v4235
      %v4249 = vmul.f32 %v475, %v4235
      %v4250 = vmul.f32 %v476, %v4235
      %v4251 = vmul.f32 %v477, %v4235
      %v4252 = vmul.f32 %v478, %v4235
      %v4253 = vmul.f32 %v479, %v4235
      %v4254 = vmul.f32 %v480, %v4235
      %v4255 = vmul.f32 %v481, %v4235
      %v4256 = vmul.f32 %v482, %v4235
      %v4257 = vmul.f32 %v483, %v4235
      %v4258 = vmul.f32 %v484, %v4235
      %v4259 = vmul.f32 %v485, %v4235
      %vm4284 = vcmask 1042432
      %v4285 = vrot.slane %v4236, 5
      %v4286 = vrot.slane %v4237, 5
      %v4287 = vsel %vm4284, %v4285, %v4286
      %v4288 = vrot.slane %v4238, 5
      %v4289 = vsel %vm4284, %v4286, %v4288
      %v4290 = vrot.slane %v4239, 5
      %v4291 = vrot.slane %v4240, 5
      %v4292 = vsel %vm4284, %v4290, %v4291
      %v4293 = vrot.slane %v4241, 5
      %v4294 = vsel %vm4284, %v4291, %v4293
      %v4295 = vrot.slane %v4242, 5
      %v4296 = vrot.slane %v4243, 5
      %v4297 = vsel %vm4284, %v4295, %v4296
      %v4298 = vrot.slane %v4244, 5
      %v4299 = vsel %vm4284, %v4296, %v4298
      %v4300 = vrot.slane %v4245, 5
      %v4301 = vrot.slane %v4246, 5
      %v4302 = vsel %vm4284, %v4300, %v4301
      %v4303 = vrot.slane %v4247, 5
      %v4304 = vsel %vm4284, %v4301, %v4303
      %v4305 = vrot.slane %v4248, 5
      %v4306 = vrot.slane %v4249, 5
      %v4307 = vsel %vm4284, %v4305, %v4306
      %v4308 = vrot.slane %v4250, 5
      %v4309 = vsel %vm4284, %v4306, %v4308
      %v4310 = vrot.slane %v4251, 5
      %v4311 = vrot.slane %v4252, 5
      %v4312 = vsel %vm4284, %v4310, %v4311
      %v4313 = vrot.slane %v4253, 5
      %v4314 = vsel %vm4284, %v4311, %v4313
      %v4315 = vrot.slane %v4254, 5
      %v4316 = vrot.slane %v4255, 5
      %v4317 = vsel %vm4284, %v4315, %v4316
      %v4318 = vrot.slane %v4256, 5
      %v4319 = vsel %vm4284, %v4316, %v4318
      %v4320 = vrot.slane %v4257, 5
      %v4321 = vrot.slane %v4258, 5
      %v4322 = vsel %vm4284, %v4320, %v4321
      %v4323 = vrot.slane %v4259, 5
      %v4324 = vsel %vm4284, %v4321, %v4323
      %v4341 = vadd.f32 %v4216, %v4287
      %v4342 = vadd.f32 %v4217, %v4289
      %v4343 = vadd.f32 %v4218, %v4292
      %v4344 = vadd.f32 %v4219, %v4294
      %v4345 = vadd.f32 %v4220, %v4297
      %v4346 = vadd.f32 %v4221, %v4299
      %v4347 = vadd.f32 %v4222, %v4302
      %v4348 = vadd.f32 %v4223, %v4304
      %v4349 = vadd.f32 %v4224, %v4307
      %v4350 = vadd.f32 %v4225, %v4309
      %v4351 = vadd.f32 %v4226, %v4312
      %v4352 = vadd.f32 %v4227, %v4314
      %v4353 = vadd.f32 %v4228, %v4317
      %v4354 = vadd.f32 %v4229, %v4319
      %v4355 = vadd.f32 %v4230, %v4322
      %v4356 = vadd.f32 %v4231, %v4324
      %v4357 = vlaneseq
      %v4358 = vshrl.u32 %v4357, 7
      %v4359 = vsub.s32 5, %v4358
      %v4360 = vrot.slane %v454, %v4359
      %v4361 = vmul.f32 %v465, %v4360
      %v4362 = vmul.f32 %v466, %v4360
      %v4363 = vmul.f32 %v467, %v4360
      %v4364 = vmul.f32 %v468, %v4360
      %v4365 = vmul.f32 %v469, %v4360
      %v4366 = vmul.f32 %v470, %v4360
      %v4367 = vmul.f32 %v471, %v4360
      %v4368 = vmul.f32 %v472, %v4360
      %v4369 = vmul.f32 %v473, %v4360
      %v4370 = vmul.f32 %v474, %v4360
      %v4371 = vmul.f32 %v475, %v4360
      %v4372 = vmul.f32 %v476, %v4360
      %v4373 = vmul.f32 %v477, %v4360
      %v4374 = vmul.f32 %v478, %v4360
      %v4375 = vmul.f32 %v479, %v4360
      %v4376 = vmul.f32 %v480, %v4360
      %v4377 = vmul.f32 %v481, %v4360
      %v4378 = vmul.f32 %v482, %v4360
      %v4379 = vmul.f32 %v483, %v4360
      %v4380 = vmul.f32 %v484, %v4360
      %v4381 = vmul.f32 %v485, %v4360
      %v4382 = vmul.f32 %v486, %v4360
      %v4383 = vmul.f32 %v487, %v4360
      %v4384 = vmul.f32 %v488, %v4360
      %v4409 = vrot.slane %v4361, 5
      %v4410 = vrot.slane %v4362, 5
      %v4411 = vsel %vm4284, %v4409, %v4410
      %v4412 = vrot.slane %v4363, 5
      %v4413 = vsel %vm4284, %v4410, %v4412
      %v4414 = vrot.slane %v4364, 5
      %v4415 = vrot.slane %v4365, 5
      %v4416 = vsel %vm4284, %v4414, %v4415
      %v4417 = vrot.slane %v4366, 5
      %v4418 = vsel %vm4284, %v4415, %v4417
      %v4419 = vrot.slane %v4367, 5
      %v4420 = vrot.slane %v4368, 5
      %v4421 = vsel %vm4284, %v4419, %v4420
      %v4422 = vrot.slane %v4369, 5
      %v4423 = vsel %vm4284, %v4420, %v4422
      %v4424 = vrot.slane %v4370, 5
      %v4425 = vrot.slane %v4371, 5
      %v4426 = vsel %vm4284, %v4424, %v4425
      %v4427 = vrot.slane %v4372, 5
      %v4428 = vsel %vm4284, %v4425, %v4427
      %v4429 = vrot.slane %v4373, 5
      %v4430 = vrot.slane %v4374, 5
      %v4431 = vsel %vm4284, %v4429, %v4430
      %v4432 = vrot.slane %v4375, 5
      %v4433 = vsel %vm4284, %v4430, %v4432
      %v4434 = vrot.slane %v4376, 5
      %v4435 = vrot.slane %v4377, 5
      %v4436 = vsel %vm4284, %v4434, %v4435
      %v4437 = vrot.slane %v4378, 5
      %v4438 = vsel %vm4284, %v4435, %v4437
      %v4439 = vrot.slane %v4379, 5
      %v4440 = vrot.slane %v4380, 5
      %v4441 = vsel %vm4284, %v4439, %v4440
      %v4442 = vrot.slane %v4381, 5
      %v4443 = vsel %vm4284, %v4440, %v4442
      %v4444 = vrot.slane %v4382, 5
      %v4445 = vrot.slane %v4383, 5
      %v4446 = vsel %vm4284, %v4444, %v4445
      %v4447 = vrot.slane %v4384, 5
      %v4448 = vsel %vm4284, %v4445, %v4447
      %v4465 = vadd.f32 %v4341, %v4411
      %v4466 = vadd.f32 %v4342, %v4413
      %v4467 = vadd.f32 %v4343, %v4416
      %v4468 = vadd.f32 %v4344, %v4418
      %v4469 = vadd.f32 %v4345, %v4421
      %v4470 = vadd.f32 %v4346, %v4423
      %v4471 = vadd.f32 %v4347, %v4426
      %v4472 = vadd.f32 %v4348, %v4428
      %v4473 = vadd.f32 %v4349, %v4431
      %v4474 = vadd.f32 %v4350, %v4433
      %v4475 = vadd.f32 %v4351, %v4436
      %v4476 = vadd.f32 %v4352, %v4438
      %v4477 = vadd.f32 %v4353, %v4441
      %v4478 = vadd.f32 %v4354, %v4443
      %v4479 = vadd.f32 %v4355, %v4446
      %v4480 = vadd.f32 %v4356, %v4448
      %v4481 = vlaneseq
      %v4482 = vshrl.u32 %v4481, 7
      %v4483 = vsub.s32 5, %v4482
      %v4484 = vrot.slane %v455, %v4483
      %v4485 = vmul.f32 %v468, %v4484
      %v4486 = vmul.f32 %v469, %v4484
      %v4487 = vmul.f32 %v470, %v4484
      %v4488 = vmul.f32 %v471, %v4484
      %v4489 = vmul.f32 %v472, %v4484
      %v4490 = vmul.f32 %v473, %v4484
      %v4491 = vmul.f32 %v474, %v4484
      %v4492 = vmul.f32 %v475, %v4484
      %v4493 = vmul.f32 %v476, %v4484
      %v4494 = vmul.f32 %v477, %v4484
      %v4495 = vmul.f32 %v478, %v4484
      %v4496 = vmul.f32 %v479, %v4484
      %v4497 = vmul.f32 %v480, %v4484
      %v4498 = vmul.f32 %v481, %v4484
      %v4499 = vmul.f32 %v482, %v4484
      %v4500 = vmul.f32 %v483, %v4484
      %v4501 = vmul.f32 %v484, %v4484
      %v4502 = vmul.f32 %v485, %v4484
      %v4503 = vmul.f32 %v486, %v4484
      %v4504 = vmul.f32 %v487, %v4484
      %v4505 = vmul.f32 %v488, %v4484
      %v4506 = vmul.f32 %v489, %v4484
      %v4507 = vmul.f32 %v490, %v4484
      %v4508 = vmul.f32 %v491, %v4484
      %v4533 = vrot.slane %v4485, 5
      %v4534 = vrot.slane %v4486, 5
      %v4535 = vsel %vm4284, %v4533, %v4534
      %v4536 = vrot.slane %v4487, 5
      %v4537 = vsel %vm4284, %v4534, %v4536
      %v4538 = vrot.slane %v4488, 5
      %v4539 = vrot.slane %v4489, 5
      %v4540 = vsel %vm4284, %v4538, %v4539
      %v4541 = vrot.slane %v4490, 5
      %v4542 = vsel %vm4284, %v4539, %v4541
      %v4543 = vrot.slane %v4491, 5
      %v4544 = vrot.slane %v4492, 5
      %v4545 = vsel %vm4284, %v4543, %v4544
      %v4546 = vrot.slane %v4493, 5
      %v4547 = vsel %vm4284, %v4544, %v4546
      %v4548 = vrot.slane %v4494, 5
      %v4549 = vrot.slane %v4495, 5
      %v4550 = vsel %vm4284, %v4548, %v4549
      %v4551 = vrot.slane %v4496, 5
      %v4552 = vsel %vm4284, %v4549, %v4551
      %v4553 = vrot.slane %v4497, 5
      %v4554 = vrot.slane %v4498, 5
      %v4555 = vsel %vm4284, %v4553, %v4554
      %v4556 = vrot.slane %v4499, 5
      %v4557 = vsel %vm4284, %v4554, %v4556
      %v4558 = vrot.slane %v4500, 5
      %v4559 = vrot.slane %v4501, 5
      %v4560 = vsel %vm4284, %v4558, %v4559
      %v4561 = vrot.slane %v4502, 5
      %v4562 = vsel %vm4284, %v4559, %v4561
      %v4563 = vrot.slane %v4503, 5
      %v4564 = vrot.slane %v4504, 5
      %v4565 = vsel %vm4284, %v4563, %v4564
      %v4566 = vrot.slane %v4505, 5
      %v4567 = vsel %vm4284, %v4564, %v4566
      %v4568 = vrot.slane %v4506, 5
      %v4569 = vrot.slane %v4507, 5
      %v4570 = vsel %vm4284, %v4568, %v4569
      %v4571 = vrot.slane %v4508, 5
      %v4572 = vsel %vm4284, %v4569, %v4571
      %v4589 = vadd.f32 %v4465, %v4535
      %v4590 = vadd.f32 %v4466, %v4537
      %v4591 = vadd.f32 %v4467, %v4540
      %v4592 = vadd.f32 %v4468, %v4542
      %v4593 = vadd.f32 %v4469, %v4545
      %v4594 = vadd.f32 %v4470, %v4547
      %v4595 = vadd.f32 %v4471, %v4550
      %v4596 = vadd.f32 %v4472, %v4552
      %v4597 = vadd.f32 %v4473, %v4555
      %v4598 = vadd.f32 %v4474, %v4557
      %v4599 = vadd.f32 %v4475, %v4560
      %v4600 = vadd.f32 %v4476, %v4562
      %v4601 = vadd.f32 %v4477, %v4565
      %v4602 = vadd.f32 %v4478, %v4567
      %v4603 = vadd.f32 %v4479, %v4570
      %v4604 = vadd.f32 %v4480, %v4572
      %v4605 = vlaneseq
      %v4606 = vshrl.u32 %v4605, 7
      %v4607 = vsub.s32 5, %v4606
      %v4608 = vrot.slane %v456, %v4607
      %v4609 = vmul.f32 %v471, %v4608
      %v4610 = vmul.f32 %v472, %v4608
      %v4611 = vmul.f32 %v473, %v4608
      %v4612 = vmul.f32 %v474, %v4608
      %v4613 = vmul.f32 %v475, %v4608
      %v4614 = vmul.f32 %v476, %v4608
      %v4615 = vmul.f32 %v477, %v4608
      %v4616 = vmul.f32 %v478, %v4608
      %v4617 = vmul.f32 %v479, %v4608
      %v4618 = vmul.f32 %v480, %v4608
      %v4619 = vmul.f32 %v481, %v4608
      %v4620 = vmul.f32 %v482, %v4608
      %v4621 = vmul.f32 %v483, %v4608
      %v4622 = vmul.f32 %v484, %v4608
      %v4623 = vmul.f32 %v485, %v4608
      %v4624 = vmul.f32 %v486, %v4608
      %v4625 = vmul.f32 %v487, %v4608
      %v4626 = vmul.f32 %v488, %v4608
      %v4627 = vmul.f32 %v489, %v4608
      %v4628 = vmul.f32 %v490, %v4608
      %v4629 = vmul.f32 %v491, %v4608
      %v4630 = vmul.f32 %v492, %v4608
      %v4631 = vmul.f32 %v493, %v4608
      %v4632 = vmul.f32 %v494, %v4608
      %v4657 = vrot.slane %v4609, 5
      %v4658 = vrot.slane %v4610, 5
      %v4659 = vsel %vm4284, %v4657, %v4658
      %v4660 = vrot.slane %v4611, 5
      %v4661 = vsel %vm4284, %v4658, %v4660
      %v4662 = vrot.slane %v4612, 5
      %v4663 = vrot.slane %v4613, 5
      %v4664 = vsel %vm4284, %v4662, %v4663
      %v4665 = vrot.slane %v4614, 5
      %v4666 = vsel %vm4284, %v4663, %v4665
      %v4667 = vrot.slane %v4615, 5
      %v4668 = vrot.slane %v4616, 5
      %v4669 = vsel %vm4284, %v4667, %v4668
      %v4670 = vrot.slane %v4617, 5
      %v4671 = vsel %vm4284, %v4668, %v4670
      %v4672 = vrot.slane %v4618, 5
      %v4673 = vrot.slane %v4619, 5
      %v4674 = vsel %vm4284, %v4672, %v4673
      %v4675 = vrot.slane %v4620, 5
      %v4676 = vsel %vm4284, %v4673, %v4675
      %v4677 = vrot.slane %v4621, 5
      %v4678 = vrot.slane %v4622, 5
      %v4679 = vsel %vm4284, %v4677, %v4678
      %v4680 = vrot.slane %v4623, 5
      %v4681 = vsel %vm4284, %v4678, %v4680
      %v4682 = vrot.slane %v4624, 5
      %v4683 = vrot.slane %v4625, 5
      %v4684 = vsel %vm4284, %v4682, %v4683
      %v4685 = vrot.slane %v4626, 5
      %v4686 = vsel %vm4284, %v4683, %v4685
      %v4687 = vrot.slane %v4627, 5
      %v4688 = vrot.slane %v4628, 5
      %v4689 = vsel %vm4284, %v4687, %v4688
      %v4690 = vrot.slane %v4629, 5
      %v4691 = vsel %vm4284, %v4688, %v4690
      %v4692 = vrot.slane %v4630, 5
      %v4693 = vrot.slane %v4631, 5
      %v4694 = vsel %vm4284, %v4692, %v4693
      %v4695 = vrot.slane %v4632, 5
      %v4696 = vsel %vm4284, %v4693, %v4695
      %v4713 = vadd.f32 %v4589, %v4659
      %v4714 = vadd.f32 %v4590, %v4661
      %v4715 = vadd.f32 %v4591, %v4664
      %v4716 = vadd.f32 %v4592, %v4666
      %v4717 = vadd.f32 %v4593, %v4669
      %v4718 = vadd.f32 %v4594, %v4671
      %v4719 = vadd.f32 %v4595, %v4674
      %v4720 = vadd.f32 %v4596, %v4676
      %v4721 = vadd.f32 %v4597, %v4679
      %v4722 = vadd.f32 %v4598, %v4681
      %v4723 = vadd.f32 %v4599, %v4684
      %v4724 = vadd.f32 %v4600, %v4686
      %v4725 = vadd.f32 %v4601, %v4689
      %v4726 = vadd.f32 %v4602, %v4691
      %v4727 = vadd.f32 %v4603, %v4694
      %v4728 = vadd.f32 %v4604, %v4696
      %v4729 = vlaneseq
      %v4730 = vshrl.u32 %v4729, 7
      %v4731 = vsub.s32 5, %v4730
      %v4732 = vrot.slane %v457, %v4731
      %v4733 = vmul.f32 %v474, %v4732
      %v4734 = vmul.f32 %v475, %v4732
      %v4735 = vmul.f32 %v476, %v4732
      %v4736 = vmul.f32 %v477, %v4732
      %v4737 = vmul.f32 %v478, %v4732
      %v4738 = vmul.f32 %v479, %v4732
      %v4739 = vmul.f32 %v480, %v4732
      %v4740 = vmul.f32 %v481, %v4732
      %v4741 = vmul.f32 %v482, %v4732
      %v4742 = vmul.f32 %v483, %v4732
      %v4743 = vmul.f32 %v484, %v4732
      %v4744 = vmul.f32 %v485, %v4732
      %v4745 = vmul.f32 %v486, %v4732
      %v4746 = vmul.f32 %v487, %v4732
      %v4747 = vmul.f32 %v488, %v4732
      %v4748 = vmul.f32 %v489, %v4732
      %v4749 = vmul.f32 %v490, %v4732
      %v4750 = vmul.f32 %v491, %v4732
      %v4751 = vmul.f32 %v492, %v4732
      %v4752 = vmul.f32 %v493, %v4732
      %v4753 = vmul.f32 %v494, %v4732
      %v4754 = vmul.f32 %v495, %v4732
      %v4755 = vmul.f32 %v496, %v4732
      %v4756 = vmul.f32 %v497, %v4732
      %v4781 = vrot.slane %v4733, 5
      %v4782 = vrot.slane %v4734, 5
      %v4783 = vsel %vm4284, %v4781, %v4782
      %v4784 = vrot.slane %v4735, 5
      %v4785 = vsel %vm4284, %v4782, %v4784
      %v4786 = vrot.slane %v4736, 5
      %v4787 = vrot.slane %v4737, 5
      %v4788 = vsel %vm4284, %v4786, %v4787
      %v4789 = vrot.slane %v4738, 5
      %v4790 = vsel %vm4284, %v4787, %v4789
      %v4791 = vrot.slane %v4739, 5
      %v4792 = vrot.slane %v4740, 5
      %v4793 = vsel %vm4284, %v4791, %v4792
      %v4794 = vrot.slane %v4741, 5
      %v4795 = vsel %vm4284, %v4792, %v4794
      %v4796 = vrot.slane %v4742, 5
      %v4797 = vrot.slane %v4743, 5
      %v4798 = vsel %vm4284, %v4796, %v4797
      %v4799 = vrot.slane %v4744, 5
      %v4800 = vsel %vm4284, %v4797, %v4799
      %v4801 = vrot.slane %v4745, 5
      %v4802 = vrot.slane %v4746, 5
      %v4803 = vsel %vm4284, %v4801, %v4802
      %v4804 = vrot.slane %v4747, 5
      %v4805 = vsel %vm4284, %v4802, %v4804
      %v4806 = vrot.slane %v4748, 5
      %v4807 = vrot.slane %v4749, 5
      %v4808 = vsel %vm4284, %v4806, %v4807
      %v4809 = vrot.slane %v4750, 5
      %v4810 = vsel %vm4284, %v4807, %v4809
      %v4811 = vrot.slane %v4751, 5
      %v4812 = vrot.slane %v4752, 5
      %v4813 = vsel %vm4284, %v4811, %v4812
      %v4814 = vrot.slane %v4753, 5
      %v4815 = vsel %vm4284, %v4812, %v4814
      %v4816 = vrot.slane %v4754, 5
      %v4817 = vrot.slane %v4755, 5
      %v4818 = vsel %vm4284, %v4816, %v4817
      %v4819 = vrot.slane %v4756, 5
      %v4820 = vsel %vm4284, %v4817, %v4819
      %v4837 = vadd.f32 %v4713, %v4783
      %v4838 = vadd.f32 %v4714, %v4785
      %v4839 = vadd.f32 %v4715, %v4788
      %v4840 = vadd.f32 %v4716, %v4790
      %v4841 = vadd.f32 %v4717, %v4793
      %v4842 = vadd.f32 %v4718, %v4795
      %v4843 = vadd.f32 %v4719, %v4798
      %v4844 = vadd.f32 %v4720, %v4800
      %v4845 = vadd.f32 %v4721, %v4803
      %v4846 = vadd.f32 %v4722, %v4805
      %v4847 = vadd.f32 %v4723, %v4808
      %v4848 = vadd.f32 %v4724, %v4810
      %v4849 = vadd.f32 %v4725, %v4813
      %v4850 = vadd.f32 %v4726, %v4815
      %v4851 = vadd.f32 %v4727, %v4818
      %v4852 = vadd.f32 %v4728, %v4820
      %v4853 = vlaneseq
      %v4854 = vshrl.u32 %v4853, 7
      %v4855 = vsub.s32 5, %v4854
      %v4856 = vrot.slane %v458, %v4855
      %v4857 = vmul.f32 %v477, %v4856
      %v4858 = vmul.f32 %v478, %v4856
      %v4859 = vmul.f32 %v479, %v4856
      %v4860 = vmul.f32 %v480, %v4856
      %v4861 = vmul.f32 %v481, %v4856
      %v4862 = vmul.f32 %v482, %v4856
      %v4863 = vmul.f32 %v483, %v4856
      %v4864 = vmul.f32 %v484, %v4856
      %v4865 = vmul.f32 %v485, %v4856
      %v4866 = vmul.f32 %v486, %v4856
      %v4867 = vmul.f32 %v487, %v4856
      %v4868 = vmul.f32 %v488, %v4856
      %v4869 = vmul.f32 %v489, %v4856
      %v4870 = vmul.f32 %v490, %v4856
      %v4871 = vmul.f32 %v491, %v4856
      %v4872 = vmul.f32 %v492, %v4856
      %v4873 = vmul.f32 %v493, %v4856
      %v4874 = vmul.f32 %v494, %v4856
      %v4875 = vmul.f32 %v495, %v4856
      %v4876 = vmul.f32 %v496, %v4856
      %v4877 = vmul.f32 %v497, %v4856
      %v4878 = vmul.f32 %v498, %v4856
      %v4879 = vmul.f32 %v499, %v4856
      %v4880 = vmul.f32 %v500, %v4856
      %v4905 = vrot.slane %v4857, 5
      %v4906 = vrot.slane %v4858, 5
      %v4907 = vsel %vm4284, %v4905, %v4906
      %v4908 = vrot.slane %v4859, 5
      %v4909 = vsel %vm4284, %v4906, %v4908
      %v4910 = vrot.slane %v4860, 5
      %v4911 = vrot.slane %v4861, 5
      %v4912 = vsel %vm4284, %v4910, %v4911
      %v4913 = vrot.slane %v4862, 5
      %v4914 = vsel %vm4284, %v4911, %v4913
      %v4915 = vrot.slane %v4863, 5
      %v4916 = vrot.slane %v4864, 5
      %v4917 = vsel %vm4284, %v4915, %v4916
      %v4918 = vrot.slane %v4865, 5
      %v4919 = vsel %vm4284, %v4916, %v4918
      %v4920 = vrot.slane %v4866, 5
      %v4921 = vrot.slane %v4867, 5
      %v4922 = vsel %vm4284, %v4920, %v4921
      %v4923 = vrot.slane %v4868, 5
      %v4924 = vsel %vm4284, %v4921, %v4923
      %v4925 = vrot.slane %v4869, 5
      %v4926 = vrot.slane %v4870, 5
      %v4927 = vsel %vm4284, %v4925, %v4926
      %v4928 = vrot.slane %v4871, 5
      %v4929 = vsel %vm4284, %v4926, %v4928
      %v4930 = vrot.slane %v4872, 5
      %v4931 = vrot.slane %v4873, 5
      %v4932 = vsel %vm4284, %v4930, %v4931
      %v4933 = vrot.slane %v4874, 5
      %v4934 = vsel %vm4284, %v4931, %v4933
      %v4935 = vrot.slane %v4875, 5
      %v4936 = vrot.slane %v4876, 5
      %v4937 = vsel %vm4284, %v4935, %v4936
      %v4938 = vrot.slane %v4877, 5
      %v4939 = vsel %vm4284, %v4936, %v4938
      %v4940 = vrot.slane %v4878, 5
      %v4941 = vrot.slane %v4879, 5
      %v4942 = vsel %vm4284, %v4940, %v4941
      %v4943 = vrot.slane %v4880, 5
      %v4944 = vsel %vm4284, %v4941, %v4943
      %v4961 = vadd.f32 %v4837, %v4907
      %v4962 = vadd.f32 %v4838, %v4909
      %v4963 = vadd.f32 %v4839, %v4912
      %v4964 = vadd.f32 %v4840, %v4914
      %v4965 = vadd.f32 %v4841, %v4917
      %v4966 = vadd.f32 %v4842, %v4919
      %v4967 = vadd.f32 %v4843, %v4922
      %v4968 = vadd.f32 %v4844, %v4924
      %v4969 = vadd.f32 %v4845, %v4927
      %v4970 = vadd.f32 %v4846, %v4929
      %v4971 = vadd.f32 %v4847, %v4932
      %v4972 = vadd.f32 %v4848, %v4934
      %v4973 = vadd.f32 %v4849, %v4937
      %v4974 = vadd.f32 %v4850, %v4939
      %v4975 = vadd.f32 %v4851, %v4942
      %v4976 = vadd.f32 %v4852, %v4944
      %v4977 = vlaneseq
      %v4978 = vshrl.u32 %v4977, 7
      %v4979 = vsub.s32 5, %v4978
      %v4980 = vrot.slane %v459, %v4979
      %v4981 = vmul.f32 %v480, %v4980
      %v4982 = vmul.f32 %v481, %v4980
      %v4983 = vmul.f32 %v482, %v4980
      %v4984 = vmul.f32 %v483, %v4980
      %v4985 = vmul.f32 %v484, %v4980
      %v4986 = vmul.f32 %v485, %v4980
      %v4987 = vmul.f32 %v486, %v4980
      %v4988 = vmul.f32 %v487, %v4980
      %v4989 = vmul.f32 %v488, %v4980
      %v4990 = vmul.f32 %v489, %v4980
      %v4991 = vmul.f32 %v490, %v4980
      %v4992 = vmul.f32 %v491, %v4980
      %v4993 = vmul.f32 %v492, %v4980
      %v4994 = vmul.f32 %v493, %v4980
      %v4995 = vmul.f32 %v494, %v4980
      %v4996 = vmul.f32 %v495, %v4980
      %v4997 = vmul.f32 %v496, %v4980
      %v4998 = vmul.f32 %v497, %v4980
      %v4999 = vmul.f32 %v498, %v4980
      %v5000 = vmul.f32 %v499, %v4980
      %v5001 = vmul.f32 %v500, %v4980
      %v5002 = vmul.f32 %v501, %v4980
      %v5003 = vmul.f32 %v502, %v4980
      %v5004 = vmul.f32 %v503, %v4980
      %v5029 = vrot.slane %v4981, 5
      %v5030 = vrot.slane %v4982, 5
      %v5031 = vsel %vm4284, %v5029, %v5030
      %v5032 = vrot.slane %v4983, 5
      %v5033 = vsel %vm4284, %v5030, %v5032
      %v5034 = vrot.slane %v4984, 5
      %v5035 = vrot.slane %v4985, 5
      %v5036 = vsel %vm4284, %v5034, %v5035
      %v5037 = vrot.slane %v4986, 5
      %v5038 = vsel %vm4284, %v5035, %v5037
      %v5039 = vrot.slane %v4987, 5
      %v5040 = vrot.slane %v4988, 5
      %v5041 = vsel %vm4284, %v5039, %v5040
      %v5042 = vrot.slane %v4989, 5
      %v5043 = vsel %vm4284, %v5040, %v5042
      %v5044 = vrot.slane %v4990, 5
      %v5045 = vrot.slane %v4991, 5
      %v5046 = vsel %vm4284, %v5044, %v5045
      %v5047 = vrot.slane %v4992, 5
      %v5048 = vsel %vm4284, %v5045, %v5047
      %v5049 = vrot.slane %v4993, 5
      %v5050 = vrot.slane %v4994, 5
      %v5051 = vsel %vm4284, %v5049, %v5050
      %v5052 = vrot.slane %v4995, 5
      %v5053 = vsel %vm4284, %v5050, %v5052
      %v5054 = vrot.slane %v4996, 5
      %v5055 = vrot.slane %v4997, 5
      %v5056 = vsel %vm4284, %v5054, %v5055
      %v5057 = vrot.slane %v4998, 5
      %v5058 = vsel %vm4284, %v5055, %v5057
      %v5059 = vrot.slane %v4999, 5
      %v5060 = vrot.slane %v5000, 5
      %v5061 = vsel %vm4284, %v5059, %v5060
      %v5062 = vrot.slane %v5001, 5
      %v5063 = vsel %vm4284, %v5060, %v5062
      %v5064 = vrot.slane %v5002, 5
      %v5065 = vrot.slane %v5003, 5
      %v5066 = vsel %vm4284, %v5064, %v5065
      %v5067 = vrot.slane %v5004, 5
      %v5068 = vsel %vm4284, %v5065, %v5067
      %v5085 = vadd.f32 %v4961, %v5031
      %v5086 = vadd.f32 %v4962, %v5033
      %v5087 = vadd.f32 %v4963, %v5036
      %v5088 = vadd.f32 %v4964, %v5038
      %v5089 = vadd.f32 %v4965, %v5041
      %v5090 = vadd.f32 %v4966, %v5043
      %v5091 = vadd.f32 %v4967, %v5046
      %v5092 = vadd.f32 %v4968, %v5048
      %v5093 = vadd.f32 %v4969, %v5051
      %v5094 = vadd.f32 %v4970, %v5053
      %v5095 = vadd.f32 %v4971, %v5056
      %v5096 = vadd.f32 %v4972, %v5058
      %v5097 = vadd.f32 %v4973, %v5061
      %v5098 = vadd.f32 %v4974, %v5063
      %v5099 = vadd.f32 %v4975, %v5066
      %v5100 = vadd.f32 %v4976, %v5068
      %v5101 = vlaneseq
      %v5102 = vshrl.u32 %v5101, 7
      %v5103 = vsub.s32 6, %v5102
      %v5104 = vrot.slane %v453, %v5103
      %v5105 = vmul.f32 %v462, %v5104
      %v5106 = vmul.f32 %v463, %v5104
      %v5107 = vmul.f32 %v464, %v5104
      %v5108 = vmul.f32 %v465, %v5104
      %v5109 = vmul.f32 %v466, %v5104
      %v5110 = vmul.f32 %v467, %v5104
      %v5111 = vmul.f32 %v468, %v5104
      %v5112 = vmul.f32 %v469, %v5104
      %v5113 = vmul.f32 %v470, %v5104
      %v5114 = vmul.f32 %v471, %v5104
      %v5115 = vmul.f32 %v472, %v5104
      %v5116 = vmul.f32 %v473, %v5104
      %v5117 = vmul.f32 %v474, %v5104
      %v5118 = vmul.f32 %v475, %v5104
      %v5119 = vmul.f32 %v476, %v5104
      %v5120 = vmul.f32 %v477, %v5104
      %v5121 = vmul.f32 %v478, %v5104
      %v5122 = vmul.f32 %v479, %v5104
      %v5123 = vmul.f32 %v480, %v5104
      %v5124 = vmul.f32 %v481, %v5104
      %v5125 = vmul.f32 %v482, %v5104
      %v5126 = vmul.f32 %v483, %v5104
      %v5127 = vmul.f32 %v484, %v5104
      %v5128 = vmul.f32 %v485, %v5104
      %vm5153 = vcmask 1041408
      %v5154 = vrot.slane %v5105, 6
      %v5155 = vrot.slane %v5106, 6
      %v5156 = vsel %vm5153, %v5154, %v5155
      %v5157 = vrot.slane %v5107, 6
      %v5158 = vsel %vm5153, %v5155, %v5157
      %v5159 = vrot.slane %v5108, 6
      %v5160 = vrot.slane %v5109, 6
      %v5161 = vsel %vm5153, %v5159, %v5160
      %v5162 = vrot.slane %v5110, 6
      %v5163 = vsel %vm5153, %v5160, %v5162
      %v5164 = vrot.slane %v5111, 6
      %v5165 = vrot.slane %v5112, 6
      %v5166 = vsel %vm5153, %v5164, %v5165
      %v5167 = vrot.slane %v5113, 6
      %v5168 = vsel %vm5153, %v5165, %v5167
      %v5169 = vrot.slane %v5114, 6
      %v5170 = vrot.slane %v5115, 6
      %v5171 = vsel %vm5153, %v5169, %v5170
      %v5172 = vrot.slane %v5116, 6
      %v5173 = vsel %vm5153, %v5170, %v5172
      %v5174 = vrot.slane %v5117, 6
      %v5175 = vrot.slane %v5118, 6
      %v5176 = vsel %vm5153, %v5174, %v5175
      %v5177 = vrot.slane %v5119, 6
      %v5178 = vsel %vm5153, %v5175, %v5177
      %v5179 = vrot.slane %v5120, 6
      %v5180 = vrot.slane %v5121, 6
      %v5181 = vsel %vm5153, %v5179, %v5180
      %v5182 = vrot.slane %v5122, 6
      %v5183 = vsel %vm5153, %v5180, %v5182
      %v5184 = vrot.slane %v5123, 6
      %v5185 = vrot.slane %v5124, 6
      %v5186 = vsel %vm5153, %v5184, %v5185
      %v5187 = vrot.slane %v5125, 6
      %v5188 = vsel %vm5153, %v5185, %v5187
      %v5189 = vrot.slane %v5126, 6
      %v5190 = vrot.slane %v5127, 6
      %v5191 = vsel %vm5153, %v5189, %v5190
      %v5192 = vrot.slane %v5128, 6
      %v5193 = vsel %vm5153, %v5190, %v5192
      %v5210 = vadd.f32 %v5085, %v5156
      %v5211 = vadd.f32 %v5086, %v5158
      %v5212 = vadd.f32 %v5087, %v5161
      %v5213 = vadd.f32 %v5088, %v5163
      %v5214 = vadd.f32 %v5089, %v5166
      %v5215 = vadd.f32 %v5090, %v5168
      %v5216 = vadd.f32 %v5091, %v5171
      %v5217 = vadd.f32 %v5092, %v5173
      %v5218 = vadd.f32 %v5093, %v5176
      %v5219 = vadd.f32 %v5094, %v5178
      %v5220 = vadd.f32 %v5095, %v5181
      %v5221 = vadd.f32 %v5096, %v5183
      %v5222 = vadd.f32 %v5097, %v5186
      %v5223 = vadd.f32 %v5098, %v5188
      %v5224 = vadd.f32 %v5099, %v5191
      %v5225 = vadd.f32 %v5100, %v5193
      %v5226 = vlaneseq
      %v5227 = vshrl.u32 %v5226, 7
      %v5228 = vsub.s32 6, %v5227
      %v5229 = vrot.slane %v454, %v5228
      %v5230 = vmul.f32 %v465, %v5229
      %v5231 = vmul.f32 %v466, %v5229
      %v5232 = vmul.f32 %v467, %v5229
      %v5233 = vmul.f32 %v468, %v5229
      %v5234 = vmul.f32 %v469, %v5229
      %v5235 = vmul.f32 %v470, %v5229
      %v5236 = vmul.f32 %v471, %v5229
      %v5237 = vmul.f32 %v472, %v5229
      %v5238 = vmul.f32 %v473, %v5229
      %v5239 = vmul.f32 %v474, %v5229
      %v5240 = vmul.f32 %v475, %v5229
      %v5241 = vmul.f32 %v476, %v5229
      %v5242 = vmul.f32 %v477, %v5229
      %v5243 = vmul.f32 %v478, %v5229
      %v5244 = vmul.f32 %v479, %v5229
      %v5245 = vmul.f32 %v480, %v5229
      %v5246 = vmul.f32 %v481, %v5229
      %v5247 = vmul.f32 %v482, %v5229
      %v5248 = vmul.f32 %v483, %v5229
      %v5249 = vmul.f32 %v484, %v5229
      %v5250 = vmul.f32 %v485, %v5229
      %v5251 = vmul.f32 %v486, %v5229
      %v5252 = vmul.f32 %v487, %v5229
      %v5253 = vmul.f32 %v488, %v5229
      %v5278 = vrot.slane %v5230, 6
      %v5279 = vrot.slane %v5231, 6
      %v5280 = vsel %vm5153, %v5278, %v5279
      %v5281 = vrot.slane %v5232, 6
      %v5282 = vsel %vm5153, %v5279, %v5281
      %v5283 = vrot.slane %v5233, 6
      %v5284 = vrot.slane %v5234, 6
      %v5285 = vsel %vm5153, %v5283, %v5284
      %v5286 = vrot.slane %v5235, 6
      %v5287 = vsel %vm5153, %v5284, %v5286
      %v5288 = vrot.slane %v5236, 6
      %v5289 = vrot.slane %v5237, 6
      %v5290 = vsel %vm5153, %v5288, %v5289
      %v5291 = vrot.slane %v5238, 6
      %v5292 = vsel %vm5153, %v5289, %v5291
      %v5293 = vrot.slane %v5239, 6
      %v5294 = vrot.slane %v5240, 6
      %v5295 = vsel %vm5153, %v5293, %v5294
      %v5296 = vrot.slane %v5241, 6
      %v5297 = vsel %vm5153, %v5294, %v5296
      %v5298 = vrot.slane %v5242, 6
      %v5299 = vrot.slane %v5243, 6
      %v5300 = vsel %vm5153, %v5298, %v5299
      %v5301 = vrot.slane %v5244, 6
      %v5302 = vsel %vm5153, %v5299, %v5301
      %v5303 = vrot.slane %v5245, 6
      %v5304 = vrot.slane %v5246, 6
      %v5305 = vsel %vm5153, %v5303, %v5304
      %v5306 = vrot.slane %v5247, 6
      %v5307 = vsel %vm5153, %v5304, %v5306
      %v5308 = vrot.slane %v5248, 6
      %v5309 = vrot.slane %v5249, 6
      %v5310 = vsel %vm5153, %v5308, %v5309
      %v5311 = vrot.slane %v5250, 6
      %v5312 = vsel %vm5153, %v5309, %v5311
      %v5313 = vrot.slane %v5251, 6
      %v5314 = vrot.slane %v5252, 6
      %v5315 = vsel %vm5153, %v5313, %v5314
      %v5316 = vrot.slane %v5253, 6
      %v5317 = vsel %vm5153, %v5314, %v5316
      %v5334 = vadd.f32 %v5210, %v5280
      %v5335 = vadd.f32 %v5211, %v5282
      %v5336 = vadd.f32 %v5212, %v5285
      %v5337 = vadd.f32 %v5213, %v5287
      %v5338 = vadd.f32 %v5214, %v5290
      %v5339 = vadd.f32 %v5215, %v5292
      %v5340 = vadd.f32 %v5216, %v5295
      %v5341 = vadd.f32 %v5217, %v5297
      %v5342 = vadd.f32 %v5218, %v5300
      %v5343 = vadd.f32 %v5219, %v5302
      %v5344 = vadd.f32 %v5220, %v5305
      %v5345 = vadd.f32 %v5221, %v5307
      %v5346 = vadd.f32 %v5222, %v5310
      %v5347 = vadd.f32 %v5223, %v5312
      %v5348 = vadd.f32 %v5224, %v5315
      %v5349 = vadd.f32 %v5225, %v5317
      %v5350 = vlaneseq
      %v5351 = vshrl.u32 %v5350, 7
      %v5352 = vsub.s32 6, %v5351
      %v5353 = vrot.slane %v455, %v5352
      %v5354 = vmul.f32 %v468, %v5353
      %v5355 = vmul.f32 %v469, %v5353
      %v5356 = vmul.f32 %v470, %v5353
      %v5357 = vmul.f32 %v471, %v5353
      %v5358 = vmul.f32 %v472, %v5353
      %v5359 = vmul.f32 %v473, %v5353
      %v5360 = vmul.f32 %v474, %v5353
      %v5361 = vmul.f32 %v475, %v5353
      %v5362 = vmul.f32 %v476, %v5353
      %v5363 = vmul.f32 %v477, %v5353
      %v5364 = vmul.f32 %v478, %v5353
      %v5365 = vmul.f32 %v479, %v5353
      %v5366 = vmul.f32 %v480, %v5353
      %v5367 = vmul.f32 %v481, %v5353
      %v5368 = vmul.f32 %v482, %v5353
      %v5369 = vmul.f32 %v483, %v5353
      %v5370 = vmul.f32 %v484, %v5353
      %v5371 = vmul.f32 %v485, %v5353
      %v5372 = vmul.f32 %v486, %v5353
      %v5373 = vmul.f32 %v487, %v5353
      %v5374 = vmul.f32 %v488, %v5353
      %v5375 = vmul.f32 %v489, %v5353
      %v5376 = vmul.f32 %v490, %v5353
      %v5377 = vmul.f32 %v491, %v5353
      %v5402 = vrot.slane %v5354, 6
      %v5403 = vrot.slane %v5355, 6
      %v5404 = vsel %vm5153, %v5402, %v5403
      %v5405 = vrot.slane %v5356, 6
      %v5406 = vsel %vm5153, %v5403, %v5405
      %v5407 = vrot.slane %v5357, 6
      %v5408 = vrot.slane %v5358, 6
      %v5409 = vsel %vm5153, %v5407, %v5408
      %v5410 = vrot.slane %v5359, 6
      %v5411 = vsel %vm5153, %v5408, %v5410
      %v5412 = vrot.slane %v5360, 6
      %v5413 = vrot.slane %v5361, 6
      %v5414 = vsel %vm5153, %v5412, %v5413
      %v5415 = vrot.slane %v5362, 6
      %v5416 = vsel %vm5153, %v5413, %v5415
      %v5417 = vrot.slane %v5363, 6
      %v5418 = vrot.slane %v5364, 6
      %v5419 = vsel %vm5153, %v5417, %v5418
      %v5420 = vrot.slane %v5365, 6
      %v5421 = vsel %vm5153, %v5418, %v5420
      %v5422 = vrot.slane %v5366, 6
      %v5423 = vrot.slane %v5367, 6
      %v5424 = vsel %vm5153, %v5422, %v5423
      %v5425 = vrot.slane %v5368, 6
      %v5426 = vsel %vm5153, %v5423, %v5425
      %v5427 = vrot.slane %v5369, 6
      %v5428 = vrot.slane %v5370, 6
      %v5429 = vsel %vm5153, %v5427, %v5428
      %v5430 = vrot.slane %v5371, 6
      %v5431 = vsel %vm5153, %v5428, %v5430
      %v5432 = vrot.slane %v5372, 6
      %v5433 = vrot.slane %v5373, 6
      %v5434 = vsel %vm5153, %v5432, %v5433
      %v5435 = vrot.slane %v5374, 6
      %v5436 = vsel %vm5153, %v5433, %v5435
      %v5437 = vrot.slane %v5375, 6
      %v5438 = vrot.slane %v5376, 6
      %v5439 = vsel %vm5153, %v5437, %v5438
      %v5440 = vrot.slane %v5377, 6
      %v5441 = vsel %vm5153, %v5438, %v5440
      %v5458 = vadd.f32 %v5334, %v5404
      %v5459 = vadd.f32 %v5335, %v5406
      %v5460 = vadd.f32 %v5336, %v5409
      %v5461 = vadd.f32 %v5337, %v5411
      %v5462 = vadd.f32 %v5338, %v5414
      %v5463 = vadd.f32 %v5339, %v5416
      %v5464 = vadd.f32 %v5340, %v5419
      %v5465 = vadd.f32 %v5341, %v5421
      %v5466 = vadd.f32 %v5342, %v5424
      %v5467 = vadd.f32 %v5343, %v5426
      %v5468 = vadd.f32 %v5344, %v5429
      %v5469 = vadd.f32 %v5345, %v5431
      %v5470 = vadd.f32 %v5346, %v5434
      %v5471 = vadd.f32 %v5347, %v5436
      %v5472 = vadd.f32 %v5348, %v5439
      %v5473 = vadd.f32 %v5349, %v5441
      %v5474 = vlaneseq
      %v5475 = vshrl.u32 %v5474, 7
      %v5476 = vsub.s32 6, %v5475
      %v5477 = vrot.slane %v456, %v5476
      %v5478 = vmul.f32 %v471, %v5477
      %v5479 = vmul.f32 %v472, %v5477
      %v5480 = vmul.f32 %v473, %v5477
      %v5481 = vmul.f32 %v474, %v5477
      %v5482 = vmul.f32 %v475, %v5477
      %v5483 = vmul.f32 %v476, %v5477
      %v5484 = vmul.f32 %v477, %v5477
      %v5485 = vmul.f32 %v478, %v5477
      %v5486 = vmul.f32 %v479, %v5477
      %v5487 = vmul.f32 %v480, %v5477
      %v5488 = vmul.f32 %v481, %v5477
      %v5489 = vmul.f32 %v482, %v5477
      %v5490 = vmul.f32 %v483, %v5477
      %v5491 = vmul.f32 %v484, %v5477
      %v5492 = vmul.f32 %v485, %v5477
      %v5493 = vmul.f32 %v486, %v5477
      %v5494 = vmul.f32 %v487, %v5477
      %v5495 = vmul.f32 %v488, %v5477
      %v5496 = vmul.f32 %v489, %v5477
      %v5497 = vmul.f32 %v490, %v5477
      %v5498 = vmul.f32 %v491, %v5477
      %v5499 = vmul.f32 %v492, %v5477
      %v5500 = vmul.f32 %v493, %v5477
      %v5501 = vmul.f32 %v494, %v5477
      %v5526 = vrot.slane %v5478, 6
      %v5527 = vrot.slane %v5479, 6
      %v5528 = vsel %vm5153, %v5526, %v5527
      %v5529 = vrot.slane %v5480, 6
      %v5530 = vsel %vm5153, %v5527, %v5529
      %v5531 = vrot.slane %v5481, 6
      %v5532 = vrot.slane %v5482, 6
      %v5533 = vsel %vm5153, %v5531, %v5532
      %v5534 = vrot.slane %v5483, 6
      %v5535 = vsel %vm5153, %v5532, %v5534
      %v5536 = vrot.slane %v5484, 6
      %v5537 = vrot.slane %v5485, 6
      %v5538 = vsel %vm5153, %v5536, %v5537
      %v5539 = vrot.slane %v5486, 6
      %v5540 = vsel %vm5153, %v5537, %v5539
      %v5541 = vrot.slane %v5487, 6
      %v5542 = vrot.slane %v5488, 6
      %v5543 = vsel %vm5153, %v5541, %v5542
      %v5544 = vrot.slane %v5489, 6
      %v5545 = vsel %vm5153, %v5542, %v5544
      %v5546 = vrot.slane %v5490, 6
      %v5547 = vrot.slane %v5491, 6
      %v5548 = vsel %vm5153, %v5546, %v5547
      %v5549 = vrot.slane %v5492, 6
      %v5550 = vsel %vm5153, %v5547, %v5549
      %v5551 = vrot.slane %v5493, 6
      %v5552 = vrot.slane %v5494, 6
      %v5553 = vsel %vm5153, %v5551, %v5552
      %v5554 = vrot.slane %v5495, 6
      %v5555 = vsel %vm5153, %v5552, %v5554
      %v5556 = vrot.slane %v5496, 6
      %v5557 = vrot.slane %v5497, 6
      %v5558 = vsel %vm5153, %v5556, %v5557
      %v5559 = vrot.slane %v5498, 6
      %v5560 = vsel %vm5153, %v5557, %v5559
      %v5561 = vrot.slane %v5499, 6
      %v5562 = vrot.slane %v5500, 6
      %v5563 = vsel %vm5153, %v5561, %v5562
      %v5564 = vrot.slane %v5501, 6
      %v5565 = vsel %vm5153, %v5562, %v5564
      %v5582 = vadd.f32 %v5458, %v5528
      %v5583 = vadd.f32 %v5459, %v5530
      %v5584 = vadd.f32 %v5460, %v5533
      %v5585 = vadd.f32 %v5461, %v5535
      %v5586 = vadd.f32 %v5462, %v5538
      %v5587 = vadd.f32 %v5463, %v5540
      %v5588 = vadd.f32 %v5464, %v5543
      %v5589 = vadd.f32 %v5465, %v5545
      %v5590 = vadd.f32 %v5466, %v5548
      %v5591 = vadd.f32 %v5467, %v5550
      %v5592 = vadd.f32 %v5468, %v5553
      %v5593 = vadd.f32 %v5469, %v5555
      %v5594 = vadd.f32 %v5470, %v5558
      %v5595 = vadd.f32 %v5471, %v5560
      %v5596 = vadd.f32 %v5472, %v5563
      %v5597 = vadd.f32 %v5473, %v5565
      %v5598 = vlaneseq
      %v5599 = vshrl.u32 %v5598, 7
      %v5600 = vsub.s32 6, %v5599
      %v5601 = vrot.slane %v457, %v5600
      %v5602 = vmul.f32 %v474, %v5601
      %v5603 = vmul.f32 %v475, %v5601
      %v5604 = vmul.f32 %v476, %v5601
      %v5605 = vmul.f32 %v477, %v5601
      %v5606 = vmul.f32 %v478, %v5601
      %v5607 = vmul.f32 %v479, %v5601
      %v5608 = vmul.f32 %v480, %v5601
      %v5609 = vmul.f32 %v481, %v5601
      %v5610 = vmul.f32 %v482, %v5601
      %v5611 = vmul.f32 %v483, %v5601
      %v5612 = vmul.f32 %v484, %v5601
      %v5613 = vmul.f32 %v485, %v5601
      %v5614 = vmul.f32 %v486, %v5601
      %v5615 = vmul.f32 %v487, %v5601
      %v5616 = vmul.f32 %v488, %v5601
      %v5617 = vmul.f32 %v489, %v5601
      %v5618 = vmul.f32 %v490, %v5601
      %v5619 = vmul.f32 %v491, %v5601
      %v5620 = vmul.f32 %v492, %v5601
      %v5621 = vmul.f32 %v493, %v5601
      %v5622 = vmul.f32 %v494, %v5601
      %v5623 = vmul.f32 %v495, %v5601
      %v5624 = vmul.f32 %v496, %v5601
      %v5625 = vmul.f32 %v497, %v5601
      %v5650 = vrot.slane %v5602, 6
      %v5651 = vrot.slane %v5603, 6
      %v5652 = vsel %vm5153, %v5650, %v5651
      %v5653 = vrot.slane %v5604, 6
      %v5654 = vsel %vm5153, %v5651, %v5653
      %v5655 = vrot.slane %v5605, 6
      %v5656 = vrot.slane %v5606, 6
      %v5657 = vsel %vm5153, %v5655, %v5656
      %v5658 = vrot.slane %v5607, 6
      %v5659 = vsel %vm5153, %v5656, %v5658
      %v5660 = vrot.slane %v5608, 6
      %v5661 = vrot.slane %v5609, 6
      %v5662 = vsel %vm5153, %v5660, %v5661
      %v5663 = vrot.slane %v5610, 6
      %v5664 = vsel %vm5153, %v5661, %v5663
      %v5665 = vrot.slane %v5611, 6
      %v5666 = vrot.slane %v5612, 6
      %v5667 = vsel %vm5153, %v5665, %v5666
      %v5668 = vrot.slane %v5613, 6
      %v5669 = vsel %vm5153, %v5666, %v5668
      %v5670 = vrot.slane %v5614, 6
      %v5671 = vrot.slane %v5615, 6
      %v5672 = vsel %vm5153, %v5670, %v5671
      %v5673 = vrot.slane %v5616, 6
      %v5674 = vsel %vm5153, %v5671, %v5673
      %v5675 = vrot.slane %v5617, 6
      %v5676 = vrot.slane %v5618, 6
      %v5677 = vsel %vm5153, %v5675, %v5676
      %v5678 = vrot.slane %v5619, 6
      %v5679 = vsel %vm5153, %v5676, %v5678
      %v5680 = vrot.slane %v5620, 6
      %v5681 = vrot.slane %v5621, 6
      %v5682 = vsel %vm5153, %v5680, %v5681
      %v5683 = vrot.slane %v5622, 6
      %v5684 = vsel %vm5153, %v5681, %v5683
      %v5685 = vrot.slane %v5623, 6
      %v5686 = vrot.slane %v5624, 6
      %v5687 = vsel %vm5153, %v5685, %v5686
      %v5688 = vrot.slane %v5625, 6
      %v5689 = vsel %vm5153, %v5686, %v5688
      %v5706 = vadd.f32 %v5582, %v5652
      %v5707 = vadd.f32 %v5583, %v5654
      %v5708 = vadd.f32 %v5584, %v5657
      %v5709 = vadd.f32 %v5585, %v5659
      %v5710 = vadd.f32 %v5586, %v5662
      %v5711 = vadd.f32 %v5587, %v5664
      %v5712 = vadd.f32 %v5588, %v5667
      %v5713 = vadd.f32 %v5589, %v5669
      %v5714 = vadd.f32 %v5590, %v5672
      %v5715 = vadd.f32 %v5591, %v5674
      %v5716 = vadd.f32 %v5592, %v5677
      %v5717 = vadd.f32 %v5593, %v5679
      %v5718 = vadd.f32 %v5594, %v5682
      %v5719 = vadd.f32 %v5595, %v5684
      %v5720 = vadd.f32 %v5596, %v5687
      %v5721 = vadd.f32 %v5597, %v5689
      %v5722 = vlaneseq
      %v5723 = vshrl.u32 %v5722, 7
      %v5724 = vsub.s32 6, %v5723
      %v5725 = vrot.slane %v458, %v5724
      %v5726 = vmul.f32 %v477, %v5725
      %v5727 = vmul.f32 %v478, %v5725
      %v5728 = vmul.f32 %v479, %v5725
      %v5729 = vmul.f32 %v480, %v5725
      %v5730 = vmul.f32 %v481, %v5725
      %v5731 = vmul.f32 %v482, %v5725
      %v5732 = vmul.f32 %v483, %v5725
      %v5733 = vmul.f32 %v484, %v5725
      %v5734 = vmul.f32 %v485, %v5725
      %v5735 = vmul.f32 %v486, %v5725
      %v5736 = vmul.f32 %v487, %v5725
      %v5737 = vmul.f32 %v488, %v5725
      %v5738 = vmul.f32 %v489, %v5725
      %v5739 = vmul.f32 %v490, %v5725
      %v5740 = vmul.f32 %v491, %v5725
      %v5741 = vmul.f32 %v492, %v5725
      %v5742 = vmul.f32 %v493, %v5725
      %v5743 = vmul.f32 %v494, %v5725
      %v5744 = vmul.f32 %v495, %v5725
      %v5745 = vmul.f32 %v496, %v5725
      %v5746 = vmul.f32 %v497, %v5725
      %v5747 = vmul.f32 %v498, %v5725
      %v5748 = vmul.f32 %v499, %v5725
      %v5749 = vmul.f32 %v500, %v5725
      %v5774 = vrot.slane %v5726, 6
      %v5775 = vrot.slane %v5727, 6
      %v5776 = vsel %vm5153, %v5774, %v5775
      %v5777 = vrot.slane %v5728, 6
      %v5778 = vsel %vm5153, %v5775, %v5777
      %v5779 = vrot.slane %v5729, 6
      %v5780 = vrot.slane %v5730, 6
      %v5781 = vsel %vm5153, %v5779, %v5780
      %v5782 = vrot.slane %v5731, 6
      %v5783 = vsel %vm5153, %v5780, %v5782
      %v5784 = vrot.slane %v5732, 6
      %v5785 = vrot.slane %v5733, 6
      %v5786 = vsel %vm5153, %v5784, %v5785
      %v5787 = vrot.slane %v5734, 6
      %v5788 = vsel %vm5153, %v5785, %v5787
      %v5789 = vrot.slane %v5735, 6
      %v5790 = vrot.slane %v5736, 6
      %v5791 = vsel %vm5153, %v5789, %v5790
      %v5792 = vrot.slane %v5737, 6
      %v5793 = vsel %vm5153, %v5790, %v5792
      %v5794 = vrot.slane %v5738, 6
      %v5795 = vrot.slane %v5739, 6
      %v5796 = vsel %vm5153, %v5794, %v5795
      %v5797 = vrot.slane %v5740, 6
      %v5798 = vsel %vm5153, %v5795, %v5797
      %v5799 = vrot.slane %v5741, 6
      %v5800 = vrot.slane %v5742, 6
      %v5801 = vsel %vm5153, %v5799, %v5800
      %v5802 = vrot.slane %v5743, 6
      %v5803 = vsel %vm5153, %v5800, %v5802
      %v5804 = vrot.slane %v5744, 6
      %v5805 = vrot.slane %v5745, 6
      %v5806 = vsel %vm5153, %v5804, %v5805
      %v5807 = vrot.slane %v5746, 6
      %v5808 = vsel %vm5153, %v5805, %v5807
      %v5809 = vrot.slane %v5747, 6
      %v5810 = vrot.slane %v5748, 6
      %v5811 = vsel %vm5153, %v5809, %v5810
      %v5812 = vrot.slane %v5749, 6
      %v5813 = vsel %vm5153, %v5810, %v5812
      %v5830 = vadd.f32 %v5706, %v5776
      %v5831 = vadd.f32 %v5707, %v5778
      %v5832 = vadd.f32 %v5708, %v5781
      %v5833 = vadd.f32 %v5709, %v5783
      %v5834 = vadd.f32 %v5710, %v5786
      %v5835 = vadd.f32 %v5711, %v5788
      %v5836 = vadd.f32 %v5712, %v5791
      %v5837 = vadd.f32 %v5713, %v5793
      %v5838 = vadd.f32 %v5714, %v5796
      %v5839 = vadd.f32 %v5715, %v5798
      %v5840 = vadd.f32 %v5716, %v5801
      %v5841 = vadd.f32 %v5717, %v5803
      %v5842 = vadd.f32 %v5718, %v5806
      %v5843 = vadd.f32 %v5719, %v5808
      %v5844 = vadd.f32 %v5720, %v5811
      %v5845 = vadd.f32 %v5721, %v5813
      %v5846 = vlaneseq
      %v5847 = vshrl.u32 %v5846, 7
      %v5848 = vsub.s32 6, %v5847
      %v5849 = vrot.slane %v459, %v5848
      %v5850 = vmul.f32 %v480, %v5849
      %v5851 = vmul.f32 %v481, %v5849
      %v5852 = vmul.f32 %v482, %v5849
      %v5853 = vmul.f32 %v483, %v5849
      %v5854 = vmul.f32 %v484, %v5849
      %v5855 = vmul.f32 %v485, %v5849
      %v5856 = vmul.f32 %v486, %v5849
      %v5857 = vmul.f32 %v487, %v5849
      %v5858 = vmul.f32 %v488, %v5849
      %v5859 = vmul.f32 %v489, %v5849
      %v5860 = vmul.f32 %v490, %v5849
      %v5861 = vmul.f32 %v491, %v5849
      %v5862 = vmul.f32 %v492, %v5849
      %v5863 = vmul.f32 %v493, %v5849
      %v5864 = vmul.f32 %v494, %v5849
      %v5865 = vmul.f32 %v495, %v5849
      %v5866 = vmul.f32 %v496, %v5849
      %v5867 = vmul.f32 %v497, %v5849
      %v5868 = vmul.f32 %v498, %v5849
      %v5869 = vmul.f32 %v499, %v5849
      %v5870 = vmul.f32 %v500, %v5849
      %v5871 = vmul.f32 %v501, %v5849
      %v5872 = vmul.f32 %v502, %v5849
      %v5873 = vmul.f32 %v503, %v5849
      %v5898 = vrot.slane %v5850, 6
      %v5899 = vrot.slane %v5851, 6
      %v5900 = vsel %vm5153, %v5898, %v5899
      %v5901 = vrot.slane %v5852, 6
      %v5902 = vsel %vm5153, %v5899, %v5901
      %v5903 = vrot.slane %v5853, 6
      %v5904 = vrot.slane %v5854, 6
      %v5905 = vsel %vm5153, %v5903, %v5904
      %v5906 = vrot.slane %v5855, 6
      %v5907 = vsel %vm5153, %v5904, %v5906
      %v5908 = vrot.slane %v5856, 6
      %v5909 = vrot.slane %v5857, 6
      %v5910 = vsel %vm5153, %v5908, %v5909
      %v5911 = vrot.slane %v5858, 6
      %v5912 = vsel %vm5153, %v5909, %v5911
      %v5913 = vrot.slane %v5859, 6
      %v5914 = vrot.slane %v5860, 6
      %v5915 = vsel %vm5153, %v5913, %v5914
      %v5916 = vrot.slane %v5861, 6
      %v5917 = vsel %vm5153, %v5914, %v5916
      %v5918 = vrot.slane %v5862, 6
      %v5919 = vrot.slane %v5863, 6
      %v5920 = vsel %vm5153, %v5918, %v5919
      %v5921 = vrot.slane %v5864, 6
      %v5922 = vsel %vm5153, %v5919, %v5921
      %v5923 = vrot.slane %v5865, 6
      %v5924 = vrot.slane %v5866, 6
      %v5925 = vsel %vm5153, %v5923, %v5924
      %v5926 = vrot.slane %v5867, 6
      %v5927 = vsel %vm5153, %v5924, %v5926
      %v5928 = vrot.slane %v5868, 6
      %v5929 = vrot.slane %v5869, 6
      %v5930 = vsel %vm5153, %v5928, %v5929
      %v5931 = vrot.slane %v5870, 6
      %v5932 = vsel %vm5153, %v5929, %v5931
      %v5933 = vrot.slane %v5871, 6
      %v5934 = vrot.slane %v5872, 6
      %v5935 = vsel %vm5153, %v5933, %v5934
      %v5936 = vrot.slane %v5873, 6
      %v5937 = vsel %vm5153, %v5934, %v5936
      %v5954 = vadd.f32 %v5830, %v5900
      %v5955 = vadd.f32 %v5831, %v5902
      %v5956 = vadd.f32 %v5832, %v5905
      %v5957 = vadd.f32 %v5833, %v5907
      %v5958 = vadd.f32 %v5834, %v5910
      %v5959 = vadd.f32 %v5835, %v5912
      %v5960 = vadd.f32 %v5836, %v5915
      %v5961 = vadd.f32 %v5837, %v5917
      %v5962 = vadd.f32 %v5838, %v5920
      %v5963 = vadd.f32 %v5839, %v5922
      %v5964 = vadd.f32 %v5840, %v5925
      %v5965 = vadd.f32 %v5841, %v5927
      %v5966 = vadd.f32 %v5842, %v5930
      %v5967 = vadd.f32 %v5843, %v5932
      %v5968 = vadd.f32 %v5844, %v5935
      %v5969 = vadd.f32 %v5845, %v5937
      %v5971 = vlaneseq
      %v5972 = vshrl.u32 %v5971, 7
      %v5973 = vsub.s32 0, %v5972
      %v5974 = vrot.slane %v460, %v5973
      %v5976 = vadd.f32 %v5954, %v5974
      %v5977 = vadd.f32 %v5955, %v5974
      %v5978 = vadd.f32 %v5956, %v5974
      %v5979 = vadd.f32 %v5957, %v5974
      %v5980 = vadd.f32 %v5958, %v5974
      %v5981 = vadd.f32 %v5959, %v5974
      %v5982 = vadd.f32 %v5960, %v5974
      %v5983 = vadd.f32 %v5961, %v5974
      %v5984 = vadd.f32 %v5962, %v5974
      %v5985 = vadd.f32 %v5963, %v5974
      %v5986 = vadd.f32 %v5964, %v5974
      %v5987 = vadd.f32 %v5965, %v5974
      %v5988 = vadd.f32 %v5966, %v5974
      %v5989 = vadd.f32 %v5967, %v5974
      %v5990 = vadd.f32 %v5968, %v5974
      %v5991 = vadd.f32 %v5969, %v5974
      %v5992 = vsel %vm334, %v5976, 0.0
      %5993 = vadd.xlane.f32.xlu0 %v5992
      %v5994 = vpop.xlane.xlu0 %5993
      %v5995 = vsel %vm334, %v5977, 0.0
      %5996 = vadd.xlane.f32.xlu0 %v5995
      %v5997 = vpop.xlane.xlu0 %5996
      %v5998 = vsel %vm334, %v5978, 0.0
      %5999 = vadd.xlane.f32.xlu0 %v5998
      %v6000 = vpop.xlane.xlu0 %5999
      %v6001 = vsel %vm334, %v5979, 0.0
      %6002 = vadd.xlane.f32.xlu0 %v6001
      %v6003 = vpop.xlane.xlu0 %6002
      %v6004 = vsel %vm334, %v5980, 0.0
      %6005 = vadd.xlane.f32.xlu0 %v6004
      %v6006 = vpop.xlane.xlu0 %6005
      %v6007 = vsel %vm334, %v5981, 0.0
      %6008 = vadd.xlane.f32.xlu0 %v6007
      %v6009 = vpop.xlane.xlu0 %6008
      %v6010 = vsel %vm334, %v5982, 0.0
      %6011 = vadd.xlane.f32.xlu0 %v6010
      %v6012 = vpop.xlane.xlu0 %6011
      %v6013 = vsel %vm334, %v5983, 0.0
      %6014 = vadd.xlane.f32.xlu0 %v6013
      %v6015 = vpop.xlane.xlu0 %6014
      %v6016 = vsel %vm334, %v5984, 0.0
      %6017 = vadd.xlane.f32.xlu0 %v6016
      %v6018 = vpop.xlane.xlu0 %6017
      %v6019 = vsel %vm334, %v5985, 0.0
      %6020 = vadd.xlane.f32.xlu0 %v6019
      %v6021 = vpop.xlane.xlu0 %6020
      %v6022 = vsel %vm334, %v5986, 0.0
      %6023 = vadd.xlane.f32.xlu0 %v6022
      %v6024 = vpop.xlane.xlu0 %6023
      %v6025 = vsel %vm334, %v5987, 0.0
      %6026 = vadd.xlane.f32.xlu0 %v6025
      %v6027 = vpop.xlane.xlu0 %6026
      %v6028 = vsel %vm334, %v5988, 0.0
      %6029 = vadd.xlane.f32.xlu0 %v6028
      %v6030 = vpop.xlane.xlu0 %6029
      %v6031 = vsel %vm334, %v5989, 0.0
      %6032 = vadd.xlane.f32.xlu0 %v6031
      %v6033 = vpop.xlane.xlu0 %6032
      %v6034 = vsel %vm334, %v5990, 0.0
      %6035 = vadd.xlane.f32.xlu0 %v6034
      %v6036 = vpop.xlane.xlu0 %6035
      %v6037 = vsel %vm334, %v5991, 0.0
      %6038 = vadd.xlane.f32.xlu0 %v6037
      %v6039 = vpop.xlane.xlu0 %6038
      %v6040 = vmul.f32 %v5994, 0.25
      %v6041 = vmul.f32 %v5997, 0.25
      %v6042 = vmul.f32 %v6000, 0.25
      %v6043 = vmul.f32 %v6003, 0.25
      %v6044 = vmul.f32 %v6006, 0.25
      %v6045 = vmul.f32 %v6009, 0.25
      %v6046 = vmul.f32 %v6012, 0.25
      %v6047 = vmul.f32 %v6015, 0.25
      %v6048 = vmul.f32 %v6018, 0.25
      %v6049 = vmul.f32 %v6021, 0.25
      %v6050 = vmul.f32 %v6024, 0.25
      %v6051 = vmul.f32 %v6027, 0.25
      %v6052 = vmul.f32 %v6030, 0.25
      %v6053 = vmul.f32 %v6033, 0.25
      %v6054 = vmul.f32 %v6036, 0.25
      %v6055 = vmul.f32 %v6039, 0.25
      %v6056 = vsub.f32 %v5976, %v6040
      %v6057 = vsub.f32 %v5977, %v6041
      %v6058 = vsub.f32 %v5978, %v6042
      %v6059 = vsub.f32 %v5979, %v6043
      %v6060 = vsub.f32 %v5980, %v6044
      %v6061 = vsub.f32 %v5981, %v6045
      %v6062 = vsub.f32 %v5982, %v6046
      %v6063 = vsub.f32 %v5983, %v6047
      %v6064 = vsub.f32 %v5984, %v6048
      %v6065 = vsub.f32 %v5985, %v6049
      %v6066 = vsub.f32 %v5986, %v6050
      %v6067 = vsub.f32 %v5987, %v6051
      %v6068 = vsub.f32 %v5988, %v6052
      %v6069 = vsub.f32 %v5989, %v6053
      %v6070 = vsub.f32 %v5990, %v6054
      %v6071 = vsub.f32 %v5991, %v6055
      %v6072 = vmul.f32 %v6056, %v6056
      %v6073 = vmul.f32 %v6057, %v6057
      %v6074 = vmul.f32 %v6058, %v6058
      %v6075 = vmul.f32 %v6059, %v6059
      %v6076 = vmul.f32 %v6060, %v6060
      %v6077 = vmul.f32 %v6061, %v6061
      %v6078 = vmul.f32 %v6062, %v6062
      %v6079 = vmul.f32 %v6063, %v6063
      %v6080 = vmul.f32 %v6064, %v6064
      %v6081 = vmul.f32 %v6065, %v6065
      %v6082 = vmul.f32 %v6066, %v6066
      %v6083 = vmul.f32 %v6067, %v6067
      %v6084 = vmul.f32 %v6068, %v6068
      %v6085 = vmul.f32 %v6069, %v6069
      %v6086 = vmul.f32 %v6070, %v6070
      %v6087 = vmul.f32 %v6071, %v6071
      %v6088 = vsel %vm334, %v6072, 0.0
      %6089 = vadd.xlane.f32.xlu0 %v6088
      %v6090 = vpop.xlane.xlu0 %6089
      %v6091 = vsel %vm334, %v6073, 0.0
      %6092 = vadd.xlane.f32.xlu0 %v6091
      %v6093 = vpop.xlane.xlu0 %6092
      %v6094 = vsel %vm334, %v6074, 0.0
      %6095 = vadd.xlane.f32.xlu0 %v6094
      %v6096 = vpop.xlane.xlu0 %6095
      %v6097 = vsel %vm334, %v6075, 0.0
      %6098 = vadd.xlane.f32.xlu0 %v6097
      %v6099 = vpop.xlane.xlu0 %6098
      %v6100 = vsel %vm334, %v6076, 0.0
      %6101 = vadd.xlane.f32.xlu0 %v6100
      %v6102 = vpop.xlane.xlu0 %6101
      %v6103 = vsel %vm334, %v6077, 0.0
      %6104 = vadd.xlane.f32.xlu0 %v6103
      %v6105 = vpop.xlane.xlu0 %6104
      %v6106 = vsel %vm334, %v6078, 0.0
      %6107 = vadd.xlane.f32.xlu0 %v6106
      %v6108 = vpop.xlane.xlu0 %6107
      %v6109 = vsel %vm334, %v6079, 0.0
      %6110 = vadd.xlane.f32.xlu0 %v6109
      %v6111 = vpop.xlane.xlu0 %6110
      %v6112 = vsel %vm334, %v6080, 0.0
      %6113 = vadd.xlane.f32.xlu0 %v6112
      %v6114 = vpop.xlane.xlu0 %6113
      %v6115 = vsel %vm334, %v6081, 0.0
      %6116 = vadd.xlane.f32.xlu0 %v6115
      %v6117 = vpop.xlane.xlu0 %6116
      %v6118 = vsel %vm334, %v6082, 0.0
      %6119 = vadd.xlane.f32.xlu0 %v6118
      %v6120 = vpop.xlane.xlu0 %6119
      %v6121 = vsel %vm334, %v6083, 0.0
      %6122 = vadd.xlane.f32.xlu0 %v6121
      %v6123 = vpop.xlane.xlu0 %6122
      %v6124 = vsel %vm334, %v6084, 0.0
      %6125 = vadd.xlane.f32.xlu0 %v6124
      %v6126 = vpop.xlane.xlu0 %6125
      %v6127 = vsel %vm334, %v6085, 0.0
      %6128 = vadd.xlane.f32.xlu0 %v6127
      %v6129 = vpop.xlane.xlu0 %6128
      %v6130 = vsel %vm334, %v6086, 0.0
      %6131 = vadd.xlane.f32.xlu0 %v6130
      %v6132 = vpop.xlane.xlu0 %6131
      %v6133 = vsel %vm334, %v6087, 0.0
      %6134 = vadd.xlane.f32.xlu0 %v6133
      %v6135 = vpop.xlane.xlu0 %6134
      %v6136 = vmul.f32 %v6090, 0.25
      %v6137 = vmul.f32 %v6093, 0.25
      %v6138 = vmul.f32 %v6096, 0.25
      %v6139 = vmul.f32 %v6099, 0.25
      %v6140 = vmul.f32 %v6102, 0.25
      %v6141 = vmul.f32 %v6105, 0.25
      %v6142 = vmul.f32 %v6108, 0.25
      %v6143 = vmul.f32 %v6111, 0.25
      %v6144 = vmul.f32 %v6114, 0.25
      %v6145 = vmul.f32 %v6117, 0.25
      %v6146 = vmul.f32 %v6120, 0.25
      %v6147 = vmul.f32 %v6123, 0.25
      %v6148 = vmul.f32 %v6126, 0.25
      %v6149 = vmul.f32 %v6129, 0.25
      %v6150 = vmul.f32 %v6132, 0.25
      %v6151 = vmul.f32 %v6135, 0.25
      %v6152 = vadd.f32 %v6136, 1e-06
      %v6153 = vadd.f32 %v6137, 1e-06
      %v6154 = vadd.f32 %v6138, 1e-06
      %v6155 = vadd.f32 %v6139, 1e-06
      %v6156 = vadd.f32 %v6140, 1e-06
      %v6157 = vadd.f32 %v6141, 1e-06
      %v6158 = vadd.f32 %v6142, 1e-06
      %v6159 = vadd.f32 %v6143, 1e-06
      %v6160 = vadd.f32 %v6144, 1e-06
      %v6161 = vadd.f32 %v6145, 1e-06
      %v6162 = vadd.f32 %v6146, 1e-06
      %v6163 = vadd.f32 %v6147, 1e-06
      %v6164 = vadd.f32 %v6148, 1e-06
      %v6165 = vadd.f32 %v6149, 1e-06
      %v6166 = vadd.f32 %v6150, 1e-06
      %v6167 = vadd.f32 %v6151, 1e-06
      %v6168 = vrsqrt.pop %v6152
      %v6169 = vrsqrt.pop %v6153
      %v6170 = vrsqrt.pop %v6154
      %v6171 = vrsqrt.pop %v6155
      %v6172 = vrsqrt.pop %v6156
      %v6173 = vrsqrt.pop %v6157
      %v6174 = vrsqrt.pop %v6158
      %v6175 = vrsqrt.pop %v6159
      %v6176 = vrsqrt.pop %v6160
      %v6177 = vrsqrt.pop %v6161
      %v6178 = vrsqrt.pop %v6162
      %v6179 = vrsqrt.pop %v6163
      %v6180 = vrsqrt.pop %v6164
      %v6181 = vrsqrt.pop %v6165
      %v6182 = vrsqrt.pop %v6166
      %v6183 = vrsqrt.pop %v6167
      %v6184 = vmul.f32 %v6056, %v6168
      %v6185 = vmul.f32 %v6057, %v6169
      %v6186 = vmul.f32 %v6058, %v6170
      %v6187 = vmul.f32 %v6059, %v6171
      %v6188 = vmul.f32 %v6060, %v6172
      %v6189 = vmul.f32 %v6061, %v6173
      %v6190 = vmul.f32 %v6062, %v6174
      %v6191 = vmul.f32 %v6063, %v6175
      %v6192 = vmul.f32 %v6064, %v6176
      %v6193 = vmul.f32 %v6065, %v6177
      %v6194 = vmul.f32 %v6066, %v6178
      %v6195 = vmul.f32 %v6067, %v6179
      %v6196 = vmul.f32 %v6068, %v6180
      %v6197 = vmul.f32 %v6069, %v6181
      %v6198 = vmul.f32 %v6070, %v6182
      %v6199 = vmul.f32 %v6071, %v6183
      %v6200 = vpack.c.bf16 %v6185, %v6184
      %v6201 = vpack.c.bf16 %v6187, %v6186
      %v6202 = vpack.c.bf16 %v6189, %v6188
      %v6203 = vpack.c.bf16 %v6191, %v6190
      %v6204 = vpack.c.bf16 %v6193, %v6192
      %v6205 = vpack.c.bf16 %v6195, %v6194
      %v6206 = vpack.c.bf16 %v6197, %v6196
      %v6207 = vpack.c.bf16 %v6199, %v6198
      %v6208 = vld [vmem:[%s3] sm:$0x3]
      %v6210 = vlaneseq
      %v6211 = vshrl.u32 %v6210, 7
      %v6212 = vsub.s32 0, %v6211
      %v6213 = vrot.slane %v461, %v6212
      %v6216 = vsel %vm334, %v6200, 0
      %v6219 = vsel %vm334, %v6201, 0
      %v6222 = vsel %vm334, %v6202, 0
      %v6225 = vsel %vm334, %v6203, 0
      %v6228 = vsel %vm334, %v6204, 0
      %v6231 = vsel %vm334, %v6205, 0
      %v6234 = vsel %vm334, %v6206, 0
      %v6237 = vsel %vm334, %v6207, 0
      %v6240 = vsel %vm5153, %v6208, 0
      %6242 = vmatprep.subr.bf16.mxu0 0
      %6243 = vmatpush1.bf16.msra.mxu0 %v6240
      %6244 = vmatprep.subr.bf16.mxu0 0
      %6245 = vmatpush1.bf16.msra.mxu0 0
      %6246 = vmatprep.subr.bf16.mxu0 0
      %6247 = vmatpush1.bf16.msra.mxu0 0
      %6248 = vmatprep.subr.bf16.mxu0 0
      %6249 = vmatpush1.bf16.msra.mxu0 0
      %6250 = vmatprep.subr.bf16.mxu0 0
      %6251 = vmatpush1.bf16.msra.mxu0 0
      %6252 = vmatprep.subr.bf16.mxu0 0
      %6253 = vmatpush1.bf16.msra.mxu0 0
      %6254 = vmatprep.subr.bf16.mxu0 0
      %6255 = vmatpush1.bf16.msra.mxu0 0
      %6256 = vmatprep.subr.bf16.mxu0 0
      %6257 = vmatpush1.bf16.msra.mxu0 0
      %6258 = vmatprep.subr.bf16.mxu0 0
      %6259 = vmatpush1.bf16.msra.mxu0 0
      %6260 = vmatprep.subr.bf16.mxu0 0
      %6261 = vmatpush1.bf16.msra.mxu0 0
      %6262 = vmatprep.subr.bf16.mxu0 0
      %6263 = vmatpush1.bf16.msra.mxu0 0
      %6264 = vmatprep.subr.bf16.mxu0 0
      %6265 = vmatpush1.bf16.msra.mxu0 0
      %6266 = vmatprep.subr.bf16.mxu0 0
      %6267 = vmatpush1.bf16.msra.mxu0 0
      %6268 = vmatprep.subr.bf16.mxu0 0
      %6269 = vmatpush1.bf16.msra.mxu0 0
      %6270 = vmatprep.subr.bf16.mxu0 0
      %6271 = vmatpush1.bf16.msra.mxu0 0
      %6272 = vmatprep.subr.bf16.mxu0 0
      %6273 = vmatpush1.bf16.msra.mxu0 0
      %6274 = vmatprep.mubr.bf16.mxu0 0
      %6275 = vmatmul.mubr.bf16.gmra.mrb[0].mxu0 %v6216
      %v6276 = vpop.f32.mrb[0].mxu0
      %v6277 = vadd.f32 %v6213, %v6276
      %v6278 = vpop.f32.mrb[0].mxu0
      %v6279 = vpop.f32.mrb[0].mxu0
      %v6280 = vadd.f32 %v6213, %v6279
      %v6281 = vpop.f32.mrb[0].mxu0
      %6282 = vmatprep.mubr.bf16.mxu0 0
      %6283 = vmatmul.mubr.bf16.gmra.mrb[0].mxu0 %v6219
      %v6284 = vpop.f32.mrb[0].mxu0
      %v6285 = vadd.f32 %v6213, %v6284
      %v6286 = vpop.f32.mrb[0].mxu0
      %v6287 = vpop.f32.mrb[0].mxu0
      %v6288 = vadd.f32 %v6213, %v6287
      %v6289 = vpop.f32.mrb[0].mxu0
      %6290 = vmatprep.mubr.bf16.mxu0 0
      %6291 = vmatmul.mubr.bf16.gmra.mrb[0].mxu0 %v6222
      %v6292 = vpop.f32.mrb[0].mxu0
      %v6293 = vadd.f32 %v6213, %v6292
      %v6294 = vpop.f32.mrb[0].mxu0
      %v6295 = vpop.f32.mrb[0].mxu0
      %v6296 = vadd.f32 %v6213, %v6295
      %v6297 = vpop.f32.mrb[0].mxu0
      %6298 = vmatprep.mubr.bf16.mxu0 0
      %6299 = vmatmul.mubr.bf16.gmra.mrb[0].mxu0 %v6225
      %v6300 = vpop.f32.mrb[0].mxu0
      %v6301 = vadd.f32 %v6213, %v6300
      %v6302 = vpop.f32.mrb[0].mxu0
      %v6303 = vpop.f32.mrb[0].mxu0
      %v6304 = vadd.f32 %v6213, %v6303
      %v6305 = vpop.f32.mrb[0].mxu0
      %6306 = vmatprep.mubr.bf16.mxu0 0
      %6307 = vmatmul.mubr.bf16.gmra.mrb[0].mxu0 %v6228
      %v6308 = vpop.f32.mrb[0].mxu0
      %v6309 = vadd.f32 %v6213, %v6308
      %v6310 = vpop.f32.mrb[0].mxu0
      %v6311 = vpop.f32.mrb[0].mxu0
      %v6312 = vadd.f32 %v6213, %v6311
      %v6313 = vpop.f32.mrb[0].mxu0
      %6314 = vmatprep.mubr.bf16.mxu0 0
      %6315 = vmatmul.mubr.bf16.gmra.mrb[0].mxu0 %v6231
      %v6316 = vpop.f32.mrb[0].mxu0
      %v6317 = vadd.f32 %v6213, %v6316
      %v6318 = vpop.f32.mrb[0].mxu0
      %v6319 = vpop.f32.mrb[0].mxu0
      %v6320 = vadd.f32 %v6213, %v6319
      %v6321 = vpop.f32.mrb[0].mxu0
      %6322 = vmatprep.mubr.bf16.mxu0 0
      %6323 = vmatmul.mubr.bf16.gmra.mrb[0].mxu0 %v6234
      %v6324 = vpop.f32.mrb[0].mxu0
      %v6325 = vadd.f32 %v6213, %v6324
      %v6326 = vpop.f32.mrb[0].mxu0
      %v6327 = vpop.f32.mrb[0].mxu0
      %v6328 = vadd.f32 %v6213, %v6327
      %v6329 = vpop.f32.mrb[0].mxu0
      %6330 = vmatprep.mubr.bf16.mxu0 0
      %6331 = vmatmul.mubr.bf16.gmra.mrb[0].mxu0 %v6237
      %v6332 = vpop.f32.mrb[0].mxu0
      %v6333 = vadd.f32 %v6213, %v6332
      %v6334 = vpop.f32.mrb[0].mxu0
      %v6335 = vpop.f32.mrb[0].mxu0
      %v6336 = vadd.f32 %v6213, %v6335
      %v6337 = vpop.f32.mrb[0].mxu0
      %6338 = vdwg.mxu0
      %v6339 = vmul.f32 %v6277, 0.5
      %v6340 = vmul.f32 %v6280, 0.5
      %v6341 = vmul.f32 %v6285, 0.5
      %v6342 = vmul.f32 %v6288, 0.5
      %v6343 = vmul.f32 %v6293, 0.5
      %v6344 = vmul.f32 %v6296, 0.5
      %v6345 = vmul.f32 %v6301, 0.5
      %v6346 = vmul.f32 %v6304, 0.5
      %v6347 = vmul.f32 %v6309, 0.5
      %v6348 = vmul.f32 %v6312, 0.5
      %v6349 = vmul.f32 %v6317, 0.5
      %v6350 = vmul.f32 %v6320, 0.5
      %v6351 = vmul.f32 %v6325, 0.5
      %v6352 = vmul.f32 %v6328, 0.5
      %v6353 = vmul.f32 %v6333, 0.5
      %v6354 = vmul.f32 %v6336, 0.5
      %v6355 = vmul.f32 %v6277, 0.70710677
      %v6356 = vmul.f32 %v6280, 0.70710677
      %v6357 = vmul.f32 %v6285, 0.70710677
      %v6358 = vmul.f32 %v6288, 0.70710677
      %v6359 = vmul.f32 %v6293, 0.70710677
      %v6360 = vmul.f32 %v6296, 0.70710677
      %v6361 = vmul.f32 %v6301, 0.70710677
      %v6362 = vmul.f32 %v6304, 0.70710677
      %v6363 = vmul.f32 %v6309, 0.70710677
      %v6364 = vmul.f32 %v6312, 0.70710677
      %v6365 = vmul.f32 %v6317, 0.70710677
      %v6366 = vmul.f32 %v6320, 0.70710677
      %v6367 = vmul.f32 %v6325, 0.70710677
      %v6368 = vmul.f32 %v6328, 0.70710677
      %v6369 = vmul.f32 %v6333, 0.70710677
      %v6370 = vmul.f32 %v6336, 0.70710677
      %v6371 = verf.f32.pop %v6355
      %v6372 = verf.f32.pop %v6356
      %v6373 = verf.f32.pop %v6357
      %v6374 = verf.f32.pop %v6358
      %v6375 = verf.f32.pop %v6359
      %v6376 = verf.f32.pop %v6360
      %v6377 = verf.f32.pop %v6361
      %v6378 = verf.f32.pop %v6362
      %v6379 = verf.f32.pop %v6363
      %v6380 = verf.f32.pop %v6364
      %v6381 = verf.f32.pop %v6365
      %v6382 = verf.f32.pop %v6366
      %v6383 = verf.f32.pop %v6367
      %v6384 = verf.f32.pop %v6368
      %v6385 = verf.f32.pop %v6369
      %v6386 = verf.f32.pop %v6370
      %v6387 = vadd.f32 %v6371, 1.0
      %v6388 = vadd.f32 %v6372, 1.0
      %v6389 = vadd.f32 %v6373, 1.0
      %v6390 = vadd.f32 %v6374, 1.0
      %v6391 = vadd.f32 %v6375, 1.0
      %v6392 = vadd.f32 %v6376, 1.0
      %v6393 = vadd.f32 %v6377, 1.0
      %v6394 = vadd.f32 %v6378, 1.0
      %v6395 = vadd.f32 %v6379, 1.0
      %v6396 = vadd.f32 %v6380, 1.0
      %v6397 = vadd.f32 %v6381, 1.0
      %v6398 = vadd.f32 %v6382, 1.0
      %v6399 = vadd.f32 %v6383, 1.0
      %v6400 = vadd.f32 %v6384, 1.0
      %v6401 = vadd.f32 %v6385, 1.0
      %v6402 = vadd.f32 %v6386, 1.0
      %v6403 = vmul.f32 %v6339, %v6387
      %v6404 = vmul.f32 %v6340, %v6388
      %v6405 = vmul.f32 %v6341, %v6389
      %v6406 = vmul.f32 %v6342, %v6390
      %v6407 = vmul.f32 %v6343, %v6391
      %v6408 = vmul.f32 %v6344, %v6392
      %v6409 = vmul.f32 %v6345, %v6393
      %v6410 = vmul.f32 %v6346, %v6394
      %v6411 = vmul.f32 %v6347, %v6395
      %v6412 = vmul.f32 %v6348, %v6396
      %v6413 = vmul.f32 %v6349, %v6397
      %v6414 = vmul.f32 %v6350, %v6398
      %v6415 = vmul.f32 %v6351, %v6399
      %v6416 = vmul.f32 %v6352, %v6400
      %v6417 = vmul.f32 %v6353, %v6401
      %v6418 = vmul.f32 %v6354, %v6402
      %v6419 = vmul.f32 %v6403, %v6403
      %v6420 = vmul.f32 %v6404, %v6404
      %v6421 = vmul.f32 %v6405, %v6405
      %v6422 = vmul.f32 %v6406, %v6406
      %v6423 = vmul.f32 %v6407, %v6407
      %v6424 = vmul.f32 %v6408, %v6408
      %v6425 = vmul.f32 %v6409, %v6409
      %v6426 = vmul.f32 %v6410, %v6410
      %v6427 = vmul.f32 %v6411, %v6411
      %v6428 = vmul.f32 %v6412, %v6412
      %v6429 = vmul.f32 %v6413, %v6413
      %v6430 = vmul.f32 %v6414, %v6414
      %v6431 = vmul.f32 %v6415, %v6415
      %v6432 = vmul.f32 %v6416, %v6416
      %v6433 = vmul.f32 %v6417, %v6417
      %v6434 = vmul.f32 %v6418, %v6418
      %vm6435 = vcmask 130048
      %v6436 = vsel %vm6435, %v6419, 0.0
      %v6437 = vsel %vm6435, %v6420, 0.0
      %v6438 = vadd.f32 %v6436, %v6437
      %v6439 = vsel %vm6435, %v6421, 0.0
      %v6440 = vadd.f32 %v6438, %v6439
      %v6441 = vsel %vm6435, %v6422, 0.0
      %v6442 = vadd.f32 %v6440, %v6441
      %v6443 = vsel %vm6435, %v6423, 0.0
      %v6444 = vadd.f32 %v6442, %v6443
      %v6445 = vsel %vm6435, %v6424, 0.0
      %v6446 = vadd.f32 %v6444, %v6445
      %v6447 = vsel %vm6435, %v6425, 0.0
      %v6448 = vadd.f32 %v6446, %v6447
      %v6449 = vsel %vm6435, %v6426, 0.0
      %v6450 = vadd.f32 %v6448, %v6449
      %v6451 = vsel %vm6435, %v6427, 0.0
      %v6452 = vadd.f32 %v6450, %v6451
      %v6453 = vsel %vm6435, %v6428, 0.0
      %v6454 = vadd.f32 %v6452, %v6453
      %v6455 = vsel %vm6435, %v6429, 0.0
      %v6456 = vadd.f32 %v6454, %v6455
      %v6457 = vsel %vm6435, %v6430, 0.0
      %v6458 = vadd.f32 %v6456, %v6457
      %v6459 = vsel %vm6435, %v6431, 0.0
      %v6460 = vadd.f32 %v6458, %v6459
      %v6461 = vsel %vm6435, %v6432, 0.0
      %v6462 = vadd.f32 %v6460, %v6461
      %v6463 = vsel %vm6435, %v6433, 0.0
      %v6464 = vadd.f32 %v6462, %v6463
      %v6465 = vsel %vm6435, %v6434, 0.0
      %v6466 = vadd.f32 %v6464, %v6465
      %v6467 = vrot.slane %v6466, 4
      %v6468 = vadd.f32 %v6466, %v6467
      %v6469 = vrot.slane %v6468, 2
      %v6470 = vadd.f32 %v6468, %v6469
      %v6471 = vrot.slane %v6470, 1
      %v6472 = vadd.f32 %v6470, %v6471
      %v6473 = vadd.f32 %v6472, 0.0
      %v6474 = vpack.c.bf16 %v6404, %v6403
      %v6475 = vpack.c.bf16 %v6406, %v6405
      %v6476 = vpack.c.bf16 %v6408, %v6407
      %v6477 = vpack.c.bf16 %v6410, %v6409
      %v6478 = vpack.c.bf16 %v6412, %v6411
      %v6479 = vpack.c.bf16 %v6414, %v6413
      %v6480 = vpack.c.bf16 %v6416, %v6415
      %v6481 = vpack.c.bf16 %v6418, %v6417
      %6482 = vst.msk [vmem:[#allocation3] sm:$0xff] %vm6435, %v6474
      %6483 = vst.msk [vmem:[#allocation3 + $0x8] sm:$0xff] %vm6435, %v6475
      %6484 = vst.msk [vmem:[#allocation3 + $0x10] sm:$0xff] %vm6435, %v6476
      %6485 = vst.msk [vmem:[#allocation3 + $0x18] sm:$0xff] %vm6435, %v6477
      %6486 = vst.msk [vmem:[#allocation3 + $0x20] sm:$0xff] %vm6435, %v6478
      %6487 = vst.msk [vmem:[#allocation3 + $0x28] sm:$0xff] %vm6435, %v6479
      %6488 = vst.msk [vmem:[#allocation3 + $0x30] sm:$0xff] %vm6435, %v6480
      %6489 = vst.msk [vmem:[#allocation3 + $0x38] sm:$0xff] %vm6435, %v6481
      %s6490 = scalar_lea.vmem [#allocation2], 192
      %v6491 = vld [vmem:[%s6490] sm:$0xff]
      %v6492 = vld [vmem:[%s6490 + $0x8] sm:$0xff]
      %v6493 = vld [vmem:[%s6490 + $0x10] sm:$0x3f]
      %v6494 = vld [vmem:[%s6490 + $0x18] sm:$0xff]
      %v6495 = vld [vmem:[%s6490 + $0x20] sm:$0xff]
      %v6496 = vld [vmem:[%s6490 + $0x28] sm:$0x3f]
      %v6497 = vld [vmem:[%s6490 + $0x30] sm:$0xff]
      %v6498 = vld [vmem:[%s6490 + $0x38] sm:$0xff]
      %v6499 = vld [vmem:[%s6490 + $0x40] sm:$0x3f]
      %v6500 = vld [vmem:[%s6490 + $0x48] sm:$0xff]
      %v6501 = vld [vmem:[%s6490 + $0x50] sm:$0xff]
      %v6502 = vld [vmem:[%s6490 + $0x58] sm:$0x3f]
      %v6503 = vld [vmem:[%s6490 + $0x60] sm:$0xff]
      %v6504 = vld [vmem:[%s6490 + $0x68] sm:$0xff]
      %v6505 = vld [vmem:[%s6490 + $0x70] sm:$0x3f]
      %v6506 = vld [vmem:[%s6490 + $0x78] sm:$0xff]
      %v6507 = vld [vmem:[%s6490 + $0x80] sm:$0xff]
      %v6508 = vld [vmem:[%s6490 + $0x88] sm:$0x3f]
      %v6509 = vld [vmem:[%s6490 + $0x90] sm:$0xff]
      %v6510 = vld [vmem:[%s6490 + $0x98] sm:$0xff]
      %v6511 = vld [vmem:[%s6490 + $0xa0] sm:$0x3f]
      %v6512 = vld [vmem:[%s6490 + $0xa8] sm:$0xff]
      %v6513 = vld [vmem:[%s6490 + $0xb0] sm:$0xff]
      %v6514 = vld [vmem:[%s6490 + $0xb8] sm:$0x3f]
      %v6515 = vld [vmem:[%s6490 + $0xc0] sm:$0xff]
      %v6516 = vld [vmem:[%s6490 + $0xc8] sm:$0xff]
      %v6517 = vld [vmem:[%s6490 + $0xd0] sm:$0x3f]
      %v6518 = vld [vmem:[%s6490 + $0xd8] sm:$0xff]
      %v6519 = vld [vmem:[%s6490 + $0xe0] sm:$0xff]
      %v6520 = vld [vmem:[%s6490 + $0xe8] sm:$0x3f]
      %v6521 = vld [vmem:[%s6490 + $0xf0] sm:$0xff]
      %v6522 = vld [vmem:[%s6490 + $0xf8] sm:$0xff]
      %v6523 = vld [vmem:[%s6490 + $0x100] sm:$0x3f]
      %v6524 = vld [vmem:[%s6490 + $0x108] sm:$0xff]
      %v6525 = vld [vmem:[%s6490 + $0x110] sm:$0xff]
      %v6526 = vld [vmem:[%s6490 + $0x118] sm:$0x3f]
      %v6527 = vld [vmem:[%s6490 + $0x120] sm:$0xff]
      %v6528 = vld [vmem:[%s6490 + $0x128] sm:$0xff]
      %v6529 = vld [vmem:[%s6490 + $0x130] sm:$0x3f]
      %v6530 = vld [vmem:[%s6490 + $0x138] sm:$0xff]
      %v6531 = vld [vmem:[%s6490 + $0x140] sm:$0xff]
      %v6532 = vld [vmem:[%s6490 + $0x148] sm:$0x3f]
      %v6533 = vmul.f32 %v6491, %v507
      %v6534 = vmul.f32 %v6492, %v507
      %v6535 = vmul.f32 %v6494, %v507
      %v6536 = vmul.f32 %v6495, %v507
      %v6537 = vmul.f32 %v6497, %v507
      %v6538 = vmul.f32 %v6498, %v507
      %v6539 = vmul.f32 %v6500, %v507
      %v6540 = vmul.f32 %v6501, %v507
      %v6541 = vmul.f32 %v6503, %v507
      %v6542 = vmul.f32 %v6504, %v507
      %v6543 = vmul.f32 %v6506, %v507
      %v6544 = vmul.f32 %v6507, %v507
      %v6545 = vmul.f32 %v6509, %v507
      %v6546 = vmul.f32 %v6510, %v507
      %v6547 = vmul.f32 %v6512, %v507
      %v6548 = vmul.f32 %v6513, %v507
      %v6549 = vadd.f32 %v6533, 0.0
      %v6550 = vadd.f32 %v6534, 0.0
      %v6551 = vadd.f32 %v6535, 0.0
      %v6552 = vadd.f32 %v6536, 0.0
      %v6553 = vadd.f32 %v6537, 0.0
      %v6554 = vadd.f32 %v6538, 0.0
      %v6555 = vadd.f32 %v6539, 0.0
      %v6556 = vadd.f32 %v6540, 0.0
      %v6557 = vadd.f32 %v6541, 0.0
      %v6558 = vadd.f32 %v6542, 0.0
      %v6559 = vadd.f32 %v6543, 0.0
      %v6560 = vadd.f32 %v6544, 0.0
      %v6561 = vadd.f32 %v6545, 0.0
      %v6562 = vadd.f32 %v6546, 0.0
      %v6563 = vadd.f32 %v6547, 0.0
      %v6564 = vadd.f32 %v6548, 0.0
      %v6565 = vmul.f32 %v6494, %v543
      %v6566 = vmul.f32 %v6495, %v543
      %v6567 = vmul.f32 %v6497, %v543
      %v6568 = vmul.f32 %v6498, %v543
      %v6569 = vmul.f32 %v6500, %v543
      %v6570 = vmul.f32 %v6501, %v543
      %v6571 = vmul.f32 %v6503, %v543
      %v6572 = vmul.f32 %v6504, %v543
      %v6573 = vmul.f32 %v6506, %v543
      %v6574 = vmul.f32 %v6507, %v543
      %v6575 = vmul.f32 %v6509, %v543
      %v6576 = vmul.f32 %v6510, %v543
      %v6577 = vmul.f32 %v6512, %v543
      %v6578 = vmul.f32 %v6513, %v543
      %v6579 = vmul.f32 %v6515, %v543
      %v6580 = vmul.f32 %v6516, %v543
      %v6581 = vadd.f32 %v6549, %v6565
      %v6582 = vadd.f32 %v6550, %v6566
      %v6583 = vadd.f32 %v6551, %v6567
      %v6584 = vadd.f32 %v6552, %v6568
      %v6585 = vadd.f32 %v6553, %v6569
      %v6586 = vadd.f32 %v6554, %v6570
      %v6587 = vadd.f32 %v6555, %v6571
      %v6588 = vadd.f32 %v6556, %v6572
      %v6589 = vadd.f32 %v6557, %v6573
      %v6590 = vadd.f32 %v6558, %v6574
      %v6591 = vadd.f32 %v6559, %v6575
      %v6592 = vadd.f32 %v6560, %v6576
      %v6593 = vadd.f32 %v6561, %v6577
      %v6594 = vadd.f32 %v6562, %v6578
      %v6595 = vadd.f32 %v6563, %v6579
      %v6596 = vadd.f32 %v6564, %v6580
      %v6597 = vmul.f32 %v6497, %v579
      %v6598 = vmul.f32 %v6498, %v579
      %v6599 = vmul.f32 %v6500, %v579
      %v6600 = vmul.f32 %v6501, %v579
      %v6601 = vmul.f32 %v6503, %v579
      %v6602 = vmul.f32 %v6504, %v579
      %v6603 = vmul.f32 %v6506, %v579
      %v6604 = vmul.f32 %v6507, %v579
      %v6605 = vmul.f32 %v6509, %v579
      %v6606 = vmul.f32 %v6510, %v579
      %v6607 = vmul.f32 %v6512, %v579
      %v6608 = vmul.f32 %v6513, %v579
      %v6609 = vmul.f32 %v6515, %v579
      %v6610 = vmul.f32 %v6516, %v579
      %v6611 = vmul.f32 %v6518, %v579
      %v6612 = vmul.f32 %v6519, %v579
      %v6613 = vadd.f32 %v6581, %v6597
      %v6614 = vadd.f32 %v6582, %v6598
      %v6615 = vadd.f32 %v6583, %v6599
      %v6616 = vadd.f32 %v6584, %v6600
      %v6617 = vadd.f32 %v6585, %v6601
      %v6618 = vadd.f32 %v6586, %v6602
      %v6619 = vadd.f32 %v6587, %v6603
      %v6620 = vadd.f32 %v6588, %v6604
      %v6621 = vadd.f32 %v6589, %v6605
      %v6622 = vadd.f32 %v6590, %v6606
      %v6623 = vadd.f32 %v6591, %v6607
      %v6624 = vadd.f32 %v6592, %v6608
      %v6625 = vadd.f32 %v6593, %v6609
      %v6626 = vadd.f32 %v6594, %v6610
      %v6627 = vadd.f32 %v6595, %v6611
      %v6628 = vadd.f32 %v6596, %v6612
      %v6629 = vmul.f32 %v6500, %v615
      %v6630 = vmul.f32 %v6501, %v615
      %v6631 = vmul.f32 %v6503, %v615
      %v6632 = vmul.f32 %v6504, %v615
      %v6633 = vmul.f32 %v6506, %v615
      %v6634 = vmul.f32 %v6507, %v615
      %v6635 = vmul.f32 %v6509, %v615
      %v6636 = vmul.f32 %v6510, %v615
      %v6637 = vmul.f32 %v6512, %v615
      %v6638 = vmul.f32 %v6513, %v615
      %v6639 = vmul.f32 %v6515, %v615
      %v6640 = vmul.f32 %v6516, %v615
      %v6641 = vmul.f32 %v6518, %v615
      %v6642 = vmul.f32 %v6519, %v615
      %v6643 = vmul.f32 %v6521, %v615
      %v6644 = vmul.f32 %v6522, %v615
      %v6645 = vadd.f32 %v6613, %v6629
      %v6646 = vadd.f32 %v6614, %v6630
      %v6647 = vadd.f32 %v6615, %v6631
      %v6648 = vadd.f32 %v6616, %v6632
      %v6649 = vadd.f32 %v6617, %v6633
      %v6650 = vadd.f32 %v6618, %v6634
      %v6651 = vadd.f32 %v6619, %v6635
      %v6652 = vadd.f32 %v6620, %v6636
      %v6653 = vadd.f32 %v6621, %v6637
      %v6654 = vadd.f32 %v6622, %v6638
      %v6655 = vadd.f32 %v6623, %v6639
      %v6656 = vadd.f32 %v6624, %v6640
      %v6657 = vadd.f32 %v6625, %v6641
      %v6658 = vadd.f32 %v6626, %v6642
      %v6659 = vadd.f32 %v6627, %v6643
      %v6660 = vadd.f32 %v6628, %v6644
      %v6661 = vmul.f32 %v6503, %v651
      %v6662 = vmul.f32 %v6504, %v651
      %v6663 = vmul.f32 %v6506, %v651
      %v6664 = vmul.f32 %v6507, %v651
      %v6665 = vmul.f32 %v6509, %v651
      %v6666 = vmul.f32 %v6510, %v651
      %v6667 = vmul.f32 %v6512, %v651
      %v6668 = vmul.f32 %v6513, %v651
      %v6669 = vmul.f32 %v6515, %v651
      %v6670 = vmul.f32 %v6516, %v651
      %v6671 = vmul.f32 %v6518, %v651
      %v6672 = vmul.f32 %v6519, %v651
      %v6673 = vmul.f32 %v6521, %v651
      %v6674 = vmul.f32 %v6522, %v651
      %v6675 = vmul.f32 %v6524, %v651
      %v6676 = vmul.f32 %v6525, %v651
      %v6677 = vadd.f32 %v6645, %v6661
      %v6678 = vadd.f32 %v6646, %v6662
      %v6679 = vadd.f32 %v6647, %v6663
      %v6680 = vadd.f32 %v6648, %v6664
      %v6681 = vadd.f32 %v6649, %v6665
      %v6682 = vadd.f32 %v6650, %v6666
      %v6683 = vadd.f32 %v6651, %v6667
      %v6684 = vadd.f32 %v6652, %v6668
      %v6685 = vadd.f32 %v6653, %v6669
      %v6686 = vadd.f32 %v6654, %v6670
      %v6687 = vadd.f32 %v6655, %v6671
      %v6688 = vadd.f32 %v6656, %v6672
      %v6689 = vadd.f32 %v6657, %v6673
      %v6690 = vadd.f32 %v6658, %v6674
      %v6691 = vadd.f32 %v6659, %v6675
      %v6692 = vadd.f32 %v6660, %v6676
      %v6693 = vmul.f32 %v6506, %v687
      %v6694 = vmul.f32 %v6507, %v687
      %v6695 = vmul.f32 %v6509, %v687
      %v6696 = vmul.f32 %v6510, %v687
      %v6697 = vmul.f32 %v6512, %v687
      %v6698 = vmul.f32 %v6513, %v687
      %v6699 = vmul.f32 %v6515, %v687
      %v6700 = vmul.f32 %v6516, %v687
      %v6701 = vmul.f32 %v6518, %v687
      %v6702 = vmul.f32 %v6519, %v687
      %v6703 = vmul.f32 %v6521, %v687
      %v6704 = vmul.f32 %v6522, %v687
      %v6705 = vmul.f32 %v6524, %v687
      %v6706 = vmul.f32 %v6525, %v687
      %v6707 = vmul.f32 %v6527, %v687
      %v6708 = vmul.f32 %v6528, %v687
      %v6709 = vadd.f32 %v6677, %v6693
      %v6710 = vadd.f32 %v6678, %v6694
      %v6711 = vadd.f32 %v6679, %v6695
      %v6712 = vadd.f32 %v6680, %v6696
      %v6713 = vadd.f32 %v6681, %v6697
      %v6714 = vadd.f32 %v6682, %v6698
      %v6715 = vadd.f32 %v6683, %v6699
      %v6716 = vadd.f32 %v6684, %v6700
      %v6717 = vadd.f32 %v6685, %v6701
      %v6718 = vadd.f32 %v6686, %v6702
      %v6719 = vadd.f32 %v6687, %v6703
      %v6720 = vadd.f32 %v6688, %v6704
      %v6721 = vadd.f32 %v6689, %v6705
      %v6722 = vadd.f32 %v6690, %v6706
      %v6723 = vadd.f32 %v6691, %v6707
      %v6724 = vadd.f32 %v6692, %v6708
      %v6725 = vmul.f32 %v6509, %v723
      %v6726 = vmul.f32 %v6510, %v723
      %v6727 = vmul.f32 %v6512, %v723
      %v6728 = vmul.f32 %v6513, %v723
      %v6729 = vmul.f32 %v6515, %v723
      %v6730 = vmul.f32 %v6516, %v723
      %v6731 = vmul.f32 %v6518, %v723
      %v6732 = vmul.f32 %v6519, %v723
      %v6733 = vmul.f32 %v6521, %v723
      %v6734 = vmul.f32 %v6522, %v723
      %v6735 = vmul.f32 %v6524, %v723
      %v6736 = vmul.f32 %v6525, %v723
      %v6737 = vmul.f32 %v6527, %v723
      %v6738 = vmul.f32 %v6528, %v723
      %v6739 = vmul.f32 %v6530, %v723
      %v6740 = vmul.f32 %v6531, %v723
      %v6741 = vadd.f32 %v6709, %v6725
      %v6742 = vadd.f32 %v6710, %v6726
      %v6743 = vadd.f32 %v6711, %v6727
      %v6744 = vadd.f32 %v6712, %v6728
      %v6745 = vadd.f32 %v6713, %v6729
      %v6746 = vadd.f32 %v6714, %v6730
      %v6747 = vadd.f32 %v6715, %v6731
      %v6748 = vadd.f32 %v6716, %v6732
      %v6749 = vadd.f32 %v6717, %v6733
      %v6750 = vadd.f32 %v6718, %v6734
      %v6751 = vadd.f32 %v6719, %v6735
      %v6752 = vadd.f32 %v6720, %v6736
      %v6753 = vadd.f32 %v6721, %v6737
      %v6754 = vadd.f32 %v6722, %v6738
      %v6755 = vadd.f32 %v6723, %v6739
      %v6756 = vadd.f32 %v6724, %v6740
      %v6757 = vmul.f32 %v6491, %v759
      %v6758 = vmul.f32 %v6492, %v759
      %v6759 = vmul.f32 %v6493, %v759
      %v6760 = vmul.f32 %v6494, %v759
      %v6761 = vmul.f32 %v6495, %v759
      %v6762 = vmul.f32 %v6496, %v759
      %v6763 = vmul.f32 %v6497, %v759
      %v6764 = vmul.f32 %v6498, %v759
      %v6765 = vmul.f32 %v6499, %v759
      %v6766 = vmul.f32 %v6500, %v759
      %v6767 = vmul.f32 %v6501, %v759
      %v6768 = vmul.f32 %v6502, %v759
      %v6769 = vmul.f32 %v6503, %v759
      %v6770 = vmul.f32 %v6504, %v759
      %v6771 = vmul.f32 %v6505, %v759
      %v6772 = vmul.f32 %v6506, %v759
      %v6773 = vmul.f32 %v6507, %v759
      %v6774 = vmul.f32 %v6508, %v759
      %v6775 = vmul.f32 %v6509, %v759
      %v6776 = vmul.f32 %v6510, %v759
      %v6777 = vmul.f32 %v6511, %v759
      %v6778 = vmul.f32 %v6512, %v759
      %v6779 = vmul.f32 %v6513, %v759
      %v6780 = vmul.f32 %v6514, %v759
      %v6805 = vrot.slane %v6757, 1
      %v6806 = vrot.slane %v6758, 1
      %v6807 = vsel %vm808, %v6805, %v6806
      %v6808 = vrot.slane %v6759, 1
      %v6809 = vsel %vm808, %v6806, %v6808
      %v6810 = vrot.slane %v6760, 1
      %v6811 = vrot.slane %v6761, 1
      %v6812 = vsel %vm808, %v6810, %v6811
      %v6813 = vrot.slane %v6762, 1
      %v6814 = vsel %vm808, %v6811, %v6813
      %v6815 = vrot.slane %v6763, 1
      %v6816 = vrot.slane %v6764, 1
      %v6817 = vsel %vm808, %v6815, %v6816
      %v6818 = vrot.slane %v6765, 1
      %v6819 = vsel %vm808, %v6816, %v6818
      %v6820 = vrot.slane %v6766, 1
      %v6821 = vrot.slane %v6767, 1
      %v6822 = vsel %vm808, %v6820, %v6821
      %v6823 = vrot.slane %v6768, 1
      %v6824 = vsel %vm808, %v6821, %v6823
      %v6825 = vrot.slane %v6769, 1
      %v6826 = vrot.slane %v6770, 1
      %v6827 = vsel %vm808, %v6825, %v6826
      %v6828 = vrot.slane %v6771, 1
      %v6829 = vsel %vm808, %v6826, %v6828
      %v6830 = vrot.slane %v6772, 1
      %v6831 = vrot.slane %v6773, 1
      %v6832 = vsel %vm808, %v6830, %v6831
      %v6833 = vrot.slane %v6774, 1
      %v6834 = vsel %vm808, %v6831, %v6833
      %v6835 = vrot.slane %v6775, 1
      %v6836 = vrot.slane %v6776, 1
      %v6837 = vsel %vm808, %v6835, %v6836
      %v6838 = vrot.slane %v6777, 1
      %v6839 = vsel %vm808, %v6836, %v6838
      %v6840 = vrot.slane %v6778, 1
      %v6841 = vrot.slane %v6779, 1
      %v6842 = vsel %vm808, %v6840, %v6841
      %v6843 = vrot.slane %v6780, 1
      %v6844 = vsel %vm808, %v6841, %v6843
      %v6861 = vadd.f32 %v6741, %v6807
      %v6862 = vadd.f32 %v6742, %v6809
      %v6863 = vadd.f32 %v6743, %v6812
      %v6864 = vadd.f32 %v6744, %v6814
      %v6865 = vadd.f32 %v6745, %v6817
      %v6866 = vadd.f32 %v6746, %v6819
      %v6867 = vadd.f32 %v6747, %v6822
      %v6868 = vadd.f32 %v6748, %v6824
      %v6869 = vadd.f32 %v6749, %v6827
      %v6870 = vadd.f32 %v6750, %v6829
      %v6871 = vadd.f32 %v6751, %v6832
      %v6872 = vadd.f32 %v6752, %v6834
      %v6873 = vadd.f32 %v6753, %v6837
      %v6874 = vadd.f32 %v6754, %v6839
      %v6875 = vadd.f32 %v6755, %v6842
      %v6876 = vadd.f32 %v6756, %v6844
      %v6877 = vmul.f32 %v6494, %v884
      %v6878 = vmul.f32 %v6495, %v884
      %v6879 = vmul.f32 %v6496, %v884
      %v6880 = vmul.f32 %v6497, %v884
      %v6881 = vmul.f32 %v6498, %v884
      %v6882 = vmul.f32 %v6499, %v884
      %v6883 = vmul.f32 %v6500, %v884
      %v6884 = vmul.f32 %v6501, %v884
      %v6885 = vmul.f32 %v6502, %v884
      %v6886 = vmul.f32 %v6503, %v884
      %v6887 = vmul.f32 %v6504, %v884
      %v6888 = vmul.f32 %v6505, %v884
      %v6889 = vmul.f32 %v6506, %v884
      %v6890 = vmul.f32 %v6507, %v884
      %v6891 = vmul.f32 %v6508, %v884
      %v6892 = vmul.f32 %v6509, %v884
      %v6893 = vmul.f32 %v6510, %v884
      %v6894 = vmul.f32 %v6511, %v884
      %v6895 = vmul.f32 %v6512, %v884
      %v6896 = vmul.f32 %v6513, %v884
      %v6897 = vmul.f32 %v6514, %v884
      %v6898 = vmul.f32 %v6515, %v884
      %v6899 = vmul.f32 %v6516, %v884
      %v6900 = vmul.f32 %v6517, %v884
      %v6925 = vrot.slane %v6877, 1
      %v6926 = vrot.slane %v6878, 1
      %v6927 = vsel %vm808, %v6925, %v6926
      %v6928 = vrot.slane %v6879, 1
      %v6929 = vsel %vm808, %v6926, %v6928
      %v6930 = vrot.slane %v6880, 1
      %v6931 = vrot.slane %v6881, 1
      %v6932 = vsel %vm808, %v6930, %v6931
      %v6933 = vrot.slane %v6882, 1
      %v6934 = vsel %vm808, %v6931, %v6933
      %v6935 = vrot.slane %v6883, 1
      %v6936 = vrot.slane %v6884, 1
      %v6937 = vsel %vm808, %v6935, %v6936
      %v6938 = vrot.slane %v6885, 1
      %v6939 = vsel %vm808, %v6936, %v6938
      %v6940 = vrot.slane %v6886, 1
      %v6941 = vrot.slane %v6887, 1
      %v6942 = vsel %vm808, %v6940, %v6941
      %v6943 = vrot.slane %v6888, 1
      %v6944 = vsel %vm808, %v6941, %v6943
      %v6945 = vrot.slane %v6889, 1
      %v6946 = vrot.slane %v6890, 1
      %v6947 = vsel %vm808, %v6945, %v6946
      %v6948 = vrot.slane %v6891, 1
      %v6949 = vsel %vm808, %v6946, %v6948
      %v6950 = vrot.slane %v6892, 1
      %v6951 = vrot.slane %v6893, 1
      %v6952 = vsel %vm808, %v6950, %v6951
      %v6953 = vrot.slane %v6894, 1
      %v6954 = vsel %vm808, %v6951, %v6953
      %v6955 = vrot.slane %v6895, 1
      %v6956 = vrot.slane %v6896, 1
      %v6957 = vsel %vm808, %v6955, %v6956
      %v6958 = vrot.slane %v6897, 1
      %v6959 = vsel %vm808, %v6956, %v6958
      %v6960 = vrot.slane %v6898, 1
      %v6961 = vrot.slane %v6899, 1
      %v6962 = vsel %vm808, %v6960, %v6961
      %v6963 = vrot.slane %v6900, 1
      %v6964 = vsel %vm808, %v6961, %v6963
      %v6981 = vadd.f32 %v6861, %v6927
      %v6982 = vadd.f32 %v6862, %v6929
      %v6983 = vadd.f32 %v6863, %v6932
      %v6984 = vadd.f32 %v6864, %v6934
      %v6985 = vadd.f32 %v6865, %v6937
      %v6986 = vadd.f32 %v6866, %v6939
      %v6987 = vadd.f32 %v6867, %v6942
      %v6988 = vadd.f32 %v6868, %v6944
      %v6989 = vadd.f32 %v6869, %v6947
      %v6990 = vadd.f32 %v6870, %v6949
      %v6991 = vadd.f32 %v6871, %v6952
      %v6992 = vadd.f32 %v6872, %v6954
      %v6993 = vadd.f32 %v6873, %v6957
      %v6994 = vadd.f32 %v6874, %v6959
      %v6995 = vadd.f32 %v6875, %v6962
      %v6996 = vadd.f32 %v6876, %v6964
      %v6997 = vmul.f32 %v6497, %v1008
      %v6998 = vmul.f32 %v6498, %v1008
      %v6999 = vmul.f32 %v6499, %v1008
      %v7000 = vmul.f32 %v6500, %v1008
      %v7001 = vmul.f32 %v6501, %v1008
      %v7002 = vmul.f32 %v6502, %v1008
      %v7003 = vmul.f32 %v6503, %v1008
      %v7004 = vmul.f32 %v6504, %v1008
      %v7005 = vmul.f32 %v6505, %v1008
      %v7006 = vmul.f32 %v6506, %v1008
      %v7007 = vmul.f32 %v6507, %v1008
      %v7008 = vmul.f32 %v6508, %v1008
      %v7009 = vmul.f32 %v6509, %v1008
      %v7010 = vmul.f32 %v6510, %v1008
      %v7011 = vmul.f32 %v6511, %v1008
      %v7012 = vmul.f32 %v6512, %v1008
      %v7013 = vmul.f32 %v6513, %v1008
      %v7014 = vmul.f32 %v6514, %v1008
      %v7015 = vmul.f32 %v6515, %v1008
      %v7016 = vmul.f32 %v6516, %v1008
      %v7017 = vmul.f32 %v6517, %v1008
      %v7018 = vmul.f32 %v6518, %v1008
      %v7019 = vmul.f32 %v6519, %v1008
      %v7020 = vmul.f32 %v6520, %v1008
      %v7045 = vrot.slane %v6997, 1
      %v7046 = vrot.slane %v6998, 1
      %v7047 = vsel %vm808, %v7045, %v7046
      %v7048 = vrot.slane %v6999, 1
      %v7049 = vsel %vm808, %v7046, %v7048
      %v7050 = vrot.slane %v7000, 1
      %v7051 = vrot.slane %v7001, 1
      %v7052 = vsel %vm808, %v7050, %v7051
      %v7053 = vrot.slane %v7002, 1
      %v7054 = vsel %vm808, %v7051, %v7053
      %v7055 = vrot.slane %v7003, 1
      %v7056 = vrot.slane %v7004, 1
      %v7057 = vsel %vm808, %v7055, %v7056
      %v7058 = vrot.slane %v7005, 1
      %v7059 = vsel %vm808, %v7056, %v7058
      %v7060 = vrot.slane %v7006, 1
      %v7061 = vrot.slane %v7007, 1
      %v7062 = vsel %vm808, %v7060, %v7061
      %v7063 = vrot.slane %v7008, 1
      %v7064 = vsel %vm808, %v7061, %v7063
      %v7065 = vrot.slane %v7009, 1
      %v7066 = vrot.slane %v7010, 1
      %v7067 = vsel %vm808, %v7065, %v7066
      %v7068 = vrot.slane %v7011, 1
      %v7069 = vsel %vm808, %v7066, %v7068
      %v7070 = vrot.slane %v7012, 1
      %v7071 = vrot.slane %v7013, 1
      %v7072 = vsel %vm808, %v7070, %v7071
      %v7073 = vrot.slane %v7014, 1
      %v7074 = vsel %vm808, %v7071, %v7073
      %v7075 = vrot.slane %v7015, 1
      %v7076 = vrot.slane %v7016, 1
      %v7077 = vsel %vm808, %v7075, %v7076
      %v7078 = vrot.slane %v7017, 1
      %v7079 = vsel %vm808, %v7076, %v7078
      %v7080 = vrot.slane %v7018, 1
      %v7081 = vrot.slane %v7019, 1
      %v7082 = vsel %vm808, %v7080, %v7081
      %v7083 = vrot.slane %v7020, 1
      %v7084 = vsel %vm808, %v7081, %v7083
      %v7101 = vadd.f32 %v6981, %v7047
      %v7102 = vadd.f32 %v6982, %v7049
      %v7103 = vadd.f32 %v6983, %v7052
      %v7104 = vadd.f32 %v6984, %v7054
      %v7105 = vadd.f32 %v6985, %v7057
      %v7106 = vadd.f32 %v6986, %v7059
      %v7107 = vadd.f32 %v6987, %v7062
      %v7108 = vadd.f32 %v6988, %v7064
      %v7109 = vadd.f32 %v6989, %v7067
      %v7110 = vadd.f32 %v6990, %v7069
      %v7111 = vadd.f32 %v6991, %v7072
      %v7112 = vadd.f32 %v6992, %v7074
      %v7113 = vadd.f32 %v6993, %v7077
      %v7114 = vadd.f32 %v6994, %v7079
      %v7115 = vadd.f32 %v6995, %v7082
      %v7116 = vadd.f32 %v6996, %v7084
      %v7117 = vmul.f32 %v6500, %v1132
      %v7118 = vmul.f32 %v6501, %v1132
      %v7119 = vmul.f32 %v6502, %v1132
      %v7120 = vmul.f32 %v6503, %v1132
      %v7121 = vmul.f32 %v6504, %v1132
      %v7122 = vmul.f32 %v6505, %v1132
      %v7123 = vmul.f32 %v6506, %v1132
      %v7124 = vmul.f32 %v6507, %v1132
      %v7125 = vmul.f32 %v6508, %v1132
      %v7126 = vmul.f32 %v6509, %v1132
      %v7127 = vmul.f32 %v6510, %v1132
      %v7128 = vmul.f32 %v6511, %v1132
      %v7129 = vmul.f32 %v6512, %v1132
      %v7130 = vmul.f32 %v6513, %v1132
      %v7131 = vmul.f32 %v6514, %v1132
      %v7132 = vmul.f32 %v6515, %v1132
      %v7133 = vmul.f32 %v6516, %v1132
      %v7134 = vmul.f32 %v6517, %v1132
      %v7135 = vmul.f32 %v6518, %v1132
      %v7136 = vmul.f32 %v6519, %v1132
      %v7137 = vmul.f32 %v6520, %v1132
      %v7138 = vmul.f32 %v6521, %v1132
      %v7139 = vmul.f32 %v6522, %v1132
      %v7140 = vmul.f32 %v6523, %v1132
      %v7165 = vrot.slane %v7117, 1
      %v7166 = vrot.slane %v7118, 1
      %v7167 = vsel %vm808, %v7165, %v7166
      %v7168 = vrot.slane %v7119, 1
      %v7169 = vsel %vm808, %v7166, %v7168
      %v7170 = vrot.slane %v7120, 1
      %v7171 = vrot.slane %v7121, 1
      %v7172 = vsel %vm808, %v7170, %v7171
      %v7173 = vrot.slane %v7122, 1
      %v7174 = vsel %vm808, %v7171, %v7173
      %v7175 = vrot.slane %v7123, 1
      %v7176 = vrot.slane %v7124, 1
      %v7177 = vsel %vm808, %v7175, %v7176
      %v7178 = vrot.slane %v7125, 1
      %v7179 = vsel %vm808, %v7176, %v7178
      %v7180 = vrot.slane %v7126, 1
      %v7181 = vrot.slane %v7127, 1
      %v7182 = vsel %vm808, %v7180, %v7181
      %v7183 = vrot.slane %v7128, 1
      %v7184 = vsel %vm808, %v7181, %v7183
      %v7185 = vrot.slane %v7129, 1
      %v7186 = vrot.slane %v7130, 1
      %v7187 = vsel %vm808, %v7185, %v7186
      %v7188 = vrot.slane %v7131, 1
      %v7189 = vsel %vm808, %v7186, %v7188
      %v7190 = vrot.slane %v7132, 1
      %v7191 = vrot.slane %v7133, 1
      %v7192 = vsel %vm808, %v7190, %v7191
      %v7193 = vrot.slane %v7134, 1
      %v7194 = vsel %vm808, %v7191, %v7193
      %v7195 = vrot.slane %v7135, 1
      %v7196 = vrot.slane %v7136, 1
      %v7197 = vsel %vm808, %v7195, %v7196
      %v7198 = vrot.slane %v7137, 1
      %v7199 = vsel %vm808, %v7196, %v7198
      %v7200 = vrot.slane %v7138, 1
      %v7201 = vrot.slane %v7139, 1
      %v7202 = vsel %vm808, %v7200, %v7201
      %v7203 = vrot.slane %v7140, 1
      %v7204 = vsel %vm808, %v7201, %v7203
      %v7221 = vadd.f32 %v7101, %v7167
      %v7222 = vadd.f32 %v7102, %v7169
      %v7223 = vadd.f32 %v7103, %v7172
      %v7224 = vadd.f32 %v7104, %v7174
      %v7225 = vadd.f32 %v7105, %v7177
      %v7226 = vadd.f32 %v7106, %v7179
      %v7227 = vadd.f32 %v7107, %v7182
      %v7228 = vadd.f32 %v7108, %v7184
      %v7229 = vadd.f32 %v7109, %v7187
      %v7230 = vadd.f32 %v7110, %v7189
      %v7231 = vadd.f32 %v7111, %v7192
      %v7232 = vadd.f32 %v7112, %v7194
      %v7233 = vadd.f32 %v7113, %v7197
      %v7234 = vadd.f32 %v7114, %v7199
      %v7235 = vadd.f32 %v7115, %v7202
      %v7236 = vadd.f32 %v7116, %v7204
      %v7237 = vmul.f32 %v6503, %v1256
      %v7238 = vmul.f32 %v6504, %v1256
      %v7239 = vmul.f32 %v6505, %v1256
      %v7240 = vmul.f32 %v6506, %v1256
      %v7241 = vmul.f32 %v6507, %v1256
      %v7242 = vmul.f32 %v6508, %v1256
      %v7243 = vmul.f32 %v6509, %v1256
      %v7244 = vmul.f32 %v6510, %v1256
      %v7245 = vmul.f32 %v6511, %v1256
      %v7246 = vmul.f32 %v6512, %v1256
      %v7247 = vmul.f32 %v6513, %v1256
      %v7248 = vmul.f32 %v6514, %v1256
      %v7249 = vmul.f32 %v6515, %v1256
      %v7250 = vmul.f32 %v6516, %v1256
      %v7251 = vmul.f32 %v6517, %v1256
      %v7252 = vmul.f32 %v6518, %v1256
      %v7253 = vmul.f32 %v6519, %v1256
      %v7254 = vmul.f32 %v6520, %v1256
      %v7255 = vmul.f32 %v6521, %v1256
      %v7256 = vmul.f32 %v6522, %v1256
      %v7257 = vmul.f32 %v6523, %v1256
      %v7258 = vmul.f32 %v6524, %v1256
      %v7259 = vmul.f32 %v6525, %v1256
      %v7260 = vmul.f32 %v6526, %v1256
      %v7285 = vrot.slane %v7237, 1
      %v7286 = vrot.slane %v7238, 1
      %v7287 = vsel %vm808, %v7285, %v7286
      %v7288 = vrot.slane %v7239, 1
      %v7289 = vsel %vm808, %v7286, %v7288
      %v7290 = vrot.slane %v7240, 1
      %v7291 = vrot.slane %v7241, 1
      %v7292 = vsel %vm808, %v7290, %v7291
      %v7293 = vrot.slane %v7242, 1
      %v7294 = vsel %vm808, %v7291, %v7293
      %v7295 = vrot.slane %v7243, 1
      %v7296 = vrot.slane %v7244, 1
      %v7297 = vsel %vm808, %v7295, %v7296
      %v7298 = vrot.slane %v7245, 1
      %v7299 = vsel %vm808, %v7296, %v7298
      %v7300 = vrot.slane %v7246, 1
      %v7301 = vrot.slane %v7247, 1
      %v7302 = vsel %vm808, %v7300, %v7301
      %v7303 = vrot.slane %v7248, 1
      %v7304 = vsel %vm808, %v7301, %v7303
      %v7305 = vrot.slane %v7249, 1
      %v7306 = vrot.slane %v7250, 1
      %v7307 = vsel %vm808, %v7305, %v7306
      %v7308 = vrot.slane %v7251, 1
      %v7309 = vsel %vm808, %v7306, %v7308
      %v7310 = vrot.slane %v7252, 1
      %v7311 = vrot.slane %v7253, 1
      %v7312 = vsel %vm808, %v7310, %v7311
      %v7313 = vrot.slane %v7254, 1
      %v7314 = vsel %vm808, %v7311, %v7313
      %v7315 = vrot.slane %v7255, 1
      %v7316 = vrot.slane %v7256, 1
      %v7317 = vsel %vm808, %v7315, %v7316
      %v7318 = vrot.slane %v7257, 1
      %v7319 = vsel %vm808, %v7316, %v7318
      %v7320 = vrot.slane %v7258, 1
      %v7321 = vrot.slane %v7259, 1
      %v7322 = vsel %vm808, %v7320, %v7321
      %v7323 = vrot.slane %v7260, 1
      %v7324 = vsel %vm808, %v7321, %v7323
      %v7341 = vadd.f32 %v7221, %v7287
      %v7342 = vadd.f32 %v7222, %v7289
      %v7343 = vadd.f32 %v7223, %v7292
      %v7344 = vadd.f32 %v7224, %v7294
      %v7345 = vadd.f32 %v7225, %v7297
      %v7346 = vadd.f32 %v7226, %v7299
      %v7347 = vadd.f32 %v7227, %v7302
      %v7348 = vadd.f32 %v7228, %v7304
      %v7349 = vadd.f32 %v7229, %v7307
      %v7350 = vadd.f32 %v7230, %v7309
      %v7351 = vadd.f32 %v7231, %v7312
      %v7352 = vadd.f32 %v7232, %v7314
      %v7353 = vadd.f32 %v7233, %v7317
      %v7354 = vadd.f32 %v7234, %v7319
      %v7355 = vadd.f32 %v7235, %v7322
      %v7356 = vadd.f32 %v7236, %v7324
      %v7357 = vmul.f32 %v6506, %v1380
      %v7358 = vmul.f32 %v6507, %v1380
      %v7359 = vmul.f32 %v6508, %v1380
      %v7360 = vmul.f32 %v6509, %v1380
      %v7361 = vmul.f32 %v6510, %v1380
      %v7362 = vmul.f32 %v6511, %v1380
      %v7363 = vmul.f32 %v6512, %v1380
      %v7364 = vmul.f32 %v6513, %v1380
      %v7365 = vmul.f32 %v6514, %v1380
      %v7366 = vmul.f32 %v6515, %v1380
      %v7367 = vmul.f32 %v6516, %v1380
      %v7368 = vmul.f32 %v6517, %v1380
      %v7369 = vmul.f32 %v6518, %v1380
      %v7370 = vmul.f32 %v6519, %v1380
      %v7371 = vmul.f32 %v6520, %v1380
      %v7372 = vmul.f32 %v6521, %v1380
      %v7373 = vmul.f32 %v6522, %v1380
      %v7374 = vmul.f32 %v6523, %v1380
      %v7375 = vmul.f32 %v6524, %v1380
      %v7376 = vmul.f32 %v6525, %v1380
      %v7377 = vmul.f32 %v6526, %v1380
      %v7378 = vmul.f32 %v6527, %v1380
      %v7379 = vmul.f32 %v6528, %v1380
      %v7380 = vmul.f32 %v6529, %v1380
      %v7405 = vrot.slane %v7357, 1
      %v7406 = vrot.slane %v7358, 1
      %v7407 = vsel %vm808, %v7405, %v7406
      %v7408 = vrot.slane %v7359, 1
      %v7409 = vsel %vm808, %v7406, %v7408
      %v7410 = vrot.slane %v7360, 1
      %v7411 = vrot.slane %v7361, 1
      %v7412 = vsel %vm808, %v7410, %v7411
      %v7413 = vrot.slane %v7362, 1
      %v7414 = vsel %vm808, %v7411, %v7413
      %v7415 = vrot.slane %v7363, 1
      %v7416 = vrot.slane %v7364, 1
      %v7417 = vsel %vm808, %v7415, %v7416
      %v7418 = vrot.slane %v7365, 1
      %v7419 = vsel %vm808, %v7416, %v7418
      %v7420 = vrot.slane %v7366, 1
      %v7421 = vrot.slane %v7367, 1
      %v7422 = vsel %vm808, %v7420, %v7421
      %v7423 = vrot.slane %v7368, 1
      %v7424 = vsel %vm808, %v7421, %v7423
      %v7425 = vrot.slane %v7369, 1
      %v7426 = vrot.slane %v7370, 1
      %v7427 = vsel %vm808, %v7425, %v7426
      %v7428 = vrot.slane %v7371, 1
      %v7429 = vsel %vm808, %v7426, %v7428
      %v7430 = vrot.slane %v7372, 1
      %v7431 = vrot.slane %v7373, 1
      %v7432 = vsel %vm808, %v7430, %v7431
      %v7433 = vrot.slane %v7374, 1
      %v7434 = vsel %vm808, %v7431, %v7433
      %v7435 = vrot.slane %v7375, 1
      %v7436 = vrot.slane %v7376, 1
      %v7437 = vsel %vm808, %v7435, %v7436
      %v7438 = vrot.slane %v7377, 1
      %v7439 = vsel %vm808, %v7436, %v7438
      %v7440 = vrot.slane %v7378, 1
      %v7441 = vrot.slane %v7379, 1
      %v7442 = vsel %vm808, %v7440, %v7441
      %v7443 = vrot.slane %v7380, 1
      %v7444 = vsel %vm808, %v7441, %v7443
      %v7461 = vadd.f32 %v7341, %v7407
      %v7462 = vadd.f32 %v7342, %v7409
      %v7463 = vadd.f32 %v7343, %v7412
      %v7464 = vadd.f32 %v7344, %v7414
      %v7465 = vadd.f32 %v7345, %v7417
      %v7466 = vadd.f32 %v7346, %v7419
      %v7467 = vadd.f32 %v7347, %v7422
      %v7468 = vadd.f32 %v7348, %v7424
      %v7469 = vadd.f32 %v7349, %v7427
      %v7470 = vadd.f32 %v7350, %v7429
      %v7471 = vadd.f32 %v7351, %v7432
      %v7472 = vadd.f32 %v7352, %v7434
      %v7473 = vadd.f32 %v7353, %v7437
      %v7474 = vadd.f32 %v7354, %v7439
      %v7475 = vadd.f32 %v7355, %v7442
      %v7476 = vadd.f32 %v7356, %v7444
      %v7477 = vmul.f32 %v6509, %v1504
      %v7478 = vmul.f32 %v6510, %v1504
      %v7479 = vmul.f32 %v6511, %v1504
      %v7480 = vmul.f32 %v6512, %v1504
      %v7481 = vmul.f32 %v6513, %v1504
      %v7482 = vmul.f32 %v6514, %v1504
      %v7483 = vmul.f32 %v6515, %v1504
      %v7484 = vmul.f32 %v6516, %v1504
      %v7485 = vmul.f32 %v6517, %v1504
      %v7486 = vmul.f32 %v6518, %v1504
      %v7487 = vmul.f32 %v6519, %v1504
      %v7488 = vmul.f32 %v6520, %v1504
      %v7489 = vmul.f32 %v6521, %v1504
      %v7490 = vmul.f32 %v6522, %v1504
      %v7491 = vmul.f32 %v6523, %v1504
      %v7492 = vmul.f32 %v6524, %v1504
      %v7493 = vmul.f32 %v6525, %v1504
      %v7494 = vmul.f32 %v6526, %v1504
      %v7495 = vmul.f32 %v6527, %v1504
      %v7496 = vmul.f32 %v6528, %v1504
      %v7497 = vmul.f32 %v6529, %v1504
      %v7498 = vmul.f32 %v6530, %v1504
      %v7499 = vmul.f32 %v6531, %v1504
      %v7500 = vmul.f32 %v6532, %v1504
      %v7525 = vrot.slane %v7477, 1
      %v7526 = vrot.slane %v7478, 1
      %v7527 = vsel %vm808, %v7525, %v7526
      %v7528 = vrot.slane %v7479, 1
      %v7529 = vsel %vm808, %v7526, %v7528
      %v7530 = vrot.slane %v7480, 1
      %v7531 = vrot.slane %v7481, 1
      %v7532 = vsel %vm808, %v7530, %v7531
      %v7533 = vrot.slane %v7482, 1
      %v7534 = vsel %vm808, %v7531, %v7533
      %v7535 = vrot.slane %v7483, 1
      %v7536 = vrot.slane %v7484, 1
      %v7537 = vsel %vm808, %v7535, %v7536
      %v7538 = vrot.slane %v7485, 1
      %v7539 = vsel %vm808, %v7536, %v7538
      %v7540 = vrot.slane %v7486, 1
      %v7541 = vrot.slane %v7487, 1
      %v7542 = vsel %vm808, %v7540, %v7541
      %v7543 = vrot.slane %v7488, 1
      %v7544 = vsel %vm808, %v7541, %v7543
      %v7545 = vrot.slane %v7489, 1
      %v7546 = vrot.slane %v7490, 1
      %v7547 = vsel %vm808, %v7545, %v7546
      %v7548 = vrot.slane %v7491, 1
      %v7549 = vsel %vm808, %v7546, %v7548
      %v7550 = vrot.slane %v7492, 1
      %v7551 = vrot.slane %v7493, 1
      %v7552 = vsel %vm808, %v7550, %v7551
      %v7553 = vrot.slane %v7494, 1
      %v7554 = vsel %vm808, %v7551, %v7553
      %v7555 = vrot.slane %v7495, 1
      %v7556 = vrot.slane %v7496, 1
      %v7557 = vsel %vm808, %v7555, %v7556
      %v7558 = vrot.slane %v7497, 1
      %v7559 = vsel %vm808, %v7556, %v7558
      %v7560 = vrot.slane %v7498, 1
      %v7561 = vrot.slane %v7499, 1
      %v7562 = vsel %vm808, %v7560, %v7561
      %v7563 = vrot.slane %v7500, 1
      %v7564 = vsel %vm808, %v7561, %v7563
      %v7581 = vadd.f32 %v7461, %v7527
      %v7582 = vadd.f32 %v7462, %v7529
      %v7583 = vadd.f32 %v7463, %v7532
      %v7584 = vadd.f32 %v7464, %v7534
      %v7585 = vadd.f32 %v7465, %v7537
      %v7586 = vadd.f32 %v7466, %v7539
      %v7587 = vadd.f32 %v7467, %v7542
      %v7588 = vadd.f32 %v7468, %v7544
      %v7589 = vadd.f32 %v7469, %v7547
      %v7590 = vadd.f32 %v7470, %v7549
      %v7591 = vadd.f32 %v7471, %v7552
      %v7592 = vadd.f32 %v7472, %v7554
      %v7593 = vadd.f32 %v7473, %v7557
      %v7594 = vadd.f32 %v7474, %v7559
      %v7595 = vadd.f32 %v7475, %v7562
      %v7596 = vadd.f32 %v7476, %v7564
      %v7597 = vmul.f32 %v6491, %v1628
      %v7598 = vmul.f32 %v6492, %v1628
      %v7599 = vmul.f32 %v6493, %v1628
      %v7600 = vmul.f32 %v6494, %v1628
      %v7601 = vmul.f32 %v6495, %v1628
      %v7602 = vmul.f32 %v6496, %v1628
      %v7603 = vmul.f32 %v6497, %v1628
      %v7604 = vmul.f32 %v6498, %v1628
      %v7605 = vmul.f32 %v6499, %v1628
      %v7606 = vmul.f32 %v6500, %v1628
      %v7607 = vmul.f32 %v6501, %v1628
      %v7608 = vmul.f32 %v6502, %v1628
      %v7609 = vmul.f32 %v6503, %v1628
      %v7610 = vmul.f32 %v6504, %v1628
      %v7611 = vmul.f32 %v6505, %v1628
      %v7612 = vmul.f32 %v6506, %v1628
      %v7613 = vmul.f32 %v6507, %v1628
      %v7614 = vmul.f32 %v6508, %v1628
      %v7615 = vmul.f32 %v6509, %v1628
      %v7616 = vmul.f32 %v6510, %v1628
      %v7617 = vmul.f32 %v6511, %v1628
      %v7618 = vmul.f32 %v6512, %v1628
      %v7619 = vmul.f32 %v6513, %v1628
      %v7620 = vmul.f32 %v6514, %v1628
      %v7645 = vrot.slane %v7597, 2
      %v7646 = vrot.slane %v7598, 2
      %v7647 = vsel %vm1677, %v7645, %v7646
      %v7648 = vrot.slane %v7599, 2
      %v7649 = vsel %vm1677, %v7646, %v7648
      %v7650 = vrot.slane %v7600, 2
      %v7651 = vrot.slane %v7601, 2
      %v7652 = vsel %vm1677, %v7650, %v7651
      %v7653 = vrot.slane %v7602, 2
      %v7654 = vsel %vm1677, %v7651, %v7653
      %v7655 = vrot.slane %v7603, 2
      %v7656 = vrot.slane %v7604, 2
      %v7657 = vsel %vm1677, %v7655, %v7656
      %v7658 = vrot.slane %v7605, 2
      %v7659 = vsel %vm1677, %v7656, %v7658
      %v7660 = vrot.slane %v7606, 2
      %v7661 = vrot.slane %v7607, 2
      %v7662 = vsel %vm1677, %v7660, %v7661
      %v7663 = vrot.slane %v7608, 2
      %v7664 = vsel %vm1677, %v7661, %v7663
      %v7665 = vrot.slane %v7609, 2
      %v7666 = vrot.slane %v7610, 2
      %v7667 = vsel %vm1677, %v7665, %v7666
      %v7668 = vrot.slane %v7611, 2
      %v7669 = vsel %vm1677, %v7666, %v7668
      %v7670 = vrot.slane %v7612, 2
      %v7671 = vrot.slane %v7613, 2
      %v7672 = vsel %vm1677, %v7670, %v7671
      %v7673 = vrot.slane %v7614, 2
      %v7674 = vsel %vm1677, %v7671, %v7673
      %v7675 = vrot.slane %v7615, 2
      %v7676 = vrot.slane %v7616, 2
      %v7677 = vsel %vm1677, %v7675, %v7676
      %v7678 = vrot.slane %v7617, 2
      %v7679 = vsel %vm1677, %v7676, %v7678
      %v7680 = vrot.slane %v7618, 2
      %v7681 = vrot.slane %v7619, 2
      %v7682 = vsel %vm1677, %v7680, %v7681
      %v7683 = vrot.slane %v7620, 2
      %v7684 = vsel %vm1677, %v7681, %v7683
      %v7701 = vadd.f32 %v7581, %v7647
      %v7702 = vadd.f32 %v7582, %v7649
      %v7703 = vadd.f32 %v7583, %v7652
      %v7704 = vadd.f32 %v7584, %v7654
      %v7705 = vadd.f32 %v7585, %v7657
      %v7706 = vadd.f32 %v7586, %v7659
      %v7707 = vadd.f32 %v7587, %v7662
      %v7708 = vadd.f32 %v7588, %v7664
      %v7709 = vadd.f32 %v7589, %v7667
      %v7710 = vadd.f32 %v7590, %v7669
      %v7711 = vadd.f32 %v7591, %v7672
      %v7712 = vadd.f32 %v7592, %v7674
      %v7713 = vadd.f32 %v7593, %v7677
      %v7714 = vadd.f32 %v7594, %v7679
      %v7715 = vadd.f32 %v7595, %v7682
      %v7716 = vadd.f32 %v7596, %v7684
      %v7717 = vmul.f32 %v6494, %v1753
      %v7718 = vmul.f32 %v6495, %v1753
      %v7719 = vmul.f32 %v6496, %v1753
      %v7720 = vmul.f32 %v6497, %v1753
      %v7721 = vmul.f32 %v6498, %v1753
      %v7722 = vmul.f32 %v6499, %v1753
      %v7723 = vmul.f32 %v6500, %v1753
      %v7724 = vmul.f32 %v6501, %v1753
      %v7725 = vmul.f32 %v6502, %v1753
      %v7726 = vmul.f32 %v6503, %v1753
      %v7727 = vmul.f32 %v6504, %v1753
      %v7728 = vmul.f32 %v6505, %v1753
      %v7729 = vmul.f32 %v6506, %v1753
      %v7730 = vmul.f32 %v6507, %v1753
      %v7731 = vmul.f32 %v6508, %v1753
      %v7732 = vmul.f32 %v6509, %v1753
      %v7733 = vmul.f32 %v6510, %v1753
      %v7734 = vmul.f32 %v6511, %v1753
      %v7735 = vmul.f32 %v6512, %v1753
      %v7736 = vmul.f32 %v6513, %v1753
      %v7737 = vmul.f32 %v6514, %v1753
      %v7738 = vmul.f32 %v6515, %v1753
      %v7739 = vmul.f32 %v6516, %v1753
      %v7740 = vmul.f32 %v6517, %v1753
      %v7765 = vrot.slane %v7717, 2
      %v7766 = vrot.slane %v7718, 2
      %v7767 = vsel %vm1677, %v7765, %v7766
      %v7768 = vrot.slane %v7719, 2
      %v7769 = vsel %vm1677, %v7766, %v7768
      %v7770 = vrot.slane %v7720, 2
      %v7771 = vrot.slane %v7721, 2
      %v7772 = vsel %vm1677, %v7770, %v7771
      %v7773 = vrot.slane %v7722, 2
      %v7774 = vsel %vm1677, %v7771, %v7773
      %v7775 = vrot.slane %v7723, 2
      %v7776 = vrot.slane %v7724, 2
      %v7777 = vsel %vm1677, %v7775, %v7776
      %v7778 = vrot.slane %v7725, 2
      %v7779 = vsel %vm1677, %v7776, %v7778
      %v7780 = vrot.slane %v7726, 2
      %v7781 = vrot.slane %v7727, 2
      %v7782 = vsel %vm1677, %v7780, %v7781
      %v7783 = vrot.slane %v7728, 2
      %v7784 = vsel %vm1677, %v7781, %v7783
      %v7785 = vrot.slane %v7729, 2
      %v7786 = vrot.slane %v7730, 2
      %v7787 = vsel %vm1677, %v7785, %v7786
      %v7788 = vrot.slane %v7731, 2
      %v7789 = vsel %vm1677, %v7786, %v7788
      %v7790 = vrot.slane %v7732, 2
      %v7791 = vrot.slane %v7733, 2
      %v7792 = vsel %vm1677, %v7790, %v7791
      %v7793 = vrot.slane %v7734, 2
      %v7794 = vsel %vm1677, %v7791, %v7793
      %v7795 = vrot.slane %v7735, 2
      %v7796 = vrot.slane %v7736, 2
      %v7797 = vsel %vm1677, %v7795, %v7796
      %v7798 = vrot.slane %v7737, 2
      %v7799 = vsel %vm1677, %v7796, %v7798
      %v7800 = vrot.slane %v7738, 2
      %v7801 = vrot.slane %v7739, 2
      %v7802 = vsel %vm1677, %v7800, %v7801
      %v7803 = vrot.slane %v7740, 2
      %v7804 = vsel %vm1677, %v7801, %v7803
      %v7821 = vadd.f32 %v7701, %v7767
      %v7822 = vadd.f32 %v7702, %v7769
      %v7823 = vadd.f32 %v7703, %v7772
      %v7824 = vadd.f32 %v7704, %v7774
      %v7825 = vadd.f32 %v7705, %v7777
      %v7826 = vadd.f32 %v7706, %v7779
      %v7827 = vadd.f32 %v7707, %v7782
      %v7828 = vadd.f32 %v7708, %v7784
      %v7829 = vadd.f32 %v7709, %v7787
      %v7830 = vadd.f32 %v7710, %v7789
      %v7831 = vadd.f32 %v7711, %v7792
      %v7832 = vadd.f32 %v7712, %v7794
      %v7833 = vadd.f32 %v7713, %v7797
      %v7834 = vadd.f32 %v7714, %v7799
      %v7835 = vadd.f32 %v7715, %v7802
      %v7836 = vadd.f32 %v7716, %v7804
      %v7837 = vmul.f32 %v6497, %v1877
      %v7838 = vmul.f32 %v6498, %v1877
      %v7839 = vmul.f32 %v6499, %v1877
      %v7840 = vmul.f32 %v6500, %v1877
      %v7841 = vmul.f32 %v6501, %v1877
      %v7842 = vmul.f32 %v6502, %v1877
      %v7843 = vmul.f32 %v6503, %v1877
      %v7844 = vmul.f32 %v6504, %v1877
      %v7845 = vmul.f32 %v6505, %v1877
      %v7846 = vmul.f32 %v6506, %v1877
      %v7847 = vmul.f32 %v6507, %v1877
      %v7848 = vmul.f32 %v6508, %v1877
      %v7849 = vmul.f32 %v6509, %v1877
      %v7850 = vmul.f32 %v6510, %v1877
      %v7851 = vmul.f32 %v6511, %v1877
      %v7852 = vmul.f32 %v6512, %v1877
      %v7853 = vmul.f32 %v6513, %v1877
      %v7854 = vmul.f32 %v6514, %v1877
      %v7855 = vmul.f32 %v6515, %v1877
      %v7856 = vmul.f32 %v6516, %v1877
      %v7857 = vmul.f32 %v6517, %v1877
      %v7858 = vmul.f32 %v6518, %v1877
      %v7859 = vmul.f32 %v6519, %v1877
      %v7860 = vmul.f32 %v6520, %v1877
      %v7885 = vrot.slane %v7837, 2
      %v7886 = vrot.slane %v7838, 2
      %v7887 = vsel %vm1677, %v7885, %v7886
      %v7888 = vrot.slane %v7839, 2
      %v7889 = vsel %vm1677, %v7886, %v7888
      %v7890 = vrot.slane %v7840, 2
      %v7891 = vrot.slane %v7841, 2
      %v7892 = vsel %vm1677, %v7890, %v7891
      %v7893 = vrot.slane %v7842, 2
      %v7894 = vsel %vm1677, %v7891, %v7893
      %v7895 = vrot.slane %v7843, 2
      %v7896 = vrot.slane %v7844, 2
      %v7897 = vsel %vm1677, %v7895, %v7896
      %v7898 = vrot.slane %v7845, 2
      %v7899 = vsel %vm1677, %v7896, %v7898
      %v7900 = vrot.slane %v7846, 2
      %v7901 = vrot.slane %v7847, 2
      %v7902 = vsel %vm1677, %v7900, %v7901
      %v7903 = vrot.slane %v7848, 2
      %v7904 = vsel %vm1677, %v7901, %v7903
      %v7905 = vrot.slane %v7849, 2
      %v7906 = vrot.slane %v7850, 2
      %v7907 = vsel %vm1677, %v7905, %v7906
      %v7908 = vrot.slane %v7851, 2
      %v7909 = vsel %vm1677, %v7906, %v7908
      %v7910 = vrot.slane %v7852, 2
      %v7911 = vrot.slane %v7853, 2
      %v7912 = vsel %vm1677, %v7910, %v7911
      %v7913 = vrot.slane %v7854, 2
      %v7914 = vsel %vm1677, %v7911, %v7913
      %v7915 = vrot.slane %v7855, 2
      %v7916 = vrot.slane %v7856, 2
      %v7917 = vsel %vm1677, %v7915, %v7916
      %v7918 = vrot.slane %v7857, 2
      %v7919 = vsel %vm1677, %v7916, %v7918
      %v7920 = vrot.slane %v7858, 2
      %v7921 = vrot.slane %v7859, 2
      %v7922 = vsel %vm1677, %v7920, %v7921
      %v7923 = vrot.slane %v7860, 2
      %v7924 = vsel %vm1677, %v7921, %v7923
      %v7941 = vadd.f32 %v7821, %v7887
      %v7942 = vadd.f32 %v7822, %v7889
      %v7943 = vadd.f32 %v7823, %v7892
      %v7944 = vadd.f32 %v7824, %v7894
      %v7945 = vadd.f32 %v7825, %v7897
      %v7946 = vadd.f32 %v7826, %v7899
      %v7947 = vadd.f32 %v7827, %v7902
      %v7948 = vadd.f32 %v7828, %v7904
      %v7949 = vadd.f32 %v7829, %v7907
      %v7950 = vadd.f32 %v7830, %v7909
      %v7951 = vadd.f32 %v7831, %v7912
      %v7952 = vadd.f32 %v7832, %v7914
      %v7953 = vadd.f32 %v7833, %v7917
      %v7954 = vadd.f32 %v7834, %v7919
      %v7955 = vadd.f32 %v7835, %v7922
      %v7956 = vadd.f32 %v7836, %v7924
      %v7957 = vmul.f32 %v6500, %v2001
      %v7958 = vmul.f32 %v6501, %v2001
      %v7959 = vmul.f32 %v6502, %v2001
      %v7960 = vmul.f32 %v6503, %v2001
      %v7961 = vmul.f32 %v6504, %v2001
      %v7962 = vmul.f32 %v6505, %v2001
      %v7963 = vmul.f32 %v6506, %v2001
      %v7964 = vmul.f32 %v6507, %v2001
      %v7965 = vmul.f32 %v6508, %v2001
      %v7966 = vmul.f32 %v6509, %v2001
      %v7967 = vmul.f32 %v6510, %v2001
      %v7968 = vmul.f32 %v6511, %v2001
      %v7969 = vmul.f32 %v6512, %v2001
      %v7970 = vmul.f32 %v6513, %v2001
      %v7971 = vmul.f32 %v6514, %v2001
      %v7972 = vmul.f32 %v6515, %v2001
      %v7973 = vmul.f32 %v6516, %v2001
      %v7974 = vmul.f32 %v6517, %v2001
      %v7975 = vmul.f32 %v6518, %v2001
      %v7976 = vmul.f32 %v6519, %v2001
      %v7977 = vmul.f32 %v6520, %v2001
      %v7978 = vmul.f32 %v6521, %v2001
      %v7979 = vmul.f32 %v6522, %v2001
      %v7980 = vmul.f32 %v6523, %v2001
      %v8005 = vrot.slane %v7957, 2
      %v8006 = vrot.slane %v7958, 2
      %v8007 = vsel %vm1677, %v8005, %v8006
      %v8008 = vrot.slane %v7959, 2
      %v8009 = vsel %vm1677, %v8006, %v8008
      %v8010 = vrot.slane %v7960, 2
      %v8011 = vrot.slane %v7961, 2
      %v8012 = vsel %vm1677, %v8010, %v8011
      %v8013 = vrot.slane %v7962, 2
      %v8014 = vsel %vm1677, %v8011, %v8013
      %v8015 = vrot.slane %v7963, 2
      %v8016 = vrot.slane %v7964, 2
      %v8017 = vsel %vm1677, %v8015, %v8016
      %v8018 = vrot.slane %v7965, 2
      %v8019 = vsel %vm1677, %v8016, %v8018
      %v8020 = vrot.slane %v7966, 2
      %v8021 = vrot.slane %v7967, 2
      %v8022 = vsel %vm1677, %v8020, %v8021
      %v8023 = vrot.slane %v7968, 2
      %v8024 = vsel %vm1677, %v8021, %v8023
      %v8025 = vrot.slane %v7969, 2
      %v8026 = vrot.slane %v7970, 2
      %v8027 = vsel %vm1677, %v8025, %v8026
      %v8028 = vrot.slane %v7971, 2
      %v8029 = vsel %vm1677, %v8026, %v8028
      %v8030 = vrot.slane %v7972, 2
      %v8031 = vrot.slane %v7973, 2
      %v8032 = vsel %vm1677, %v8030, %v8031
      %v8033 = vrot.slane %v7974, 2
      %v8034 = vsel %vm1677, %v8031, %v8033
      %v8035 = vrot.slane %v7975, 2
      %v8036 = vrot.slane %v7976, 2
      %v8037 = vsel %vm1677, %v8035, %v8036
      %v8038 = vrot.slane %v7977, 2
      %v8039 = vsel %vm1677, %v8036, %v8038
      %v8040 = vrot.slane %v7978, 2
      %v8041 = vrot.slane %v7979, 2
      %v8042 = vsel %vm1677, %v8040, %v8041
      %v8043 = vrot.slane %v7980, 2
      %v8044 = vsel %vm1677, %v8041, %v8043
      %v8061 = vadd.f32 %v7941, %v8007
      %v8062 = vadd.f32 %v7942, %v8009
      %v8063 = vadd.f32 %v7943, %v8012
      %v8064 = vadd.f32 %v7944, %v8014
      %v8065 = vadd.f32 %v7945, %v8017
      %v8066 = vadd.f32 %v7946, %v8019
      %v8067 = vadd.f32 %v7947, %v8022
      %v8068 = vadd.f32 %v7948, %v8024
      %v8069 = vadd.f32 %v7949, %v8027
      %v8070 = vadd.f32 %v7950, %v8029
      %v8071 = vadd.f32 %v7951, %v8032
      %v8072 = vadd.f32 %v7952, %v8034
      %v8073 = vadd.f32 %v7953, %v8037
      %v8074 = vadd.f32 %v7954, %v8039
      %v8075 = vadd.f32 %v7955, %v8042
      %v8076 = vadd.f32 %v7956, %v8044
      %v8077 = vmul.f32 %v6503, %v2125
      %v8078 = vmul.f32 %v6504, %v2125
      %v8079 = vmul.f32 %v6505, %v2125
      %v8080 = vmul.f32 %v6506, %v2125
      %v8081 = vmul.f32 %v6507, %v2125
      %v8082 = vmul.f32 %v6508, %v2125
      %v8083 = vmul.f32 %v6509, %v2125
      %v8084 = vmul.f32 %v6510, %v2125
      %v8085 = vmul.f32 %v6511, %v2125
      %v8086 = vmul.f32 %v6512, %v2125
      %v8087 = vmul.f32 %v6513, %v2125
      %v8088 = vmul.f32 %v6514, %v2125
      %v8089 = vmul.f32 %v6515, %v2125
      %v8090 = vmul.f32 %v6516, %v2125
      %v8091 = vmul.f32 %v6517, %v2125
      %v8092 = vmul.f32 %v6518, %v2125
      %v8093 = vmul.f32 %v6519, %v2125
      %v8094 = vmul.f32 %v6520, %v2125
      %v8095 = vmul.f32 %v6521, %v2125
      %v8096 = vmul.f32 %v6522, %v2125
      %v8097 = vmul.f32 %v6523, %v2125
      %v8098 = vmul.f32 %v6524, %v2125
      %v8099 = vmul.f32 %v6525, %v2125
      %v8100 = vmul.f32 %v6526, %v2125
      %v8125 = vrot.slane %v8077, 2
      %v8126 = vrot.slane %v8078, 2
      %v8127 = vsel %vm1677, %v8125, %v8126
      %v8128 = vrot.slane %v8079, 2
      %v8129 = vsel %vm1677, %v8126, %v8128
      %v8130 = vrot.slane %v8080, 2
      %v8131 = vrot.slane %v8081, 2
      %v8132 = vsel %vm1677, %v8130, %v8131
      %v8133 = vrot.slane %v8082, 2
      %v8134 = vsel %vm1677, %v8131, %v8133
      %v8135 = vrot.slane %v8083, 2
      %v8136 = vrot.slane %v8084, 2
      %v8137 = vsel %vm1677, %v8135, %v8136
      %v8138 = vrot.slane %v8085, 2
      %v8139 = vsel %vm1677, %v8136, %v8138
      %v8140 = vrot.slane %v8086, 2
      %v8141 = vrot.slane %v8087, 2
      %v8142 = vsel %vm1677, %v8140, %v8141
      %v8143 = vrot.slane %v8088, 2
      %v8144 = vsel %vm1677, %v8141, %v8143
      %v8145 = vrot.slane %v8089, 2
      %v8146 = vrot.slane %v8090, 2
      %v8147 = vsel %vm1677, %v8145, %v8146
      %v8148 = vrot.slane %v8091, 2
      %v8149 = vsel %vm1677, %v8146, %v8148
      %v8150 = vrot.slane %v8092, 2
      %v8151 = vrot.slane %v8093, 2
      %v8152 = vsel %vm1677, %v8150, %v8151
      %v8153 = vrot.slane %v8094, 2
      %v8154 = vsel %vm1677, %v8151, %v8153
      %v8155 = vrot.slane %v8095, 2
      %v8156 = vrot.slane %v8096, 2
      %v8157 = vsel %vm1677, %v8155, %v8156
      %v8158 = vrot.slane %v8097, 2
      %v8159 = vsel %vm1677, %v8156, %v8158
      %v8160 = vrot.slane %v8098, 2
      %v8161 = vrot.slane %v8099, 2
      %v8162 = vsel %vm1677, %v8160, %v8161
      %v8163 = vrot.slane %v8100, 2
      %v8164 = vsel %vm1677, %v8161, %v8163
      %v8181 = vadd.f32 %v8061, %v8127
      %v8182 = vadd.f32 %v8062, %v8129
      %v8183 = vadd.f32 %v8063, %v8132
      %v8184 = vadd.f32 %v8064, %v8134
      %v8185 = vadd.f32 %v8065, %v8137
      %v8186 = vadd.f32 %v8066, %v8139
      %v8187 = vadd.f32 %v8067, %v8142
      %v8188 = vadd.f32 %v8068, %v8144
      %v8189 = vadd.f32 %v8069, %v8147
      %v8190 = vadd.f32 %v8070, %v8149
      %v8191 = vadd.f32 %v8071, %v8152
      %v8192 = vadd.f32 %v8072, %v8154
      %v8193 = vadd.f32 %v8073, %v8157
      %v8194 = vadd.f32 %v8074, %v8159
      %v8195 = vadd.f32 %v8075, %v8162
      %v8196 = vadd.f32 %v8076, %v8164
      %v8197 = vmul.f32 %v6506, %v2249
      %v8198 = vmul.f32 %v6507, %v2249
      %v8199 = vmul.f32 %v6508, %v2249
      %v8200 = vmul.f32 %v6509, %v2249
      %v8201 = vmul.f32 %v6510, %v2249
      %v8202 = vmul.f32 %v6511, %v2249
      %v8203 = vmul.f32 %v6512, %v2249
      %v8204 = vmul.f32 %v6513, %v2249
      %v8205 = vmul.f32 %v6514, %v2249
      %v8206 = vmul.f32 %v6515, %v2249
      %v8207 = vmul.f32 %v6516, %v2249
      %v8208 = vmul.f32 %v6517, %v2249
      %v8209 = vmul.f32 %v6518, %v2249
      %v8210 = vmul.f32 %v6519, %v2249
      %v8211 = vmul.f32 %v6520, %v2249
      %v8212 = vmul.f32 %v6521, %v2249
      %v8213 = vmul.f32 %v6522, %v2249
      %v8214 = vmul.f32 %v6523, %v2249
      %v8215 = vmul.f32 %v6524, %v2249
      %v8216 = vmul.f32 %v6525, %v2249
      %v8217 = vmul.f32 %v6526, %v2249
      %v8218 = vmul.f32 %v6527, %v2249
      %v8219 = vmul.f32 %v6528, %v2249
      %v8220 = vmul.f32 %v6529, %v2249
      %v8245 = vrot.slane %v8197, 2
      %v8246 = vrot.slane %v8198, 2
      %v8247 = vsel %vm1677, %v8245, %v8246
      %v8248 = vrot.slane %v8199, 2
      %v8249 = vsel %vm1677, %v8246, %v8248
      %v8250 = vrot.slane %v8200, 2
      %v8251 = vrot.slane %v8201, 2
      %v8252 = vsel %vm1677, %v8250, %v8251
      %v8253 = vrot.slane %v8202, 2
      %v8254 = vsel %vm1677, %v8251, %v8253
      %v8255 = vrot.slane %v8203, 2
      %v8256 = vrot.slane %v8204, 2
      %v8257 = vsel %vm1677, %v8255, %v8256
      %v8258 = vrot.slane %v8205, 2
      %v8259 = vsel %vm1677, %v8256, %v8258
      %v8260 = vrot.slane %v8206, 2
      %v8261 = vrot.slane %v8207, 2
      %v8262 = vsel %vm1677, %v8260, %v8261
      %v8263 = vrot.slane %v8208, 2
      %v8264 = vsel %vm1677, %v8261, %v8263
      %v8265 = vrot.slane %v8209, 2
      %v8266 = vrot.slane %v8210, 2
      %v8267 = vsel %vm1677, %v8265, %v8266
      %v8268 = vrot.slane %v8211, 2
      %v8269 = vsel %vm1677, %v8266, %v8268
      %v8270 = vrot.slane %v8212, 2
      %v8271 = vrot.slane %v8213, 2
      %v8272 = vsel %vm1677, %v8270, %v8271
      %v8273 = vrot.slane %v8214, 2
      %v8274 = vsel %vm1677, %v8271, %v8273
      %v8275 = vrot.slane %v8215, 2
      %v8276 = vrot.slane %v8216, 2
      %v8277 = vsel %vm1677, %v8275, %v8276
      %v8278 = vrot.slane %v8217, 2
      %v8279 = vsel %vm1677, %v8276, %v8278
      %v8280 = vrot.slane %v8218, 2
      %v8281 = vrot.slane %v8219, 2
      %v8282 = vsel %vm1677, %v8280, %v8281
      %v8283 = vrot.slane %v8220, 2
      %v8284 = vsel %vm1677, %v8281, %v8283
      %v8301 = vadd.f32 %v8181, %v8247
      %v8302 = vadd.f32 %v8182, %v8249
      %v8303 = vadd.f32 %v8183, %v8252
      %v8304 = vadd.f32 %v8184, %v8254
      %v8305 = vadd.f32 %v8185, %v8257
      %v8306 = vadd.f32 %v8186, %v8259
      %v8307 = vadd.f32 %v8187, %v8262
      %v8308 = vadd.f32 %v8188, %v8264
      %v8309 = vadd.f32 %v8189, %v8267
      %v8310 = vadd.f32 %v8190, %v8269
      %v8311 = vadd.f32 %v8191, %v8272
      %v8312 = vadd.f32 %v8192, %v8274
      %v8313 = vadd.f32 %v8193, %v8277
      %v8314 = vadd.f32 %v8194, %v8279
      %v8315 = vadd.f32 %v8195, %v8282
      %v8316 = vadd.f32 %v8196, %v8284
      %v8317 = vmul.f32 %v6509, %v2373
      %v8318 = vmul.f32 %v6510, %v2373
      %v8319 = vmul.f32 %v6511, %v2373
      %v8320 = vmul.f32 %v6512, %v2373
      %v8321 = vmul.f32 %v6513, %v2373
      %v8322 = vmul.f32 %v6514, %v2373
      %v8323 = vmul.f32 %v6515, %v2373
      %v8324 = vmul.f32 %v6516, %v2373
      %v8325 = vmul.f32 %v6517, %v2373
      %v8326 = vmul.f32 %v6518, %v2373
      %v8327 = vmul.f32 %v6519, %v2373
      %v8328 = vmul.f32 %v6520, %v2373
      %v8329 = vmul.f32 %v6521, %v2373
      %v8330 = vmul.f32 %v6522, %v2373
      %v8331 = vmul.f32 %v6523, %v2373
      %v8332 = vmul.f32 %v6524, %v2373
      %v8333 = vmul.f32 %v6525, %v2373
      %v8334 = vmul.f32 %v6526, %v2373
      %v8335 = vmul.f32 %v6527, %v2373
      %v8336 = vmul.f32 %v6528, %v2373
      %v8337 = vmul.f32 %v6529, %v2373
      %v8338 = vmul.f32 %v6530, %v2373
      %v8339 = vmul.f32 %v6531, %v2373
      %v8340 = vmul.f32 %v6532, %v2373
      %v8365 = vrot.slane %v8317, 2
      %v8366 = vrot.slane %v8318, 2
      %v8367 = vsel %vm1677, %v8365, %v8366
      %v8368 = vrot.slane %v8319, 2
      %v8369 = vsel %vm1677, %v8366, %v8368
      %v8370 = vrot.slane %v8320, 2
      %v8371 = vrot.slane %v8321, 2
      %v8372 = vsel %vm1677, %v8370, %v8371
      %v8373 = vrot.slane %v8322, 2
      %v8374 = vsel %vm1677, %v8371, %v8373
      %v8375 = vrot.slane %v8323, 2
      %v8376 = vrot.slane %v8324, 2
      %v8377 = vsel %vm1677, %v8375, %v8376
      %v8378 = vrot.slane %v8325, 2
      %v8379 = vsel %vm1677, %v8376, %v8378
      %v8380 = vrot.slane %v8326, 2
      %v8381 = vrot.slane %v8327, 2
      %v8382 = vsel %vm1677, %v8380, %v8381
      %v8383 = vrot.slane %v8328, 2
      %v8384 = vsel %vm1677, %v8381, %v8383
      %v8385 = vrot.slane %v8329, 2
      %v8386 = vrot.slane %v8330, 2
      %v8387 = vsel %vm1677, %v8385, %v8386
      %v8388 = vrot.slane %v8331, 2
      %v8389 = vsel %vm1677, %v8386, %v8388
      %v8390 = vrot.slane %v8332, 2
      %v8391 = vrot.slane %v8333, 2
      %v8392 = vsel %vm1677, %v8390, %v8391
      %v8393 = vrot.slane %v8334, 2
      %v8394 = vsel %vm1677, %v8391, %v8393
      %v8395 = vrot.slane %v8335, 2
      %v8396 = vrot.slane %v8336, 2
      %v8397 = vsel %vm1677, %v8395, %v8396
      %v8398 = vrot.slane %v8337, 2
      %v8399 = vsel %vm1677, %v8396, %v8398
      %v8400 = vrot.slane %v8338, 2
      %v8401 = vrot.slane %v8339, 2
      %v8402 = vsel %vm1677, %v8400, %v8401
      %v8403 = vrot.slane %v8340, 2
      %v8404 = vsel %vm1677, %v8401, %v8403
      %v8421 = vadd.f32 %v8301, %v8367
      %v8422 = vadd.f32 %v8302, %v8369
      %v8423 = vadd.f32 %v8303, %v8372
      %v8424 = vadd.f32 %v8304, %v8374
      %v8425 = vadd.f32 %v8305, %v8377
      %v8426 = vadd.f32 %v8306, %v8379
      %v8427 = vadd.f32 %v8307, %v8382
      %v8428 = vadd.f32 %v8308, %v8384
      %v8429 = vadd.f32 %v8309, %v8387
      %v8430 = vadd.f32 %v8310, %v8389
      %v8431 = vadd.f32 %v8311, %v8392
      %v8432 = vadd.f32 %v8312, %v8394
      %v8433 = vadd.f32 %v8313, %v8397
      %v8434 = vadd.f32 %v8314, %v8399
      %v8435 = vadd.f32 %v8315, %v8402
      %v8436 = vadd.f32 %v8316, %v8404
      %v8437 = vmul.f32 %v6491, %v2497
      %v8438 = vmul.f32 %v6492, %v2497
      %v8439 = vmul.f32 %v6493, %v2497
      %v8440 = vmul.f32 %v6494, %v2497
      %v8441 = vmul.f32 %v6495, %v2497
      %v8442 = vmul.f32 %v6496, %v2497
      %v8443 = vmul.f32 %v6497, %v2497
      %v8444 = vmul.f32 %v6498, %v2497
      %v8445 = vmul.f32 %v6499, %v2497
      %v8446 = vmul.f32 %v6500, %v2497
      %v8447 = vmul.f32 %v6501, %v2497
      %v8448 = vmul.f32 %v6502, %v2497
      %v8449 = vmul.f32 %v6503, %v2497
      %v8450 = vmul.f32 %v6504, %v2497
      %v8451 = vmul.f32 %v6505, %v2497
      %v8452 = vmul.f32 %v6506, %v2497
      %v8453 = vmul.f32 %v6507, %v2497
      %v8454 = vmul.f32 %v6508, %v2497
      %v8455 = vmul.f32 %v6509, %v2497
      %v8456 = vmul.f32 %v6510, %v2497
      %v8457 = vmul.f32 %v6511, %v2497
      %v8458 = vmul.f32 %v6512, %v2497
      %v8459 = vmul.f32 %v6513, %v2497
      %v8460 = vmul.f32 %v6514, %v2497
      %v8485 = vrot.slane %v8437, 3
      %v8486 = vrot.slane %v8438, 3
      %v8487 = vsel %vm2546, %v8485, %v8486
      %v8488 = vrot.slane %v8439, 3
      %v8489 = vsel %vm2546, %v8486, %v8488
      %v8490 = vrot.slane %v8440, 3
      %v8491 = vrot.slane %v8441, 3
      %v8492 = vsel %vm2546, %v8490, %v8491
      %v8493 = vrot.slane %v8442, 3
      %v8494 = vsel %vm2546, %v8491, %v8493
      %v8495 = vrot.slane %v8443, 3
      %v8496 = vrot.slane %v8444, 3
      %v8497 = vsel %vm2546, %v8495, %v8496
      %v8498 = vrot.slane %v8445, 3
      %v8499 = vsel %vm2546, %v8496, %v8498
      %v8500 = vrot.slane %v8446, 3
      %v8501 = vrot.slane %v8447, 3
      %v8502 = vsel %vm2546, %v8500, %v8501
      %v8503 = vrot.slane %v8448, 3
      %v8504 = vsel %vm2546, %v8501, %v8503
      %v8505 = vrot.slane %v8449, 3
      %v8506 = vrot.slane %v8450, 3
      %v8507 = vsel %vm2546, %v8505, %v8506
      %v8508 = vrot.slane %v8451, 3
      %v8509 = vsel %vm2546, %v8506, %v8508
      %v8510 = vrot.slane %v8452, 3
      %v8511 = vrot.slane %v8453, 3
      %v8512 = vsel %vm2546, %v8510, %v8511
      %v8513 = vrot.slane %v8454, 3
      %v8514 = vsel %vm2546, %v8511, %v8513
      %v8515 = vrot.slane %v8455, 3
      %v8516 = vrot.slane %v8456, 3
      %v8517 = vsel %vm2546, %v8515, %v8516
      %v8518 = vrot.slane %v8457, 3
      %v8519 = vsel %vm2546, %v8516, %v8518
      %v8520 = vrot.slane %v8458, 3
      %v8521 = vrot.slane %v8459, 3
      %v8522 = vsel %vm2546, %v8520, %v8521
      %v8523 = vrot.slane %v8460, 3
      %v8524 = vsel %vm2546, %v8521, %v8523
      %v8541 = vadd.f32 %v8421, %v8487
      %v8542 = vadd.f32 %v8422, %v8489
      %v8543 = vadd.f32 %v8423, %v8492
      %v8544 = vadd.f32 %v8424, %v8494
      %v8545 = vadd.f32 %v8425, %v8497
      %v8546 = vadd.f32 %v8426, %v8499
      %v8547 = vadd.f32 %v8427, %v8502
      %v8548 = vadd.f32 %v8428, %v8504
      %v8549 = vadd.f32 %v8429, %v8507
      %v8550 = vadd.f32 %v8430, %v8509
      %v8551 = vadd.f32 %v8431, %v8512
      %v8552 = vadd.f32 %v8432, %v8514
      %v8553 = vadd.f32 %v8433, %v8517
      %v8554 = vadd.f32 %v8434, %v8519
      %v8555 = vadd.f32 %v8435, %v8522
      %v8556 = vadd.f32 %v8436, %v8524
      %v8557 = vmul.f32 %v6494, %v2622
      %v8558 = vmul.f32 %v6495, %v2622
      %v8559 = vmul.f32 %v6496, %v2622
      %v8560 = vmul.f32 %v6497, %v2622
      %v8561 = vmul.f32 %v6498, %v2622
      %v8562 = vmul.f32 %v6499, %v2622
      %v8563 = vmul.f32 %v6500, %v2622
      %v8564 = vmul.f32 %v6501, %v2622
      %v8565 = vmul.f32 %v6502, %v2622
      %v8566 = vmul.f32 %v6503, %v2622
      %v8567 = vmul.f32 %v6504, %v2622
      %v8568 = vmul.f32 %v6505, %v2622
      %v8569 = vmul.f32 %v6506, %v2622
      %v8570 = vmul.f32 %v6507, %v2622
      %v8571 = vmul.f32 %v6508, %v2622
      %v8572 = vmul.f32 %v6509, %v2622
      %v8573 = vmul.f32 %v6510, %v2622
      %v8574 = vmul.f32 %v6511, %v2622
      %v8575 = vmul.f32 %v6512, %v2622
      %v8576 = vmul.f32 %v6513, %v2622
      %v8577 = vmul.f32 %v6514, %v2622
      %v8578 = vmul.f32 %v6515, %v2622
      %v8579 = vmul.f32 %v6516, %v2622
      %v8580 = vmul.f32 %v6517, %v2622
      %v8605 = vrot.slane %v8557, 3
      %v8606 = vrot.slane %v8558, 3
      %v8607 = vsel %vm2546, %v8605, %v8606
      %v8608 = vrot.slane %v8559, 3
      %v8609 = vsel %vm2546, %v8606, %v8608
      %v8610 = vrot.slane %v8560, 3
      %v8611 = vrot.slane %v8561, 3
      %v8612 = vsel %vm2546, %v8610, %v8611
      %v8613 = vrot.slane %v8562, 3
      %v8614 = vsel %vm2546, %v8611, %v8613
      %v8615 = vrot.slane %v8563, 3
      %v8616 = vrot.slane %v8564, 3
      %v8617 = vsel %vm2546, %v8615, %v8616
      %v8618 = vrot.slane %v8565, 3
      %v8619 = vsel %vm2546, %v8616, %v8618
      %v8620 = vrot.slane %v8566, 3
      %v8621 = vrot.slane %v8567, 3
      %v8622 = vsel %vm2546, %v8620, %v8621
      %v8623 = vrot.slane %v8568, 3
      %v8624 = vsel %vm2546, %v8621, %v8623
      %v8625 = vrot.slane %v8569, 3
      %v8626 = vrot.slane %v8570, 3
      %v8627 = vsel %vm2546, %v8625, %v8626
      %v8628 = vrot.slane %v8571, 3
      %v8629 = vsel %vm2546, %v8626, %v8628
      %v8630 = vrot.slane %v8572, 3
      %v8631 = vrot.slane %v8573, 3
      %v8632 = vsel %vm2546, %v8630, %v8631
      %v8633 = vrot.slane %v8574, 3
      %v8634 = vsel %vm2546, %v8631, %v8633
      %v8635 = vrot.slane %v8575, 3
      %v8636 = vrot.slane %v8576, 3
      %v8637 = vsel %vm2546, %v8635, %v8636
      %v8638 = vrot.slane %v8577, 3
      %v8639 = vsel %vm2546, %v8636, %v8638
      %v8640 = vrot.slane %v8578, 3
      %v8641 = vrot.slane %v8579, 3
      %v8642 = vsel %vm2546, %v8640, %v8641
      %v8643 = vrot.slane %v8580, 3
      %v8644 = vsel %vm2546, %v8641, %v8643
      %v8661 = vadd.f32 %v8541, %v8607
      %v8662 = vadd.f32 %v8542, %v8609
      %v8663 = vadd.f32 %v8543, %v8612
      %v8664 = vadd.f32 %v8544, %v8614
      %v8665 = vadd.f32 %v8545, %v8617
      %v8666 = vadd.f32 %v8546, %v8619
      %v8667 = vadd.f32 %v8547, %v8622
      %v8668 = vadd.f32 %v8548, %v8624
      %v8669 = vadd.f32 %v8549, %v8627
      %v8670 = vadd.f32 %v8550, %v8629
      %v8671 = vadd.f32 %v8551, %v8632
      %v8672 = vadd.f32 %v8552, %v8634
      %v8673 = vadd.f32 %v8553, %v8637
      %v8674 = vadd.f32 %v8554, %v8639
      %v8675 = vadd.f32 %v8555, %v8642
      %v8676 = vadd.f32 %v8556, %v8644
      %v8677 = vmul.f32 %v6497, %v2746
      %v8678 = vmul.f32 %v6498, %v2746
      %v8679 = vmul.f32 %v6499, %v2746
      %v8680 = vmul.f32 %v6500, %v2746
      %v8681 = vmul.f32 %v6501, %v2746
      %v8682 = vmul.f32 %v6502, %v2746
      %v8683 = vmul.f32 %v6503, %v2746
      %v8684 = vmul.f32 %v6504, %v2746
      %v8685 = vmul.f32 %v6505, %v2746
      %v8686 = vmul.f32 %v6506, %v2746
      %v8687 = vmul.f32 %v6507, %v2746
      %v8688 = vmul.f32 %v6508, %v2746
      %v8689 = vmul.f32 %v6509, %v2746
      %v8690 = vmul.f32 %v6510, %v2746
      %v8691 = vmul.f32 %v6511, %v2746
      %v8692 = vmul.f32 %v6512, %v2746
      %v8693 = vmul.f32 %v6513, %v2746
      %v8694 = vmul.f32 %v6514, %v2746
      %v8695 = vmul.f32 %v6515, %v2746
      %v8696 = vmul.f32 %v6516, %v2746
      %v8697 = vmul.f32 %v6517, %v2746
      %v8698 = vmul.f32 %v6518, %v2746
      %v8699 = vmul.f32 %v6519, %v2746
      %v8700 = vmul.f32 %v6520, %v2746
      %v8725 = vrot.slane %v8677, 3
      %v8726 = vrot.slane %v8678, 3
      %v8727 = vsel %vm2546, %v8725, %v8726
      %v8728 = vrot.slane %v8679, 3
      %v8729 = vsel %vm2546, %v8726, %v8728
      %v8730 = vrot.slane %v8680, 3
      %v8731 = vrot.slane %v8681, 3
      %v8732 = vsel %vm2546, %v8730, %v8731
      %v8733 = vrot.slane %v8682, 3
      %v8734 = vsel %vm2546, %v8731, %v8733
      %v8735 = vrot.slane %v8683, 3
      %v8736 = vrot.slane %v8684, 3
      %v8737 = vsel %vm2546, %v8735, %v8736
      %v8738 = vrot.slane %v8685, 3
      %v8739 = vsel %vm2546, %v8736, %v8738
      %v8740 = vrot.slane %v8686, 3
      %v8741 = vrot.slane %v8687, 3
      %v8742 = vsel %vm2546, %v8740, %v8741
      %v8743 = vrot.slane %v8688, 3
      %v8744 = vsel %vm2546, %v8741, %v8743
      %v8745 = vrot.slane %v8689, 3
      %v8746 = vrot.slane %v8690, 3
      %v8747 = vsel %vm2546, %v8745, %v8746
      %v8748 = vrot.slane %v8691, 3
      %v8749 = vsel %vm2546, %v8746, %v8748
      %v8750 = vrot.slane %v8692, 3
      %v8751 = vrot.slane %v8693, 3
      %v8752 = vsel %vm2546, %v8750, %v8751
      %v8753 = vrot.slane %v8694, 3
      %v8754 = vsel %vm2546, %v8751, %v8753
      %v8755 = vrot.slane %v8695, 3
      %v8756 = vrot.slane %v8696, 3
      %v8757 = vsel %vm2546, %v8755, %v8756
      %v8758 = vrot.slane %v8697, 3
      %v8759 = vsel %vm2546, %v8756, %v8758
      %v8760 = vrot.slane %v8698, 3
      %v8761 = vrot.slane %v8699, 3
      %v8762 = vsel %vm2546, %v8760, %v8761
      %v8763 = vrot.slane %v8700, 3
      %v8764 = vsel %vm2546, %v8761, %v8763
      %v8781 = vadd.f32 %v8661, %v8727
      %v8782 = vadd.f32 %v8662, %v8729
      %v8783 = vadd.f32 %v8663, %v8732
      %v8784 = vadd.f32 %v8664, %v8734
      %v8785 = vadd.f32 %v8665, %v8737
      %v8786 = vadd.f32 %v8666, %v8739
      %v8787 = vadd.f32 %v8667, %v8742
      %v8788 = vadd.f32 %v8668, %v8744
      %v8789 = vadd.f32 %v8669, %v8747
      %v8790 = vadd.f32 %v8670, %v8749
      %v8791 = vadd.f32 %v8671, %v8752
      %v8792 = vadd.f32 %v8672, %v8754
      %v8793 = vadd.f32 %v8673, %v8757
      %v8794 = vadd.f32 %v8674, %v8759
      %v8795 = vadd.f32 %v8675, %v8762
      %v8796 = vadd.f32 %v8676, %v8764
      %v8797 = vmul.f32 %v6500, %v2870
      %v8798 = vmul.f32 %v6501, %v2870
      %v8799 = vmul.f32 %v6502, %v2870
      %v8800 = vmul.f32 %v6503, %v2870
      %v8801 = vmul.f32 %v6504, %v2870
      %v8802 = vmul.f32 %v6505, %v2870
      %v8803 = vmul.f32 %v6506, %v2870
      %v8804 = vmul.f32 %v6507, %v2870
      %v8805 = vmul.f32 %v6508, %v2870
      %v8806 = vmul.f32 %v6509, %v2870
      %v8807 = vmul.f32 %v6510, %v2870
      %v8808 = vmul.f32 %v6511, %v2870
      %v8809 = vmul.f32 %v6512, %v2870
      %v8810 = vmul.f32 %v6513, %v2870
      %v8811 = vmul.f32 %v6514, %v2870
      %v8812 = vmul.f32 %v6515, %v2870
      %v8813 = vmul.f32 %v6516, %v2870
      %v8814 = vmul.f32 %v6517, %v2870
      %v8815 = vmul.f32 %v6518, %v2870
      %v8816 = vmul.f32 %v6519, %v2870
      %v8817 = vmul.f32 %v6520, %v2870
      %v8818 = vmul.f32 %v6521, %v2870
      %v8819 = vmul.f32 %v6522, %v2870
      %v8820 = vmul.f32 %v6523, %v2870
      %v8845 = vrot.slane %v8797, 3
      %v8846 = vrot.slane %v8798, 3
      %v8847 = vsel %vm2546, %v8845, %v8846
      %v8848 = vrot.slane %v8799, 3
      %v8849 = vsel %vm2546, %v8846, %v8848
      %v8850 = vrot.slane %v8800, 3
      %v8851 = vrot.slane %v8801, 3
      %v8852 = vsel %vm2546, %v8850, %v8851
      %v8853 = vrot.slane %v8802, 3
      %v8854 = vsel %vm2546, %v8851, %v8853
      %v8855 = vrot.slane %v8803, 3
      %v8856 = vrot.slane %v8804, 3
      %v8857 = vsel %vm2546, %v8855, %v8856
      %v8858 = vrot.slane %v8805, 3
      %v8859 = vsel %vm2546, %v8856, %v8858
      %v8860 = vrot.slane %v8806, 3
      %v8861 = vrot.slane %v8807, 3
      %v8862 = vsel %vm2546, %v8860, %v8861
      %v8863 = vrot.slane %v8808, 3
      %v8864 = vsel %vm2546, %v8861, %v8863
      %v8865 = vrot.slane %v8809, 3
      %v8866 = vrot.slane %v8810, 3
      %v8867 = vsel %vm2546, %v8865, %v8866
      %v8868 = vrot.slane %v8811, 3
      %v8869 = vsel %vm2546, %v8866, %v8868
      %v8870 = vrot.slane %v8812, 3
      %v8871 = vrot.slane %v8813, 3
      %v8872 = vsel %vm2546, %v8870, %v8871
      %v8873 = vrot.slane %v8814, 3
      %v8874 = vsel %vm2546, %v8871, %v8873
      %v8875 = vrot.slane %v8815, 3
      %v8876 = vrot.slane %v8816, 3
      %v8877 = vsel %vm2546, %v8875, %v8876
      %v8878 = vrot.slane %v8817, 3
      %v8879 = vsel %vm2546, %v8876, %v8878
      %v8880 = vrot.slane %v8818, 3
      %v8881 = vrot.slane %v8819, 3
      %v8882 = vsel %vm2546, %v8880, %v8881
      %v8883 = vrot.slane %v8820, 3
      %v8884 = vsel %vm2546, %v8881, %v8883
      %v8901 = vadd.f32 %v8781, %v8847
      %v8902 = vadd.f32 %v8782, %v8849
      %v8903 = vadd.f32 %v8783, %v8852
      %v8904 = vadd.f32 %v8784, %v8854
      %v8905 = vadd.f32 %v8785, %v8857
      %v8906 = vadd.f32 %v8786, %v8859
      %v8907 = vadd.f32 %v8787, %v8862
      %v8908 = vadd.f32 %v8788, %v8864
      %v8909 = vadd.f32 %v8789, %v8867
      %v8910 = vadd.f32 %v8790, %v8869
      %v8911 = vadd.f32 %v8791, %v8872
      %v8912 = vadd.f32 %v8792, %v8874
      %v8913 = vadd.f32 %v8793, %v8877
      %v8914 = vadd.f32 %v8794, %v8879
      %v8915 = vadd.f32 %v8795, %v8882
      %v8916 = vadd.f32 %v8796, %v8884
      %v8917 = vmul.f32 %v6503, %v2994
      %v8918 = vmul.f32 %v6504, %v2994
      %v8919 = vmul.f32 %v6505, %v2994
      %v8920 = vmul.f32 %v6506, %v2994
      %v8921 = vmul.f32 %v6507, %v2994
      %v8922 = vmul.f32 %v6508, %v2994
      %v8923 = vmul.f32 %v6509, %v2994
      %v8924 = vmul.f32 %v6510, %v2994
      %v8925 = vmul.f32 %v6511, %v2994
      %v8926 = vmul.f32 %v6512, %v2994
      %v8927 = vmul.f32 %v6513, %v2994
      %v8928 = vmul.f32 %v6514, %v2994
      %v8929 = vmul.f32 %v6515, %v2994
      %v8930 = vmul.f32 %v6516, %v2994
      %v8931 = vmul.f32 %v6517, %v2994
      %v8932 = vmul.f32 %v6518, %v2994
      %v8933 = vmul.f32 %v6519, %v2994
      %v8934 = vmul.f32 %v6520, %v2994
      %v8935 = vmul.f32 %v6521, %v2994
      %v8936 = vmul.f32 %v6522, %v2994
      %v8937 = vmul.f32 %v6523, %v2994
      %v8938 = vmul.f32 %v6524, %v2994
      %v8939 = vmul.f32 %v6525, %v2994
      %v8940 = vmul.f32 %v6526, %v2994
      %v8965 = vrot.slane %v8917, 3
      %v8966 = vrot.slane %v8918, 3
      %v8967 = vsel %vm2546, %v8965, %v8966
      %v8968 = vrot.slane %v8919, 3
      %v8969 = vsel %vm2546, %v8966, %v8968
      %v8970 = vrot.slane %v8920, 3
      %v8971 = vrot.slane %v8921, 3
      %v8972 = vsel %vm2546, %v8970, %v8971
      %v8973 = vrot.slane %v8922, 3
      %v8974 = vsel %vm2546, %v8971, %v8973
      %v8975 = vrot.slane %v8923, 3
      %v8976 = vrot.slane %v8924, 3
      %v8977 = vsel %vm2546, %v8975, %v8976
      %v8978 = vrot.slane %v8925, 3
      %v8979 = vsel %vm2546, %v8976, %v8978
      %v8980 = vrot.slane %v8926, 3
      %v8981 = vrot.slane %v8927, 3
      %v8982 = vsel %vm2546, %v8980, %v8981
      %v8983 = vrot.slane %v8928, 3
      %v8984 = vsel %vm2546, %v8981, %v8983
      %v8985 = vrot.slane %v8929, 3
      %v8986 = vrot.slane %v8930, 3
      %v8987 = vsel %vm2546, %v8985, %v8986
      %v8988 = vrot.slane %v8931, 3
      %v8989 = vsel %vm2546, %v8986, %v8988
      %v8990 = vrot.slane %v8932, 3
      %v8991 = vrot.slane %v8933, 3
      %v8992 = vsel %vm2546, %v8990, %v8991
      %v8993 = vrot.slane %v8934, 3
      %v8994 = vsel %vm2546, %v8991, %v8993
      %v8995 = vrot.slane %v8935, 3
      %v8996 = vrot.slane %v8936, 3
      %v8997 = vsel %vm2546, %v8995, %v8996
      %v8998 = vrot.slane %v8937, 3
      %v8999 = vsel %vm2546, %v8996, %v8998
      %v9000 = vrot.slane %v8938, 3
      %v9001 = vrot.slane %v8939, 3
      %v9002 = vsel %vm2546, %v9000, %v9001
      %v9003 = vrot.slane %v8940, 3
      %v9004 = vsel %vm2546, %v9001, %v9003
      %v9021 = vadd.f32 %v8901, %v8967
      %v9022 = vadd.f32 %v8902, %v8969
      %v9023 = vadd.f32 %v8903, %v8972
      %v9024 = vadd.f32 %v8904, %v8974
      %v9025 = vadd.f32 %v8905, %v8977
      %v9026 = vadd.f32 %v8906, %v8979
      %v9027 = vadd.f32 %v8907, %v8982
      %v9028 = vadd.f32 %v8908, %v8984
      %v9029 = vadd.f32 %v8909, %v8987
      %v9030 = vadd.f32 %v8910, %v8989
      %v9031 = vadd.f32 %v8911, %v8992
      %v9032 = vadd.f32 %v8912, %v8994
      %v9033 = vadd.f32 %v8913, %v8997
      %v9034 = vadd.f32 %v8914, %v8999
      %v9035 = vadd.f32 %v8915, %v9002
      %v9036 = vadd.f32 %v8916, %v9004
      %v9037 = vmul.f32 %v6506, %v3118
      %v9038 = vmul.f32 %v6507, %v3118
      %v9039 = vmul.f32 %v6508, %v3118
      %v9040 = vmul.f32 %v6509, %v3118
      %v9041 = vmul.f32 %v6510, %v3118
      %v9042 = vmul.f32 %v6511, %v3118
      %v9043 = vmul.f32 %v6512, %v3118
      %v9044 = vmul.f32 %v6513, %v3118
      %v9045 = vmul.f32 %v6514, %v3118
      %v9046 = vmul.f32 %v6515, %v3118
      %v9047 = vmul.f32 %v6516, %v3118
      %v9048 = vmul.f32 %v6517, %v3118
      %v9049 = vmul.f32 %v6518, %v3118
      %v9050 = vmul.f32 %v6519, %v3118
      %v9051 = vmul.f32 %v6520, %v3118
      %v9052 = vmul.f32 %v6521, %v3118
      %v9053 = vmul.f32 %v6522, %v3118
      %v9054 = vmul.f32 %v6523, %v3118
      %v9055 = vmul.f32 %v6524, %v3118
      %v9056 = vmul.f32 %v6525, %v3118
      %v9057 = vmul.f32 %v6526, %v3118
      %v9058 = vmul.f32 %v6527, %v3118
      %v9059 = vmul.f32 %v6528, %v3118
      %v9060 = vmul.f32 %v6529, %v3118
      %v9085 = vrot.slane %v9037, 3
      %v9086 = vrot.slane %v9038, 3
      %v9087 = vsel %vm2546, %v9085, %v9086
      %v9088 = vrot.slane %v9039, 3
      %v9089 = vsel %vm2546, %v9086, %v9088
      %v9090 = vrot.slane %v9040, 3
      %v9091 = vrot.slane %v9041, 3
      %v9092 = vsel %vm2546, %v9090, %v9091
      %v9093 = vrot.slane %v9042, 3
      %v9094 = vsel %vm2546, %v9091, %v9093
      %v9095 = vrot.slane %v9043, 3
      %v9096 = vrot.slane %v9044, 3
      %v9097 = vsel %vm2546, %v9095, %v9096
      %v9098 = vrot.slane %v9045, 3
      %v9099 = vsel %vm2546, %v9096, %v9098
      %v9100 = vrot.slane %v9046, 3
      %v9101 = vrot.slane %v9047, 3
      %v9102 = vsel %vm2546, %v9100, %v9101
      %v9103 = vrot.slane %v9048, 3
      %v9104 = vsel %vm2546, %v9101, %v9103
      %v9105 = vrot.slane %v9049, 3
      %v9106 = vrot.slane %v9050, 3
      %v9107 = vsel %vm2546, %v9105, %v9106
      %v9108 = vrot.slane %v9051, 3
      %v9109 = vsel %vm2546, %v9106, %v9108
      %v9110 = vrot.slane %v9052, 3
      %v9111 = vrot.slane %v9053, 3
      %v9112 = vsel %vm2546, %v9110, %v9111
      %v9113 = vrot.slane %v9054, 3
      %v9114 = vsel %vm2546, %v9111, %v9113
      %v9115 = vrot.slane %v9055, 3
      %v9116 = vrot.slane %v9056, 3
      %v9117 = vsel %vm2546, %v9115, %v9116
      %v9118 = vrot.slane %v9057, 3
      %v9119 = vsel %vm2546, %v9116, %v9118
      %v9120 = vrot.slane %v9058, 3
      %v9121 = vrot.slane %v9059, 3
      %v9122 = vsel %vm2546, %v9120, %v9121
      %v9123 = vrot.slane %v9060, 3
      %v9124 = vsel %vm2546, %v9121, %v9123
      %v9141 = vadd.f32 %v9021, %v9087
      %v9142 = vadd.f32 %v9022, %v9089
      %v9143 = vadd.f32 %v9023, %v9092
      %v9144 = vadd.f32 %v9024, %v9094
      %v9145 = vadd.f32 %v9025, %v9097
      %v9146 = vadd.f32 %v9026, %v9099
      %v9147 = vadd.f32 %v9027, %v9102
      %v9148 = vadd.f32 %v9028, %v9104
      %v9149 = vadd.f32 %v9029, %v9107
      %v9150 = vadd.f32 %v9030, %v9109
      %v9151 = vadd.f32 %v9031, %v9112
      %v9152 = vadd.f32 %v9032, %v9114
      %v9153 = vadd.f32 %v9033, %v9117
      %v9154 = vadd.f32 %v9034, %v9119
      %v9155 = vadd.f32 %v9035, %v9122
      %v9156 = vadd.f32 %v9036, %v9124
      %v9157 = vmul.f32 %v6509, %v3242
      %v9158 = vmul.f32 %v6510, %v3242
      %v9159 = vmul.f32 %v6511, %v3242
      %v9160 = vmul.f32 %v6512, %v3242
      %v9161 = vmul.f32 %v6513, %v3242
      %v9162 = vmul.f32 %v6514, %v3242
      %v9163 = vmul.f32 %v6515, %v3242
      %v9164 = vmul.f32 %v6516, %v3242
      %v9165 = vmul.f32 %v6517, %v3242
      %v9166 = vmul.f32 %v6518, %v3242
      %v9167 = vmul.f32 %v6519, %v3242
      %v9168 = vmul.f32 %v6520, %v3242
      %v9169 = vmul.f32 %v6521, %v3242
      %v9170 = vmul.f32 %v6522, %v3242
      %v9171 = vmul.f32 %v6523, %v3242
      %v9172 = vmul.f32 %v6524, %v3242
      %v9173 = vmul.f32 %v6525, %v3242
      %v9174 = vmul.f32 %v6526, %v3242
      %v9175 = vmul.f32 %v6527, %v3242
      %v9176 = vmul.f32 %v6528, %v3242
      %v9177 = vmul.f32 %v6529, %v3242
      %v9178 = vmul.f32 %v6530, %v3242
      %v9179 = vmul.f32 %v6531, %v3242
      %v9180 = vmul.f32 %v6532, %v3242
      %v9205 = vrot.slane %v9157, 3
      %v9206 = vrot.slane %v9158, 3
      %v9207 = vsel %vm2546, %v9205, %v9206
      %v9208 = vrot.slane %v9159, 3
      %v9209 = vsel %vm2546, %v9206, %v9208
      %v9210 = vrot.slane %v9160, 3
      %v9211 = vrot.slane %v9161, 3
      %v9212 = vsel %vm2546, %v9210, %v9211
      %v9213 = vrot.slane %v9162, 3
      %v9214 = vsel %vm2546, %v9211, %v9213
      %v9215 = vrot.slane %v9163, 3
      %v9216 = vrot.slane %v9164, 3
      %v9217 = vsel %vm2546, %v9215, %v9216
      %v9218 = vrot.slane %v9165, 3
      %v9219 = vsel %vm2546, %v9216, %v9218
      %v9220 = vrot.slane %v9166, 3
      %v9221 = vrot.slane %v9167, 3
      %v9222 = vsel %vm2546, %v9220, %v9221
      %v9223 = vrot.slane %v9168, 3
      %v9224 = vsel %vm2546, %v9221, %v9223
      %v9225 = vrot.slane %v9169, 3
      %v9226 = vrot.slane %v9170, 3
      %v9227 = vsel %vm2546, %v9225, %v9226
      %v9228 = vrot.slane %v9171, 3
      %v9229 = vsel %vm2546, %v9226, %v9228
      %v9230 = vrot.slane %v9172, 3
      %v9231 = vrot.slane %v9173, 3
      %v9232 = vsel %vm2546, %v9230, %v9231
      %v9233 = vrot.slane %v9174, 3
      %v9234 = vsel %vm2546, %v9231, %v9233
      %v9235 = vrot.slane %v9175, 3
      %v9236 = vrot.slane %v9176, 3
      %v9237 = vsel %vm2546, %v9235, %v9236
      %v9238 = vrot.slane %v9177, 3
      %v9239 = vsel %vm2546, %v9236, %v9238
      %v9240 = vrot.slane %v9178, 3
      %v9241 = vrot.slane %v9179, 3
      %v9242 = vsel %vm2546, %v9240, %v9241
      %v9243 = vrot.slane %v9180, 3
      %v9244 = vsel %vm2546, %v9241, %v9243
      %v9261 = vadd.f32 %v9141, %v9207
      %v9262 = vadd.f32 %v9142, %v9209
      %v9263 = vadd.f32 %v9143, %v9212
      %v9264 = vadd.f32 %v9144, %v9214
      %v9265 = vadd.f32 %v9145, %v9217
      %v9266 = vadd.f32 %v9146, %v9219
      %v9267 = vadd.f32 %v9147, %v9222
      %v9268 = vadd.f32 %v9148, %v9224
      %v9269 = vadd.f32 %v9149, %v9227
      %v9270 = vadd.f32 %v9150, %v9229
      %v9271 = vadd.f32 %v9151, %v9232
      %v9272 = vadd.f32 %v9152, %v9234
      %v9273 = vadd.f32 %v9153, %v9237
      %v9274 = vadd.f32 %v9154, %v9239
      %v9275 = vadd.f32 %v9155, %v9242
      %v9276 = vadd.f32 %v9156, %v9244
      %v9277 = vmul.f32 %v6491, %v3366
      %v9278 = vmul.f32 %v6492, %v3366
      %v9279 = vmul.f32 %v6493, %v3366
      %v9280 = vmul.f32 %v6494, %v3366
      %v9281 = vmul.f32 %v6495, %v3366
      %v9282 = vmul.f32 %v6496, %v3366
      %v9283 = vmul.f32 %v6497, %v3366
      %v9284 = vmul.f32 %v6498, %v3366
      %v9285 = vmul.f32 %v6499, %v3366
      %v9286 = vmul.f32 %v6500, %v3366
      %v9287 = vmul.f32 %v6501, %v3366
      %v9288 = vmul.f32 %v6502, %v3366
      %v9289 = vmul.f32 %v6503, %v3366
      %v9290 = vmul.f32 %v6504, %v3366
      %v9291 = vmul.f32 %v6505, %v3366
      %v9292 = vmul.f32 %v6506, %v3366
      %v9293 = vmul.f32 %v6507, %v3366
      %v9294 = vmul.f32 %v6508, %v3366
      %v9295 = vmul.f32 %v6509, %v3366
      %v9296 = vmul.f32 %v6510, %v3366
      %v9297 = vmul.f32 %v6511, %v3366
      %v9298 = vmul.f32 %v6512, %v3366
      %v9299 = vmul.f32 %v6513, %v3366
      %v9300 = vmul.f32 %v6514, %v3366
      %v9325 = vrot.slane %v9277, 4
      %v9326 = vrot.slane %v9278, 4
      %v9327 = vsel %vm3415, %v9325, %v9326
      %v9328 = vrot.slane %v9279, 4
      %v9329 = vsel %vm3415, %v9326, %v9328
      %v9330 = vrot.slane %v9280, 4
      %v9331 = vrot.slane %v9281, 4
      %v9332 = vsel %vm3415, %v9330, %v9331
      %v9333 = vrot.slane %v9282, 4
      %v9334 = vsel %vm3415, %v9331, %v9333
      %v9335 = vrot.slane %v9283, 4
      %v9336 = vrot.slane %v9284, 4
      %v9337 = vsel %vm3415, %v9335, %v9336
      %v9338 = vrot.slane %v9285, 4
      %v9339 = vsel %vm3415, %v9336, %v9338
      %v9340 = vrot.slane %v9286, 4
      %v9341 = vrot.slane %v9287, 4
      %v9342 = vsel %vm3415, %v9340, %v9341
      %v9343 = vrot.slane %v9288, 4
      %v9344 = vsel %vm3415, %v9341, %v9343
      %v9345 = vrot.slane %v9289, 4
      %v9346 = vrot.slane %v9290, 4
      %v9347 = vsel %vm3415, %v9345, %v9346
      %v9348 = vrot.slane %v9291, 4
      %v9349 = vsel %vm3415, %v9346, %v9348
      %v9350 = vrot.slane %v9292, 4
      %v9351 = vrot.slane %v9293, 4
      %v9352 = vsel %vm3415, %v9350, %v9351
      %v9353 = vrot.slane %v9294, 4
      %v9354 = vsel %vm3415, %v9351, %v9353
      %v9355 = vrot.slane %v9295, 4
      %v9356 = vrot.slane %v9296, 4
      %v9357 = vsel %vm3415, %v9355, %v9356
      %v9358 = vrot.slane %v9297, 4
      %v9359 = vsel %vm3415, %v9356, %v9358
      %v9360 = vrot.slane %v9298, 4
      %v9361 = vrot.slane %v9299, 4
      %v9362 = vsel %vm3415, %v9360, %v9361
      %v9363 = vrot.slane %v9300, 4
      %v9364 = vsel %vm3415, %v9361, %v9363
      %v9381 = vadd.f32 %v9261, %v9327
      %v9382 = vadd.f32 %v9262, %v9329
      %v9383 = vadd.f32 %v9263, %v9332
      %v9384 = vadd.f32 %v9264, %v9334
      %v9385 = vadd.f32 %v9265, %v9337
      %v9386 = vadd.f32 %v9266, %v9339
      %v9387 = vadd.f32 %v9267, %v9342
      %v9388 = vadd.f32 %v9268, %v9344
      %v9389 = vadd.f32 %v9269, %v9347
      %v9390 = vadd.f32 %v9270, %v9349
      %v9391 = vadd.f32 %v9271, %v9352
      %v9392 = vadd.f32 %v9272, %v9354
      %v9393 = vadd.f32 %v9273, %v9357
      %v9394 = vadd.f32 %v9274, %v9359
      %v9395 = vadd.f32 %v9275, %v9362
      %v9396 = vadd.f32 %v9276, %v9364
      %v9397 = vmul.f32 %v6494, %v3491
      %v9398 = vmul.f32 %v6495, %v3491
      %v9399 = vmul.f32 %v6496, %v3491
      %v9400 = vmul.f32 %v6497, %v3491
      %v9401 = vmul.f32 %v6498, %v3491
      %v9402 = vmul.f32 %v6499, %v3491
      %v9403 = vmul.f32 %v6500, %v3491
      %v9404 = vmul.f32 %v6501, %v3491
      %v9405 = vmul.f32 %v6502, %v3491
      %v9406 = vmul.f32 %v6503, %v3491
      %v9407 = vmul.f32 %v6504, %v3491
      %v9408 = vmul.f32 %v6505, %v3491
      %v9409 = vmul.f32 %v6506, %v3491
      %v9410 = vmul.f32 %v6507, %v3491
      %v9411 = vmul.f32 %v6508, %v3491
      %v9412 = vmul.f32 %v6509, %v3491
      %v9413 = vmul.f32 %v6510, %v3491
      %v9414 = vmul.f32 %v6511, %v3491
      %v9415 = vmul.f32 %v6512, %v3491
      %v9416 = vmul.f32 %v6513, %v3491
      %v9417 = vmul.f32 %v6514, %v3491
      %v9418 = vmul.f32 %v6515, %v3491
      %v9419 = vmul.f32 %v6516, %v3491
      %v9420 = vmul.f32 %v6517, %v3491
      %v9445 = vrot.slane %v9397, 4
      %v9446 = vrot.slane %v9398, 4
      %v9447 = vsel %vm3415, %v9445, %v9446
      %v9448 = vrot.slane %v9399, 4
      %v9449 = vsel %vm3415, %v9446, %v9448
      %v9450 = vrot.slane %v9400, 4
      %v9451 = vrot.slane %v9401, 4
      %v9452 = vsel %vm3415, %v9450, %v9451
      %v9453 = vrot.slane %v9402, 4
      %v9454 = vsel %vm3415, %v9451, %v9453
      %v9455 = vrot.slane %v9403, 4
      %v9456 = vrot.slane %v9404, 4
      %v9457 = vsel %vm3415, %v9455, %v9456
      %v9458 = vrot.slane %v9405, 4
      %v9459 = vsel %vm3415, %v9456, %v9458
      %v9460 = vrot.slane %v9406, 4
      %v9461 = vrot.slane %v9407, 4
      %v9462 = vsel %vm3415, %v9460, %v9461
      %v9463 = vrot.slane %v9408, 4
      %v9464 = vsel %vm3415, %v9461, %v9463
      %v9465 = vrot.slane %v9409, 4
      %v9466 = vrot.slane %v9410, 4
      %v9467 = vsel %vm3415, %v9465, %v9466
      %v9468 = vrot.slane %v9411, 4
      %v9469 = vsel %vm3415, %v9466, %v9468
      %v9470 = vrot.slane %v9412, 4
      %v9471 = vrot.slane %v9413, 4
      %v9472 = vsel %vm3415, %v9470, %v9471
      %v9473 = vrot.slane %v9414, 4
      %v9474 = vsel %vm3415, %v9471, %v9473
      %v9475 = vrot.slane %v9415, 4
      %v9476 = vrot.slane %v9416, 4
      %v9477 = vsel %vm3415, %v9475, %v9476
      %v9478 = vrot.slane %v9417, 4
      %v9479 = vsel %vm3415, %v9476, %v9478
      %v9480 = vrot.slane %v9418, 4
      %v9481 = vrot.slane %v9419, 4
      %v9482 = vsel %vm3415, %v9480, %v9481
      %v9483 = vrot.slane %v9420, 4
      %v9484 = vsel %vm3415, %v9481, %v9483
      %v9501 = vadd.f32 %v9381, %v9447
      %v9502 = vadd.f32 %v9382, %v9449
      %v9503 = vadd.f32 %v9383, %v9452
      %v9504 = vadd.f32 %v9384, %v9454
      %v9505 = vadd.f32 %v9385, %v9457
      %v9506 = vadd.f32 %v9386, %v9459
      %v9507 = vadd.f32 %v9387, %v9462
      %v9508 = vadd.f32 %v9388, %v9464
      %v9509 = vadd.f32 %v9389, %v9467
      %v9510 = vadd.f32 %v9390, %v9469
      %v9511 = vadd.f32 %v9391, %v9472
      %v9512 = vadd.f32 %v9392, %v9474
      %v9513 = vadd.f32 %v9393, %v9477
      %v9514 = vadd.f32 %v9394, %v9479
      %v9515 = vadd.f32 %v9395, %v9482
      %v9516 = vadd.f32 %v9396, %v9484
      %v9517 = vmul.f32 %v6497, %v3615
      %v9518 = vmul.f32 %v6498, %v3615
      %v9519 = vmul.f32 %v6499, %v3615
      %v9520 = vmul.f32 %v6500, %v3615
      %v9521 = vmul.f32 %v6501, %v3615
      %v9522 = vmul.f32 %v6502, %v3615
      %v9523 = vmul.f32 %v6503, %v3615
      %v9524 = vmul.f32 %v6504, %v3615
      %v9525 = vmul.f32 %v6505, %v3615
      %v9526 = vmul.f32 %v6506, %v3615
      %v9527 = vmul.f32 %v6507, %v3615
      %v9528 = vmul.f32 %v6508, %v3615
      %v9529 = vmul.f32 %v6509, %v3615
      %v9530 = vmul.f32 %v6510, %v3615
      %v9531 = vmul.f32 %v6511, %v3615
      %v9532 = vmul.f32 %v6512, %v3615
      %v9533 = vmul.f32 %v6513, %v3615
      %v9534 = vmul.f32 %v6514, %v3615
      %v9535 = vmul.f32 %v6515, %v3615
      %v9536 = vmul.f32 %v6516, %v3615
      %v9537 = vmul.f32 %v6517, %v3615
      %v9538 = vmul.f32 %v6518, %v3615
      %v9539 = vmul.f32 %v6519, %v3615
      %v9540 = vmul.f32 %v6520, %v3615
      %v9565 = vrot.slane %v9517, 4
      %v9566 = vrot.slane %v9518, 4
      %v9567 = vsel %vm3415, %v9565, %v9566
      %v9568 = vrot.slane %v9519, 4
      %v9569 = vsel %vm3415, %v9566, %v9568
      %v9570 = vrot.slane %v9520, 4
      %v9571 = vrot.slane %v9521, 4
      %v9572 = vsel %vm3415, %v9570, %v9571
      %v9573 = vrot.slane %v9522, 4
      %v9574 = vsel %vm3415, %v9571, %v9573
      %v9575 = vrot.slane %v9523, 4
      %v9576 = vrot.slane %v9524, 4
      %v9577 = vsel %vm3415, %v9575, %v9576
      %v9578 = vrot.slane %v9525, 4
      %v9579 = vsel %vm3415, %v9576, %v9578
      %v9580 = vrot.slane %v9526, 4
      %v9581 = vrot.slane %v9527, 4
      %v9582 = vsel %vm3415, %v9580, %v9581
      %v9583 = vrot.slane %v9528, 4
      %v9584 = vsel %vm3415, %v9581, %v9583
      %v9585 = vrot.slane %v9529, 4
      %v9586 = vrot.slane %v9530, 4
      %v9587 = vsel %vm3415, %v9585, %v9586
      %v9588 = vrot.slane %v9531, 4
      %v9589 = vsel %vm3415, %v9586, %v9588
      %v9590 = vrot.slane %v9532, 4
      %v9591 = vrot.slane %v9533, 4
      %v9592 = vsel %vm3415, %v9590, %v9591
      %v9593 = vrot.slane %v9534, 4
      %v9594 = vsel %vm3415, %v9591, %v9593
      %v9595 = vrot.slane %v9535, 4
      %v9596 = vrot.slane %v9536, 4
      %v9597 = vsel %vm3415, %v9595, %v9596
      %v9598 = vrot.slane %v9537, 4
      %v9599 = vsel %vm3415, %v9596, %v9598
      %v9600 = vrot.slane %v9538, 4
      %v9601 = vrot.slane %v9539, 4
      %v9602 = vsel %vm3415, %v9600, %v9601
      %v9603 = vrot.slane %v9540, 4
      %v9604 = vsel %vm3415, %v9601, %v9603
      %v9621 = vadd.f32 %v9501, %v9567
      %v9622 = vadd.f32 %v9502, %v9569
      %v9623 = vadd.f32 %v9503, %v9572
      %v9624 = vadd.f32 %v9504, %v9574
      %v9625 = vadd.f32 %v9505, %v9577
      %v9626 = vadd.f32 %v9506, %v9579
      %v9627 = vadd.f32 %v9507, %v9582
      %v9628 = vadd.f32 %v9508, %v9584
      %v9629 = vadd.f32 %v9509, %v9587
      %v9630 = vadd.f32 %v9510, %v9589
      %v9631 = vadd.f32 %v9511, %v9592
      %v9632 = vadd.f32 %v9512, %v9594
      %v9633 = vadd.f32 %v9513, %v9597
      %v9634 = vadd.f32 %v9514, %v9599
      %v9635 = vadd.f32 %v9515, %v9602
      %v9636 = vadd.f32 %v9516, %v9604
      %v9637 = vmul.f32 %v6500, %v3739
      %v9638 = vmul.f32 %v6501, %v3739
      %v9639 = vmul.f32 %v6502, %v3739
      %v9640 = vmul.f32 %v6503, %v3739
      %v9641 = vmul.f32 %v6504, %v3739
      %v9642 = vmul.f32 %v6505, %v3739
      %v9643 = vmul.f32 %v6506, %v3739
      %v9644 = vmul.f32 %v6507, %v3739
      %v9645 = vmul.f32 %v6508, %v3739
      %v9646 = vmul.f32 %v6509, %v3739
      %v9647 = vmul.f32 %v6510, %v3739
      %v9648 = vmul.f32 %v6511, %v3739
      %v9649 = vmul.f32 %v6512, %v3739
      %v9650 = vmul.f32 %v6513, %v3739
      %v9651 = vmul.f32 %v6514, %v3739
      %v9652 = vmul.f32 %v6515, %v3739
      %v9653 = vmul.f32 %v6516, %v3739
      %v9654 = vmul.f32 %v6517, %v3739
      %v9655 = vmul.f32 %v6518, %v3739
      %v9656 = vmul.f32 %v6519, %v3739
      %v9657 = vmul.f32 %v6520, %v3739
      %v9658 = vmul.f32 %v6521, %v3739
      %v9659 = vmul.f32 %v6522, %v3739
      %v9660 = vmul.f32 %v6523, %v3739
      %v9685 = vrot.slane %v9637, 4
      %v9686 = vrot.slane %v9638, 4
      %v9687 = vsel %vm3415, %v9685, %v9686
      %v9688 = vrot.slane %v9639, 4
      %v9689 = vsel %vm3415, %v9686, %v9688
      %v9690 = vrot.slane %v9640, 4
      %v9691 = vrot.slane %v9641, 4
      %v9692 = vsel %vm3415, %v9690, %v9691
      %v9693 = vrot.slane %v9642, 4
      %v9694 = vsel %vm3415, %v9691, %v9693
      %v9695 = vrot.slane %v9643, 4
      %v9696 = vrot.slane %v9644, 4
      %v9697 = vsel %vm3415, %v9695, %v9696
      %v9698 = vrot.slane %v9645, 4
      %v9699 = vsel %vm3415, %v9696, %v9698
      %v9700 = vrot.slane %v9646, 4
      %v9701 = vrot.slane %v9647, 4
      %v9702 = vsel %vm3415, %v9700, %v9701
      %v9703 = vrot.slane %v9648, 4
      %v9704 = vsel %vm3415, %v9701, %v9703
      %v9705 = vrot.slane %v9649, 4
      %v9706 = vrot.slane %v9650, 4
      %v9707 = vsel %vm3415, %v9705, %v9706
      %v9708 = vrot.slane %v9651, 4
      %v9709 = vsel %vm3415, %v9706, %v9708
      %v9710 = vrot.slane %v9652, 4
      %v9711 = vrot.slane %v9653, 4
      %v9712 = vsel %vm3415, %v9710, %v9711
      %v9713 = vrot.slane %v9654, 4
      %v9714 = vsel %vm3415, %v9711, %v9713
      %v9715 = vrot.slane %v9655, 4
      %v9716 = vrot.slane %v9656, 4
      %v9717 = vsel %vm3415, %v9715, %v9716
      %v9718 = vrot.slane %v9657, 4
      %v9719 = vsel %vm3415, %v9716, %v9718
      %v9720 = vrot.slane %v9658, 4
      %v9721 = vrot.slane %v9659, 4
      %v9722 = vsel %vm3415, %v9720, %v9721
      %v9723 = vrot.slane %v9660, 4
      %v9724 = vsel %vm3415, %v9721, %v9723
      %v9741 = vadd.f32 %v9621, %v9687
      %v9742 = vadd.f32 %v9622, %v9689
      %v9743 = vadd.f32 %v9623, %v9692
      %v9744 = vadd.f32 %v9624, %v9694
      %v9745 = vadd.f32 %v9625, %v9697
      %v9746 = vadd.f32 %v9626, %v9699
      %v9747 = vadd.f32 %v9627, %v9702
      %v9748 = vadd.f32 %v9628, %v9704
      %v9749 = vadd.f32 %v9629, %v9707
      %v9750 = vadd.f32 %v9630, %v9709
      %v9751 = vadd.f32 %v9631, %v9712
      %v9752 = vadd.f32 %v9632, %v9714
      %v9753 = vadd.f32 %v9633, %v9717
      %v9754 = vadd.f32 %v9634, %v9719
      %v9755 = vadd.f32 %v9635, %v9722
      %v9756 = vadd.f32 %v9636, %v9724
      %v9757 = vmul.f32 %v6503, %v3863
      %v9758 = vmul.f32 %v6504, %v3863
      %v9759 = vmul.f32 %v6505, %v3863
      %v9760 = vmul.f32 %v6506, %v3863
      %v9761 = vmul.f32 %v6507, %v3863
      %v9762 = vmul.f32 %v6508, %v3863
      %v9763 = vmul.f32 %v6509, %v3863
      %v9764 = vmul.f32 %v6510, %v3863
      %v9765 = vmul.f32 %v6511, %v3863
      %v9766 = vmul.f32 %v6512, %v3863
      %v9767 = vmul.f32 %v6513, %v3863
      %v9768 = vmul.f32 %v6514, %v3863
      %v9769 = vmul.f32 %v6515, %v3863
      %v9770 = vmul.f32 %v6516, %v3863
      %v9771 = vmul.f32 %v6517, %v3863
      %v9772 = vmul.f32 %v6518, %v3863
      %v9773 = vmul.f32 %v6519, %v3863
      %v9774 = vmul.f32 %v6520, %v3863
      %v9775 = vmul.f32 %v6521, %v3863
      %v9776 = vmul.f32 %v6522, %v3863
      %v9777 = vmul.f32 %v6523, %v3863
      %v9778 = vmul.f32 %v6524, %v3863
      %v9779 = vmul.f32 %v6525, %v3863
      %v9780 = vmul.f32 %v6526, %v3863
      %v9805 = vrot.slane %v9757, 4
      %v9806 = vrot.slane %v9758, 4
      %v9807 = vsel %vm3415, %v9805, %v9806
      %v9808 = vrot.slane %v9759, 4
      %v9809 = vsel %vm3415, %v9806, %v9808
      %v9810 = vrot.slane %v9760, 4
      %v9811 = vrot.slane %v9761, 4
      %v9812 = vsel %vm3415, %v9810, %v9811
      %v9813 = vrot.slane %v9762, 4
      %v9814 = vsel %vm3415, %v9811, %v9813
      %v9815 = vrot.slane %v9763, 4
      %v9816 = vrot.slane %v9764, 4
      %v9817 = vsel %vm3415, %v9815, %v9816
      %v9818 = vrot.slane %v9765, 4
      %v9819 = vsel %vm3415, %v9816, %v9818
      %v9820 = vrot.slane %v9766, 4
      %v9821 = vrot.slane %v9767, 4
      %v9822 = vsel %vm3415, %v9820, %v9821
      %v9823 = vrot.slane %v9768, 4
      %v9824 = vsel %vm3415, %v9821, %v9823
      %v9825 = vrot.slane %v9769, 4
      %v9826 = vrot.slane %v9770, 4
      %v9827 = vsel %vm3415, %v9825, %v9826
      %v9828 = vrot.slane %v9771, 4
      %v9829 = vsel %vm3415, %v9826, %v9828
      %v9830 = vrot.slane %v9772, 4
      %v9831 = vrot.slane %v9773, 4
      %v9832 = vsel %vm3415, %v9830, %v9831
      %v9833 = vrot.slane %v9774, 4
      %v9834 = vsel %vm3415, %v9831, %v9833
      %v9835 = vrot.slane %v9775, 4
      %v9836 = vrot.slane %v9776, 4
      %v9837 = vsel %vm3415, %v9835, %v9836
      %v9838 = vrot.slane %v9777, 4
      %v9839 = vsel %vm3415, %v9836, %v9838
      %v9840 = vrot.slane %v9778, 4
      %v9841 = vrot.slane %v9779, 4
      %v9842 = vsel %vm3415, %v9840, %v9841
      %v9843 = vrot.slane %v9780, 4
      %v9844 = vsel %vm3415, %v9841, %v9843
      %v9861 = vadd.f32 %v9741, %v9807
      %v9862 = vadd.f32 %v9742, %v9809
      %v9863 = vadd.f32 %v9743, %v9812
      %v9864 = vadd.f32 %v9744, %v9814
      %v9865 = vadd.f32 %v9745, %v9817
      %v9866 = vadd.f32 %v9746, %v9819
      %v9867 = vadd.f32 %v9747, %v9822
      %v9868 = vadd.f32 %v9748, %v9824
      %v9869 = vadd.f32 %v9749, %v9827
      %v9870 = vadd.f32 %v9750, %v9829
      %v9871 = vadd.f32 %v9751, %v9832
      %v9872 = vadd.f32 %v9752, %v9834
      %v9873 = vadd.f32 %v9753, %v9837
      %v9874 = vadd.f32 %v9754, %v9839
      %v9875 = vadd.f32 %v9755, %v9842
      %v9876 = vadd.f32 %v9756, %v9844
      %v9877 = vmul.f32 %v6506, %v3987
      %v9878 = vmul.f32 %v6507, %v3987
      %v9879 = vmul.f32 %v6508, %v3987
      %v9880 = vmul.f32 %v6509, %v3987
      %v9881 = vmul.f32 %v6510, %v3987
      %v9882 = vmul.f32 %v6511, %v3987
      %v9883 = vmul.f32 %v6512, %v3987
      %v9884 = vmul.f32 %v6513, %v3987
      %v9885 = vmul.f32 %v6514, %v3987
      %v9886 = vmul.f32 %v6515, %v3987
      %v9887 = vmul.f32 %v6516, %v3987
      %v9888 = vmul.f32 %v6517, %v3987
      %v9889 = vmul.f32 %v6518, %v3987
      %v9890 = vmul.f32 %v6519, %v3987
      %v9891 = vmul.f32 %v6520, %v3987
      %v9892 = vmul.f32 %v6521, %v3987
      %v9893 = vmul.f32 %v6522, %v3987
      %v9894 = vmul.f32 %v6523, %v3987
      %v9895 = vmul.f32 %v6524, %v3987
      %v9896 = vmul.f32 %v6525, %v3987
      %v9897 = vmul.f32 %v6526, %v3987
      %v9898 = vmul.f32 %v6527, %v3987
      %v9899 = vmul.f32 %v6528, %v3987
      %v9900 = vmul.f32 %v6529, %v3987
      %v9925 = vrot.slane %v9877, 4
      %v9926 = vrot.slane %v9878, 4
      %v9927 = vsel %vm3415, %v9925, %v9926
      %v9928 = vrot.slane %v9879, 4
      %v9929 = vsel %vm3415, %v9926, %v9928
      %v9930 = vrot.slane %v9880, 4
      %v9931 = vrot.slane %v9881, 4
      %v9932 = vsel %vm3415, %v9930, %v9931
      %v9933 = vrot.slane %v9882, 4
      %v9934 = vsel %vm3415, %v9931, %v9933
      %v9935 = vrot.slane %v9883, 4
      %v9936 = vrot.slane %v9884, 4
      %v9937 = vsel %vm3415, %v9935, %v9936
      %v9938 = vrot.slane %v9885, 4
      %v9939 = vsel %vm3415, %v9936, %v9938
      %v9940 = vrot.slane %v9886, 4
      %v9941 = vrot.slane %v9887, 4
      %v9942 = vsel %vm3415, %v9940, %v9941
      %v9943 = vrot.slane %v9888, 4
      %v9944 = vsel %vm3415, %v9941, %v9943
      %v9945 = vrot.slane %v9889, 4
      %v9946 = vrot.slane %v9890, 4
      %v9947 = vsel %vm3415, %v9945, %v9946
      %v9948 = vrot.slane %v9891, 4
      %v9949 = vsel %vm3415, %v9946, %v9948
      %v9950 = vrot.slane %v9892, 4
      %v9951 = vrot.slane %v9893, 4
      %v9952 = vsel %vm3415, %v9950, %v9951
      %v9953 = vrot.slane %v9894, 4
      %v9954 = vsel %vm3415, %v9951, %v9953
      %v9955 = vrot.slane %v9895, 4
      %v9956 = vrot.slane %v9896, 4
      %v9957 = vsel %vm3415, %v9955, %v9956
      %v9958 = vrot.slane %v9897, 4
      %v9959 = vsel %vm3415, %v9956, %v9958
      %v9960 = vrot.slane %v9898, 4
      %v9961 = vrot.slane %v9899, 4
      %v9962 = vsel %vm3415, %v9960, %v9961
      %v9963 = vrot.slane %v9900, 4
      %v9964 = vsel %vm3415, %v9961, %v9963
      %v9981 = vadd.f32 %v9861, %v9927
      %v9982 = vadd.f32 %v9862, %v9929
      %v9983 = vadd.f32 %v9863, %v9932
      %v9984 = vadd.f32 %v9864, %v9934
      %v9985 = vadd.f32 %v9865, %v9937
      %v9986 = vadd.f32 %v9866, %v9939
      %v9987 = vadd.f32 %v9867, %v9942
      %v9988 = vadd.f32 %v9868, %v9944
      %v9989 = vadd.f32 %v9869, %v9947
      %v9990 = vadd.f32 %v9870, %v9949
      %v9991 = vadd.f32 %v9871, %v9952
      %v9992 = vadd.f32 %v9872, %v9954
      %v9993 = vadd.f32 %v9873, %v9957
      %v9994 = vadd.f32 %v9874, %v9959
      %v9995 = vadd.f32 %v9875, %v9962
      %v9996 = vadd.f32 %v9876, %v9964
      %v9997 = vmul.f32 %v6509, %v4111
      %v9998 = vmul.f32 %v6510, %v4111
      %v9999 = vmul.f32 %v6511, %v4111
      %v10000 = vmul.f32 %v6512, %v4111
      %v10001 = vmul.f32 %v6513, %v4111
      %v10002 = vmul.f32 %v6514, %v4111
      %v10003 = vmul.f32 %v6515, %v4111
      %v10004 = vmul.f32 %v6516, %v4111
      %v10005 = vmul.f32 %v6517, %v4111
      %v10006 = vmul.f32 %v6518, %v4111
      %v10007 = vmul.f32 %v6519, %v4111
      %v10008 = vmul.f32 %v6520, %v4111
      %v10009 = vmul.f32 %v6521, %v4111
      %v10010 = vmul.f32 %v6522, %v4111
      %v10011 = vmul.f32 %v6523, %v4111
      %v10012 = vmul.f32 %v6524, %v4111
      %v10013 = vmul.f32 %v6525, %v4111
      %v10014 = vmul.f32 %v6526, %v4111
      %v10015 = vmul.f32 %v6527, %v4111
      %v10016 = vmul.f32 %v6528, %v4111
      %v10017 = vmul.f32 %v6529, %v4111
      %v10018 = vmul.f32 %v6530, %v4111
      %v10019 = vmul.f32 %v6531, %v4111
      %v10020 = vmul.f32 %v6532, %v4111
      %v10045 = vrot.slane %v9997, 4
      %v10046 = vrot.slane %v9998, 4
      %v10047 = vsel %vm3415, %v10045, %v10046
      %v10048 = vrot.slane %v9999, 4
      %v10049 = vsel %vm3415, %v10046, %v10048
      %v10050 = vrot.slane %v10000, 4
      %v10051 = vrot.slane %v10001, 4
      %v10052 = vsel %vm3415, %v10050, %v10051
      %v10053 = vrot.slane %v10002, 4
      %v10054 = vsel %vm3415, %v10051, %v10053
      %v10055 = vrot.slane %v10003, 4
      %v10056 = vrot.slane %v10004, 4
      %v10057 = vsel %vm3415, %v10055, %v10056
      %v10058 = vrot.slane %v10005, 4
      %v10059 = vsel %vm3415, %v10056, %v10058
      %v10060 = vrot.slane %v10006, 4
      %v10061 = vrot.slane %v10007, 4
      %v10062 = vsel %vm3415, %v10060, %v10061
      %v10063 = vrot.slane %v10008, 4
      %v10064 = vsel %vm3415, %v10061, %v10063
      %v10065 = vrot.slane %v10009, 4
      %v10066 = vrot.slane %v10010, 4
      %v10067 = vsel %vm3415, %v10065, %v10066
      %v10068 = vrot.slane %v10011, 4
      %v10069 = vsel %vm3415, %v10066, %v10068
      %v10070 = vrot.slane %v10012, 4
      %v10071 = vrot.slane %v10013, 4
      %v10072 = vsel %vm3415, %v10070, %v10071
      %v10073 = vrot.slane %v10014, 4
      %v10074 = vsel %vm3415, %v10071, %v10073
      %v10075 = vrot.slane %v10015, 4
      %v10076 = vrot.slane %v10016, 4
      %v10077 = vsel %vm3415, %v10075, %v10076
      %v10078 = vrot.slane %v10017, 4
      %v10079 = vsel %vm3415, %v10076, %v10078
      %v10080 = vrot.slane %v10018, 4
      %v10081 = vrot.slane %v10019, 4
      %v10082 = vsel %vm3415, %v10080, %v10081
      %v10083 = vrot.slane %v10020, 4
      %v10084 = vsel %vm3415, %v10081, %v10083
      %v10101 = vadd.f32 %v9981, %v10047
      %v10102 = vadd.f32 %v9982, %v10049
      %v10103 = vadd.f32 %v9983, %v10052
      %v10104 = vadd.f32 %v9984, %v10054
      %v10105 = vadd.f32 %v9985, %v10057
      %v10106 = vadd.f32 %v9986, %v10059
      %v10107 = vadd.f32 %v9987, %v10062
      %v10108 = vadd.f32 %v9988, %v10064
      %v10109 = vadd.f32 %v9989, %v10067
      %v10110 = vadd.f32 %v9990, %v10069
      %v10111 = vadd.f32 %v9991, %v10072
      %v10112 = vadd.f32 %v9992, %v10074
      %v10113 = vadd.f32 %v9993, %v10077
      %v10114 = vadd.f32 %v9994, %v10079
      %v10115 = vadd.f32 %v9995, %v10082
      %v10116 = vadd.f32 %v9996, %v10084
      %v10117 = vmul.f32 %v6491, %v4235
      %v10118 = vmul.f32 %v6492, %v4235
      %v10119 = vmul.f32 %v6493, %v4235
      %v10120 = vmul.f32 %v6494, %v4235
      %v10121 = vmul.f32 %v6495, %v4235
      %v10122 = vmul.f32 %v6496, %v4235
      %v10123 = vmul.f32 %v6497, %v4235
      %v10124 = vmul.f32 %v6498, %v4235
      %v10125 = vmul.f32 %v6499, %v4235
      %v10126 = vmul.f32 %v6500, %v4235
      %v10127 = vmul.f32 %v6501, %v4235
      %v10128 = vmul.f32 %v6502, %v4235
      %v10129 = vmul.f32 %v6503, %v4235
      %v10130 = vmul.f32 %v6504, %v4235
      %v10131 = vmul.f32 %v6505, %v4235
      %v10132 = vmul.f32 %v6506, %v4235
      %v10133 = vmul.f32 %v6507, %v4235
      %v10134 = vmul.f32 %v6508, %v4235
      %v10135 = vmul.f32 %v6509, %v4235
      %v10136 = vmul.f32 %v6510, %v4235
      %v10137 = vmul.f32 %v6511, %v4235
      %v10138 = vmul.f32 %v6512, %v4235
      %v10139 = vmul.f32 %v6513, %v4235
      %v10140 = vmul.f32 %v6514, %v4235
      %v10165 = vrot.slane %v10117, 5
      %v10166 = vrot.slane %v10118, 5
      %v10167 = vsel %vm4284, %v10165, %v10166
      %v10168 = vrot.slane %v10119, 5
      %v10169 = vsel %vm4284, %v10166, %v10168
      %v10170 = vrot.slane %v10120, 5
      %v10171 = vrot.slane %v10121, 5
      %v10172 = vsel %vm4284, %v10170, %v10171
      %v10173 = vrot.slane %v10122, 5
      %v10174 = vsel %vm4284, %v10171, %v10173
      %v10175 = vrot.slane %v10123, 5
      %v10176 = vrot.slane %v10124, 5
      %v10177 = vsel %vm4284, %v10175, %v10176
      %v10178 = vrot.slane %v10125, 5
      %v10179 = vsel %vm4284, %v10176, %v10178
      %v10180 = vrot.slane %v10126, 5
      %v10181 = vrot.slane %v10127, 5
      %v10182 = vsel %vm4284, %v10180, %v10181
      %v10183 = vrot.slane %v10128, 5
      %v10184 = vsel %vm4284, %v10181, %v10183
      %v10185 = vrot.slane %v10129, 5
      %v10186 = vrot.slane %v10130, 5
      %v10187 = vsel %vm4284, %v10185, %v10186
      %v10188 = vrot.slane %v10131, 5
      %v10189 = vsel %vm4284, %v10186, %v10188
      %v10190 = vrot.slane %v10132, 5
      %v10191 = vrot.slane %v10133, 5
      %v10192 = vsel %vm4284, %v10190, %v10191
      %v10193 = vrot.slane %v10134, 5
      %v10194 = vsel %vm4284, %v10191, %v10193
      %v10195 = vrot.slane %v10135, 5
      %v10196 = vrot.slane %v10136, 5
      %v10197 = vsel %vm4284, %v10195, %v10196
      %v10198 = vrot.slane %v10137, 5
      %v10199 = vsel %vm4284, %v10196, %v10198
      %v10200 = vrot.slane %v10138, 5
      %v10201 = vrot.slane %v10139, 5
      %v10202 = vsel %vm4284, %v10200, %v10201
      %v10203 = vrot.slane %v10140, 5
      %v10204 = vsel %vm4284, %v10201, %v10203
      %v10221 = vadd.f32 %v10101, %v10167
      %v10222 = vadd.f32 %v10102, %v10169
      %v10223 = vadd.f32 %v10103, %v10172
      %v10224 = vadd.f32 %v10104, %v10174
      %v10225 = vadd.f32 %v10105, %v10177
      %v10226 = vadd.f32 %v10106, %v10179
      %v10227 = vadd.f32 %v10107, %v10182
      %v10228 = vadd.f32 %v10108, %v10184
      %v10229 = vadd.f32 %v10109, %v10187
      %v10230 = vadd.f32 %v10110, %v10189
      %v10231 = vadd.f32 %v10111, %v10192
      %v10232 = vadd.f32 %v10112, %v10194
      %v10233 = vadd.f32 %v10113, %v10197
      %v10234 = vadd.f32 %v10114, %v10199
      %v10235 = vadd.f32 %v10115, %v10202
      %v10236 = vadd.f32 %v10116, %v10204
      %v10237 = vmul.f32 %v6494, %v4360
      %v10238 = vmul.f32 %v6495, %v4360
      %v10239 = vmul.f32 %v6496, %v4360
      %v10240 = vmul.f32 %v6497, %v4360
      %v10241 = vmul.f32 %v6498, %v4360
      %v10242 = vmul.f32 %v6499, %v4360
      %v10243 = vmul.f32 %v6500, %v4360
      %v10244 = vmul.f32 %v6501, %v4360
      %v10245 = vmul.f32 %v6502, %v4360
      %v10246 = vmul.f32 %v6503, %v4360
      %v10247 = vmul.f32 %v6504, %v4360
      %v10248 = vmul.f32 %v6505, %v4360
      %v10249 = vmul.f32 %v6506, %v4360
      %v10250 = vmul.f32 %v6507, %v4360
      %v10251 = vmul.f32 %v6508, %v4360
      %v10252 = vmul.f32 %v6509, %v4360
      %v10253 = vmul.f32 %v6510, %v4360
      %v10254 = vmul.f32 %v6511, %v4360
      %v10255 = vmul.f32 %v6512, %v4360
      %v10256 = vmul.f32 %v6513, %v4360
      %v10257 = vmul.f32 %v6514, %v4360
      %v10258 = vmul.f32 %v6515, %v4360
      %v10259 = vmul.f32 %v6516, %v4360
      %v10260 = vmul.f32 %v6517, %v4360
      %v10285 = vrot.slane %v10237, 5
      %v10286 = vrot.slane %v10238, 5
      %v10287 = vsel %vm4284, %v10285, %v10286
      %v10288 = vrot.slane %v10239, 5
      %v10289 = vsel %vm4284, %v10286, %v10288
      %v10290 = vrot.slane %v10240, 5
      %v10291 = vrot.slane %v10241, 5
      %v10292 = vsel %vm4284, %v10290, %v10291
      %v10293 = vrot.slane %v10242, 5
      %v10294 = vsel %vm4284, %v10291, %v10293
      %v10295 = vrot.slane %v10243, 5
      %v10296 = vrot.slane %v10244, 5
      %v10297 = vsel %vm4284, %v10295, %v10296
      %v10298 = vrot.slane %v10245, 5
      %v10299 = vsel %vm4284, %v10296, %v10298
      %v10300 = vrot.slane %v10246, 5
      %v10301 = vrot.slane %v10247, 5
      %v10302 = vsel %vm4284, %v10300, %v10301
      %v10303 = vrot.slane %v10248, 5
      %v10304 = vsel %vm4284, %v10301, %v10303
      %v10305 = vrot.slane %v10249, 5
      %v10306 = vrot.slane %v10250, 5
      %v10307 = vsel %vm4284, %v10305, %v10306
      %v10308 = vrot.slane %v10251, 5
      %v10309 = vsel %vm4284, %v10306, %v10308
      %v10310 = vrot.slane %v10252, 5
      %v10311 = vrot.slane %v10253, 5
      %v10312 = vsel %vm4284, %v10310, %v10311
      %v10313 = vrot.slane %v10254, 5
      %v10314 = vsel %vm4284, %v10311, %v10313
      %v10315 = vrot.slane %v10255, 5
      %v10316 = vrot.slane %v10256, 5
      %v10317 = vsel %vm4284, %v10315, %v10316
      %v10318 = vrot.slane %v10257, 5
      %v10319 = vsel %vm4284, %v10316, %v10318
      %v10320 = vrot.slane %v10258, 5
      %v10321 = vrot.slane %v10259, 5
      %v10322 = vsel %vm4284, %v10320, %v10321
      %v10323 = vrot.slane %v10260, 5
      %v10324 = vsel %vm4284, %v10321, %v10323
      %v10341 = vadd.f32 %v10221, %v10287
      %v10342 = vadd.f32 %v10222, %v10289
      %v10343 = vadd.f32 %v10223, %v10292
      %v10344 = vadd.f32 %v10224, %v10294
      %v10345 = vadd.f32 %v10225, %v10297
      %v10346 = vadd.f32 %v10226, %v10299
      %v10347 = vadd.f32 %v10227, %v10302
      %v10348 = vadd.f32 %v10228, %v10304
      %v10349 = vadd.f32 %v10229, %v10307
      %v10350 = vadd.f32 %v10230, %v10309
      %v10351 = vadd.f32 %v10231, %v10312
      %v10352 = vadd.f32 %v10232, %v10314
      %v10353 = vadd.f32 %v10233, %v10317
      %v10354 = vadd.f32 %v10234, %v10319
      %v10355 = vadd.f32 %v10235, %v10322
      %v10356 = vadd.f32 %v10236, %v10324
      %v10357 = vmul.f32 %v6497, %v4484
      %v10358 = vmul.f32 %v6498, %v4484
      %v10359 = vmul.f32 %v6499, %v4484
      %v10360 = vmul.f32 %v6500, %v4484
      %v10361 = vmul.f32 %v6501, %v4484
      %v10362 = vmul.f32 %v6502, %v4484
      %v10363 = vmul.f32 %v6503, %v4484
      %v10364 = vmul.f32 %v6504, %v4484
      %v10365 = vmul.f32 %v6505, %v4484
      %v10366 = vmul.f32 %v6506, %v4484
      %v10367 = vmul.f32 %v6507, %v4484
      %v10368 = vmul.f32 %v6508, %v4484
      %v10369 = vmul.f32 %v6509, %v4484
      %v10370 = vmul.f32 %v6510, %v4484
      %v10371 = vmul.f32 %v6511, %v4484
      %v10372 = vmul.f32 %v6512, %v4484
      %v10373 = vmul.f32 %v6513, %v4484
      %v10374 = vmul.f32 %v6514, %v4484
      %v10375 = vmul.f32 %v6515, %v4484
      %v10376 = vmul.f32 %v6516, %v4484
      %v10377 = vmul.f32 %v6517, %v4484
      %v10378 = vmul.f32 %v6518, %v4484
      %v10379 = vmul.f32 %v6519, %v4484
      %v10380 = vmul.f32 %v6520, %v4484
      %v10405 = vrot.slane %v10357, 5
      %v10406 = vrot.slane %v10358, 5
      %v10407 = vsel %vm4284, %v10405, %v10406
      %v10408 = vrot.slane %v10359, 5
      %v10409 = vsel %vm4284, %v10406, %v10408
      %v10410 = vrot.slane %v10360, 5
      %v10411 = vrot.slane %v10361, 5
      %v10412 = vsel %vm4284, %v10410, %v10411
      %v10413 = vrot.slane %v10362, 5
      %v10414 = vsel %vm4284, %v10411, %v10413
      %v10415 = vrot.slane %v10363, 5
      %v10416 = vrot.slane %v10364, 5
      %v10417 = vsel %vm4284, %v10415, %v10416
      %v10418 = vrot.slane %v10365, 5
      %v10419 = vsel %vm4284, %v10416, %v10418
      %v10420 = vrot.slane %v10366, 5
      %v10421 = vrot.slane %v10367, 5
      %v10422 = vsel %vm4284, %v10420, %v10421
      %v10423 = vrot.slane %v10368, 5
      %v10424 = vsel %vm4284, %v10421, %v10423
      %v10425 = vrot.slane %v10369, 5
      %v10426 = vrot.slane %v10370, 5
      %v10427 = vsel %vm4284, %v10425, %v10426
      %v10428 = vrot.slane %v10371, 5
      %v10429 = vsel %vm4284, %v10426, %v10428
      %v10430 = vrot.slane %v10372, 5
      %v10431 = vrot.slane %v10373, 5
      %v10432 = vsel %vm4284, %v10430, %v10431
      %v10433 = vrot.slane %v10374, 5
      %v10434 = vsel %vm4284, %v10431, %v10433
      %v10435 = vrot.slane %v10375, 5
      %v10436 = vrot.slane %v10376, 5
      %v10437 = vsel %vm4284, %v10435, %v10436
      %v10438 = vrot.slane %v10377, 5
      %v10439 = vsel %vm4284, %v10436, %v10438
      %v10440 = vrot.slane %v10378, 5
      %v10441 = vrot.slane %v10379, 5
      %v10442 = vsel %vm4284, %v10440, %v10441
      %v10443 = vrot.slane %v10380, 5
      %v10444 = vsel %vm4284, %v10441, %v10443
      %v10461 = vadd.f32 %v10341, %v10407
      %v10462 = vadd.f32 %v10342, %v10409
      %v10463 = vadd.f32 %v10343, %v10412
      %v10464 = vadd.f32 %v10344, %v10414
      %v10465 = vadd.f32 %v10345, %v10417
      %v10466 = vadd.f32 %v10346, %v10419
      %v10467 = vadd.f32 %v10347, %v10422
      %v10468 = vadd.f32 %v10348, %v10424
      %v10469 = vadd.f32 %v10349, %v10427
      %v10470 = vadd.f32 %v10350, %v10429
      %v10471 = vadd.f32 %v10351, %v10432
      %v10472 = vadd.f32 %v10352, %v10434
      %v10473 = vadd.f32 %v10353, %v10437
      %v10474 = vadd.f32 %v10354, %v10439
      %v10475 = vadd.f32 %v10355, %v10442
      %v10476 = vadd.f32 %v10356, %v10444
      %v10477 = vmul.f32 %v6500, %v4608
      %v10478 = vmul.f32 %v6501, %v4608
      %v10479 = vmul.f32 %v6502, %v4608
      %v10480 = vmul.f32 %v6503, %v4608
      %v10481 = vmul.f32 %v6504, %v4608
      %v10482 = vmul.f32 %v6505, %v4608
      %v10483 = vmul.f32 %v6506, %v4608
      %v10484 = vmul.f32 %v6507, %v4608
      %v10485 = vmul.f32 %v6508, %v4608
      %v10486 = vmul.f32 %v6509, %v4608
      %v10487 = vmul.f32 %v6510, %v4608
      %v10488 = vmul.f32 %v6511, %v4608
      %v10489 = vmul.f32 %v6512, %v4608
      %v10490 = vmul.f32 %v6513, %v4608
      %v10491 = vmul.f32 %v6514, %v4608
      %v10492 = vmul.f32 %v6515, %v4608
      %v10493 = vmul.f32 %v6516, %v4608
      %v10494 = vmul.f32 %v6517, %v4608
      %v10495 = vmul.f32 %v6518, %v4608
      %v10496 = vmul.f32 %v6519, %v4608
      %v10497 = vmul.f32 %v6520, %v4608
      %v10498 = vmul.f32 %v6521, %v4608
      %v10499 = vmul.f32 %v6522, %v4608
      %v10500 = vmul.f32 %v6523, %v4608
      %v10525 = vrot.slane %v10477, 5
      %v10526 = vrot.slane %v10478, 5
      %v10527 = vsel %vm4284, %v10525, %v10526
      %v10528 = vrot.slane %v10479, 5
      %v10529 = vsel %vm4284, %v10526, %v10528
      %v10530 = vrot.slane %v10480, 5
      %v10531 = vrot.slane %v10481, 5
      %v10532 = vsel %vm4284, %v10530, %v10531
      %v10533 = vrot.slane %v10482, 5
      %v10534 = vsel %vm4284, %v10531, %v10533
      %v10535 = vrot.slane %v10483, 5
      %v10536 = vrot.slane %v10484, 5
      %v10537 = vsel %vm4284, %v10535, %v10536
      %v10538 = vrot.slane %v10485, 5
      %v10539 = vsel %vm4284, %v10536, %v10538
      %v10540 = vrot.slane %v10486, 5
      %v10541 = vrot.slane %v10487, 5
      %v10542 = vsel %vm4284, %v10540, %v10541
      %v10543 = vrot.slane %v10488, 5
      %v10544 = vsel %vm4284, %v10541, %v10543
      %v10545 = vrot.slane %v10489, 5
      %v10546 = vrot.slane %v10490, 5
      %v10547 = vsel %vm4284, %v10545, %v10546
      %v10548 = vrot.slane %v10491, 5
      %v10549 = vsel %vm4284, %v10546, %v10548
      %v10550 = vrot.slane %v10492, 5
      %v10551 = vrot.slane %v10493, 5
      %v10552 = vsel %vm4284, %v10550, %v10551
      %v10553 = vrot.slane %v10494, 5
      %v10554 = vsel %vm4284, %v10551, %v10553
      %v10555 = vrot.slane %v10495, 5
      %v10556 = vrot.slane %v10496, 5
      %v10557 = vsel %vm4284, %v10555, %v10556
      %v10558 = vrot.slane %v10497, 5
      %v10559 = vsel %vm4284, %v10556, %v10558
      %v10560 = vrot.slane %v10498, 5
      %v10561 = vrot.slane %v10499, 5
      %v10562 = vsel %vm4284, %v10560, %v10561
      %v10563 = vrot.slane %v10500, 5
      %v10564 = vsel %vm4284, %v10561, %v10563
      %v10581 = vadd.f32 %v10461, %v10527
      %v10582 = vadd.f32 %v10462, %v10529
      %v10583 = vadd.f32 %v10463, %v10532
      %v10584 = vadd.f32 %v10464, %v10534
      %v10585 = vadd.f32 %v10465, %v10537
      %v10586 = vadd.f32 %v10466, %v10539
      %v10587 = vadd.f32 %v10467, %v10542
      %v10588 = vadd.f32 %v10468, %v10544
      %v10589 = vadd.f32 %v10469, %v10547
      %v10590 = vadd.f32 %v10470, %v10549
      %v10591 = vadd.f32 %v10471, %v10552
      %v10592 = vadd.f32 %v10472, %v10554
      %v10593 = vadd.f32 %v10473, %v10557
      %v10594 = vadd.f32 %v10474, %v10559
      %v10595 = vadd.f32 %v10475, %v10562
      %v10596 = vadd.f32 %v10476, %v10564
      %v10597 = vmul.f32 %v6503, %v4732
      %v10598 = vmul.f32 %v6504, %v4732
      %v10599 = vmul.f32 %v6505, %v4732
      %v10600 = vmul.f32 %v6506, %v4732
      %v10601 = vmul.f32 %v6507, %v4732
      %v10602 = vmul.f32 %v6508, %v4732
      %v10603 = vmul.f32 %v6509, %v4732
      %v10604 = vmul.f32 %v6510, %v4732
      %v10605 = vmul.f32 %v6511, %v4732
      %v10606 = vmul.f32 %v6512, %v4732
      %v10607 = vmul.f32 %v6513, %v4732
      %v10608 = vmul.f32 %v6514, %v4732
      %v10609 = vmul.f32 %v6515, %v4732
      %v10610 = vmul.f32 %v6516, %v4732
      %v10611 = vmul.f32 %v6517, %v4732
      %v10612 = vmul.f32 %v6518, %v4732
      %v10613 = vmul.f32 %v6519, %v4732
      %v10614 = vmul.f32 %v6520, %v4732
      %v10615 = vmul.f32 %v6521, %v4732
      %v10616 = vmul.f32 %v6522, %v4732
      %v10617 = vmul.f32 %v6523, %v4732
      %v10618 = vmul.f32 %v6524, %v4732
      %v10619 = vmul.f32 %v6525, %v4732
      %v10620 = vmul.f32 %v6526, %v4732
      %v10645 = vrot.slane %v10597, 5
      %v10646 = vrot.slane %v10598, 5
      %v10647 = vsel %vm4284, %v10645, %v10646
      %v10648 = vrot.slane %v10599, 5
      %v10649 = vsel %vm4284, %v10646, %v10648
      %v10650 = vrot.slane %v10600, 5
      %v10651 = vrot.slane %v10601, 5
      %v10652 = vsel %vm4284, %v10650, %v10651
      %v10653 = vrot.slane %v10602, 5
      %v10654 = vsel %vm4284, %v10651, %v10653
      %v10655 = vrot.slane %v10603, 5
      %v10656 = vrot.slane %v10604, 5
      %v10657 = vsel %vm4284, %v10655, %v10656
      %v10658 = vrot.slane %v10605, 5
      %v10659 = vsel %vm4284, %v10656, %v10658
      %v10660 = vrot.slane %v10606, 5
      %v10661 = vrot.slane %v10607, 5
      %v10662 = vsel %vm4284, %v10660, %v10661
      %v10663 = vrot.slane %v10608, 5
      %v10664 = vsel %vm4284, %v10661, %v10663
      %v10665 = vrot.slane %v10609, 5
      %v10666 = vrot.slane %v10610, 5
      %v10667 = vsel %vm4284, %v10665, %v10666
      %v10668 = vrot.slane %v10611, 5
      %v10669 = vsel %vm4284, %v10666, %v10668
      %v10670 = vrot.slane %v10612, 5
      %v10671 = vrot.slane %v10613, 5
      %v10672 = vsel %vm4284, %v10670, %v10671
      %v10673 = vrot.slane %v10614, 5
      %v10674 = vsel %vm4284, %v10671, %v10673
      %v10675 = vrot.slane %v10615, 5
      %v10676 = vrot.slane %v10616, 5
      %v10677 = vsel %vm4284, %v10675, %v10676
      %v10678 = vrot.slane %v10617, 5
      %v10679 = vsel %vm4284, %v10676, %v10678
      %v10680 = vrot.slane %v10618, 5
      %v10681 = vrot.slane %v10619, 5
      %v10682 = vsel %vm4284, %v10680, %v10681
      %v10683 = vrot.slane %v10620, 5
      %v10684 = vsel %vm4284, %v10681, %v10683
      %v10701 = vadd.f32 %v10581, %v10647
      %v10702 = vadd.f32 %v10582, %v10649
      %v10703 = vadd.f32 %v10583, %v10652
      %v10704 = vadd.f32 %v10584, %v10654
      %v10705 = vadd.f32 %v10585, %v10657
      %v10706 = vadd.f32 %v10586, %v10659
      %v10707 = vadd.f32 %v10587, %v10662
      %v10708 = vadd.f32 %v10588, %v10664
      %v10709 = vadd.f32 %v10589, %v10667
      %v10710 = vadd.f32 %v10590, %v10669
      %v10711 = vadd.f32 %v10591, %v10672
      %v10712 = vadd.f32 %v10592, %v10674
      %v10713 = vadd.f32 %v10593, %v10677
      %v10714 = vadd.f32 %v10594, %v10679
      %v10715 = vadd.f32 %v10595, %v10682
      %v10716 = vadd.f32 %v10596, %v10684
      %v10717 = vmul.f32 %v6506, %v4856
      %v10718 = vmul.f32 %v6507, %v4856
      %v10719 = vmul.f32 %v6508, %v4856
      %v10720 = vmul.f32 %v6509, %v4856
      %v10721 = vmul.f32 %v6510, %v4856
      %v10722 = vmul.f32 %v6511, %v4856
      %v10723 = vmul.f32 %v6512, %v4856
      %v10724 = vmul.f32 %v6513, %v4856
      %v10725 = vmul.f32 %v6514, %v4856
      %v10726 = vmul.f32 %v6515, %v4856
      %v10727 = vmul.f32 %v6516, %v4856
      %v10728 = vmul.f32 %v6517, %v4856
      %v10729 = vmul.f32 %v6518, %v4856
      %v10730 = vmul.f32 %v6519, %v4856
      %v10731 = vmul.f32 %v6520, %v4856
      %v10732 = vmul.f32 %v6521, %v4856
      %v10733 = vmul.f32 %v6522, %v4856
      %v10734 = vmul.f32 %v6523, %v4856
      %v10735 = vmul.f32 %v6524, %v4856
      %v10736 = vmul.f32 %v6525, %v4856
      %v10737 = vmul.f32 %v6526, %v4856
      %v10738 = vmul.f32 %v6527, %v4856
      %v10739 = vmul.f32 %v6528, %v4856
      %v10740 = vmul.f32 %v6529, %v4856
      %v10765 = vrot.slane %v10717, 5
      %v10766 = vrot.slane %v10718, 5
      %v10767 = vsel %vm4284, %v10765, %v10766
      %v10768 = vrot.slane %v10719, 5
      %v10769 = vsel %vm4284, %v10766, %v10768
      %v10770 = vrot.slane %v10720, 5
      %v10771 = vrot.slane %v10721, 5
      %v10772 = vsel %vm4284, %v10770, %v10771
      %v10773 = vrot.slane %v10722, 5
      %v10774 = vsel %vm4284, %v10771, %v10773
      %v10775 = vrot.slane %v10723, 5
      %v10776 = vrot.slane %v10724, 5
      %v10777 = vsel %vm4284, %v10775, %v10776
      %v10778 = vrot.slane %v10725, 5
      %v10779 = vsel %vm4284, %v10776, %v10778
      %v10780 = vrot.slane %v10726, 5
      %v10781 = vrot.slane %v10727, 5
      %v10782 = vsel %vm4284, %v10780, %v10781
      %v10783 = vrot.slane %v10728, 5
      %v10784 = vsel %vm4284, %v10781, %v10783
      %v10785 = vrot.slane %v10729, 5
      %v10786 = vrot.slane %v10730, 5
      %v10787 = vsel %vm4284, %v10785, %v10786
      %v10788 = vrot.slane %v10731, 5
      %v10789 = vsel %vm4284, %v10786, %v10788
      %v10790 = vrot.slane %v10732, 5
      %v10791 = vrot.slane %v10733, 5
      %v10792 = vsel %vm4284, %v10790, %v10791
      %v10793 = vrot.slane %v10734, 5
      %v10794 = vsel %vm4284, %v10791, %v10793
      %v10795 = vrot.slane %v10735, 5
      %v10796 = vrot.slane %v10736, 5
      %v10797 = vsel %vm4284, %v10795, %v10796
      %v10798 = vrot.slane %v10737, 5
      %v10799 = vsel %vm4284, %v10796, %v10798
      %v10800 = vrot.slane %v10738, 5
      %v10801 = vrot.slane %v10739, 5
      %v10802 = vsel %vm4284, %v10800, %v10801
      %v10803 = vrot.slane %v10740, 5
      %v10804 = vsel %vm4284, %v10801, %v10803
      %v10821 = vadd.f32 %v10701, %v10767
      %v10822 = vadd.f32 %v10702, %v10769
      %v10823 = vadd.f32 %v10703, %v10772
      %v10824 = vadd.f32 %v10704, %v10774
      %v10825 = vadd.f32 %v10705, %v10777
      %v10826 = vadd.f32 %v10706, %v10779
      %v10827 = vadd.f32 %v10707, %v10782
      %v10828 = vadd.f32 %v10708, %v10784
      %v10829 = vadd.f32 %v10709, %v10787
      %v10830 = vadd.f32 %v10710, %v10789
      %v10831 = vadd.f32 %v10711, %v10792
      %v10832 = vadd.f32 %v10712, %v10794
      %v10833 = vadd.f32 %v10713, %v10797
      %v10834 = vadd.f32 %v10714, %v10799
      %v10835 = vadd.f32 %v10715, %v10802
      %v10836 = vadd.f32 %v10716, %v10804
      %v10837 = vmul.f32 %v6509, %v4980
      %v10838 = vmul.f32 %v6510, %v4980
      %v10839 = vmul.f32 %v6511, %v4980
      %v10840 = vmul.f32 %v6512, %v4980
      %v10841 = vmul.f32 %v6513, %v4980
      %v10842 = vmul.f32 %v6514, %v4980
      %v10843 = vmul.f32 %v6515, %v4980
      %v10844 = vmul.f32 %v6516, %v4980
      %v10845 = vmul.f32 %v6517, %v4980
      %v10846 = vmul.f32 %v6518, %v4980
      %v10847 = vmul.f32 %v6519, %v4980
      %v10848 = vmul.f32 %v6520, %v4980
      %v10849 = vmul.f32 %v6521, %v4980
      %v10850 = vmul.f32 %v6522, %v4980
      %v10851 = vmul.f32 %v6523, %v4980
      %v10852 = vmul.f32 %v6524, %v4980
      %v10853 = vmul.f32 %v6525, %v4980
      %v10854 = vmul.f32 %v6526, %v4980
      %v10855 = vmul.f32 %v6527, %v4980
      %v10856 = vmul.f32 %v6528, %v4980
      %v10857 = vmul.f32 %v6529, %v4980
      %v10858 = vmul.f32 %v6530, %v4980
      %v10859 = vmul.f32 %v6531, %v4980
      %v10860 = vmul.f32 %v6532, %v4980
      %v10885 = vrot.slane %v10837, 5
      %v10886 = vrot.slane %v10838, 5
      %v10887 = vsel %vm4284, %v10885, %v10886
      %v10888 = vrot.slane %v10839, 5
      %v10889 = vsel %vm4284, %v10886, %v10888
      %v10890 = vrot.slane %v10840, 5
      %v10891 = vrot.slane %v10841, 5
      %v10892 = vsel %vm4284, %v10890, %v10891
      %v10893 = vrot.slane %v10842, 5
      %v10894 = vsel %vm4284, %v10891, %v10893
      %v10895 = vrot.slane %v10843, 5
      %v10896 = vrot.slane %v10844, 5
      %v10897 = vsel %vm4284, %v10895, %v10896
      %v10898 = vrot.slane %v10845, 5
      %v10899 = vsel %vm4284, %v10896, %v10898
      %v10900 = vrot.slane %v10846, 5
      %v10901 = vrot.slane %v10847, 5
      %v10902 = vsel %vm4284, %v10900, %v10901
      %v10903 = vrot.slane %v10848, 5
      %v10904 = vsel %vm4284, %v10901, %v10903
      %v10905 = vrot.slane %v10849, 5
      %v10906 = vrot.slane %v10850, 5
      %v10907 = vsel %vm4284, %v10905, %v10906
      %v10908 = vrot.slane %v10851, 5
      %v10909 = vsel %vm4284, %v10906, %v10908
      %v10910 = vrot.slane %v10852, 5
      %v10911 = vrot.slane %v10853, 5
      %v10912 = vsel %vm4284, %v10910, %v10911
      %v10913 = vrot.slane %v10854, 5
      %v10914 = vsel %vm4284, %v10911, %v10913
      %v10915 = vrot.slane %v10855, 5
      %v10916 = vrot.slane %v10856, 5
      %v10917 = vsel %vm4284, %v10915, %v10916
      %v10918 = vrot.slane %v10857, 5
      %v10919 = vsel %vm4284, %v10916, %v10918
      %v10920 = vrot.slane %v10858, 5
      %v10921 = vrot.slane %v10859, 5
      %v10922 = vsel %vm4284, %v10920, %v10921
      %v10923 = vrot.slane %v10860, 5
      %v10924 = vsel %vm4284, %v10921, %v10923
      %v10941 = vadd.f32 %v10821, %v10887
      %v10942 = vadd.f32 %v10822, %v10889
      %v10943 = vadd.f32 %v10823, %v10892
      %v10944 = vadd.f32 %v10824, %v10894
      %v10945 = vadd.f32 %v10825, %v10897
      %v10946 = vadd.f32 %v10826, %v10899
      %v10947 = vadd.f32 %v10827, %v10902
      %v10948 = vadd.f32 %v10828, %v10904
      %v10949 = vadd.f32 %v10829, %v10907
      %v10950 = vadd.f32 %v10830, %v10909
      %v10951 = vadd.f32 %v10831, %v10912
      %v10952 = vadd.f32 %v10832, %v10914
      %v10953 = vadd.f32 %v10833, %v10917
      %v10954 = vadd.f32 %v10834, %v10919
      %v10955 = vadd.f32 %v10835, %v10922
      %v10956 = vadd.f32 %v10836, %v10924
      %v10957 = vmul.f32 %v6491, %v5104
      %v10958 = vmul.f32 %v6492, %v5104
      %v10959 = vmul.f32 %v6493, %v5104
      %v10960 = vmul.f32 %v6494, %v5104
      %v10961 = vmul.f32 %v6495, %v5104
      %v10962 = vmul.f32 %v6496, %v5104
      %v10963 = vmul.f32 %v6497, %v5104
      %v10964 = vmul.f32 %v6498, %v5104
      %v10965 = vmul.f32 %v6499, %v5104
      %v10966 = vmul.f32 %v6500, %v5104
      %v10967 = vmul.f32 %v6501, %v5104
      %v10968 = vmul.f32 %v6502, %v5104
      %v10969 = vmul.f32 %v6503, %v5104
      %v10970 = vmul.f32 %v6504, %v5104
      %v10971 = vmul.f32 %v6505, %v5104
      %v10972 = vmul.f32 %v6506, %v5104
      %v10973 = vmul.f32 %v6507, %v5104
      %v10974 = vmul.f32 %v6508, %v5104
      %v10975 = vmul.f32 %v6509, %v5104
      %v10976 = vmul.f32 %v6510, %v5104
      %v10977 = vmul.f32 %v6511, %v5104
      %v10978 = vmul.f32 %v6512, %v5104
      %v10979 = vmul.f32 %v6513, %v5104
      %v10980 = vmul.f32 %v6514, %v5104
      %v11005 = vrot.slane %v10957, 6
      %v11006 = vrot.slane %v10958, 6
      %v11007 = vsel %vm5153, %v11005, %v11006
      %v11008 = vrot.slane %v10959, 6
      %v11009 = vsel %vm5153, %v11006, %v11008
      %v11010 = vrot.slane %v10960, 6
      %v11011 = vrot.slane %v10961, 6
      %v11012 = vsel %vm5153, %v11010, %v11011
      %v11013 = vrot.slane %v10962, 6
      %v11014 = vsel %vm5153, %v11011, %v11013
      %v11015 = vrot.slane %v10963, 6
      %v11016 = vrot.slane %v10964, 6
      %v11017 = vsel %vm5153, %v11015, %v11016
      %v11018 = vrot.slane %v10965, 6
      %v11019 = vsel %vm5153, %v11016, %v11018
      %v11020 = vrot.slane %v10966, 6
      %v11021 = vrot.slane %v10967, 6
      %v11022 = vsel %vm5153, %v11020, %v11021
      %v11023 = vrot.slane %v10968, 6
      %v11024 = vsel %vm5153, %v11021, %v11023
      %v11025 = vrot.slane %v10969, 6
      %v11026 = vrot.slane %v10970, 6
      %v11027 = vsel %vm5153, %v11025, %v11026
      %v11028 = vrot.slane %v10971, 6
      %v11029 = vsel %vm5153, %v11026, %v11028
      %v11030 = vrot.slane %v10972, 6
      %v11031 = vrot.slane %v10973, 6
      %v11032 = vsel %vm5153, %v11030, %v11031
      %v11033 = vrot.slane %v10974, 6
      %v11034 = vsel %vm5153, %v11031, %v11033
      %v11035 = vrot.slane %v10975, 6
      %v11036 = vrot.slane %v10976, 6
      %v11037 = vsel %vm5153, %v11035, %v11036
      %v11038 = vrot.slane %v10977, 6
      %v11039 = vsel %vm5153, %v11036, %v11038
      %v11040 = vrot.slane %v10978, 6
      %v11041 = vrot.slane %v10979, 6
      %v11042 = vsel %vm5153, %v11040, %v11041
      %v11043 = vrot.slane %v10980, 6
      %v11044 = vsel %vm5153, %v11041, %v11043
      %v11061 = vadd.f32 %v10941, %v11007
      %v11062 = vadd.f32 %v10942, %v11009
      %v11063 = vadd.f32 %v10943, %v11012
      %v11064 = vadd.f32 %v10944, %v11014
      %v11065 = vadd.f32 %v10945, %v11017
      %v11066 = vadd.f32 %v10946, %v11019
      %v11067 = vadd.f32 %v10947, %v11022
      %v11068 = vadd.f32 %v10948, %v11024
      %v11069 = vadd.f32 %v10949, %v11027
      %v11070 = vadd.f32 %v10950, %v11029
      %v11071 = vadd.f32 %v10951, %v11032
      %v11072 = vadd.f32 %v10952, %v11034
      %v11073 = vadd.f32 %v10953, %v11037
      %v11074 = vadd.f32 %v10954, %v11039
      %v11075 = vadd.f32 %v10955, %v11042
      %v11076 = vadd.f32 %v10956, %v11044
      %v11077 = vmul.f32 %v6494, %v5229
      %v11078 = vmul.f32 %v6495, %v5229
      %v11079 = vmul.f32 %v6496, %v5229
      %v11080 = vmul.f32 %v6497, %v5229
      %v11081 = vmul.f32 %v6498, %v5229
      %v11082 = vmul.f32 %v6499, %v5229
      %v11083 = vmul.f32 %v6500, %v5229
      %v11084 = vmul.f32 %v6501, %v5229
      %v11085 = vmul.f32 %v6502, %v5229
      %v11086 = vmul.f32 %v6503, %v5229
      %v11087 = vmul.f32 %v6504, %v5229
      %v11088 = vmul.f32 %v6505, %v5229
      %v11089 = vmul.f32 %v6506, %v5229
      %v11090 = vmul.f32 %v6507, %v5229
      %v11091 = vmul.f32 %v6508, %v5229
      %v11092 = vmul.f32 %v6509, %v5229
      %v11093 = vmul.f32 %v6510, %v5229
      %v11094 = vmul.f32 %v6511, %v5229
      %v11095 = vmul.f32 %v6512, %v5229
      %v11096 = vmul.f32 %v6513, %v5229
      %v11097 = vmul.f32 %v6514, %v5229
      %v11098 = vmul.f32 %v6515, %v5229
      %v11099 = vmul.f32 %v6516, %v5229
      %v11100 = vmul.f32 %v6517, %v5229
      %v11125 = vrot.slane %v11077, 6
      %v11126 = vrot.slane %v11078, 6
      %v11127 = vsel %vm5153, %v11125, %v11126
      %v11128 = vrot.slane %v11079, 6
      %v11129 = vsel %vm5153, %v11126, %v11128
      %v11130 = vrot.slane %v11080, 6
      %v11131 = vrot.slane %v11081, 6
      %v11132 = vsel %vm5153, %v11130, %v11131
      %v11133 = vrot.slane %v11082, 6
      %v11134 = vsel %vm5153, %v11131, %v11133
      %v11135 = vrot.slane %v11083, 6
      %v11136 = vrot.slane %v11084, 6
      %v11137 = vsel %vm5153, %v11135, %v11136
      %v11138 = vrot.slane %v11085, 6
      %v11139 = vsel %vm5153, %v11136, %v11138
      %v11140 = vrot.slane %v11086, 6
      %v11141 = vrot.slane %v11087, 6
      %v11142 = vsel %vm5153, %v11140, %v11141
      %v11143 = vrot.slane %v11088, 6
      %v11144 = vsel %vm5153, %v11141, %v11143
      %v11145 = vrot.slane %v11089, 6
      %v11146 = vrot.slane %v11090, 6
      %v11147 = vsel %vm5153, %v11145, %v11146
      %v11148 = vrot.slane %v11091, 6
      %v11149 = vsel %vm5153, %v11146, %v11148
      %v11150 = vrot.slane %v11092, 6
      %v11151 = vrot.slane %v11093, 6
      %v11152 = vsel %vm5153, %v11150, %v11151
      %v11153 = vrot.slane %v11094, 6
      %v11154 = vsel %vm5153, %v11151, %v11153
      %v11155 = vrot.slane %v11095, 6
      %v11156 = vrot.slane %v11096, 6
      %v11157 = vsel %vm5153, %v11155, %v11156
      %v11158 = vrot.slane %v11097, 6
      %v11159 = vsel %vm5153, %v11156, %v11158
      %v11160 = vrot.slane %v11098, 6
      %v11161 = vrot.slane %v11099, 6
      %v11162 = vsel %vm5153, %v11160, %v11161
      %v11163 = vrot.slane %v11100, 6
      %v11164 = vsel %vm5153, %v11161, %v11163
      %v11181 = vadd.f32 %v11061, %v11127
      %v11182 = vadd.f32 %v11062, %v11129
      %v11183 = vadd.f32 %v11063, %v11132
      %v11184 = vadd.f32 %v11064, %v11134
      %v11185 = vadd.f32 %v11065, %v11137
      %v11186 = vadd.f32 %v11066, %v11139
      %v11187 = vadd.f32 %v11067, %v11142
      %v11188 = vadd.f32 %v11068, %v11144
      %v11189 = vadd.f32 %v11069, %v11147
      %v11190 = vadd.f32 %v11070, %v11149
      %v11191 = vadd.f32 %v11071, %v11152
      %v11192 = vadd.f32 %v11072, %v11154
      %v11193 = vadd.f32 %v11073, %v11157
      %v11194 = vadd.f32 %v11074, %v11159
      %v11195 = vadd.f32 %v11075, %v11162
      %v11196 = vadd.f32 %v11076, %v11164
      %v11197 = vmul.f32 %v6497, %v5353
      %v11198 = vmul.f32 %v6498, %v5353
      %v11199 = vmul.f32 %v6499, %v5353
      %v11200 = vmul.f32 %v6500, %v5353
      %v11201 = vmul.f32 %v6501, %v5353
      %v11202 = vmul.f32 %v6502, %v5353
      %v11203 = vmul.f32 %v6503, %v5353
      %v11204 = vmul.f32 %v6504, %v5353
      %v11205 = vmul.f32 %v6505, %v5353
      %v11206 = vmul.f32 %v6506, %v5353
      %v11207 = vmul.f32 %v6507, %v5353
      %v11208 = vmul.f32 %v6508, %v5353
      %v11209 = vmul.f32 %v6509, %v5353
      %v11210 = vmul.f32 %v6510, %v5353
      %v11211 = vmul.f32 %v6511, %v5353
      %v11212 = vmul.f32 %v6512, %v5353
      %v11213 = vmul.f32 %v6513, %v5353
      %v11214 = vmul.f32 %v6514, %v5353
      %v11215 = vmul.f32 %v6515, %v5353
      %v11216 = vmul.f32 %v6516, %v5353
      %v11217 = vmul.f32 %v6517, %v5353
      %v11218 = vmul.f32 %v6518, %v5353
      %v11219 = vmul.f32 %v6519, %v5353
      %v11220 = vmul.f32 %v6520, %v5353
      %v11245 = vrot.slane %v11197, 6
      %v11246 = vrot.slane %v11198, 6
      %v11247 = vsel %vm5153, %v11245, %v11246
      %v11248 = vrot.slane %v11199, 6
      %v11249 = vsel %vm5153, %v11246, %v11248
      %v11250 = vrot.slane %v11200, 6
      %v11251 = vrot.slane %v11201, 6
      %v11252 = vsel %vm5153, %v11250, %v11251
      %v11253 = vrot.slane %v11202, 6
      %v11254 = vsel %vm5153, %v11251, %v11253
      %v11255 = vrot.slane %v11203, 6
      %v11256 = vrot.slane %v11204, 6
      %v11257 = vsel %vm5153, %v11255, %v11256
      %v11258 = vrot.slane %v11205, 6
      %v11259 = vsel %vm5153, %v11256, %v11258
      %v11260 = vrot.slane %v11206, 6
      %v11261 = vrot.slane %v11207, 6
      %v11262 = vsel %vm5153, %v11260, %v11261
      %v11263 = vrot.slane %v11208, 6
      %v11264 = vsel %vm5153, %v11261, %v11263
      %v11265 = vrot.slane %v11209, 6
      %v11266 = vrot.slane %v11210, 6
      %v11267 = vsel %vm5153, %v11265, %v11266
      %v11268 = vrot.slane %v11211, 6
      %v11269 = vsel %vm5153, %v11266, %v11268
      %v11270 = vrot.slane %v11212, 6
      %v11271 = vrot.slane %v11213, 6
      %v11272 = vsel %vm5153, %v11270, %v11271
      %v11273 = vrot.slane %v11214, 6
      %v11274 = vsel %vm5153, %v11271, %v11273
      %v11275 = vrot.slane %v11215, 6
      %v11276 = vrot.slane %v11216, 6
      %v11277 = vsel %vm5153, %v11275, %v11276
      %v11278 = vrot.slane %v11217, 6
      %v11279 = vsel %vm5153, %v11276, %v11278
      %v11280 = vrot.slane %v11218, 6
      %v11281 = vrot.slane %v11219, 6
      %v11282 = vsel %vm5153, %v11280, %v11281
      %v11283 = vrot.slane %v11220, 6
      %v11284 = vsel %vm5153, %v11281, %v11283
      %v11301 = vadd.f32 %v11181, %v11247
      %v11302 = vadd.f32 %v11182, %v11249
      %v11303 = vadd.f32 %v11183, %v11252
      %v11304 = vadd.f32 %v11184, %v11254
      %v11305 = vadd.f32 %v11185, %v11257
      %v11306 = vadd.f32 %v11186, %v11259
      %v11307 = vadd.f32 %v11187, %v11262
      %v11308 = vadd.f32 %v11188, %v11264
      %v11309 = vadd.f32 %v11189, %v11267
      %v11310 = vadd.f32 %v11190, %v11269
      %v11311 = vadd.f32 %v11191, %v11272
      %v11312 = vadd.f32 %v11192, %v11274
      %v11313 = vadd.f32 %v11193, %v11277
      %v11314 = vadd.f32 %v11194, %v11279
      %v11315 = vadd.f32 %v11195, %v11282
      %v11316 = vadd.f32 %v11196, %v11284
      %v11317 = vmul.f32 %v6500, %v5477
      %v11318 = vmul.f32 %v6501, %v5477
      %v11319 = vmul.f32 %v6502, %v5477
      %v11320 = vmul.f32 %v6503, %v5477
      %v11321 = vmul.f32 %v6504, %v5477
      %v11322 = vmul.f32 %v6505, %v5477
      %v11323 = vmul.f32 %v6506, %v5477
      %v11324 = vmul.f32 %v6507, %v5477
      %v11325 = vmul.f32 %v6508, %v5477
      %v11326 = vmul.f32 %v6509, %v5477
      %v11327 = vmul.f32 %v6510, %v5477
      %v11328 = vmul.f32 %v6511, %v5477
      %v11329 = vmul.f32 %v6512, %v5477
      %v11330 = vmul.f32 %v6513, %v5477
      %v11331 = vmul.f32 %v6514, %v5477
      %v11332 = vmul.f32 %v6515, %v5477
      %v11333 = vmul.f32 %v6516, %v5477
      %v11334 = vmul.f32 %v6517, %v5477
      %v11335 = vmul.f32 %v6518, %v5477
      %v11336 = vmul.f32 %v6519, %v5477
      %v11337 = vmul.f32 %v6520, %v5477
      %v11338 = vmul.f32 %v6521, %v5477
      %v11339 = vmul.f32 %v6522, %v5477
      %v11340 = vmul.f32 %v6523, %v5477
      %v11365 = vrot.slane %v11317, 6
      %v11366 = vrot.slane %v11318, 6
      %v11367 = vsel %vm5153, %v11365, %v11366
      %v11368 = vrot.slane %v11319, 6
      %v11369 = vsel %vm5153, %v11366, %v11368
      %v11370 = vrot.slane %v11320, 6
      %v11371 = vrot.slane %v11321, 6
      %v11372 = vsel %vm5153, %v11370, %v11371
      %v11373 = vrot.slane %v11322, 6
      %v11374 = vsel %vm5153, %v11371, %v11373
      %v11375 = vrot.slane %v11323, 6
      %v11376 = vrot.slane %v11324, 6
      %v11377 = vsel %vm5153, %v11375, %v11376
      %v11378 = vrot.slane %v11325, 6
      %v11379 = vsel %vm5153, %v11376, %v11378
      %v11380 = vrot.slane %v11326, 6
      %v11381 = vrot.slane %v11327, 6
      %v11382 = vsel %vm5153, %v11380, %v11381
      %v11383 = vrot.slane %v11328, 6
      %v11384 = vsel %vm5153, %v11381, %v11383
      %v11385 = vrot.slane %v11329, 6
      %v11386 = vrot.slane %v11330, 6
      %v11387 = vsel %vm5153, %v11385, %v11386
      %v11388 = vrot.slane %v11331, 6
      %v11389 = vsel %vm5153, %v11386, %v11388
      %v11390 = vrot.slane %v11332, 6
      %v11391 = vrot.slane %v11333, 6
      %v11392 = vsel %vm5153, %v11390, %v11391
      %v11393 = vrot.slane %v11334, 6
      %v11394 = vsel %vm5153, %v11391, %v11393
      %v11395 = vrot.slane %v11335, 6
      %v11396 = vrot.slane %v11336, 6
      %v11397 = vsel %vm5153, %v11395, %v11396
      %v11398 = vrot.slane %v11337, 6
      %v11399 = vsel %vm5153, %v11396, %v11398
      %v11400 = vrot.slane %v11338, 6
      %v11401 = vrot.slane %v11339, 6
      %v11402 = vsel %vm5153, %v11400, %v11401
      %v11403 = vrot.slane %v11340, 6
      %v11404 = vsel %vm5153, %v11401, %v11403
      %v11421 = vadd.f32 %v11301, %v11367
      %v11422 = vadd.f32 %v11302, %v11369
      %v11423 = vadd.f32 %v11303, %v11372
      %v11424 = vadd.f32 %v11304, %v11374
      %v11425 = vadd.f32 %v11305, %v11377
      %v11426 = vadd.f32 %v11306, %v11379
      %v11427 = vadd.f32 %v11307, %v11382
      %v11428 = vadd.f32 %v11308, %v11384
      %v11429 = vadd.f32 %v11309, %v11387
      %v11430 = vadd.f32 %v11310, %v11389
      %v11431 = vadd.f32 %v11311, %v11392
      %v11432 = vadd.f32 %v11312, %v11394
      %v11433 = vadd.f32 %v11313, %v11397
      %v11434 = vadd.f32 %v11314, %v11399
      %v11435 = vadd.f32 %v11315, %v11402
      %v11436 = vadd.f32 %v11316, %v11404
      %v11437 = vmul.f32 %v6503, %v5601
      %v11438 = vmul.f32 %v6504, %v5601
      %v11439 = vmul.f32 %v6505, %v5601
      %v11440 = vmul.f32 %v6506, %v5601
      %v11441 = vmul.f32 %v6507, %v5601
      %v11442 = vmul.f32 %v6508, %v5601
      %v11443 = vmul.f32 %v6509, %v5601
      %v11444 = vmul.f32 %v6510, %v5601
      %v11445 = vmul.f32 %v6511, %v5601
      %v11446 = vmul.f32 %v6512, %v5601
      %v11447 = vmul.f32 %v6513, %v5601
      %v11448 = vmul.f32 %v6514, %v5601
      %v11449 = vmul.f32 %v6515, %v5601
      %v11450 = vmul.f32 %v6516, %v5601
      %v11451 = vmul.f32 %v6517, %v5601
      %v11452 = vmul.f32 %v6518, %v5601
      %v11453 = vmul.f32 %v6519, %v5601
      %v11454 = vmul.f32 %v6520, %v5601
      %v11455 = vmul.f32 %v6521, %v5601
      %v11456 = vmul.f32 %v6522, %v5601
      %v11457 = vmul.f32 %v6523, %v5601
      %v11458 = vmul.f32 %v6524, %v5601
      %v11459 = vmul.f32 %v6525, %v5601
      %v11460 = vmul.f32 %v6526, %v5601
      %v11485 = vrot.slane %v11437, 6
      %v11486 = vrot.slane %v11438, 6
      %v11487 = vsel %vm5153, %v11485, %v11486
      %v11488 = vrot.slane %v11439, 6
      %v11489 = vsel %vm5153, %v11486, %v11488
      %v11490 = vrot.slane %v11440, 6
      %v11491 = vrot.slane %v11441, 6
      %v11492 = vsel %vm5153, %v11490, %v11491
      %v11493 = vrot.slane %v11442, 6
      %v11494 = vsel %vm5153, %v11491, %v11493
      %v11495 = vrot.slane %v11443, 6
      %v11496 = vrot.slane %v11444, 6
      %v11497 = vsel %vm5153, %v11495, %v11496
      %v11498 = vrot.slane %v11445, 6
      %v11499 = vsel %vm5153, %v11496, %v11498
      %v11500 = vrot.slane %v11446, 6
      %v11501 = vrot.slane %v11447, 6
      %v11502 = vsel %vm5153, %v11500, %v11501
      %v11503 = vrot.slane %v11448, 6
      %v11504 = vsel %vm5153, %v11501, %v11503
      %v11505 = vrot.slane %v11449, 6
      %v11506 = vrot.slane %v11450, 6
      %v11507 = vsel %vm5153, %v11505, %v11506
      %v11508 = vrot.slane %v11451, 6
      %v11509 = vsel %vm5153, %v11506, %v11508
      %v11510 = vrot.slane %v11452, 6
      %v11511 = vrot.slane %v11453, 6
      %v11512 = vsel %vm5153, %v11510, %v11511
      %v11513 = vrot.slane %v11454, 6
      %v11514 = vsel %vm5153, %v11511, %v11513
      %v11515 = vrot.slane %v11455, 6
      %v11516 = vrot.slane %v11456, 6
      %v11517 = vsel %vm5153, %v11515, %v11516
      %v11518 = vrot.slane %v11457, 6
      %v11519 = vsel %vm5153, %v11516, %v11518
      %v11520 = vrot.slane %v11458, 6
      %v11521 = vrot.slane %v11459, 6
      %v11522 = vsel %vm5153, %v11520, %v11521
      %v11523 = vrot.slane %v11460, 6
      %v11524 = vsel %vm5153, %v11521, %v11523
      %v11541 = vadd.f32 %v11421, %v11487
      %v11542 = vadd.f32 %v11422, %v11489
      %v11543 = vadd.f32 %v11423, %v11492
      %v11544 = vadd.f32 %v11424, %v11494
      %v11545 = vadd.f32 %v11425, %v11497
      %v11546 = vadd.f32 %v11426, %v11499
      %v11547 = vadd.f32 %v11427, %v11502
      %v11548 = vadd.f32 %v11428, %v11504
      %v11549 = vadd.f32 %v11429, %v11507
      %v11550 = vadd.f32 %v11430, %v11509
      %v11551 = vadd.f32 %v11431, %v11512
      %v11552 = vadd.f32 %v11432, %v11514
      %v11553 = vadd.f32 %v11433, %v11517
      %v11554 = vadd.f32 %v11434, %v11519
      %v11555 = vadd.f32 %v11435, %v11522
      %v11556 = vadd.f32 %v11436, %v11524
      %v11557 = vmul.f32 %v6506, %v5725
      %v11558 = vmul.f32 %v6507, %v5725
      %v11559 = vmul.f32 %v6508, %v5725
      %v11560 = vmul.f32 %v6509, %v5725
      %v11561 = vmul.f32 %v6510, %v5725
      %v11562 = vmul.f32 %v6511, %v5725
      %v11563 = vmul.f32 %v6512, %v5725
      %v11564 = vmul.f32 %v6513, %v5725
      %v11565 = vmul.f32 %v6514, %v5725
      %v11566 = vmul.f32 %v6515, %v5725
      %v11567 = vmul.f32 %v6516, %v5725
      %v11568 = vmul.f32 %v6517, %v5725
      %v11569 = vmul.f32 %v6518, %v5725
      %v11570 = vmul.f32 %v6519, %v5725
      %v11571 = vmul.f32 %v6520, %v5725
      %v11572 = vmul.f32 %v6521, %v5725
      %v11573 = vmul.f32 %v6522, %v5725
      %v11574 = vmul.f32 %v6523, %v5725
      %v11575 = vmul.f32 %v6524, %v5725
      %v11576 = vmul.f32 %v6525, %v5725
      %v11577 = vmul.f32 %v6526, %v5725
      %v11578 = vmul.f32 %v6527, %v5725
      %v11579 = vmul.f32 %v6528, %v5725
      %v11580 = vmul.f32 %v6529, %v5725
      %v11605 = vrot.slane %v11557, 6
      %v11606 = vrot.slane %v11558, 6
      %v11607 = vsel %vm5153, %v11605, %v11606
      %v11608 = vrot.slane %v11559, 6
      %v11609 = vsel %vm5153, %v11606, %v11608
      %v11610 = vrot.slane %v11560, 6
      %v11611 = vrot.slane %v11561, 6
      %v11612 = vsel %vm5153, %v11610, %v11611
      %v11613 = vrot.slane %v11562, 6
      %v11614 = vsel %vm5153, %v11611, %v11613
      %v11615 = vrot.slane %v11563, 6
      %v11616 = vrot.slane %v11564, 6
      %v11617 = vsel %vm5153, %v11615, %v11616
      %v11618 = vrot.slane %v11565, 6
      %v11619 = vsel %vm5153, %v11616, %v11618
      %v11620 = vrot.slane %v11566, 6
      %v11621 = vrot.slane %v11567, 6
      %v11622 = vsel %vm5153, %v11620, %v11621
      %v11623 = vrot.slane %v11568, 6
      %v11624 = vsel %vm5153, %v11621, %v11623
      %v11625 = vrot.slane %v11569, 6
      %v11626 = vrot.slane %v11570, 6
      %v11627 = vsel %vm5153, %v11625, %v11626
      %v11628 = vrot.slane %v11571, 6
      %v11629 = vsel %vm5153, %v11626, %v11628
      %v11630 = vrot.slane %v11572, 6
      %v11631 = vrot.slane %v11573, 6
      %v11632 = vsel %vm5153, %v11630, %v11631
      %v11633 = vrot.slane %v11574, 6
      %v11634 = vsel %vm5153, %v11631, %v11633
      %v11635 = vrot.slane %v11575, 6
      %v11636 = vrot.slane %v11576, 6
      %v11637 = vsel %vm5153, %v11635, %v11636
      %v11638 = vrot.slane %v11577, 6
      %v11639 = vsel %vm5153, %v11636, %v11638
      %v11640 = vrot.slane %v11578, 6
      %v11641 = vrot.slane %v11579, 6
      %v11642 = vsel %vm5153, %v11640, %v11641
      %v11643 = vrot.slane %v11580, 6
      %v11644 = vsel %vm5153, %v11641, %v11643
      %v11661 = vadd.f32 %v11541, %v11607
      %v11662 = vadd.f32 %v11542, %v11609
      %v11663 = vadd.f32 %v11543, %v11612
      %v11664 = vadd.f32 %v11544, %v11614
      %v11665 = vadd.f32 %v11545, %v11617
      %v11666 = vadd.f32 %v11546, %v11619
      %v11667 = vadd.f32 %v11547, %v11622
      %v11668 = vadd.f32 %v11548, %v11624
      %v11669 = vadd.f32 %v11549, %v11627
      %v11670 = vadd.f32 %v11550, %v11629
      %v11671 = vadd.f32 %v11551, %v11632
      %v11672 = vadd.f32 %v11552, %v11634
      %v11673 = vadd.f32 %v11553, %v11637
      %v11674 = vadd.f32 %v11554, %v11639
      %v11675 = vadd.f32 %v11555, %v11642
      %v11676 = vadd.f32 %v11556, %v11644
      %v11677 = vmul.f32 %v6509, %v5849
      %v11678 = vmul.f32 %v6510, %v5849
      %v11679 = vmul.f32 %v6511, %v5849
      %v11680 = vmul.f32 %v6512, %v5849
      %v11681 = vmul.f32 %v6513, %v5849
      %v11682 = vmul.f32 %v6514, %v5849
      %v11683 = vmul.f32 %v6515, %v5849
      %v11684 = vmul.f32 %v6516, %v5849
      %v11685 = vmul.f32 %v6517, %v5849
      %v11686 = vmul.f32 %v6518, %v5849
      %v11687 = vmul.f32 %v6519, %v5849
      %v11688 = vmul.f32 %v6520, %v5849
      %v11689 = vmul.f32 %v6521, %v5849
      %v11690 = vmul.f32 %v6522, %v5849
      %v11691 = vmul.f32 %v6523, %v5849
      %v11692 = vmul.f32 %v6524, %v5849
      %v11693 = vmul.f32 %v6525, %v5849
      %v11694 = vmul.f32 %v6526, %v5849
      %v11695 = vmul.f32 %v6527, %v5849
      %v11696 = vmul.f32 %v6528, %v5849
      %v11697 = vmul.f32 %v6529, %v5849
      %v11698 = vmul.f32 %v6530, %v5849
      %v11699 = vmul.f32 %v6531, %v5849
      %v11700 = vmul.f32 %v6532, %v5849
      %v11725 = vrot.slane %v11677, 6
      %v11726 = vrot.slane %v11678, 6
      %v11727 = vsel %vm5153, %v11725, %v11726
      %v11728 = vrot.slane %v11679, 6
      %v11729 = vsel %vm5153, %v11726, %v11728
      %v11730 = vrot.slane %v11680, 6
      %v11731 = vrot.slane %v11681, 6
      %v11732 = vsel %vm5153, %v11730, %v11731
      %v11733 = vrot.slane %v11682, 6
      %v11734 = vsel %vm5153, %v11731, %v11733
      %v11735 = vrot.slane %v11683, 6
      %v11736 = vrot.slane %v11684, 6
      %v11737 = vsel %vm5153, %v11735, %v11736
      %v11738 = vrot.slane %v11685, 6
      %v11739 = vsel %vm5153, %v11736, %v11738
      %v11740 = vrot.slane %v11686, 6
      %v11741 = vrot.slane %v11687, 6
      %v11742 = vsel %vm5153, %v11740, %v11741
      %v11743 = vrot.slane %v11688, 6
      %v11744 = vsel %vm5153, %v11741, %v11743
      %v11745 = vrot.slane %v11689, 6
      %v11746 = vrot.slane %v11690, 6
      %v11747 = vsel %vm5153, %v11745, %v11746
      %v11748 = vrot.slane %v11691, 6
      %v11749 = vsel %vm5153, %v11746, %v11748
      %v11750 = vrot.slane %v11692, 6
      %v11751 = vrot.slane %v11693, 6
      %v11752 = vsel %vm5153, %v11750, %v11751
      %v11753 = vrot.slane %v11694, 6
      %v11754 = vsel %vm5153, %v11751, %v11753
      %v11755 = vrot.slane %v11695, 6
      %v11756 = vrot.slane %v11696, 6
      %v11757 = vsel %vm5153, %v11755, %v11756
      %v11758 = vrot.slane %v11697, 6
      %v11759 = vsel %vm5153, %v11756, %v11758
      %v11760 = vrot.slane %v11698, 6
      %v11761 = vrot.slane %v11699, 6
      %v11762 = vsel %vm5153, %v11760, %v11761
      %v11763 = vrot.slane %v11700, 6
      %v11764 = vsel %vm5153, %v11761, %v11763
      %v11781 = vadd.f32 %v11661, %v11727
      %v11782 = vadd.f32 %v11662, %v11729
      %v11783 = vadd.f32 %v11663, %v11732
      %v11784 = vadd.f32 %v11664, %v11734
      %v11785 = vadd.f32 %v11665, %v11737
      %v11786 = vadd.f32 %v11666, %v11739
      %v11787 = vadd.f32 %v11667, %v11742
      %v11788 = vadd.f32 %v11668, %v11744
      %v11789 = vadd.f32 %v11669, %v11747
      %v11790 = vadd.f32 %v11670, %v11749
      %v11791 = vadd.f32 %v11671, %v11752
      %v11792 = vadd.f32 %v11672, %v11754
      %v11793 = vadd.f32 %v11673, %v11757
      %v11794 = vadd.f32 %v11674, %v11759
      %v11795 = vadd.f32 %v11675, %v11762
      %v11796 = vadd.f32 %v11676, %v11764
      %v11797 = vadd.f32 %v11781, %v5974
      %v11798 = vadd.f32 %v11782, %v5974
      %v11799 = vadd.f32 %v11783, %v5974
      %v11800 = vadd.f32 %v11784, %v5974
      %v11801 = vadd.f32 %v11785, %v5974
      %v11802 = vadd.f32 %v11786, %v5974
      %v11803 = vadd.f32 %v11787, %v5974
      %v11804 = vadd.f32 %v11788, %v5974
      %v11805 = vadd.f32 %v11789, %v5974
      %v11806 = vadd.f32 %v11790, %v5974
      %v11807 = vadd.f32 %v11791, %v5974
      %v11808 = vadd.f32 %v11792, %v5974
      %v11809 = vadd.f32 %v11793, %v5974
      %v11810 = vadd.f32 %v11794, %v5974
      %v11811 = vadd.f32 %v11795, %v5974
      %v11812 = vadd.f32 %v11796, %v5974
      %v11813 = vsel %vm334, %v11797, 0.0
      %11814 = vadd.xlane.f32.xlu0 %v11813
      %v11815 = vpop.xlane.xlu0 %11814
      %v11816 = vsel %vm334, %v11798, 0.0
      %11817 = vadd.xlane.f32.xlu0 %v11816
      %v11818 = vpop.xlane.xlu0 %11817
      %v11819 = vsel %vm334, %v11799, 0.0
      %11820 = vadd.xlane.f32.xlu0 %v11819
      %v11821 = vpop.xlane.xlu0 %11820
      %v11822 = vsel %vm334, %v11800, 0.0
      %11823 = vadd.xlane.f32.xlu0 %v11822
      %v11824 = vpop.xlane.xlu0 %11823
      %v11825 = vsel %vm334, %v11801, 0.0
      %11826 = vadd.xlane.f32.xlu0 %v11825
      %v11827 = vpop.xlane.xlu0 %11826
      %v11828 = vsel %vm334, %v11802, 0.0
      %11829 = vadd.xlane.f32.xlu0 %v11828
      %v11830 = vpop.xlane.xlu0 %11829
      %v11831 = vsel %vm334, %v11803, 0.0
      %11832 = vadd.xlane.f32.xlu0 %v11831
      %v11833 = vpop.xlane.xlu0 %11832
      %v11834 = vsel %vm334, %v11804, 0.0
      %11835 = vadd.xlane.f32.xlu0 %v11834
      %v11836 = vpop.xlane.xlu0 %11835
      %v11837 = vsel %vm334, %v11805, 0.0
      %11838 = vadd.xlane.f32.xlu0 %v11837
      %v11839 = vpop.xlane.xlu0 %11838
      %v11840 = vsel %vm334, %v11806, 0.0
      %11841 = vadd.xlane.f32.xlu0 %v11840
      %v11842 = vpop.xlane.xlu0 %11841
      %v11843 = vsel %vm334, %v11807, 0.0
      %11844 = vadd.xlane.f32.xlu0 %v11843
      %v11845 = vpop.xlane.xlu0 %11844
      %v11846 = vsel %vm334, %v11808, 0.0
      %11847 = vadd.xlane.f32.xlu0 %v11846
      %v11848 = vpop.xlane.xlu0 %11847
      %v11849 = vsel %vm334, %v11809, 0.0
      %11850 = vadd.xlane.f32.xlu0 %v11849
      %v11851 = vpop.xlane.xlu0 %11850
      %v11852 = vsel %vm334, %v11810, 0.0
      %11853 = vadd.xlane.f32.xlu0 %v11852
      %v11854 = vpop.xlane.xlu0 %11853
      %v11855 = vsel %vm334, %v11811, 0.0
      %11856 = vadd.xlane.f32.xlu0 %v11855
      %v11857 = vpop.xlane.xlu0 %11856
      %v11858 = vsel %vm334, %v11812, 0.0
      %11859 = vadd.xlane.f32.xlu0 %v11858
      %v11860 = vpop.xlane.xlu0 %11859
      %v11861 = vmul.f32 %v11815, 0.25
      %v11862 = vmul.f32 %v11818, 0.25
      %v11863 = vmul.f32 %v11821, 0.25
      %v11864 = vmul.f32 %v11824, 0.25
      %v11865 = vmul.f32 %v11827, 0.25
      %v11866 = vmul.f32 %v11830, 0.25
      %v11867 = vmul.f32 %v11833, 0.25
      %v11868 = vmul.f32 %v11836, 0.25
      %v11869 = vmul.f32 %v11839, 0.25
      %v11870 = vmul.f32 %v11842, 0.25
      %v11871 = vmul.f32 %v11845, 0.25
      %v11872 = vmul.f32 %v11848, 0.25
      %v11873 = vmul.f32 %v11851, 0.25
      %v11874 = vmul.f32 %v11854, 0.25
      %v11875 = vmul.f32 %v11857, 0.25
      %v11876 = vmul.f32 %v11860, 0.25
      %v11877 = vsub.f32 %v11797, %v11861
      %v11878 = vsub.f32 %v11798, %v11862
      %v11879 = vsub.f32 %v11799, %v11863
      %v11880 = vsub.f32 %v11800, %v11864
      %v11881 = vsub.f32 %v11801, %v11865
      %v11882 = vsub.f32 %v11802, %v11866
      %v11883 = vsub.f32 %v11803, %v11867
      %v11884 = vsub.f32 %v11804, %v11868
      %v11885 = vsub.f32 %v11805, %v11869
      %v11886 = vsub.f32 %v11806, %v11870
      %v11887 = vsub.f32 %v11807, %v11871
      %v11888 = vsub.f32 %v11808, %v11872
      %v11889 = vsub.f32 %v11809, %v11873
      %v11890 = vsub.f32 %v11810, %v11874
      %v11891 = vsub.f32 %v11811, %v11875
      %v11892 = vsub.f32 %v11812, %v11876
      %v11893 = vmul.f32 %v11877, %v11877
      %v11894 = vmul.f32 %v11878, %v11878
      %v11895 = vmul.f32 %v11879, %v11879
      %v11896 = vmul.f32 %v11880, %v11880
      %v11897 = vmul.f32 %v11881, %v11881
      %v11898 = vmul.f32 %v11882, %v11882
      %v11899 = vmul.f32 %v11883, %v11883
      %v11900 = vmul.f32 %v11884, %v11884
      %v11901 = vmul.f32 %v11885, %v11885
      %v11902 = vmul.f32 %v11886, %v11886
      %v11903 = vmul.f32 %v11887, %v11887
      %v11904 = vmul.f32 %v11888, %v11888
      %v11905 = vmul.f32 %v11889, %v11889
      %v11906 = vmul.f32 %v11890, %v11890
      %v11907 = vmul.f32 %v11891, %v11891
      %v11908 = vmul.f32 %v11892, %v11892
      %v11909 = vsel %vm334, %v11893, 0.0
      %11910 = vadd.xlane.f32.xlu0 %v11909
      %v11911 = vpop.xlane.xlu0 %11910
      %v11912 = vsel %vm334, %v11894, 0.0
      %11913 = vadd.xlane.f32.xlu0 %v11912
      %v11914 = vpop.xlane.xlu0 %11913
      %v11915 = vsel %vm334, %v11895, 0.0
      %11916 = vadd.xlane.f32.xlu0 %v11915
      %v11917 = vpop.xlane.xlu0 %11916
      %v11918 = vsel %vm334, %v11896, 0.0
      %11919 = vadd.xlane.f32.xlu0 %v11918
      %v11920 = vpop.xlane.xlu0 %11919
      %v11921 = vsel %vm334, %v11897, 0.0
      %11922 = vadd.xlane.f32.xlu0 %v11921
      %v11923 = vpop.xlane.xlu0 %11922
      %v11924 = vsel %vm334, %v11898, 0.0
      %11925 = vadd.xlane.f32.xlu0 %v11924
      %v11926 = vpop.xlane.xlu0 %11925
      %v11927 = vsel %vm334, %v11899, 0.0
      %11928 = vadd.xlane.f32.xlu0 %v11927
      %v11929 = vpop.xlane.xlu0 %11928
      %v11930 = vsel %vm334, %v11900, 0.0
      %11931 = vadd.xlane.f32.xlu0 %v11930
      %v11932 = vpop.xlane.xlu0 %11931
      %v11933 = vsel %vm334, %v11901, 0.0
      %11934 = vadd.xlane.f32.xlu0 %v11933
      %v11935 = vpop.xlane.xlu0 %11934
      %v11936 = vsel %vm334, %v11902, 0.0
      %11937 = vadd.xlane.f32.xlu0 %v11936
      %v11938 = vpop.xlane.xlu0 %11937
      %v11939 = vsel %vm334, %v11903, 0.0
      %11940 = vadd.xlane.f32.xlu0 %v11939
      %v11941 = vpop.xlane.xlu0 %11940
      %v11942 = vsel %vm334, %v11904, 0.0
      %11943 = vadd.xlane.f32.xlu0 %v11942
      %v11944 = vpop.xlane.xlu0 %11943
      %v11945 = vsel %vm334, %v11905, 0.0
      %11946 = vadd.xlane.f32.xlu0 %v11945
      %v11947 = vpop.xlane.xlu0 %11946
      %v11948 = vsel %vm334, %v11906, 0.0
      %11949 = vadd.xlane.f32.xlu0 %v11948
      %v11950 = vpop.xlane.xlu0 %11949
      %v11951 = vsel %vm334, %v11907, 0.0
      %11952 = vadd.xlane.f32.xlu0 %v11951
      %v11953 = vpop.xlane.xlu0 %11952
      %v11954 = vsel %vm334, %v11908, 0.0
      %11955 = vadd.xlane.f32.xlu0 %v11954
      %v11956 = vpop.xlane.xlu0 %11955
      %v11957 = vmul.f32 %v11911, 0.25
      %v11958 = vmul.f32 %v11914, 0.25
      %v11959 = vmul.f32 %v11917, 0.25
      %v11960 = vmul.f32 %v11920, 0.25
      %v11961 = vmul.f32 %v11923, 0.25
      %v11962 = vmul.f32 %v11926, 0.25
      %v11963 = vmul.f32 %v11929, 0.25
      %v11964 = vmul.f32 %v11932, 0.25
      %v11965 = vmul.f32 %v11935, 0.25
      %v11966 = vmul.f32 %v11938, 0.25
      %v11967 = vmul.f32 %v11941, 0.25
      %v11968 = vmul.f32 %v11944, 0.25
      %v11969 = vmul.f32 %v11947, 0.25
      %v11970 = vmul.f32 %v11950, 0.25
      %v11971 = vmul.f32 %v11953, 0.25
      %v11972 = vmul.f32 %v11956, 0.25
      %v11973 = vadd.f32 %v11957, 1e-06
      %v11974 = vadd.f32 %v11958, 1e-06
      %v11975 = vadd.f32 %v11959, 1e-06
      %v11976 = vadd.f32 %v11960, 1e-06
      %v11977 = vadd.f32 %v11961, 1e-06
      %v11978 = vadd.f32 %v11962, 1e-06
      %v11979 = vadd.f32 %v11963, 1e-06
      %v11980 = vadd.f32 %v11964, 1e-06
      %v11981 = vadd.f32 %v11965, 1e-06
      %v11982 = vadd.f32 %v11966, 1e-06
      %v11983 = vadd.f32 %v11967, 1e-06
      %v11984 = vadd.f32 %v11968, 1e-06
      %v11985 = vadd.f32 %v11969, 1e-06
      %v11986 = vadd.f32 %v11970, 1e-06
      %v11987 = vadd.f32 %v11971, 1e-06
      %v11988 = vadd.f32 %v11972, 1e-06
      %v11989 = vrsqrt.pop %v11973
      %v11990 = vrsqrt.pop %v11974
      %v11991 = vrsqrt.pop %v11975
      %v11992 = vrsqrt.pop %v11976
      %v11993 = vrsqrt.pop %v11977
      %v11994 = vrsqrt.pop %v11978
      %v11995 = vrsqrt.pop %v11979
      %v11996 = vrsqrt.pop %v11980
      %v11997 = vrsqrt.pop %v11981
      %v11998 = vrsqrt.pop %v11982
      %v11999 = vrsqrt.pop %v11983
      %v12000 = vrsqrt.pop %v11984
      %v12001 = vrsqrt.pop %v11985
      %v12002 = vrsqrt.pop %v11986
      %v12003 = vrsqrt.pop %v11987
      %v12004 = vrsqrt.pop %v11988
      %v12005 = vmul.f32 %v11877, %v11989
      %v12006 = vmul.f32 %v11878, %v11990
      %v12007 = vmul.f32 %v11879, %v11991
      %v12008 = vmul.f32 %v11880, %v11992
      %v12009 = vmul.f32 %v11881, %v11993
      %v12010 = vmul.f32 %v11882, %v11994
      %v12011 = vmul.f32 %v11883, %v11995
      %v12012 = vmul.f32 %v11884, %v11996
      %v12013 = vmul.f32 %v11885, %v11997
      %v12014 = vmul.f32 %v11886, %v11998
      %v12015 = vmul.f32 %v11887, %v11999
      %v12016 = vmul.f32 %v11888, %v12000
      %v12017 = vmul.f32 %v11889, %v12001
      %v12018 = vmul.f32 %v11890, %v12002
      %v12019 = vmul.f32 %v11891, %v12003
      %v12020 = vmul.f32 %v11892, %v12004
      %v12021 = vpack.c.bf16 %v12006, %v12005
      %v12022 = vpack.c.bf16 %v12008, %v12007
      %v12023 = vpack.c.bf16 %v12010, %v12009
      %v12024 = vpack.c.bf16 %v12012, %v12011
      %v12025 = vpack.c.bf16 %v12014, %v12013
      %v12026 = vpack.c.bf16 %v12016, %v12015
      %v12027 = vpack.c.bf16 %v12018, %v12017
      %v12028 = vpack.c.bf16 %v12020, %v12019
      %v12029 = vld [vmem:[%s3] sm:$0x3]
      %v12031 = vsel %vm334, %v12021, 0
      %v12034 = vsel %vm334, %v12022, 0
      %v12037 = vsel %vm334, %v12023, 0
      %v12040 = vsel %vm334, %v12024, 0
      %v12043 = vsel %vm334, %v12025, 0
      %v12046 = vsel %vm334, %v12026, 0
      %v12049 = vsel %vm334, %v12027, 0
      %v12052 = vsel %vm334, %v12028, 0
      %v12055 = vsel %vm5153, %v12029, 0
      %12057 = vmatprep.subr.bf16.mxu0 0
      %12058 = vmatpush1.bf16.msra.mxu0 %v12055
      %12059 = vmatprep.subr.bf16.mxu0 0
      %12060 = vmatpush1.bf16.msra.mxu0 0
      %12061 = vmatprep.subr.bf16.mxu0 0
      %12062 = vmatpush1.bf16.msra.mxu0 0
      %12063 = vmatprep.subr.bf16.mxu0 0
      %12064 = vmatpush1.bf16.msra.mxu0 0
      %12065 = vmatprep.subr.bf16.mxu0 0
      %12066 = vmatpush1.bf16.msra.mxu0 0
      %12067 = vmatprep.subr.bf16.mxu0 0
      %12068 = vmatpush1.bf16.msra.mxu0 0
      %12069 = vmatprep.subr.bf16.mxu0 0
      %12070 = vmatpush1.bf16.msra.mxu0 0
      %12071 = vmatprep.subr.bf16.mxu0 0
      %12072 = vmatpush1.bf16.msra.mxu0 0
      %12073 = vmatprep.subr.bf16.mxu0 0
      %12074 = vmatpush1.bf16.msra.mxu0 0
      %12075 = vmatprep.subr.bf16.mxu0 0
      %12076 = vmatpush1.bf16.msra.mxu0 0
      %12077 = vmatprep.subr.bf16.mxu0 0
      %12078 = vmatpush1.bf16.msra.mxu0 0
      %12079 = vmatprep.subr.bf16.mxu0 0
      %12080 = vmatpush1.bf16.msra.mxu0 0
      %12081 = vmatprep.subr.bf16.mxu0 0
      %12082 = vmatpush1.bf16.msra.mxu0 0
      %12083 = vmatprep.subr.bf16.mxu0 0
      %12084 = vmatpush1.bf16.msra.mxu0 0
      %12085 = vmatprep.subr.bf16.mxu0 0
      %12086 = vmatpush1.bf16.msra.mxu0 0
      %12087 = vmatprep.subr.bf16.mxu0 0
      %12088 = vmatpush1.bf16.msra.mxu0 0
      %12089 = vmatprep.mubr.bf16.mxu0 0
      %12090 = vmatmul.mubr.bf16.gmra.mrb[0].mxu0 %v12031
      %v12091 = vpop.f32.mrb[0].mxu0
      %v12092 = vadd.f32 %v6213, %v12091
      %v12093 = vpop.f32.mrb[0].mxu0
      %v12094 = vpop.f32.mrb[0].mxu0
      %v12095 = vadd.f32 %v6213, %v12094
      %v12096 = vpop.f32.mrb[0].mxu0
      %12097 = vmatprep.mubr.bf16.mxu0 0
      %12098 = vmatmul.mubr.bf16.gmra.mrb[0].mxu0 %v12034
      %v12099 = vpop.f32.mrb[0].mxu0
      %v12100 = vadd.f32 %v6213, %v12099
      %v12101 = vpop.f32.mrb[0].mxu0
      %v12102 = vpop.f32.mrb[0].mxu0
      %v12103 = vadd.f32 %v6213, %v12102
      %v12104 = vpop.f32.mrb[0].mxu0
      %12105 = vmatprep.mubr.bf16.mxu0 0
      %12106 = vmatmul.mubr.bf16.gmra.mrb[0].mxu0 %v12037
      %v12107 = vpop.f32.mrb[0].mxu0
      %v12108 = vadd.f32 %v6213, %v12107
      %v12109 = vpop.f32.mrb[0].mxu0
      %v12110 = vpop.f32.mrb[0].mxu0
      %v12111 = vadd.f32 %v6213, %v12110
      %v12112 = vpop.f32.mrb[0].mxu0
      %12113 = vmatprep.mubr.bf16.mxu0 0
      %12114 = vmatmul.mubr.bf16.gmra.mrb[0].mxu0 %v12040
      %v12115 = vpop.f32.mrb[0].mxu0
      %v12116 = vadd.f32 %v6213, %v12115
      %v12117 = vpop.f32.mrb[0].mxu0
      %v12118 = vpop.f32.mrb[0].mxu0
      %v12119 = vadd.f32 %v6213, %v12118
      %v12120 = vpop.f32.mrb[0].mxu0
      %12121 = vmatprep.mubr.bf16.mxu0 0
      %12122 = vmatmul.mubr.bf16.gmra.mrb[0].mxu0 %v12043
      %v12123 = vpop.f32.mrb[0].mxu0
      %v12124 = vadd.f32 %v6213, %v12123
      %v12125 = vpop.f32.mrb[0].mxu0
      %v12126 = vpop.f32.mrb[0].mxu0
      %v12127 = vadd.f32 %v6213, %v12126
      %v12128 = vpop.f32.mrb[0].mxu0
      %12129 = vmatprep.mubr.bf16.mxu0 0
      %12130 = vmatmul.mubr.bf16.gmra.mrb[0].mxu0 %v12046
      %v12131 = vpop.f32.mrb[0].mxu0
      %v12132 = vadd.f32 %v6213, %v12131
      %v12133 = vpop.f32.mrb[0].mxu0
      %v12134 = vpop.f32.mrb[0].mxu0
      %v12135 = vadd.f32 %v6213, %v12134
      %v12136 = vpop.f32.mrb[0].mxu0
      %12137 = vmatprep.mubr.bf16.mxu0 0
      %12138 = vmatmul.mubr.bf16.gmra.mrb[0].mxu0 %v12049
      %v12139 = vpop.f32.mrb[0].mxu0
      %v12140 = vadd.f32 %v6213, %v12139
      %v12141 = vpop.f32.mrb[0].mxu0
      %v12142 = vpop.f32.mrb[0].mxu0
      %v12143 = vadd.f32 %v6213, %v12142
      %v12144 = vpop.f32.mrb[0].mxu0
      %12145 = vmatprep.mubr.bf16.mxu0 0
      %12146 = vmatmul.mubr.bf16.gmra.mrb[0].mxu0 %v12052
      %v12147 = vpop.f32.mrb[0].mxu0
      %v12148 = vadd.f32 %v6213, %v12147
      %v12149 = vpop.f32.mrb[0].mxu0
      %v12150 = vpop.f32.mrb[0].mxu0
      %v12151 = vadd.f32 %v6213, %v12150
      %v12152 = vpop.f32.mrb[0].mxu0
      %12153 = vdwg.mxu0
      %v12154 = vmul.f32 %v12092, 0.5
      %v12155 = vmul.f32 %v12095, 0.5
      %v12156 = vmul.f32 %v12100, 0.5
      %v12157 = vmul.f32 %v12103, 0.5
      %v12158 = vmul.f32 %v12108, 0.5
      %v12159 = vmul.f32 %v12111, 0.5
      %v12160 = vmul.f32 %v12116, 0.5
      %v12161 = vmul.f32 %v12119, 0.5
      %v12162 = vmul.f32 %v12124, 0.5
      %v12163 = vmul.f32 %v12127, 0.5
      %v12164 = vmul.f32 %v12132, 0.5
      %v12165 = vmul.f32 %v12135, 0.5
      %v12166 = vmul.f32 %v12140, 0.5
      %v12167 = vmul.f32 %v12143, 0.5
      %v12168 = vmul.f32 %v12148, 0.5
      %v12169 = vmul.f32 %v12151, 0.5
      %v12170 = vmul.f32 %v12092, 0.70710677
      %v12171 = vmul.f32 %v12095, 0.70710677
      %v12172 = vmul.f32 %v12100, 0.70710677
      %v12173 = vmul.f32 %v12103, 0.70710677
      %v12174 = vmul.f32 %v12108, 0.70710677
      %v12175 = vmul.f32 %v12111, 0.70710677
      %v12176 = vmul.f32 %v12116, 0.70710677
      %v12177 = vmul.f32 %v12119, 0.70710677
      %v12178 = vmul.f32 %v12124, 0.70710677
      %v12179 = vmul.f32 %v12127, 0.70710677
      %v12180 = vmul.f32 %v12132, 0.70710677
      %v12181 = vmul.f32 %v12135, 0.70710677
      %v12182 = vmul.f32 %v12140, 0.70710677
      %v12183 = vmul.f32 %v12143, 0.70710677
      %v12184 = vmul.f32 %v12148, 0.70710677
      %v12185 = vmul.f32 %v12151, 0.70710677
      %v12186 = verf.f32.pop %v12170
      %v12187 = verf.f32.pop %v12171
      %v12188 = verf.f32.pop %v12172
      %v12189 = verf.f32.pop %v12173
      %v12190 = verf.f32.pop %v12174
      %v12191 = verf.f32.pop %v12175
      %v12192 = verf.f32.pop %v12176
      %v12193 = verf.f32.pop %v12177
      %v12194 = verf.f32.pop %v12178
      %v12195 = verf.f32.pop %v12179
      %v12196 = verf.f32.pop %v12180
      %v12197 = verf.f32.pop %v12181
      %v12198 = verf.f32.pop %v12182
      %v12199 = verf.f32.pop %v12183
      %v12200 = verf.f32.pop %v12184
      %v12201 = verf.f32.pop %v12185
      %v12202 = vadd.f32 %v12186, 1.0
      %v12203 = vadd.f32 %v12187, 1.0
      %v12204 = vadd.f32 %v12188, 1.0
      %v12205 = vadd.f32 %v12189, 1.0
      %v12206 = vadd.f32 %v12190, 1.0
      %v12207 = vadd.f32 %v12191, 1.0
      %v12208 = vadd.f32 %v12192, 1.0
      %v12209 = vadd.f32 %v12193, 1.0
      %v12210 = vadd.f32 %v12194, 1.0
      %v12211 = vadd.f32 %v12195, 1.0
      %v12212 = vadd.f32 %v12196, 1.0
      %v12213 = vadd.f32 %v12197, 1.0
      %v12214 = vadd.f32 %v12198, 1.0
      %v12215 = vadd.f32 %v12199, 1.0
      %v12216 = vadd.f32 %v12200, 1.0
      %v12217 = vadd.f32 %v12201, 1.0
      %v12218 = vmul.f32 %v12154, %v12202
      %v12219 = vmul.f32 %v12155, %v12203
      %v12220 = vmul.f32 %v12156, %v12204
      %v12221 = vmul.f32 %v12157, %v12205
      %v12222 = vmul.f32 %v12158, %v12206
      %v12223 = vmul.f32 %v12159, %v12207
      %v12224 = vmul.f32 %v12160, %v12208
      %v12225 = vmul.f32 %v12161, %v12209
      %v12226 = vmul.f32 %v12162, %v12210
      %v12227 = vmul.f32 %v12163, %v12211
      %v12228 = vmul.f32 %v12164, %v12212
      %v12229 = vmul.f32 %v12165, %v12213
      %v12230 = vmul.f32 %v12166, %v12214
      %v12231 = vmul.f32 %v12167, %v12215
      %v12232 = vmul.f32 %v12168, %v12216
      %v12233 = vmul.f32 %v12169, %v12217
      %v12234 = vmul.f32 %v12218, %v12218
      %v12235 = vmul.f32 %v12219, %v12219
      %v12236 = vmul.f32 %v12220, %v12220
      %v12237 = vmul.f32 %v12221, %v12221
      %v12238 = vmul.f32 %v12222, %v12222
      %v12239 = vmul.f32 %v12223, %v12223
      %v12240 = vmul.f32 %v12224, %v12224
      %v12241 = vmul.f32 %v12225, %v12225
      %v12242 = vmul.f32 %v12226, %v12226
      %v12243 = vmul.f32 %v12227, %v12227
      %v12244 = vmul.f32 %v12228, %v12228
      %v12245 = vmul.f32 %v12229, %v12229
      %v12246 = vmul.f32 %v12230, %v12230
      %v12247 = vmul.f32 %v12231, %v12231
      %v12248 = vmul.f32 %v12232, %v12232
      %v12249 = vmul.f32 %v12233, %v12233
      %v12250 = vsel %vm6435, %v12234, 0.0
      %v12251 = vsel %vm6435, %v12235, 0.0
      %v12252 = vadd.f32 %v12250, %v12251
      %v12253 = vsel %vm6435, %v12236, 0.0
      %v12254 = vadd.f32 %v12252, %v12253
      %v12255 = vsel %vm6435, %v12237, 0.0
      %v12256 = vadd.f32 %v12254, %v12255
      %v12257 = vsel %vm6435, %v12238, 0.0
      %v12258 = vadd.f32 %v12256, %v12257
      %v12259 = vsel %vm6435, %v12239, 0.0
      %v12260 = vadd.f32 %v12258, %v12259
      %v12261 = vsel %vm6435, %v12240, 0.0
      %v12262 = vadd.f32 %v12260, %v12261
      %v12263 = vsel %vm6435, %v12241, 0.0
      %v12264 = vadd.f32 %v12262, %v12263
      %v12265 = vsel %vm6435, %v12242, 0.0
      %v12266 = vadd.f32 %v12264, %v12265
      %v12267 = vsel %vm6435, %v12243, 0.0
      %v12268 = vadd.f32 %v12266, %v12267
      %v12269 = vsel %vm6435, %v12244, 0.0
      %v12270 = vadd.f32 %v12268, %v12269
      %v12271 = vsel %vm6435, %v12245, 0.0
      %v12272 = vadd.f32 %v12270, %v12271
      %v12273 = vsel %vm6435, %v12246, 0.0
      %v12274 = vadd.f32 %v12272, %v12273
      %v12275 = vsel %vm6435, %v12247, 0.0
      %v12276 = vadd.f32 %v12274, %v12275
      %v12277 = vsel %vm6435, %v12248, 0.0
      %v12278 = vadd.f32 %v12276, %v12277
      %v12279 = vsel %vm6435, %v12249, 0.0
      %v12280 = vadd.f32 %v12278, %v12279
      %v12281 = vrot.slane %v12280, 4
      %v12282 = vadd.f32 %v12280, %v12281
      %v12283 = vrot.slane %v12282, 2
      %v12284 = vadd.f32 %v12282, %v12283
      %v12285 = vrot.slane %v12284, 1
      %v12286 = vadd.f32 %v12284, %v12285
      %v12287 = vadd.f32 %v6473, %v12286
      %v12288 = vpack.c.bf16 %v12219, %v12218
      %v12289 = vpack.c.bf16 %v12221, %v12220
      %v12290 = vpack.c.bf16 %v12223, %v12222
      %v12291 = vpack.c.bf16 %v12225, %v12224
      %v12292 = vpack.c.bf16 %v12227, %v12226
      %v12293 = vpack.c.bf16 %v12229, %v12228
      %v12294 = vpack.c.bf16 %v12231, %v12230
      %v12295 = vpack.c.bf16 %v12233, %v12232
      %12296 = vst.msk [vmem:[#allocation3 + $0x40] sm:$0xff] %vm6435, %v12288
      %12297 = vst.msk [vmem:[#allocation3 + $0x48] sm:$0xff] %vm6435, %v12289
      %12298 = vst.msk [vmem:[#allocation3 + $0x50] sm:$0xff] %vm6435, %v12290
      %12299 = vst.msk [vmem:[#allocation3 + $0x58] sm:$0xff] %vm6435, %v12291
      %12300 = vst.msk [vmem:[#allocation3 + $0x60] sm:$0xff] %vm6435, %v12292
      %12301 = vst.msk [vmem:[#allocation3 + $0x68] sm:$0xff] %vm6435, %v12293
      %12302 = vst.msk [vmem:[#allocation3 + $0x70] sm:$0xff] %vm6435, %v12294
      %12303 = vst.msk [vmem:[#allocation3 + $0x78] sm:$0xff] %vm6435, %v12295
      %v12304 = vrsqrt.pop %v12287
      %v12305 = vmul.f32 %v12287, %v12304
      %vm12306 = vcmp.eq.f32.partialorder %v12287, inf
      %v12307 = vsel %vm12306, %v12287, %v12305
      %vm12308 = vcmp.eq.f32.partialorder %v12287, 0.0
      %v12309 = vand.u32 %v12287, 2147483648
      %v12310 = vsel %vm12308, %v12309, %v12307
      %vm12311 = vcmask 122880
      %v12312 = vsel %vm12311, %v12310, 0.0
      %12313 = vadd.xlane.f32.xlu0 %v12312
      %v12314 = vpop.xlane.xlu0 %12313
      %v12315 = vrot.slane %v12314, 4
      %v12316 = vadd.f32 %v12314, %v12315
      %v12317 = vrot.slane %v12316, 2
      %v12318 = vadd.f32 %v12316, %v12317
      %v12319 = vrot.slane %v12318, 1
      %v12320 = vadd.f32 %v12318, %v12319
      %s12321 = vtos %v12320
      %v12322 = vrcp.pop 16.0
      %s12323 = vtos %v12322
      %s12324 = smul.f32 %s12321, %s12323
      %s12325 = sadd.f32 %s12324, 1e-06
      %v12326 = vstv %s12325
      %v12327 = vrcp.pop %v12326
      %v12328 = vmul.f32 %v12310, %v12327
      %v12329 = vld [vmem:[%s5] sm:$0x1]
      %v12330 = vmul.f32 %v12329, %v12328
      %v12331 = vadd.f32 %v12330, 1.0
      %v12332 = vld [vmem:[%s6] sm:$0x1]
      %v12333 = vld [vmem:[%s8] sm:$0x1]
      %v12334 = vld [vmem:[#allocation3] sm:$0xff]
      %v12335 = vld [vmem:[#allocation3 + $0x8] sm:$0xff]
      %v12336 = vld [vmem:[#allocation3 + $0x10] sm:$0xff]
      %v12337 = vld [vmem:[#allocation3 + $0x18] sm:$0xff]
      %v12338 = vld [vmem:[#allocation3 + $0x20] sm:$0xff]
      %v12339 = vld [vmem:[#allocation3 + $0x28] sm:$0xff]
      %v12340 = vld [vmem:[#allocation3 + $0x30] sm:$0xff]
      %v12341 = vld [vmem:[#allocation3 + $0x38] sm:$0xff]
      %v12342 = vunpack.c.l.bf16 %v12334
      %v12343 = vunpack.c.h.bf16 %v12334
      %v12344 = vunpack.c.l.bf16 %v12335
      %v12345 = vunpack.c.h.bf16 %v12335
      %v12346 = vunpack.c.l.bf16 %v12336
      %v12347 = vunpack.c.h.bf16 %v12336
      %v12348 = vunpack.c.l.bf16 %v12337
      %v12349 = vunpack.c.h.bf16 %v12337
      %v12350 = vunpack.c.l.bf16 %v12338
      %v12351 = vunpack.c.h.bf16 %v12338
      %v12352 = vunpack.c.l.bf16 %v12339
      %v12353 = vunpack.c.h.bf16 %v12339
      %v12354 = vunpack.c.l.bf16 %v12340
      %v12355 = vunpack.c.h.bf16 %v12340
      %v12356 = vunpack.c.l.bf16 %v12341
      %v12357 = vunpack.c.h.bf16 %v12341
      %v12359 = vlaneseq
      %v12360 = vshrl.u32 %v12359, 7
      %v12361 = vsub.s32 0, %v12360
      %v12362 = vrot.slane %v12331, %v12361
      %v12364 = vmul.f32 %v12342, %v12362
      %v12365 = vmul.f32 %v12343, %v12362
      %v12366 = vmul.f32 %v12344, %v12362
      %v12367 = vmul.f32 %v12345, %v12362
      %v12368 = vmul.f32 %v12346, %v12362
      %v12369 = vmul.f32 %v12347, %v12362
      %v12370 = vmul.f32 %v12348, %v12362
      %v12371 = vmul.f32 %v12349, %v12362
      %v12372 = vmul.f32 %v12350, %v12362
      %v12373 = vmul.f32 %v12351, %v12362
      %v12374 = vmul.f32 %v12352, %v12362
      %v12375 = vmul.f32 %v12353, %v12362
      %v12376 = vmul.f32 %v12354, %v12362
      %v12377 = vmul.f32 %v12355, %v12362
      %v12378 = vmul.f32 %v12356, %v12362
      %v12379 = vmul.f32 %v12357, %v12362
      %v12381 = vlaneseq
      %v12382 = vshrl.u32 %v12381, 7
      %v12383 = vsub.s32 0, %v12382
      %v12384 = vrot.slane %v12332, %v12383
      %v12386 = vadd.f32 %v12364, %v12384
      %v12387 = vadd.f32 %v12365, %v12384
      %v12388 = vadd.f32 %v12366, %v12384
      %v12389 = vadd.f32 %v12367, %v12384
      %v12390 = vadd.f32 %v12368, %v12384
      %v12391 = vadd.f32 %v12369, %v12384
      %v12392 = vadd.f32 %v12370, %v12384
      %v12393 = vadd.f32 %v12371, %v12384
      %v12394 = vadd.f32 %v12372, %v12384
      %v12395 = vadd.f32 %v12373, %v12384
      %v12396 = vadd.f32 %v12374, %v12384
      %v12397 = vadd.f32 %v12375, %v12384
      %v12398 = vadd.f32 %v12376, %v12384
      %v12399 = vadd.f32 %v12377, %v12384
      %v12400 = vadd.f32 %v12378, %v12384
      %v12401 = vadd.f32 %v12379, %v12384
      %v12402 = vpack.c.bf16 %v12387, %v12386
      %v12403 = vpack.c.bf16 %v12389, %v12388
      %v12404 = vpack.c.bf16 %v12391, %v12390
      %v12405 = vpack.c.bf16 %v12393, %v12392
      %v12406 = vpack.c.bf16 %v12395, %v12394
      %v12407 = vpack.c.bf16 %v12397, %v12396
      %v12408 = vpack.c.bf16 %v12399, %v12398
      %v12409 = vpack.c.bf16 %v12401, %v12400
      %v12410 = vld [vmem:[%s7] sm:$0xf]
      %v12411 = vld [vmem:[%s7 + $0x4] sm:$0xf]
      %v12413 = vlaneseq
      %v12414 = vshrl.u32 %v12413, 7
      %v12415 = vsub.s32 0, %v12414
      %v12416 = vrot.slane %v12333, %v12415
      %v12420 = vunpack.c.l.b16 %v12410
      %v12421 = vunpack.c.l.b16 %v12411
      %v12422 = vpack.c.b16 %v12421, %v12420
      %v12425 = vsel %vm6435, %v12402, 0
      %v12428 = vsel %vm6435, %v12403, 0
      %v12431 = vsel %vm6435, %v12404, 0
      %v12434 = vsel %vm6435, %v12405, 0
      %v12437 = vsel %vm6435, %v12406, 0
      %v12440 = vsel %vm6435, %v12407, 0
      %v12443 = vsel %vm6435, %v12408, 0
      %v12446 = vsel %vm6435, %v12409, 0
      %12448 = vmatprep.subr.bf16.mxu0 0
      %12449 = vmatpush1.bf16.msra.mxu0 %v12422
      %12450 = vmatprep.subr.bf16.mxu0 0
      %12451 = vmatpush1.bf16.msra.mxu0 0
      %12452 = vmatprep.subr.bf16.mxu0 0
      %12453 = vmatpush1.bf16.msra.mxu0 0
      %12454 = vmatprep.subr.bf16.mxu0 0
      %12455 = vmatpush1.bf16.msra.mxu0 0
      %12456 = vmatprep.subr.bf16.mxu0 0
      %12457 = vmatpush1.bf16.msra.mxu0 0
      %12458 = vmatprep.subr.bf16.mxu0 0
      %12459 = vmatpush1.bf16.msra.mxu0 0
      %12460 = vmatprep.subr.bf16.mxu0 0
      %12461 = vmatpush1.bf16.msra.mxu0 0
      %12462 = vmatprep.subr.bf16.mxu0 0
      %12463 = vmatpush1.bf16.msra.mxu0 0
      %12464 = vmatprep.subr.bf16.mxu0 0
      %12465 = vmatpush1.bf16.msra.mxu0 0
      %12466 = vmatprep.subr.bf16.mxu0 0
      %12467 = vmatpush1.bf16.msra.mxu0 0
      %12468 = vmatprep.subr.bf16.mxu0 0
      %12469 = vmatpush1.bf16.msra.mxu0 0
      %12470 = vmatprep.subr.bf16.mxu0 0
      %12471 = vmatpush1.bf16.msra.mxu0 0
      %12472 = vmatprep.subr.bf16.mxu0 0
      %12473 = vmatpush1.bf16.msra.mxu0 0
      %12474 = vmatprep.subr.bf16.mxu0 0
      %12475 = vmatpush1.bf16.msra.mxu0 0
      %12476 = vmatprep.subr.bf16.mxu0 0
      %12477 = vmatpush1.bf16.msra.mxu0 0
      %12478 = vmatprep.subr.bf16.mxu0 0
      %12479 = vmatpush1.bf16.msra.mxu0 0
      %12480 = vmatprep.mubr.bf16.mxu0 0
      %12481 = vmatmul.mubr.bf16.gmra.mrb[0].mxu0 %v12425
      %v12482 = vpop.f32.mrb[0].mxu0
      %v12483 = vadd.f32 %v12416, %v12482
      %v12484 = vpop.f32.mrb[0].mxu0
      %v12485 = vpop.f32.mrb[0].mxu0
      %v12486 = vadd.f32 %v12416, %v12485
      %v12487 = vpop.f32.mrb[0].mxu0
      %12488 = vmatprep.mubr.bf16.mxu0 0
      %12489 = vmatmul.mubr.bf16.gmra.mrb[0].mxu0 %v12428
      %v12490 = vpop.f32.mrb[0].mxu0
      %v12491 = vadd.f32 %v12416, %v12490
      %v12492 = vpop.f32.mrb[0].mxu0
      %v12493 = vpop.f32.mrb[0].mxu0
      %v12494 = vadd.f32 %v12416, %v12493
      %v12495 = vpop.f32.mrb[0].mxu0
      %12496 = vmatprep.mubr.bf16.mxu0 0
      %12497 = vmatmul.mubr.bf16.gmra.mrb[0].mxu0 %v12431
      %v12498 = vpop.f32.mrb[0].mxu0
      %v12499 = vadd.f32 %v12416, %v12498
      %v12500 = vpop.f32.mrb[0].mxu0
      %v12501 = vpop.f32.mrb[0].mxu0
      %v12502 = vadd.f32 %v12416, %v12501
      %v12503 = vpop.f32.mrb[0].mxu0
      %12504 = vmatprep.mubr.bf16.mxu0 0
      %12505 = vmatmul.mubr.bf16.gmra.mrb[0].mxu0 %v12434
      %v12506 = vpop.f32.mrb[0].mxu0
      %v12507 = vadd.f32 %v12416, %v12506
      %v12508 = vpop.f32.mrb[0].mxu0
      %v12509 = vpop.f32.mrb[0].mxu0
      %v12510 = vadd.f32 %v12416, %v12509
      %v12511 = vpop.f32.mrb[0].mxu0
      %12512 = vmatprep.mubr.bf16.mxu0 0
      %12513 = vmatmul.mubr.bf16.gmra.mrb[0].mxu0 %v12437
      %v12514 = vpop.f32.mrb[0].mxu0
      %v12515 = vadd.f32 %v12416, %v12514
      %v12516 = vpop.f32.mrb[0].mxu0
      %v12517 = vpop.f32.mrb[0].mxu0
      %v12518 = vadd.f32 %v12416, %v12517
      %v12519 = vpop.f32.mrb[0].mxu0
      %12520 = vmatprep.mubr.bf16.mxu0 0
      %12521 = vmatmul.mubr.bf16.gmra.mrb[0].mxu0 %v12440
      %v12522 = vpop.f32.mrb[0].mxu0
      %v12523 = vadd.f32 %v12416, %v12522
      %v12524 = vpop.f32.mrb[0].mxu0
      %v12525 = vpop.f32.mrb[0].mxu0
      %v12526 = vadd.f32 %v12416, %v12525
      %v12527 = vpop.f32.mrb[0].mxu0
      %12528 = vmatprep.mubr.bf16.mxu0 0
      %12529 = vmatmul.mubr.bf16.gmra.mrb[0].mxu0 %v12443
      %v12530 = vpop.f32.mrb[0].mxu0
      %v12531 = vadd.f32 %v12416, %v12530
      %v12532 = vpop.f32.mrb[0].mxu0
      %v12533 = vpop.f32.mrb[0].mxu0
      %v12534 = vadd.f32 %v12416, %v12533
      %v12535 = vpop.f32.mrb[0].mxu0
      %12536 = vmatprep.mubr.bf16.mxu0 0
      %12537 = vmatmul.mubr.bf16.gmra.mrb[0].mxu0 %v12446
      %v12538 = vpop.f32.mrb[0].mxu0
      %v12539 = vadd.f32 %v12416, %v12538
      %v12540 = vpop.f32.mrb[0].mxu0
      %v12541 = vpop.f32.mrb[0].mxu0
      %v12542 = vadd.f32 %v12416, %v12541
      %v12543 = vpop.f32.mrb[0].mxu0
      %12544 = vdwg.mxu0
      %v12545 = vld [vmem:[%s327] sm:$0xff]
      %v12546 = vld [vmem:[%s327 + $0x8] sm:$0xff]
      %v12547 = vld [vmem:[%s327 + $0x10] sm:$0xff]
      %v12548 = vld [vmem:[%s327 + $0x18] sm:$0xff]
      %v12549 = vld [vmem:[%s327 + $0x20] sm:$0xff]
      %v12550 = vld [vmem:[%s327 + $0x28] sm:$0xff]
      %v12551 = vld [vmem:[%s327 + $0x30] sm:$0xff]
      %v12552 = vld [vmem:[%s327 + $0x38] sm:$0xff]
      %v12553 = vld [vmem:[%s327 + $0x40] sm:$0xff]
      %v12554 = vld [vmem:[%s327 + $0x48] sm:$0xff]
      %v12555 = vld [vmem:[%s327 + $0x50] sm:$0xff]
      %v12556 = vld [vmem:[%s327 + $0x58] sm:$0xff]
      %v12557 = vld [vmem:[%s327 + $0x60] sm:$0xff]
      %v12558 = vld [vmem:[%s327 + $0x68] sm:$0xff]
      %v12559 = vld [vmem:[%s327 + $0x70] sm:$0xff]
      %v12560 = vld [vmem:[%s327 + $0x78] sm:$0xff]
      %v12561 = vadd.f32 %v12483, %v12545
      %v12562 = vadd.f32 %v12486, %v12546
      %v12563 = vadd.f32 %v12491, %v12547
      %v12564 = vadd.f32 %v12494, %v12548
      %v12565 = vadd.f32 %v12499, %v12549
      %v12566 = vadd.f32 %v12502, %v12550
      %v12567 = vadd.f32 %v12507, %v12551
      %v12568 = vadd.f32 %v12510, %v12552
      %v12569 = vadd.f32 %v12515, %v12553
      %v12570 = vadd.f32 %v12518, %v12554
      %v12571 = vadd.f32 %v12523, %v12555
      %v12572 = vadd.f32 %v12526, %v12556
      %v12573 = vadd.f32 %v12531, %v12557
      %v12574 = vadd.f32 %v12534, %v12558
      %v12575 = vadd.f32 %v12539, %v12559
      %v12576 = vadd.f32 %v12542, %v12560
      %12577 = vst.msk [vmem:[%s332] sm:$0xff] %vm334, %v12561
      %12578 = vst.msk [vmem:[%s332 + $0x8] sm:$0xff] %vm334, %v12562
      %12579 = vst.msk [vmem:[%s332 + $0x10] sm:$0xff] %vm334, %v12563
      %12580 = vst.msk [vmem:[%s332 + $0x18] sm:$0xff] %vm334, %v12564
      %12581 = vst.msk [vmem:[%s332 + $0x20] sm:$0xff] %vm334, %v12565
      %12582 = vst.msk [vmem:[%s332 + $0x28] sm:$0xff] %vm334, %v12566
      %12583 = vst.msk [vmem:[%s332 + $0x30] sm:$0xff] %vm334, %v12567
      %12584 = vst.msk [vmem:[%s332 + $0x38] sm:$0xff] %vm334, %v12568
      %12585 = vst.msk [vmem:[%s332 + $0x40] sm:$0xff] %vm334, %v12569
      %12586 = vst.msk [vmem:[%s332 + $0x48] sm:$0xff] %vm334, %v12570
      %12587 = vst.msk [vmem:[%s332 + $0x50] sm:$0xff] %vm334, %v12571
      %12588 = vst.msk [vmem:[%s332 + $0x58] sm:$0xff] %vm334, %v12572
      %12589 = vst.msk [vmem:[%s332 + $0x60] sm:$0xff] %vm334, %v12573
      %12590 = vst.msk [vmem:[%s332 + $0x68] sm:$0xff] %vm334, %v12574
      %12591 = vst.msk [vmem:[%s332 + $0x70] sm:$0xff] %vm334, %v12575
      %12592 = vst.msk [vmem:[%s332 + $0x78] sm:$0xff] %vm334, %v12576
      %v12593 = vld [vmem:[#allocation3 + $0x40] sm:$0xff]
      %v12594 = vld [vmem:[#allocation3 + $0x48] sm:$0xff]
      %v12595 = vld [vmem:[#allocation3 + $0x50] sm:$0xff]
      %v12596 = vld [vmem:[#allocation3 + $0x58] sm:$0xff]
      %v12597 = vld [vmem:[#allocation3 + $0x60] sm:$0xff]
      %v12598 = vld [vmem:[#allocation3 + $0x68] sm:$0xff]
      %v12599 = vld [vmem:[#allocation3 + $0x70] sm:$0xff]
      %v12600 = vld [vmem:[#allocation3 + $0x78] sm:$0xff]
      %v12601 = vunpack.c.l.bf16 %v12593
      %v12602 = vunpack.c.h.bf16 %v12593
      %v12603 = vunpack.c.l.bf16 %v12594
      %v12604 = vunpack.c.h.bf16 %v12594
      %v12605 = vunpack.c.l.bf16 %v12595
      %v12606 = vunpack.c.h.bf16 %v12595
      %v12607 = vunpack.c.l.bf16 %v12596
      %v12608 = vunpack.c.h.bf16 %v12596
      %v12609 = vunpack.c.l.bf16 %v12597
      %v12610 = vunpack.c.h.bf16 %v12597
      %v12611 = vunpack.c.l.bf16 %v12598
      %v12612 = vunpack.c.h.bf16 %v12598
      %v12613 = vunpack.c.l.bf16 %v12599
      %v12614 = vunpack.c.h.bf16 %v12599
      %v12615 = vunpack.c.l.bf16 %v12600
      %v12616 = vunpack.c.h.bf16 %v12600
      %v12617 = vmul.f32 %v12601, %v12362
      %v12618 = vmul.f32 %v12602, %v12362
      %v12619 = vmul.f32 %v12603, %v12362
      %v12620 = vmul.f32 %v12604, %v12362
      %v12621 = vmul.f32 %v12605, %v12362
      %v12622 = vmul.f32 %v12606, %v12362
      %v12623 = vmul.f32 %v12607, %v12362
      %v12624 = vmul.f32 %v12608, %v12362
      %v12625 = vmul.f32 %v12609, %v12362
      %v12626 = vmul.f32 %v12610, %v12362
      %v12627 = vmul.f32 %v12611, %v12362
      %v12628 = vmul.f32 %v12612, %v12362
      %v12629 = vmul.f32 %v12613, %v12362
      %v12630 = vmul.f32 %v12614, %v12362
      %v12631 = vmul.f32 %v12615, %v12362
      %v12632 = vmul.f32 %v12616, %v12362
      %v12633 = vadd.f32 %v12617, %v12384
      %v12634 = vadd.f32 %v12618, %v12384
      %v12635 = vadd.f32 %v12619, %v12384
      %v12636 = vadd.f32 %v12620, %v12384
      %v12637 = vadd.f32 %v12621, %v12384
      %v12638 = vadd.f32 %v12622, %v12384
      %v12639 = vadd.f32 %v12623, %v12384
      %v12640 = vadd.f32 %v12624, %v12384
      %v12641 = vadd.f32 %v12625, %v12384
      %v12642 = vadd.f32 %v12626, %v12384
      %v12643 = vadd.f32 %v12627, %v12384
      %v12644 = vadd.f32 %v12628, %v12384
      %v12645 = vadd.f32 %v12629, %v12384
      %v12646 = vadd.f32 %v12630, %v12384
      %v12647 = vadd.f32 %v12631, %v12384
      %v12648 = vadd.f32 %v12632, %v12384
      %v12649 = vpack.c.bf16 %v12634, %v12633
      %v12650 = vpack.c.bf16 %v12636, %v12635
      %v12651 = vpack.c.bf16 %v12638, %v12637
      %v12652 = vpack.c.bf16 %v12640, %v12639
      %v12653 = vpack.c.bf16 %v12642, %v12641
      %v12654 = vpack.c.bf16 %v12644, %v12643
      %v12655 = vpack.c.bf16 %v12646, %v12645
      %v12656 = vpack.c.bf16 %v12648, %v12647
      %v12657 = vld [vmem:[%s7] sm:$0xf]
      %v12658 = vld [vmem:[%s7 + $0x4] sm:$0xf]
      %v12661 = vunpack.c.l.b16 %v12657
      %v12662 = vunpack.c.l.b16 %v12658
      %v12663 = vpack.c.b16 %v12662, %v12661
      %v12666 = vsel %vm6435, %v12649, 0
      %v12669 = vsel %vm6435, %v12650, 0
      %v12672 = vsel %vm6435, %v12651, 0
      %v12675 = vsel %vm6435, %v12652, 0
      %v12678 = vsel %vm6435, %v12653, 0
      %v12681 = vsel %vm6435, %v12654, 0
      %v12684 = vsel %vm6435, %v12655, 0
      %v12687 = vsel %vm6435, %v12656, 0
      %12689 = vmatprep.subr.bf16.mxu0 0
      %12690 = vmatpush1.bf16.msra.mxu0 %v12663
      %12691 = vmatprep.subr.bf16.mxu0 0
      %12692 = vmatpush1.bf16.msra.mxu0 0
      %12693 = vmatprep.subr.bf16.mxu0 0
      %12694 = vmatpush1.bf16.msra.mxu0 0
      %12695 = vmatprep.subr.bf16.mxu0 0
      %12696 = vmatpush1.bf16.msra.mxu0 0
      %12697 = vmatprep.subr.bf16.mxu0 0
      %12698 = vmatpush1.bf16.msra.mxu0 0
      %12699 = vmatprep.subr.bf16.mxu0 0
      %12700 = vmatpush1.bf16.msra.mxu0 0
      %12701 = vmatprep.subr.bf16.mxu0 0
      %12702 = vmatpush1.bf16.msra.mxu0 0
      %12703 = vmatprep.subr.bf16.mxu0 0
      %12704 = vmatpush1.bf16.msra.mxu0 0
      %12705 = vmatprep.subr.bf16.mxu0 0
      %12706 = vmatpush1.bf16.msra.mxu0 0
      %12707 = vmatprep.subr.bf16.mxu0 0
      %12708 = vmatpush1.bf16.msra.mxu0 0
      %12709 = vmatprep.subr.bf16.mxu0 0
      %12710 = vmatpush1.bf16.msra.mxu0 0
      %12711 = vmatprep.subr.bf16.mxu0 0
      %12712 = vmatpush1.bf16.msra.mxu0 0
      %12713 = vmatprep.subr.bf16.mxu0 0
      %12714 = vmatpush1.bf16.msra.mxu0 0
      %12715 = vmatprep.subr.bf16.mxu0 0
      %12716 = vmatpush1.bf16.msra.mxu0 0
      %12717 = vmatprep.subr.bf16.mxu0 0
      %12718 = vmatpush1.bf16.msra.mxu0 0
      %12719 = vmatprep.subr.bf16.mxu0 0
      %12720 = vmatpush1.bf16.msra.mxu0 0
      %12721 = vmatprep.mubr.bf16.mxu0 0
      %12722 = vmatmul.mubr.bf16.gmra.mrb[0].mxu0 %v12666
      %v12723 = vpop.f32.mrb[0].mxu0
      %v12724 = vadd.f32 %v12416, %v12723
      %v12725 = vpop.f32.mrb[0].mxu0
      %v12726 = vpop.f32.mrb[0].mxu0
      %v12727 = vadd.f32 %v12416, %v12726
      %v12728 = vpop.f32.mrb[0].mxu0
      %12729 = vmatprep.mubr.bf16.mxu0 0
      %12730 = vmatmul.mubr.bf16.gmra.mrb[0].mxu0 %v12669
      %v12731 = vpop.f32.mrb[0].mxu0
      %v12732 = vadd.f32 %v12416, %v12731
      %v12733 = vpop.f32.mrb[0].mxu0
      %v12734 = vpop.f32.mrb[0].mxu0
      %v12735 = vadd.f32 %v12416, %v12734
      %v12736 = vpop.f32.mrb[0].mxu0
      %12737 = vmatprep.mubr.bf16.mxu0 0
      %12738 = vmatmul.mubr.bf16.gmra.mrb[0].mxu0 %v12672
      %v12739 = vpop.f32.mrb[0].mxu0
      %v12740 = vadd.f32 %v12416, %v12739
      %v12741 = vpop.f32.mrb[0].mxu0
      %v12742 = vpop.f32.mrb[0].mxu0
      %v12743 = vadd.f32 %v12416, %v12742
      %v12744 = vpop.f32.mrb[0].mxu0
      %12745 = vmatprep.mubr.bf16.mxu0 0
      %12746 = vmatmul.mubr.bf16.gmra.mrb[0].mxu0 %v12675
      %v12747 = vpop.f32.mrb[0].mxu0
      %v12748 = vadd.f32 %v12416, %v12747
      %v12749 = vpop.f32.mrb[0].mxu0
      %v12750 = vpop.f32.mrb[0].mxu0
      %v12751 = vadd.f32 %v12416, %v12750
      %v12752 = vpop.f32.mrb[0].mxu0
      %12753 = vmatprep.mubr.bf16.mxu0 0
      %12754 = vmatmul.mubr.bf16.gmra.mrb[0].mxu0 %v12678
      %v12755 = vpop.f32.mrb[0].mxu0
      %v12756 = vadd.f32 %v12416, %v12755
      %v12757 = vpop.f32.mrb[0].mxu0
      %v12758 = vpop.f32.mrb[0].mxu0
      %v12759 = vadd.f32 %v12416, %v12758
      %v12760 = vpop.f32.mrb[0].mxu0
      %12761 = vmatprep.mubr.bf16.mxu0 0
      %12762 = vmatmul.mubr.bf16.gmra.mrb[0].mxu0 %v12681
      %v12763 = vpop.f32.mrb[0].mxu0
      %v12764 = vadd.f32 %v12416, %v12763
      %v12765 = vpop.f32.mrb[0].mxu0
      %v12766 = vpop.f32.mrb[0].mxu0
      %v12767 = vadd.f32 %v12416, %v12766
      %v12768 = vpop.f32.mrb[0].mxu0
      %12769 = vmatprep.mubr.bf16.mxu0 0
      %12770 = vmatmul.mubr.bf16.gmra.mrb[0].mxu0 %v12684
      %v12771 = vpop.f32.mrb[0].mxu0
      %v12772 = vadd.f32 %v12416, %v12771
      %v12773 = vpop.f32.mrb[0].mxu0
      %v12774 = vpop.f32.mrb[0].mxu0
      %v12775 = vadd.f32 %v12416, %v12774
      %v12776 = vpop.f32.mrb[0].mxu0
      %12777 = vmatprep.mubr.bf16.mxu0 0
      %12778 = vmatmul.mubr.bf16.gmra.mrb[0].mxu0 %v12687
      %v12779 = vpop.f32.mrb[0].mxu0
      %v12780 = vadd.f32 %v12416, %v12779
      %v12781 = vpop.f32.mrb[0].mxu0
      %v12782 = vpop.f32.mrb[0].mxu0
      %v12783 = vadd.f32 %v12416, %v12782
      %v12784 = vpop.f32.mrb[0].mxu0
      %12785 = vdwg.mxu0
      %s12786 = scalar_lea.vmem %s327, 128
      %v12787 = vld [vmem:[%s12786] sm:$0xff]
      %v12788 = vld [vmem:[%s12786 + $0x8] sm:$0xff]
      %v12789 = vld [vmem:[%s12786 + $0x10] sm:$0xff]
      %v12790 = vld [vmem:[%s12786 + $0x18] sm:$0xff]
      %v12791 = vld [vmem:[%s12786 + $0x20] sm:$0xff]
      %v12792 = vld [vmem:[%s12786 + $0x28] sm:$0xff]
      %v12793 = vld [vmem:[%s12786 + $0x30] sm:$0xff]
      %v12794 = vld [vmem:[%s12786 + $0x38] sm:$0xff]
      %v12795 = vld [vmem:[%s12786 + $0x40] sm:$0xff]
      %v12796 = vld [vmem:[%s12786 + $0x48] sm:$0xff]
      %v12797 = vld [vmem:[%s12786 + $0x50] sm:$0xff]
      %v12798 = vld [vmem:[%s12786 + $0x58] sm:$0xff]
      %v12799 = vld [vmem:[%s12786 + $0x60] sm:$0xff]
      %v12800 = vld [vmem:[%s12786 + $0x68] sm:$0xff]
      %v12801 = vld [vmem:[%s12786 + $0x70] sm:$0xff]
      %v12802 = vld [vmem:[%s12786 + $0x78] sm:$0xff]
      %v12803 = vadd.f32 %v12724, %v12787
      %v12804 = vadd.f32 %v12727, %v12788
      %v12805 = vadd.f32 %v12732, %v12789
      %v12806 = vadd.f32 %v12735, %v12790
      %v12807 = vadd.f32 %v12740, %v12791
      %v12808 = vadd.f32 %v12743, %v12792
      %v12809 = vadd.f32 %v12748, %v12793
      %v12810 = vadd.f32 %v12751, %v12794
      %v12811 = vadd.f32 %v12756, %v12795
      %v12812 = vadd.f32 %v12759, %v12796
      %v12813 = vadd.f32 %v12764, %v12797
      %v12814 = vadd.f32 %v12767, %v12798
      %v12815 = vadd.f32 %v12772, %v12799
      %v12816 = vadd.f32 %v12775, %v12800
      %v12817 = vadd.f32 %v12780, %v12801
      %v12818 = vadd.f32 %v12783, %v12802
      %s12819 = scalar_lea.vmem %s332, 128
      %12820 = vst.msk [vmem:[%s12819] sm:$0xff] %vm334, %v12803
      %12821 = vst.msk [vmem:[%s12819 + $0x8] sm:$0xff] %vm334, %v12804
      %12822 = vst.msk [vmem:[%s12819 + $0x10] sm:$0xff] %vm334, %v12805
      %12823 = vst.msk [vmem:[%s12819 + $0x18] sm:$0xff] %vm334, %v12806
      %12824 = vst.msk [vmem:[%s12819 + $0x20] sm:$0xff] %vm334, %v12807
      %12825 = vst.msk [vmem:[%s12819 + $0x28] sm:$0xff] %vm334, %v12808
      %12826 = vst.msk [vmem:[%s12819 + $0x30] sm:$0xff] %vm334, %v12809
      %12827 = vst.msk [vmem:[%s12819 + $0x38] sm:$0xff] %vm334, %v12810
      %12828 = vst.msk [vmem:[%s12819 + $0x40] sm:$0xff] %vm334, %v12811
      %12829 = vst.msk [vmem:[%s12819 + $0x48] sm:$0xff] %vm334, %v12812
      %12830 = vst.msk [vmem:[%s12819 + $0x50] sm:$0xff] %vm334, %v12813
      %12831 = vst.msk [vmem:[%s12819 + $0x58] sm:$0xff] %vm334, %v12814
      %12832 = vst.msk [vmem:[%s12819 + $0x60] sm:$0xff] %vm334, %v12815
      %12833 = vst.msk [vmem:[%s12819 + $0x68] sm:$0xff] %vm334, %v12816
      %12834 = vst.msk [vmem:[%s12819 + $0x70] sm:$0xff] %vm334, %v12817
      %12835 = vst.msk [vmem:[%s12819 + $0x78] sm:$0xff] %vm334, %v12818
      %p12836 = scmp.lt.s32.totalorder %s20, 1
      %s12837 = scalar_select %p12836, %s20, 1
      %s12838 = smul.addr %s12837, 32
      %s12839 = smul.addr %s12838, 8
      %s12840 = scalar_lea.vmem %s9, %s12839
      // Predicated region
      $region57: #{tpu_custom_call.1} parent=55 // pred_check
        %p12841 = pneg %p232
      $region58: #{tpu_custom_call.1} parent=55 // pred_check_branch
        %12843 = sbr.rel (%p12841) target = $region60
      $region59: #{tpu_custom_call.1} parent=55 // pred_region
        _
      $region60: #{tpu_custom_call.1} parent=55 // pred_fallthru
        _
    $region56: #{tpu_custom_call.1} parent=5 // pred_fallthru
      _
    %p12844 = scmp.le.s32.totalorder 2, %s15
    // Predicated region
    $region61: #{tpu_custom_call.1} parent=5 // pred_check
      %p12845 = pneg %p12844
    $region62: #{tpu_custom_call.1} parent=5 // pred_check_branch
      %12847 = sbr.rel (%p12845) target = $region64
    $region63: #{tpu_custom_call.1} parent=5 // pred_region
      %s12848 = ssub.s32 %s15, 2
      // Predicated region
      $region65: #{tpu_custom_call.1} parent=63 // pred_check
        %p12849 = pneg %p238
      $region66: #{tpu_custom_call.1} parent=63 // pred_check_branch
        %12851 = sbr.rel (%p12849) target = $region68
      $region67: #{tpu_custom_call.1} parent=63 // pred_region
        %p12852 = scmp.lt.s32.totalorder %s21, 1
        %s12853 = scalar_select %p12852, %s21, 1
        %s12854 = smul.addr %s12853, 32
        %s12855 = smul.addr %s12854, 8
        %s12856 = scalar_lea.vmem %s9, %s12855
      $region68: #{tpu_custom_call.1} parent=63 // pred_fallthru
        _
    $region64: #{tpu_custom_call.1} parent=5 // pred_fallthru
      _
  $region6: #{tpu_custom_call.1} parent=0 // loop_footer
    %s19 = sadd.s32 1, %s15
  $region7: #{tpu_custom_call.1} parent=0 // loop_footer_branch
    %14 = sbr.rel target = $region3
  $region8: #{tpu_custom_call.1} parent=0 // loop_exit
    _

</llo_original>
